<compile_context>
chip_gen: v6e
topology: v6e:2x2x1
jax: 0.10.0
libtpu: 0.0.40
codegen_flags: <defaults>
</compile_context>

<pallas_src>
import jax
import jax.numpy as jnp
from jax.experimental import pallas as pl
from jax.experimental.pallas import tpu as pltpu

H = W = 28
RELU_LEVELS = float(2 ** 2 - 1)          # QuantizedReLU(bit=2)
N_CLASSES = 10
CONV_SPECS = ((3, 1), (3, 3), (1, 3))    # (cout, cin) for the three 3x3 convs


# ------------------------------ fused kernel --------------------------------

def _hoge_fused_kernel(x_ref,
                       w1_ref, b1_ref, w2_ref, b2_ref, w3_ref, b3_ref,
                       wl_ref, bl_ref, out_ref):
    n_batch = x_ref.shape[0]
    zrow = jnp.zeros((1, W), jnp.float32)
    zcol = jnp.zeros((H + 2, 1), jnp.float32)

    def conv3x3(act, w_ref, b_ref, cin, cout):
        """act[n][ci]: (28, 28) f32 value (resident).  Returns new_act[n][co]."""
        new_act = []
        for n in range(n_batch):
            accs = [jnp.zeros((H, W), jnp.float32) + b_ref[co] for co in range(cout)]
            for ci in range(cin):
                # zero-pad (pad=1) the resident plane with two cheap concats
                p = jnp.concatenate([zrow, act[n][ci], zrow], axis=0)   # (30, 28)
                p = jnp.concatenate([zcol, p, zcol], axis=1)            # (30, 30)
                for kh in range(3):
                    for kw in range(3):
                        win = p[kh:kh + H, kw:kw + W]                   # (28, 28)
                        for co in range(cout):
                            wv = w_ref[co * (cin * 9) + ci * 9 + kh * 3 + kw]
                            accs[co] = accs[co] + wv * win
            new_act.append(accs)
        return new_act

    def relu_quant(act):
        """QuantizedReLU(bit=2, dynamic_range=True), whole-tensor dynamic range."""
        rel = [[jnp.maximum(a, 0.0) for a in row] for row in act]
        m = jnp.float32(0.0)
        for row in rel:
            for a in row:
                m = jnp.maximum(m, jnp.max(a))
        scale = jnp.where(m > 0.0, m / RELU_LEVELS, jnp.float32(1.0))
        inv = 1.0 / scale                       # one scalar divide total
        return [[jnp.round(a * inv) * scale for a in row] for row in rel]

    # ---- conv -> (identity Quantizer) -> relu-quant, three times, all resident
    act = [[x_ref[n, 0, :, :]] for n in range(n_batch)]
    act = relu_quant(conv3x3(act, w1_ref, b1_ref, 1, 3))
    act = relu_quant(conv3x3(act, w2_ref, b2_ref, 3, 3))
    act = relu_quant(conv3x3(act, w3_ref, b3_ref, 3, 1))

    # ---- flatten + QuantizedLinear(784, 10) ---------------------------------
    # Weights arrive pre-quantized and pre-reshaped to (10, 28, 28), so the
    # flatten is implicit:  out[n, o] = sum_{r,c} act[n][r, c] * wl[o, r, c] + b[o].
    bias = bl_ref[...]                                             # (1, 10)
    lane = jax.lax.broadcasted_iota(jnp.int32, (1, N_CLASSES), 1)  # 0..9 on lanes
    rows = []
    for n in range(n_batch):
        a_n = act[n][0]                                            # (28, 28)
        row = bias
        for o in range(N_CLASSES):
            s = jnp.sum(a_n * wl_ref[o])                           # scalar dot
            row = row + jnp.where(lane == o, s, jnp.float32(0.0))
        rows.append(row)
    out_ref[...] = jnp.concatenate(rows, axis=0).astype(out_ref.dtype)


# ------------------------------ host-side glue ------------------------------

def fake_quant_sym(w, bit):
    """Symmetric uniform weight fake-quantization (forward of the STE quantizer)."""
    n = float(2 ** (bit - 1) - 1)
    m = jnp.max(jnp.abs(w))
    scale = jnp.where(m > 0.0, m / n, 1.0)
    return jnp.round(w / scale) * scale


def init_params(key):
    params = {"convs": []}
    for cout, cin in CONV_SPECS:
        key, kw, kb = jax.random.split(key, 3)
        bound = 1.0 / jnp.sqrt(cin * 9.0)
        w = jax.random.uniform(kw, (cout, cin, 3, 3), jnp.float32, -bound, bound)
        b = jax.random.uniform(kb, (cout,), jnp.float32, -bound, bound)
        params["convs"].append((w, b))
    key, kw, kb = jax.random.split(key, 3)
    bound = 1.0 / jnp.sqrt(float(H * W))
    wl = jax.random.uniform(kw, (N_CLASSES, H * W), jnp.float32, -bound, bound)
    bl = jax.random.uniform(kb, (N_CLASSES,), jnp.float32, -bound, bound)
    params["linear"] = (wl, bl)
    return params


def prepare_params(params):
    """One-time weight fake-quant + kernel-friendly layouts (outside the hot path)."""
    prep = {"convs": []}
    for (w, b) in params["convs"]:
        wq = fake_quant_sym(w, 2).reshape(-1)                 # flat OIHW -> SMEM scalars
        prep["convs"].append((wq, b))
    wl, bl = params["linear"]
    wlq = fake_quant_sym(wl, 8).reshape(N_CLASSES, H, W)      # (10, 28, 28)
    prep["linear"] = (wlq, bl.reshape(1, N_CLASSES))
    return prep


def hoge_forward(prep, x):
    """x: (N, 1, 28, 28) f32 -> (N, 10) f32, in a single fused pallas_call."""
    n_batch = x.shape[0]
    (w1, b1), (w2, b2), (w3, b3) = prep["convs"]
    wl, bl = prep["linear"]
    smem = pl.BlockSpec(memory_space=pltpu.MemorySpace.SMEM)
    vmem = pl.BlockSpec(memory_space=pltpu.MemorySpace.VMEM)
    return pl.pallas_call(
        _hoge_fused_kernel,
        out_shape=jax.ShapeDtypeStruct((n_batch, N_CLASSES), jnp.float32),
        in_specs=[vmem,                    # x            (N, 1, 28, 28)
                  smem, smem,              # conv1 w flat (27,), b (3,)
                  smem, smem,              # conv2 w flat (81,), b (3,)
                  smem, smem,              # conv3 w flat (27,), b (1,)
                  vmem, vmem],             # linear w (10, 28, 28), b (1, 10)
        out_specs=vmem,
    )(x, w1, b1, w2, b2, w3, b3, wl, bl)


if __name__ == "__main__":
    key = jax.random.PRNGKey(0)
    k_in, k_par = jax.random.split(key)
    # 28x28 spatial is required by the architecture (final Linear is 28*28 -> 10).
    x = jax.random.normal(k_in, (2, 1, 28, 28), dtype=jnp.float32)
    params = init_params(k_par)
    prep = prepare_params(params)          # one-time weight quant + layout prep

    out = hoge_forward(prep, x)
    out = jax.block_until_ready(out)
    assert out.shape == (2, 10) and out.dtype == jnp.float32
    print("KERNEL_OK")
</pallas_src>

<mosaic_0001>
module attributes {stable_mosaic.version = 11 : i64} {
  func.func @_hoge_fused_kernel(%arg0: memref<2x1x28x28xf32, #tpu.memory_space<vmem>>, %arg1: memref<27xf32, #tpu.memory_space<smem>>, %arg2: memref<3xf32, #tpu.memory_space<smem>>, %arg3: memref<81xf32, #tpu.memory_space<smem>>, %arg4: memref<3xf32, #tpu.memory_space<smem>>, %arg5: memref<27xf32, #tpu.memory_space<smem>>, %arg6: memref<1xf32, #tpu.memory_space<smem>>, %arg7: memref<10x28x28xf32, #tpu.memory_space<vmem>>, %arg8: memref<1x10xf32, #tpu.memory_space<vmem>>, %arg9: memref<2x10xf32, #tpu.memory_space<vmem>>) attributes {dimension_semantics = [], scalar_prefetch = 0 : i64, scratch_operands = 0 : i64, tpu.core_type = #tpu.core_type<tc>} {
    %cst = arith.constant 0.000000e+00 : f32
    %0 = vector.broadcast %cst : f32 to vector<1x28xf32>
    %cst_0 = arith.constant 0.000000e+00 : f32
    %1 = vector.broadcast %cst_0 : f32 to vector<30x1xf32>
    %c0 = arith.constant 0 : index
    %c0_1 = arith.constant 0 : index
    %c0_2 = arith.constant 0 : index
    %c0_3 = arith.constant 0 : index
    %2 = vector.load %arg0[%c0, %c0_1, %c0_2, %c0_3] : memref<2x1x28x28xf32, #tpu.memory_space<vmem>>, vector<1x1x28x28xf32>
    %3 = vector.shape_cast %2 : vector<1x1x28x28xf32> to vector<28x28xf32>
    %c1 = arith.constant 1 : index
    %c0_4 = arith.constant 0 : index
    %c0_5 = arith.constant 0 : index
    %c0_6 = arith.constant 0 : index
    %4 = vector.load %arg0[%c1, %c0_4, %c0_5, %c0_6] : memref<2x1x28x28xf32, #tpu.memory_space<vmem>>, vector<1x1x28x28xf32>
    %5 = vector.shape_cast %4 : vector<1x1x28x28xf32> to vector<28x28xf32>
    %cst_7 = arith.constant 0.000000e+00 : f32
    %6 = vector.broadcast %cst_7 : f32 to vector<28x28xf32>
    %c0_8 = arith.constant 0 : index
    %7 = memref.load %arg2[%c0_8] : memref<3xf32, #tpu.memory_space<smem>>
    %8 = vector.broadcast %7 : f32 to vector<28x28xf32>
    %9 = arith.addf %6, %8 : vector<28x28xf32>
    %cst_9 = arith.constant 0.000000e+00 : f32
    %10 = vector.broadcast %cst_9 : f32 to vector<28x28xf32>
    %c1_10 = arith.constant 1 : index
    %11 = memref.load %arg2[%c1_10] : memref<3xf32, #tpu.memory_space<smem>>
    %12 = vector.broadcast %11 : f32 to vector<28x28xf32>
    %13 = arith.addf %10, %12 : vector<28x28xf32>
    %cst_11 = arith.constant 0.000000e+00 : f32
    %14 = vector.broadcast %cst_11 : f32 to vector<28x28xf32>
    %c2 = arith.constant 2 : index
    %15 = memref.load %arg2[%c2] : memref<3xf32, #tpu.memory_space<smem>>
    %16 = vector.broadcast %15 : f32 to vector<28x28xf32>
    %17 = arith.addf %14, %16 : vector<28x28xf32>
    %18 = tpu.concatenate %0, %3, %0 in 0 : vector<1x28xf32>, vector<28x28xf32>, vector<1x28xf32> -> vector<30x28xf32>
    %19 = tpu.concatenate %1, %18, %1 in 1 : vector<30x1xf32>, vector<30x28xf32>, vector<30x1xf32> -> vector<30x30xf32>
    %20 = vector.extract_strided_slice %19 {offsets = [0, 0], sizes = [28, 28], strides = [1, 1]} : vector<30x30xf32> to vector<28x28xf32>
    %c0_12 = arith.constant 0 : index
    %21 = memref.load %arg1[%c0_12] : memref<27xf32, #tpu.memory_space<smem>>
    %22 = vector.broadcast %21 : f32 to vector<28x28xf32>
    %23 = arith.mulf %22, %20 : vector<28x28xf32>
    %24 = arith.addf %9, %23 : vector<28x28xf32>
    %c9 = arith.constant 9 : index
    %25 = memref.load %arg1[%c9] : memref<27xf32, #tpu.memory_space<smem>>
    %26 = vector.broadcast %25 : f32 to vector<28x28xf32>
    %27 = arith.mulf %26, %20 : vector<28x28xf32>
    %28 = arith.addf %13, %27 : vector<28x28xf32>
    %c18 = arith.constant 18 : index
    %29 = memref.load %arg1[%c18] : memref<27xf32, #tpu.memory_space<smem>>
    %30 = vector.broadcast %29 : f32 to vector<28x28xf32>
    %31 = arith.mulf %30, %20 : vector<28x28xf32>
    %32 = arith.addf %17, %31 : vector<28x28xf32>
    %33 = vector.extract_strided_slice %19 {offsets = [0, 1], sizes = [28, 28], strides = [1, 1]} : vector<30x30xf32> to vector<28x28xf32>
    %c1_13 = arith.constant 1 : index
    %34 = memref.load %arg1[%c1_13] : memref<27xf32, #tpu.memory_space<smem>>
    %35 = vector.broadcast %34 : f32 to vector<28x28xf32>
    %36 = arith.mulf %35, %33 : vector<28x28xf32>
    %37 = arith.addf %24, %36 : vector<28x28xf32>
    %c10 = arith.constant 10 : index
    %38 = memref.load %arg1[%c10] : memref<27xf32, #tpu.memory_space<smem>>
    %39 = vector.broadcast %38 : f32 to vector<28x28xf32>
    %40 = arith.mulf %39, %33 : vector<28x28xf32>
    %41 = arith.addf %28, %40 : vector<28x28xf32>
    %c19 = arith.constant 19 : index
    %42 = memref.load %arg1[%c19] : memref<27xf32, #tpu.memory_space<smem>>
    %43 = vector.broadcast %42 : f32 to vector<28x28xf32>
    %44 = arith.mulf %43, %33 : vector<28x28xf32>
    %45 = arith.addf %32, %44 : vector<28x28xf32>
    %46 = vector.extract_strided_slice %19 {offsets = [0, 2], sizes = [28, 28], strides = [1, 1]} : vector<30x30xf32> to vector<28x28xf32>
    %c2_14 = arith.constant 2 : index
    %47 = memref.load %arg1[%c2_14] : memref<27xf32, #tpu.memory_space<smem>>
    %48 = vector.broadcast %47 : f32 to vector<28x28xf32>
    %49 = arith.mulf %48, %46 : vector<28x28xf32>
    %50 = arith.addf %37, %49 : vector<28x28xf32>
    %c11 = arith.constant 11 : index
    %51 = memref.load %arg1[%c11] : memref<27xf32, #tpu.memory_space<smem>>
    %52 = vector.broadcast %51 : f32 to vector<28x28xf32>
    %53 = arith.mulf %52, %46 : vector<28x28xf32>
    %54 = arith.addf %41, %53 : vector<28x28xf32>
    %c20 = arith.constant 20 : index
    %55 = memref.load %arg1[%c20] : memref<27xf32, #tpu.memory_space<smem>>
    %56 = vector.broadcast %55 : f32 to vector<28x28xf32>
    %57 = arith.mulf %56, %46 : vector<28x28xf32>
    %58 = arith.addf %45, %57 : vector<28x28xf32>
    %59 = vector.extract_strided_slice %19 {offsets = [1, 0], sizes = [28, 28], strides = [1, 1]} : vector<30x30xf32> to vector<28x28xf32>
    %c3 = arith.constant 3 : index
    %60 = memref.load %arg1[%c3] : memref<27xf32, #tpu.memory_space<smem>>
    %61 = vector.broadcast %60 : f32 to vector<28x28xf32>
    %62 = arith.mulf %61, %59 : vector<28x28xf32>
    %63 = arith.addf %50, %62 : vector<28x28xf32>
    %c12 = arith.constant 12 : index
    %64 = memref.load %arg1[%c12] : memref<27xf32, #tpu.memory_space<smem>>
    %65 = vector.broadcast %64 : f32 to vector<28x28xf32>
    %66 = arith.mulf %65, %59 : vector<28x28xf32>
    %67 = arith.addf %54, %66 : vector<28x28xf32>
    %c21 = arith.constant 21 : index
    %68 = memref.load %arg1[%c21] : memref<27xf32, #tpu.memory_space<smem>>
    %69 = vector.broadcast %68 : f32 to vector<28x28xf32>
    %70 = arith.mulf %69, %59 : vector<28x28xf32>
    %71 = arith.addf %58, %70 : vector<28x28xf32>
    %72 = vector.extract_strided_slice %19 {offsets = [1, 1], sizes = [28, 28], strides = [1, 1]} : vector<30x30xf32> to vector<28x28xf32>
    %c4 = arith.constant 4 : index
    %73 = memref.load %arg1[%c4] : memref<27xf32, #tpu.memory_space<smem>>
    %74 = vector.broadcast %73 : f32 to vector<28x28xf32>
    %75 = arith.mulf %74, %72 : vector<28x28xf32>
    %76 = arith.addf %63, %75 : vector<28x28xf32>
    %c13 = arith.constant 13 : index
    %77 = memref.load %arg1[%c13] : memref<27xf32, #tpu.memory_space<smem>>
    %78 = vector.broadcast %77 : f32 to vector<28x28xf32>
    %79 = arith.mulf %78, %72 : vector<28x28xf32>
    %80 = arith.addf %67, %79 : vector<28x28xf32>
    %c22 = arith.constant 22 : index
    %81 = memref.load %arg1[%c22] : memref<27xf32, #tpu.memory_space<smem>>
    %82 = vector.broadcast %81 : f32 to vector<28x28xf32>
    %83 = arith.mulf %82, %72 : vector<28x28xf32>
    %84 = arith.addf %71, %83 : vector<28x28xf32>
    %85 = vector.extract_strided_slice %19 {offsets = [1, 2], sizes = [28, 28], strides = [1, 1]} : vector<30x30xf32> to vector<28x28xf32>
    %c5 = arith.constant 5 : index
    %86 = memref.load %arg1[%c5] : memref<27xf32, #tpu.memory_space<smem>>
    %87 = vector.broadcast %86 : f32 to vector<28x28xf32>
    %88 = arith.mulf %87, %85 : vector<28x28xf32>
    %89 = arith.addf %76, %88 : vector<28x28xf32>
    %c14 = arith.constant 14 : index
    %90 = memref.load %arg1[%c14] : memref<27xf32, #tpu.memory_space<smem>>
    %91 = vector.broadcast %90 : f32 to vector<28x28xf32>
    %92 = arith.mulf %91, %85 : vector<28x28xf32>
    %93 = arith.addf %80, %92 : vector<28x28xf32>
    %c23 = arith.constant 23 : index
    %94 = memref.load %arg1[%c23] : memref<27xf32, #tpu.memory_space<smem>>
    %95 = vector.broadcast %94 : f32 to vector<28x28xf32>
    %96 = arith.mulf %95, %85 : vector<28x28xf32>
    %97 = arith.addf %84, %96 : vector<28x28xf32>
    %98 = vector.extract_strided_slice %19 {offsets = [2, 0], sizes = [28, 28], strides = [1, 1]} : vector<30x30xf32> to vector<28x28xf32>
    %c6 = arith.constant 6 : index
    %99 = memref.load %arg1[%c6] : memref<27xf32, #tpu.memory_space<smem>>
    %100 = vector.broadcast %99 : f32 to vector<28x28xf32>
    %101 = arith.mulf %100, %98 : vector<28x28xf32>
    %102 = arith.addf %89, %101 : vector<28x28xf32>
    %c15 = arith.constant 15 : index
    %103 = memref.load %arg1[%c15] : memref<27xf32, #tpu.memory_space<smem>>
    %104 = vector.broadcast %103 : f32 to vector<28x28xf32>
    %105 = arith.mulf %104, %98 : vector<28x28xf32>
    %106 = arith.addf %93, %105 : vector<28x28xf32>
    %c24 = arith.constant 24 : index
    %107 = memref.load %arg1[%c24] : memref<27xf32, #tpu.memory_space<smem>>
    %108 = vector.broadcast %107 : f32 to vector<28x28xf32>
    %109 = arith.mulf %108, %98 : vector<28x28xf32>
    %110 = arith.addf %97, %109 : vector<28x28xf32>
    %111 = vector.extract_strided_slice %19 {offsets = [2, 1], sizes = [28, 28], strides = [1, 1]} : vector<30x30xf32> to vector<28x28xf32>
    %c7 = arith.constant 7 : index
    %112 = memref.load %arg1[%c7] : memref<27xf32, #tpu.memory_space<smem>>
    %113 = vector.broadcast %112 : f32 to vector<28x28xf32>
    %114 = arith.mulf %113, %111 : vector<28x28xf32>
    %115 = arith.addf %102, %114 : vector<28x28xf32>
    %c16 = arith.constant 16 : index
    %116 = memref.load %arg1[%c16] : memref<27xf32, #tpu.memory_space<smem>>
    %117 = vector.broadcast %116 : f32 to vector<28x28xf32>
    %118 = arith.mulf %117, %111 : vector<28x28xf32>
    %119 = arith.addf %106, %118 : vector<28x28xf32>
    %c25 = arith.constant 25 : index
    %120 = memref.load %arg1[%c25] : memref<27xf32, #tpu.memory_space<smem>>
    %121 = vector.broadcast %120 : f32 to vector<28x28xf32>
    %122 = arith.mulf %121, %111 : vector<28x28xf32>
    %123 = arith.addf %110, %122 : vector<28x28xf32>
    %124 = vector.extract_strided_slice %19 {offsets = [2, 2], sizes = [28, 28], strides = [1, 1]} : vector<30x30xf32> to vector<28x28xf32>
    %c8 = arith.constant 8 : index
    %125 = memref.load %arg1[%c8] : memref<27xf32, #tpu.memory_space<smem>>
    %126 = vector.broadcast %125 : f32 to vector<28x28xf32>
    %127 = arith.mulf %126, %124 : vector<28x28xf32>
    %128 = arith.addf %115, %127 : vector<28x28xf32>
    %c17 = arith.constant 17 : index
    %129 = memref.load %arg1[%c17] : memref<27xf32, #tpu.memory_space<smem>>
    %130 = vector.broadcast %129 : f32 to vector<28x28xf32>
    %131 = arith.mulf %130, %124 : vector<28x28xf32>
    %132 = arith.addf %119, %131 : vector<28x28xf32>
    %c26 = arith.constant 26 : index
    %133 = memref.load %arg1[%c26] : memref<27xf32, #tpu.memory_space<smem>>
    %134 = vector.broadcast %133 : f32 to vector<28x28xf32>
    %135 = arith.mulf %134, %124 : vector<28x28xf32>
    %136 = arith.addf %123, %135 : vector<28x28xf32>
    %cst_15 = arith.constant 0.000000e+00 : f32
    %137 = vector.broadcast %cst_15 : f32 to vector<28x28xf32>
    %c0_16 = arith.constant 0 : index
    %138 = memref.load %arg2[%c0_16] : memref<3xf32, #tpu.memory_space<smem>>
    %139 = vector.broadcast %138 : f32 to vector<28x28xf32>
    %140 = arith.addf %137, %139 : vector<28x28xf32>
    %cst_17 = arith.constant 0.000000e+00 : f32
    %141 = vector.broadcast %cst_17 : f32 to vector<28x28xf32>
    %c1_18 = arith.constant 1 : index
    %142 = memref.load %arg2[%c1_18] : memref<3xf32, #tpu.memory_space<smem>>
    %143 = vector.broadcast %142 : f32 to vector<28x28xf32>
    %144 = arith.addf %141, %143 : vector<28x28xf32>
    %cst_19 = arith.constant 0.000000e+00 : f32
    %145 = vector.broadcast %cst_19 : f32 to vector<28x28xf32>
    %c2_20 = arith.constant 2 : index
    %146 = memref.load %arg2[%c2_20] : memref<3xf32, #tpu.memory_space<smem>>
    %147 = vector.broadcast %146 : f32 to vector<28x28xf32>
    %148 = arith.addf %145, %147 : vector<28x28xf32>
    %149 = tpu.concatenate %0, %5, %0 in 0 : vector<1x28xf32>, vector<28x28xf32>, vector<1x28xf32> -> vector<30x28xf32>
    %150 = tpu.concatenate %1, %149, %1 in 1 : vector<30x1xf32>, vector<30x28xf32>, vector<30x1xf32> -> vector<30x30xf32>
    %151 = vector.extract_strided_slice %150 {offsets = [0, 0], sizes = [28, 28], strides = [1, 1]} : vector<30x30xf32> to vector<28x28xf32>
    %c0_21 = arith.constant 0 : index
    %152 = memref.load %arg1[%c0_21] : memref<27xf32, #tpu.memory_space<smem>>
    %153 = vector.broadcast %152 : f32 to vector<28x28xf32>
    %154 = arith.mulf %153, %151 : vector<28x28xf32>
    %155 = arith.addf %140, %154 : vector<28x28xf32>
    %c9_22 = arith.constant 9 : index
    %156 = memref.load %arg1[%c9_22] : memref<27xf32, #tpu.memory_space<smem>>
    %157 = vector.broadcast %156 : f32 to vector<28x28xf32>
    %158 = arith.mulf %157, %151 : vector<28x28xf32>
    %159 = arith.addf %144, %158 : vector<28x28xf32>
    %c18_23 = arith.constant 18 : index
    %160 = memref.load %arg1[%c18_23] : memref<27xf32, #tpu.memory_space<smem>>
    %161 = vector.broadcast %160 : f32 to vector<28x28xf32>
    %162 = arith.mulf %161, %151 : vector<28x28xf32>
    %163 = arith.addf %148, %162 : vector<28x28xf32>
    %164 = vector.extract_strided_slice %150 {offsets = [0, 1], sizes = [28, 28], strides = [1, 1]} : vector<30x30xf32> to vector<28x28xf32>
    %c1_24 = arith.constant 1 : index
    %165 = memref.load %arg1[%c1_24] : memref<27xf32, #tpu.memory_space<smem>>
    %166 = vector.broadcast %165 : f32 to vector<28x28xf32>
    %167 = arith.mulf %166, %164 : vector<28x28xf32>
    %168 = arith.addf %155, %167 : vector<28x28xf32>
    %c10_25 = arith.constant 10 : index
    %169 = memref.load %arg1[%c10_25] : memref<27xf32, #tpu.memory_space<smem>>
    %170 = vector.broadcast %169 : f32 to vector<28x28xf32>
    %171 = arith.mulf %170, %164 : vector<28x28xf32>
    %172 = arith.addf %159, %171 : vector<28x28xf32>
    %c19_26 = arith.constant 19 : index
    %173 = memref.load %arg1[%c19_26] : memref<27xf32, #tpu.memory_space<smem>>
    %174 = vector.broadcast %173 : f32 to vector<28x28xf32>
    %175 = arith.mulf %174, %164 : vector<28x28xf32>
    %176 = arith.addf %163, %175 : vector<28x28xf32>
    %177 = vector.extract_strided_slice %150 {offsets = [0, 2], sizes = [28, 28], strides = [1, 1]} : vector<30x30xf32> to vector<28x28xf32>
    %c2_27 = arith.constant 2 : index
    %178 = memref.load %arg1[%c2_27] : memref<27xf32, #tpu.memory_space<smem>>
    %179 = vector.broadcast %178 : f32 to vector<28x28xf32>
    %180 = arith.mulf %179, %177 : vector<28x28xf32>
    %181 = arith.addf %168, %180 : vector<28x28xf32>
    %c11_28 = arith.constant 11 : index
    %182 = memref.load %arg1[%c11_28] : memref<27xf32, #tpu.memory_space<smem>>
    %183 = vector.broadcast %182 : f32 to vector<28x28xf32>
    %184 = arith.mulf %183, %177 : vector<28x28xf32>
    %185 = arith.addf %172, %184 : vector<28x28xf32>
    %c20_29 = arith.constant 20 : index
    %186 = memref.load %arg1[%c20_29] : memref<27xf32, #tpu.memory_space<smem>>
    %187 = vector.broadcast %186 : f32 to vector<28x28xf32>
    %188 = arith.mulf %187, %177 : vector<28x28xf32>
    %189 = arith.addf %176, %188 : vector<28x28xf32>
    %190 = vector.extract_strided_slice %150 {offsets = [1, 0], sizes = [28, 28], strides = [1, 1]} : vector<30x30xf32> to vector<28x28xf32>
    %c3_30 = arith.constant 3 : index
    %191 = memref.load %arg1[%c3_30] : memref<27xf32, #tpu.memory_space<smem>>
    %192 = vector.broadcast %191 : f32 to vector<28x28xf32>
    %193 = arith.mulf %192, %190 : vector<28x28xf32>
    %194 = arith.addf %181, %193 : vector<28x28xf32>
    %c12_31 = arith.constant 12 : index
    %195 = memref.load %arg1[%c12_31] : memref<27xf32, #tpu.memory_space<smem>>
    %196 = vector.broadcast %195 : f32 to vector<28x28xf32>
    %197 = arith.mulf %196, %190 : vector<28x28xf32>
    %198 = arith.addf %185, %197 : vector<28x28xf32>
    %c21_32 = arith.constant 21 : index
    %199 = memref.load %arg1[%c21_32] : memref<27xf32, #tpu.memory_space<smem>>
    %200 = vector.broadcast %199 : f32 to vector<28x28xf32>
    %201 = arith.mulf %200, %190 : vector<28x28xf32>
    %202 = arith.addf %189, %201 : vector<28x28xf32>
    %203 = vector.extract_strided_slice %150 {offsets = [1, 1], sizes = [28, 28], strides = [1, 1]} : vector<30x30xf32> to vector<28x28xf32>
    %c4_33 = arith.constant 4 : index
    %204 = memref.load %arg1[%c4_33] : memref<27xf32, #tpu.memory_space<smem>>
    %205 = vector.broadcast %204 : f32 to vector<28x28xf32>
    %206 = arith.mulf %205, %203 : vector<28x28xf32>
    %207 = arith.addf %194, %206 : vector<28x28xf32>
    %c13_34 = arith.constant 13 : index
    %208 = memref.load %arg1[%c13_34] : memref<27xf32, #tpu.memory_space<smem>>
    %209 = vector.broadcast %208 : f32 to vector<28x28xf32>
    %210 = arith.mulf %209, %203 : vector<28x28xf32>
    %211 = arith.addf %198, %210 : vector<28x28xf32>
    %c22_35 = arith.constant 22 : index
    %212 = memref.load %arg1[%c22_35] : memref<27xf32, #tpu.memory_space<smem>>
    %213 = vector.broadcast %212 : f32 to vector<28x28xf32>
    %214 = arith.mulf %213, %203 : vector<28x28xf32>
    %215 = arith.addf %202, %214 : vector<28x28xf32>
    %216 = vector.extract_strided_slice %150 {offsets = [1, 2], sizes = [28, 28], strides = [1, 1]} : vector<30x30xf32> to vector<28x28xf32>
    %c5_36 = arith.constant 5 : index
    %217 = memref.load %arg1[%c5_36] : memref<27xf32, #tpu.memory_space<smem>>
    %218 = vector.broadcast %217 : f32 to vector<28x28xf32>
    %219 = arith.mulf %218, %216 : vector<28x28xf32>
    %220 = arith.addf %207, %219 : vector<28x28xf32>
    %c14_37 = arith.constant 14 : index
    %221 = memref.load %arg1[%c14_37] : memref<27xf32, #tpu.memory_space<smem>>
    %222 = vector.broadcast %221 : f32 to vector<28x28xf32>
    %223 = arith.mulf %222, %216 : vector<28x28xf32>
    %224 = arith.addf %211, %223 : vector<28x28xf32>
    %c23_38 = arith.constant 23 : index
    %225 = memref.load %arg1[%c23_38] : memref<27xf32, #tpu.memory_space<smem>>
    %226 = vector.broadcast %225 : f32 to vector<28x28xf32>
    %227 = arith.mulf %226, %216 : vector<28x28xf32>
    %228 = arith.addf %215, %227 : vector<28x28xf32>
    %229 = vector.extract_strided_slice %150 {offsets = [2, 0], sizes = [28, 28], strides = [1, 1]} : vector<30x30xf32> to vector<28x28xf32>
    %c6_39 = arith.constant 6 : index
    %230 = memref.load %arg1[%c6_39] : memref<27xf32, #tpu.memory_space<smem>>
    %231 = vector.broadcast %230 : f32 to vector<28x28xf32>
    %232 = arith.mulf %231, %229 : vector<28x28xf32>
    %233 = arith.addf %220, %232 : vector<28x28xf32>
    %c15_40 = arith.constant 15 : index
    %234 = memref.load %arg1[%c15_40] : memref<27xf32, #tpu.memory_space<smem>>
    %235 = vector.broadcast %234 : f32 to vector<28x28xf32>
    %236 = arith.mulf %235, %229 : vector<28x28xf32>
    %237 = arith.addf %224, %236 : vector<28x28xf32>
    %c24_41 = arith.constant 24 : index
    %238 = memref.load %arg1[%c24_41] : memref<27xf32, #tpu.memory_space<smem>>
    %239 = vector.broadcast %238 : f32 to vector<28x28xf32>
    %240 = arith.mulf %239, %229 : vector<28x28xf32>
    %241 = arith.addf %228, %240 : vector<28x28xf32>
    %242 = vector.extract_strided_slice %150 {offsets = [2, 1], sizes = [28, 28], strides = [1, 1]} : vector<30x30xf32> to vector<28x28xf32>
    %c7_42 = arith.constant 7 : index
    %243 = memref.load %arg1[%c7_42] : memref<27xf32, #tpu.memory_space<smem>>
    %244 = vector.broadcast %243 : f32 to vector<28x28xf32>
    %245 = arith.mulf %244, %242 : vector<28x28xf32>
    %246 = arith.addf %233, %245 : vector<28x28xf32>
    %c16_43 = arith.constant 16 : index
    %247 = memref.load %arg1[%c16_43] : memref<27xf32, #tpu.memory_space<smem>>
    %248 = vector.broadcast %247 : f32 to vector<28x28xf32>
    %249 = arith.mulf %248, %242 : vector<28x28xf32>
    %250 = arith.addf %237, %249 : vector<28x28xf32>
    %c25_44 = arith.constant 25 : index
    %251 = memref.load %arg1[%c25_44] : memref<27xf32, #tpu.memory_space<smem>>
    %252 = vector.broadcast %251 : f32 to vector<28x28xf32>
    %253 = arith.mulf %252, %242 : vector<28x28xf32>
    %254 = arith.addf %241, %253 : vector<28x28xf32>
    %255 = vector.extract_strided_slice %150 {offsets = [2, 2], sizes = [28, 28], strides = [1, 1]} : vector<30x30xf32> to vector<28x28xf32>
    %c8_45 = arith.constant 8 : index
    %256 = memref.load %arg1[%c8_45] : memref<27xf32, #tpu.memory_space<smem>>
    %257 = vector.broadcast %256 : f32 to vector<28x28xf32>
    %258 = arith.mulf %257, %255 : vector<28x28xf32>
    %259 = arith.addf %246, %258 : vector<28x28xf32>
    %c17_46 = arith.constant 17 : index
    %260 = memref.load %arg1[%c17_46] : memref<27xf32, #tpu.memory_space<smem>>
    %261 = vector.broadcast %260 : f32 to vector<28x28xf32>
    %262 = arith.mulf %261, %255 : vector<28x28xf32>
    %263 = arith.addf %250, %262 : vector<28x28xf32>
    %c26_47 = arith.constant 26 : index
    %264 = memref.load %arg1[%c26_47] : memref<27xf32, #tpu.memory_space<smem>>
    %265 = vector.broadcast %264 : f32 to vector<28x28xf32>
    %266 = arith.mulf %265, %255 : vector<28x28xf32>
    %267 = arith.addf %254, %266 : vector<28x28xf32>
    %cst_48 = arith.constant 0.000000e+00 : f32
    %268 = vector.broadcast %cst_48 : f32 to vector<28x28xf32>
    %269 = arith.maximumf %128, %268 : vector<28x28xf32>
    %cst_49 = arith.constant 0.000000e+00 : f32
    %270 = vector.broadcast %cst_49 : f32 to vector<28x28xf32>
    %271 = arith.maximumf %132, %270 : vector<28x28xf32>
    %cst_50 = arith.constant 0.000000e+00 : f32
    %272 = vector.broadcast %cst_50 : f32 to vector<28x28xf32>
    %273 = arith.maximumf %136, %272 : vector<28x28xf32>
    %cst_51 = arith.constant 0.000000e+00 : f32
    %274 = vector.broadcast %cst_51 : f32 to vector<28x28xf32>
    %275 = arith.maximumf %259, %274 : vector<28x28xf32>
    %cst_52 = arith.constant 0.000000e+00 : f32
    %276 = vector.broadcast %cst_52 : f32 to vector<28x28xf32>
    %277 = arith.maximumf %263, %276 : vector<28x28xf32>
    %cst_53 = arith.constant 0.000000e+00 : f32
    %278 = vector.broadcast %cst_53 : f32 to vector<28x28xf32>
    %279 = arith.maximumf %267, %278 : vector<28x28xf32>
    %280 = vector.shape_cast %269 : vector<28x28xf32> to vector<1x28x28xf32>
    %cst_54 = arith.constant dense<0xFF800000> : vector<1xf32>
    %281 = vector.multi_reduction <maximumf>, %280, %cst_54 [1, 2] : vector<1x28x28xf32> to vector<1xf32>
    %282 = vector.shape_cast %281 : vector<1xf32> to vector<1x1x1xf32>
    %283 = vector.extract %282[0, 0, 0] : f32 from vector<1x1x1xf32>
    %cst_55 = arith.constant 0.000000e+00 : f32
    %284 = arith.maximumf %cst_55, %283 : f32
    %285 = vector.shape_cast %271 : vector<28x28xf32> to vector<1x28x28xf32>
    %cst_56 = arith.constant dense<0xFF800000> : vector<1xf32>
    %286 = vector.multi_reduction <maximumf>, %285, %cst_56 [1, 2] : vector<1x28x28xf32> to vector<1xf32>
    %287 = vector.shape_cast %286 : vector<1xf32> to vector<1x1x1xf32>
    %288 = vector.extract %287[0, 0, 0] : f32 from vector<1x1x1xf32>
    %289 = arith.maximumf %284, %288 : f32
    %290 = vector.shape_cast %273 : vector<28x28xf32> to vector<1x28x28xf32>
    %cst_57 = arith.constant dense<0xFF800000> : vector<1xf32>
    %291 = vector.multi_reduction <maximumf>, %290, %cst_57 [1, 2] : vector<1x28x28xf32> to vector<1xf32>
    %292 = vector.shape_cast %291 : vector<1xf32> to vector<1x1x1xf32>
    %293 = vector.extract %292[0, 0, 0] : f32 from vector<1x1x1xf32>
    %294 = arith.maximumf %289, %293 : f32
    %295 = vector.shape_cast %275 : vector<28x28xf32> to vector<1x28x28xf32>
    %cst_58 = arith.constant dense<0xFF800000> : vector<1xf32>
    %296 = vector.multi_reduction <maximumf>, %295, %cst_58 [1, 2] : vector<1x28x28xf32> to vector<1xf32>
    %297 = vector.shape_cast %296 : vector<1xf32> to vector<1x1x1xf32>
    %298 = vector.extract %297[0, 0, 0] : f32 from vector<1x1x1xf32>
    %299 = arith.maximumf %294, %298 : f32
    %300 = vector.shape_cast %277 : vector<28x28xf32> to vector<1x28x28xf32>
    %cst_59 = arith.constant dense<0xFF800000> : vector<1xf32>
    %301 = vector.multi_reduction <maximumf>, %300, %cst_59 [1, 2] : vector<1x28x28xf32> to vector<1xf32>
    %302 = vector.shape_cast %301 : vector<1xf32> to vector<1x1x1xf32>
    %303 = vector.extract %302[0, 0, 0] : f32 from vector<1x1x1xf32>
    %304 = arith.maximumf %299, %303 : f32
    %305 = vector.shape_cast %279 : vector<28x28xf32> to vector<1x28x28xf32>
    %cst_60 = arith.constant dense<0xFF800000> : vector<1xf32>
    %306 = vector.multi_reduction <maximumf>, %305, %cst_60 [1, 2] : vector<1x28x28xf32> to vector<1xf32>
    %307 = vector.shape_cast %306 : vector<1xf32> to vector<1x1x1xf32>
    %308 = vector.extract %307[0, 0, 0] : f32 from vector<1x1x1xf32>
    %309 = arith.maximumf %304, %308 : f32
    %cst_61 = arith.constant 0.000000e+00 : f32
    %310 = arith.cmpf ogt, %309, %cst_61 : f32
    %cst_62 = arith.constant 3.000000e+00 : f32
    %311 = arith.divf %309, %cst_62 : f32
    %cst_63 = arith.constant 1.000000e+00 : f32
    %312 = arith.select %310, %311, %cst_63 : f32
    %cst_64 = arith.constant 1.000000e+00 : f32
    %313 = arith.divf %cst_64, %312 : f32
    %314 = vector.broadcast %313 : f32 to vector<28x28xf32>
    %315 = arith.mulf %269, %314 : vector<28x28xf32>
    %316 = math.roundeven %315 : vector<28x28xf32>
    %317 = vector.broadcast %312 : f32 to vector<28x28xf32>
    %318 = arith.mulf %316, %317 : vector<28x28xf32>
    %319 = vector.broadcast %313 : f32 to vector<28x28xf32>
    %320 = arith.mulf %271, %319 : vector<28x28xf32>
    %321 = math.roundeven %320 : vector<28x28xf32>
    %322 = vector.broadcast %312 : f32 to vector<28x28xf32>
    %323 = arith.mulf %321, %322 : vector<28x28xf32>
    %324 = vector.broadcast %313 : f32 to vector<28x28xf32>
    %325 = arith.mulf %273, %324 : vector<28x28xf32>
    %326 = math.roundeven %325 : vector<28x28xf32>
    %327 = vector.broadcast %312 : f32 to vector<28x28xf32>
    %328 = arith.mulf %326, %327 : vector<28x28xf32>
    %329 = vector.broadcast %313 : f32 to vector<28x28xf32>
    %330 = arith.mulf %275, %329 : vector<28x28xf32>
    %331 = math.roundeven %330 : vector<28x28xf32>
    %332 = vector.broadcast %312 : f32 to vector<28x28xf32>
    %333 = arith.mulf %331, %332 : vector<28x28xf32>
    %334 = vector.broadcast %313 : f32 to vector<28x28xf32>
    %335 = arith.mulf %277, %334 : vector<28x28xf32>
    %336 = math.roundeven %335 : vector<28x28xf32>
    %337 = vector.broadcast %312 : f32 to vector<28x28xf32>
    %338 = arith.mulf %336, %337 : vector<28x28xf32>
    %339 = vector.broadcast %313 : f32 to vector<28x28xf32>
    %340 = arith.mulf %279, %339 : vector<28x28xf32>
    %341 = math.roundeven %340 : vector<28x28xf32>
    %342 = vector.broadcast %312 : f32 to vector<28x28xf32>
    %343 = arith.mulf %341, %342 : vector<28x28xf32>
    %cst_65 = arith.constant 0.000000e+00 : f32
    %344 = vector.broadcast %cst_65 : f32 to vector<28x28xf32>
    %c0_66 = arith.constant 0 : index
    %345 = memref.load %arg4[%c0_66] : memref<3xf32, #tpu.memory_space<smem>>
    %346 = vector.broadcast %345 : f32 to vector<28x28xf32>
    %347 = arith.addf %344, %346 : vector<28x28xf32>
    %cst_67 = arith.constant 0.000000e+00 : f32
    %348 = vector.broadcast %cst_67 : f32 to vector<28x28xf32>
    %c1_68 = arith.constant 1 : index
    %349 = memref.load %arg4[%c1_68] : memref<3xf32, #tpu.memory_space<smem>>
    %350 = vector.broadcast %349 : f32 to vector<28x28xf32>
    %351 = arith.addf %348, %350 : vector<28x28xf32>
    %cst_69 = arith.constant 0.000000e+00 : f32
    %352 = vector.broadcast %cst_69 : f32 to vector<28x28xf32>
    %c2_70 = arith.constant 2 : index
    %353 = memref.load %arg4[%c2_70] : memref<3xf32, #tpu.memory_space<smem>>
    %354 = vector.broadcast %353 : f32 to vector<28x28xf32>
    %355 = arith.addf %352, %354 : vector<28x28xf32>
    %356 = tpu.concatenate %0, %318, %0 in 0 : vector<1x28xf32>, vector<28x28xf32>, vector<1x28xf32> -> vector<30x28xf32>
    %357 = tpu.concatenate %1, %356, %1 in 1 : vector<30x1xf32>, vector<30x28xf32>, vector<30x1xf32> -> vector<30x30xf32>
    %358 = vector.extract_strided_slice %357 {offsets = [0, 0], sizes = [28, 28], strides = [1, 1]} : vector<30x30xf32> to vector<28x28xf32>
    %c0_71 = arith.constant 0 : index
    %359 = memref.load %arg3[%c0_71] : memref<81xf32, #tpu.memory_space<smem>>
    %360 = vector.broadcast %359 : f32 to vector<28x28xf32>
    %361 = arith.mulf %360, %358 : vector<28x28xf32>
    %362 = arith.addf %347, %361 : vector<28x28xf32>
    %c27 = arith.constant 27 : index
    %363 = memref.load %arg3[%c27] : memref<81xf32, #tpu.memory_space<smem>>
    %364 = vector.broadcast %363 : f32 to vector<28x28xf32>
    %365 = arith.mulf %364, %358 : vector<28x28xf32>
    %366 = arith.addf %351, %365 : vector<28x28xf32>
    %c54 = arith.constant 54 : index
    %367 = memref.load %arg3[%c54] : memref<81xf32, #tpu.memory_space<smem>>
    %368 = vector.broadcast %367 : f32 to vector<28x28xf32>
    %369 = arith.mulf %368, %358 : vector<28x28xf32>
    %370 = arith.addf %355, %369 : vector<28x28xf32>
    %371 = vector.extract_strided_slice %357 {offsets = [0, 1], sizes = [28, 28], strides = [1, 1]} : vector<30x30xf32> to vector<28x28xf32>
    %c1_72 = arith.constant 1 : index
    %372 = memref.load %arg3[%c1_72] : memref<81xf32, #tpu.memory_space<smem>>
    %373 = vector.broadcast %372 : f32 to vector<28x28xf32>
    %374 = arith.mulf %373, %371 : vector<28x28xf32>
    %375 = arith.addf %362, %374 : vector<28x28xf32>
    %c28 = arith.constant 28 : index
    %376 = memref.load %arg3[%c28] : memref<81xf32, #tpu.memory_space<smem>>
    %377 = vector.broadcast %376 : f32 to vector<28x28xf32>
    %378 = arith.mulf %377, %371 : vector<28x28xf32>
    %379 = arith.addf %366, %378 : vector<28x28xf32>
    %c55 = arith.constant 55 : index
    %380 = memref.load %arg3[%c55] : memref<81xf32, #tpu.memory_space<smem>>
    %381 = vector.broadcast %380 : f32 to vector<28x28xf32>
    %382 = arith.mulf %381, %371 : vector<28x28xf32>
    %383 = arith.addf %370, %382 : vector<28x28xf32>
    %384 = vector.extract_strided_slice %357 {offsets = [0, 2], sizes = [28, 28], strides = [1, 1]} : vector<30x30xf32> to vector<28x28xf32>
    %c2_73 = arith.constant 2 : index
    %385 = memref.load %arg3[%c2_73] : memref<81xf32, #tpu.memory_space<smem>>
    %386 = vector.broadcast %385 : f32 to vector<28x28xf32>
    %387 = arith.mulf %386, %384 : vector<28x28xf32>
    %388 = arith.addf %375, %387 : vector<28x28xf32>
    %c29 = arith.constant 29 : index
    %389 = memref.load %arg3[%c29] : memref<81xf32, #tpu.memory_space<smem>>
    %390 = vector.broadcast %389 : f32 to vector<28x28xf32>
    %391 = arith.mulf %390, %384 : vector<28x28xf32>
    %392 = arith.addf %379, %391 : vector<28x28xf32>
    %c56 = arith.constant 56 : index
    %393 = memref.load %arg3[%c56] : memref<81xf32, #tpu.memory_space<smem>>
    %394 = vector.broadcast %393 : f32 to vector<28x28xf32>
    %395 = arith.mulf %394, %384 : vector<28x28xf32>
    %396 = arith.addf %383, %395 : vector<28x28xf32>
    %397 = vector.extract_strided_slice %357 {offsets = [1, 0], sizes = [28, 28], strides = [1, 1]} : vector<30x30xf32> to vector<28x28xf32>
    %c3_74 = arith.constant 3 : index
    %398 = memref.load %arg3[%c3_74] : memref<81xf32, #tpu.memory_space<smem>>
    %399 = vector.broadcast %398 : f32 to vector<28x28xf32>
    %400 = arith.mulf %399, %397 : vector<28x28xf32>
    %401 = arith.addf %388, %400 : vector<28x28xf32>
    %c30 = arith.constant 30 : index
    %402 = memref.load %arg3[%c30] : memref<81xf32, #tpu.memory_space<smem>>
    %403 = vector.broadcast %402 : f32 to vector<28x28xf32>
    %404 = arith.mulf %403, %397 : vector<28x28xf32>
    %405 = arith.addf %392, %404 : vector<28x28xf32>
    %c57 = arith.constant 57 : index
    %406 = memref.load %arg3[%c57] : memref<81xf32, #tpu.memory_space<smem>>
    %407 = vector.broadcast %406 : f32 to vector<28x28xf32>
    %408 = arith.mulf %407, %397 : vector<28x28xf32>
    %409 = arith.addf %396, %408 : vector<28x28xf32>
    %410 = vector.extract_strided_slice %357 {offsets = [1, 1], sizes = [28, 28], strides = [1, 1]} : vector<30x30xf32> to vector<28x28xf32>
    %c4_75 = arith.constant 4 : index
    %411 = memref.load %arg3[%c4_75] : memref<81xf32, #tpu.memory_space<smem>>
    %412 = vector.broadcast %411 : f32 to vector<28x28xf32>
    %413 = arith.mulf %412, %410 : vector<28x28xf32>
    %414 = arith.addf %401, %413 : vector<28x28xf32>
    %c31 = arith.constant 31 : index
    %415 = memref.load %arg3[%c31] : memref<81xf32, #tpu.memory_space<smem>>
    %416 = vector.broadcast %415 : f32 to vector<28x28xf32>
    %417 = arith.mulf %416, %410 : vector<28x28xf32>
    %418 = arith.addf %405, %417 : vector<28x28xf32>
    %c58 = arith.constant 58 : index
    %419 = memref.load %arg3[%c58] : memref<81xf32, #tpu.memory_space<smem>>
    %420 = vector.broadcast %419 : f32 to vector<28x28xf32>
    %421 = arith.mulf %420, %410 : vector<28x28xf32>
    %422 = arith.addf %409, %421 : vector<28x28xf32>
    %423 = vector.extract_strided_slice %357 {offsets = [1, 2], sizes = [28, 28], strides = [1, 1]} : vector<30x30xf32> to vector<28x28xf32>
    %c5_76 = arith.constant 5 : index
    %424 = memref.load %arg3[%c5_76] : memref<81xf32, #tpu.memory_space<smem>>
    %425 = vector.broadcast %424 : f32 to vector<28x28xf32>
    %426 = arith.mulf %425, %423 : vector<28x28xf32>
    %427 = arith.addf %414, %426 : vector<28x28xf32>
    %c32 = arith.constant 32 : index
    %428 = memref.load %arg3[%c32] : memref<81xf32, #tpu.memory_space<smem>>
    %429 = vector.broadcast %428 : f32 to vector<28x28xf32>
    %430 = arith.mulf %429, %423 : vector<28x28xf32>
    %431 = arith.addf %418, %430 : vector<28x28xf32>
    %c59 = arith.constant 59 : index
    %432 = memref.load %arg3[%c59] : memref<81xf32, #tpu.memory_space<smem>>
    %433 = vector.broadcast %432 : f32 to vector<28x28xf32>
    %434 = arith.mulf %433, %423 : vector<28x28xf32>
    %435 = arith.addf %422, %434 : vector<28x28xf32>
    %436 = vector.extract_strided_slice %357 {offsets = [2, 0], sizes = [28, 28], strides = [1, 1]} : vector<30x30xf32> to vector<28x28xf32>
    %c6_77 = arith.constant 6 : index
    %437 = memref.load %arg3[%c6_77] : memref<81xf32, #tpu.memory_space<smem>>
    %438 = vector.broadcast %437 : f32 to vector<28x28xf32>
    %439 = arith.mulf %438, %436 : vector<28x28xf32>
    %440 = arith.addf %427, %439 : vector<28x28xf32>
    %c33 = arith.constant 33 : index
    %441 = memref.load %arg3[%c33] : memref<81xf32, #tpu.memory_space<smem>>
    %442 = vector.broadcast %441 : f32 to vector<28x28xf32>
    %443 = arith.mulf %442, %436 : vector<28x28xf32>
    %444 = arith.addf %431, %443 : vector<28x28xf32>
    %c60 = arith.constant 60 : index
    %445 = memref.load %arg3[%c60] : memref<81xf32, #tpu.memory_space<smem>>
    %446 = vector.broadcast %445 : f32 to vector<28x28xf32>
    %447 = arith.mulf %446, %436 : vector<28x28xf32>
    %448 = arith.addf %435, %447 : vector<28x28xf32>
    %449 = vector.extract_strided_slice %357 {offsets = [2, 1], sizes = [28, 28], strides = [1, 1]} : vector<30x30xf32> to vector<28x28xf32>
    %c7_78 = arith.constant 7 : index
    %450 = memref.load %arg3[%c7_78] : memref<81xf32, #tpu.memory_space<smem>>
    %451 = vector.broadcast %450 : f32 to vector<28x28xf32>
    %452 = arith.mulf %451, %449 : vector<28x28xf32>
    %453 = arith.addf %440, %452 : vector<28x28xf32>
    %c34 = arith.constant 34 : index
    %454 = memref.load %arg3[%c34] : memref<81xf32, #tpu.memory_space<smem>>
    %455 = vector.broadcast %454 : f32 to vector<28x28xf32>
    %456 = arith.mulf %455, %449 : vector<28x28xf32>
    %457 = arith.addf %444, %456 : vector<28x28xf32>
    %c61 = arith.constant 61 : index
    %458 = memref.load %arg3[%c61] : memref<81xf32, #tpu.memory_space<smem>>
    %459 = vector.broadcast %458 : f32 to vector<28x28xf32>
    %460 = arith.mulf %459, %449 : vector<28x28xf32>
    %461 = arith.addf %448, %460 : vector<28x28xf32>
    %462 = vector.extract_strided_slice %357 {offsets = [2, 2], sizes = [28, 28], strides = [1, 1]} : vector<30x30xf32> to vector<28x28xf32>
    %c8_79 = arith.constant 8 : index
    %463 = memref.load %arg3[%c8_79] : memref<81xf32, #tpu.memory_space<smem>>
    %464 = vector.broadcast %463 : f32 to vector<28x28xf32>
    %465 = arith.mulf %464, %462 : vector<28x28xf32>
    %466 = arith.addf %453, %465 : vector<28x28xf32>
    %c35 = arith.constant 35 : index
    %467 = memref.load %arg3[%c35] : memref<81xf32, #tpu.memory_space<smem>>
    %468 = vector.broadcast %467 : f32 to vector<28x28xf32>
    %469 = arith.mulf %468, %462 : vector<28x28xf32>
    %470 = arith.addf %457, %469 : vector<28x28xf32>
    %c62 = arith.constant 62 : index
    %471 = memref.load %arg3[%c62] : memref<81xf32, #tpu.memory_space<smem>>
    %472 = vector.broadcast %471 : f32 to vector<28x28xf32>
    %473 = arith.mulf %472, %462 : vector<28x28xf32>
    %474 = arith.addf %461, %473 : vector<28x28xf32>
    %475 = tpu.concatenate %0, %323, %0 in 0 : vector<1x28xf32>, vector<28x28xf32>, vector<1x28xf32> -> vector<30x28xf32>
    %476 = tpu.concatenate %1, %475, %1 in 1 : vector<30x1xf32>, vector<30x28xf32>, vector<30x1xf32> -> vector<30x30xf32>
    %477 = vector.extract_strided_slice %476 {offsets = [0, 0], sizes = [28, 28], strides = [1, 1]} : vector<30x30xf32> to vector<28x28xf32>
    %c9_80 = arith.constant 9 : index
    %478 = memref.load %arg3[%c9_80] : memref<81xf32, #tpu.memory_space<smem>>
    %479 = vector.broadcast %478 : f32 to vector<28x28xf32>
    %480 = arith.mulf %479, %477 : vector<28x28xf32>
    %481 = arith.addf %466, %480 : vector<28x28xf32>
    %c36 = arith.constant 36 : index
    %482 = memref.load %arg3[%c36] : memref<81xf32, #tpu.memory_space<smem>>
    %483 = vector.broadcast %482 : f32 to vector<28x28xf32>
    %484 = arith.mulf %483, %477 : vector<28x28xf32>
    %485 = arith.addf %470, %484 : vector<28x28xf32>
    %c63 = arith.constant 63 : index
    %486 = memref.load %arg3[%c63] : memref<81xf32, #tpu.memory_space<smem>>
    %487 = vector.broadcast %486 : f32 to vector<28x28xf32>
    %488 = arith.mulf %487, %477 : vector<28x28xf32>
    %489 = arith.addf %474, %488 : vector<28x28xf32>
    %490 = vector.extract_strided_slice %476 {offsets = [0, 1], sizes = [28, 28], strides = [1, 1]} : vector<30x30xf32> to vector<28x28xf32>
    %c10_81 = arith.constant 10 : index
    %491 = memref.load %arg3[%c10_81] : memref<81xf32, #tpu.memory_space<smem>>
    %492 = vector.broadcast %491 : f32 to vector<28x28xf32>
    %493 = arith.mulf %492, %490 : vector<28x28xf32>
    %494 = arith.addf %481, %493 : vector<28x28xf32>
    %c37 = arith.constant 37 : index
    %495 = memref.load %arg3[%c37] : memref<81xf32, #tpu.memory_space<smem>>
    %496 = vector.broadcast %495 : f32 to vector<28x28xf32>
    %497 = arith.mulf %496, %490 : vector<28x28xf32>
    %498 = arith.addf %485, %497 : vector<28x28xf32>
    %c64 = arith.constant 64 : index
    %499 = memref.load %arg3[%c64] : memref<81xf32, #tpu.memory_space<smem>>
    %500 = vector.broadcast %499 : f32 to vector<28x28xf32>
    %501 = arith.mulf %500, %490 : vector<28x28xf32>
    %502 = arith.addf %489, %501 : vector<28x28xf32>
    %503 = vector.extract_strided_slice %476 {offsets = [0, 2], sizes = [28, 28], strides = [1, 1]} : vector<30x30xf32> to vector<28x28xf32>
    %c11_82 = arith.constant 11 : index
    %504 = memref.load %arg3[%c11_82] : memref<81xf32, #tpu.memory_space<smem>>
    %505 = vector.broadcast %504 : f32 to vector<28x28xf32>
    %506 = arith.mulf %505, %503 : vector<28x28xf32>
    %507 = arith.addf %494, %506 : vector<28x28xf32>
    %c38 = arith.constant 38 : index
    %508 = memref.load %arg3[%c38] : memref<81xf32, #tpu.memory_space<smem>>
    %509 = vector.broadcast %508 : f32 to vector<28x28xf32>
    %510 = arith.mulf %509, %503 : vector<28x28xf32>
    %511 = arith.addf %498, %510 : vector<28x28xf32>
    %c65 = arith.constant 65 : index
    %512 = memref.load %arg3[%c65] : memref<81xf32, #tpu.memory_space<smem>>
    %513 = vector.broadcast %512 : f32 to vector<28x28xf32>
    %514 = arith.mulf %513, %503 : vector<28x28xf32>
    %515 = arith.addf %502, %514 : vector<28x28xf32>
    %516 = vector.extract_strided_slice %476 {offsets = [1, 0], sizes = [28, 28], strides = [1, 1]} : vector<30x30xf32> to vector<28x28xf32>
    %c12_83 = arith.constant 12 : index
    %517 = memref.load %arg3[%c12_83] : memref<81xf32, #tpu.memory_space<smem>>
    %518 = vector.broadcast %517 : f32 to vector<28x28xf32>
    %519 = arith.mulf %518, %516 : vector<28x28xf32>
    %520 = arith.addf %507, %519 : vector<28x28xf32>
    %c39 = arith.constant 39 : index
    %521 = memref.load %arg3[%c39] : memref<81xf32, #tpu.memory_space<smem>>
    %522 = vector.broadcast %521 : f32 to vector<28x28xf32>
    %523 = arith.mulf %522, %516 : vector<28x28xf32>
    %524 = arith.addf %511, %523 : vector<28x28xf32>
    %c66 = arith.constant 66 : index
    %525 = memref.load %arg3[%c66] : memref<81xf32, #tpu.memory_space<smem>>
    %526 = vector.broadcast %525 : f32 to vector<28x28xf32>
    %527 = arith.mulf %526, %516 : vector<28x28xf32>
    %528 = arith.addf %515, %527 : vector<28x28xf32>
    %529 = vector.extract_strided_slice %476 {offsets = [1, 1], sizes = [28, 28], strides = [1, 1]} : vector<30x30xf32> to vector<28x28xf32>
    %c13_84 = arith.constant 13 : index
    %530 = memref.load %arg3[%c13_84] : memref<81xf32, #tpu.memory_space<smem>>
    %531 = vector.broadcast %530 : f32 to vector<28x28xf32>
    %532 = arith.mulf %531, %529 : vector<28x28xf32>
    %533 = arith.addf %520, %532 : vector<28x28xf32>
    %c40 = arith.constant 40 : index
    %534 = memref.load %arg3[%c40] : memref<81xf32, #tpu.memory_space<smem>>
    %535 = vector.broadcast %534 : f32 to vector<28x28xf32>
    %536 = arith.mulf %535, %529 : vector<28x28xf32>
    %537 = arith.addf %524, %536 : vector<28x28xf32>
    %c67 = arith.constant 67 : index
    %538 = memref.load %arg3[%c67] : memref<81xf32, #tpu.memory_space<smem>>
    %539 = vector.broadcast %538 : f32 to vector<28x28xf32>
    %540 = arith.mulf %539, %529 : vector<28x28xf32>
    %541 = arith.addf %528, %540 : vector<28x28xf32>
    %542 = vector.extract_strided_slice %476 {offsets = [1, 2], sizes = [28, 28], strides = [1, 1]} : vector<30x30xf32> to vector<28x28xf32>
    %c14_85 = arith.constant 14 : index
    %543 = memref.load %arg3[%c14_85] : memref<81xf32, #tpu.memory_space<smem>>
    %544 = vector.broadcast %543 : f32 to vector<28x28xf32>
    %545 = arith.mulf %544, %542 : vector<28x28xf32>
    %546 = arith.addf %533, %545 : vector<28x28xf32>
    %c41 = arith.constant 41 : index
    %547 = memref.load %arg3[%c41] : memref<81xf32, #tpu.memory_space<smem>>
    %548 = vector.broadcast %547 : f32 to vector<28x28xf32>
    %549 = arith.mulf %548, %542 : vector<28x28xf32>
    %550 = arith.addf %537, %549 : vector<28x28xf32>
    %c68 = arith.constant 68 : index
    %551 = memref.load %arg3[%c68] : memref<81xf32, #tpu.memory_space<smem>>
    %552 = vector.broadcast %551 : f32 to vector<28x28xf32>
    %553 = arith.mulf %552, %542 : vector<28x28xf32>
    %554 = arith.addf %541, %553 : vector<28x28xf32>
    %555 = vector.extract_strided_slice %476 {offsets = [2, 0], sizes = [28, 28], strides = [1, 1]} : vector<30x30xf32> to vector<28x28xf32>
    %c15_86 = arith.constant 15 : index
    %556 = memref.load %arg3[%c15_86] : memref<81xf32, #tpu.memory_space<smem>>
    %557 = vector.broadcast %556 : f32 to vector<28x28xf32>
    %558 = arith.mulf %557, %555 : vector<28x28xf32>
    %559 = arith.addf %546, %558 : vector<28x28xf32>
    %c42 = arith.constant 42 : index
    %560 = memref.load %arg3[%c42] : memref<81xf32, #tpu.memory_space<smem>>
    %561 = vector.broadcast %560 : f32 to vector<28x28xf32>
    %562 = arith.mulf %561, %555 : vector<28x28xf32>
    %563 = arith.addf %550, %562 : vector<28x28xf32>
    %c69 = arith.constant 69 : index
    %564 = memref.load %arg3[%c69] : memref<81xf32, #tpu.memory_space<smem>>
    %565 = vector.broadcast %564 : f32 to vector<28x28xf32>
    %566 = arith.mulf %565, %555 : vector<28x28xf32>
    %567 = arith.addf %554, %566 : vector<28x28xf32>
    %568 = vector.extract_strided_slice %476 {offsets = [2, 1], sizes = [28, 28], strides = [1, 1]} : vector<30x30xf32> to vector<28x28xf32>
    %c16_87 = arith.constant 16 : index
    %569 = memref.load %arg3[%c16_87] : memref<81xf32, #tpu.memory_space<smem>>
    %570 = vector.broadcast %569 : f32 to vector<28x28xf32>
    %571 = arith.mulf %570, %568 : vector<28x28xf32>
    %572 = arith.addf %559, %571 : vector<28x28xf32>
    %c43 = arith.constant 43 : index
    %573 = memref.load %arg3[%c43] : memref<81xf32, #tpu.memory_space<smem>>
    %574 = vector.broadcast %573 : f32 to vector<28x28xf32>
    %575 = arith.mulf %574, %568 : vector<28x28xf32>
    %576 = arith.addf %563, %575 : vector<28x28xf32>
    %c70 = arith.constant 70 : index
    %577 = memref.load %arg3[%c70] : memref<81xf32, #tpu.memory_space<smem>>
    %578 = vector.broadcast %577 : f32 to vector<28x28xf32>
    %579 = arith.mulf %578, %568 : vector<28x28xf32>
    %580 = arith.addf %567, %579 : vector<28x28xf32>
    %581 = vector.extract_strided_slice %476 {offsets = [2, 2], sizes = [28, 28], strides = [1, 1]} : vector<30x30xf32> to vector<28x28xf32>
    %c17_88 = arith.constant 17 : index
    %582 = memref.load %arg3[%c17_88] : memref<81xf32, #tpu.memory_space<smem>>
    %583 = vector.broadcast %582 : f32 to vector<28x28xf32>
    %584 = arith.mulf %583, %581 : vector<28x28xf32>
    %585 = arith.addf %572, %584 : vector<28x28xf32>
    %c44 = arith.constant 44 : index
    %586 = memref.load %arg3[%c44] : memref<81xf32, #tpu.memory_space<smem>>
    %587 = vector.broadcast %586 : f32 to vector<28x28xf32>
    %588 = arith.mulf %587, %581 : vector<28x28xf32>
    %589 = arith.addf %576, %588 : vector<28x28xf32>
    %c71 = arith.constant 71 : index
    %590 = memref.load %arg3[%c71] : memref<81xf32, #tpu.memory_space<smem>>
    %591 = vector.broadcast %590 : f32 to vector<28x28xf32>
    %592 = arith.mulf %591, %581 : vector<28x28xf32>
    %593 = arith.addf %580, %592 : vector<28x28xf32>
    %594 = tpu.concatenate %0, %328, %0 in 0 : vector<1x28xf32>, vector<28x28xf32>, vector<1x28xf32> -> vector<30x28xf32>
    %595 = tpu.concatenate %1, %594, %1 in 1 : vector<30x1xf32>, vector<30x28xf32>, vector<30x1xf32> -> vector<30x30xf32>
    %596 = vector.extract_strided_slice %595 {offsets = [0, 0], sizes = [28, 28], strides = [1, 1]} : vector<30x30xf32> to vector<28x28xf32>
    %c18_89 = arith.constant 18 : index
    %597 = memref.load %arg3[%c18_89] : memref<81xf32, #tpu.memory_space<smem>>
    %598 = vector.broadcast %597 : f32 to vector<28x28xf32>
    %599 = arith.mulf %598, %596 : vector<28x28xf32>
    %600 = arith.addf %585, %599 : vector<28x28xf32>
    %c45 = arith.constant 45 : index
    %601 = memref.load %arg3[%c45] : memref<81xf32, #tpu.memory_space<smem>>
    %602 = vector.broadcast %601 : f32 to vector<28x28xf32>
    %603 = arith.mulf %602, %596 : vector<28x28xf32>
    %604 = arith.addf %589, %603 : vector<28x28xf32>
    %c72 = arith.constant 72 : index
    %605 = memref.load %arg3[%c72] : memref<81xf32, #tpu.memory_space<smem>>
    %606 = vector.broadcast %605 : f32 to vector<28x28xf32>
    %607 = arith.mulf %606, %596 : vector<28x28xf32>
    %608 = arith.addf %593, %607 : vector<28x28xf32>
    %609 = vector.extract_strided_slice %595 {offsets = [0, 1], sizes = [28, 28], strides = [1, 1]} : vector<30x30xf32> to vector<28x28xf32>
    %c19_90 = arith.constant 19 : index
    %610 = memref.load %arg3[%c19_90] : memref<81xf32, #tpu.memory_space<smem>>
    %611 = vector.broadcast %610 : f32 to vector<28x28xf32>
    %612 = arith.mulf %611, %609 : vector<28x28xf32>
    %613 = arith.addf %600, %612 : vector<28x28xf32>
    %c46 = arith.constant 46 : index
    %614 = memref.load %arg3[%c46] : memref<81xf32, #tpu.memory_space<smem>>
    %615 = vector.broadcast %614 : f32 to vector<28x28xf32>
    %616 = arith.mulf %615, %609 : vector<28x28xf32>
    %617 = arith.addf %604, %616 : vector<28x28xf32>
    %c73 = arith.constant 73 : index
    %618 = memref.load %arg3[%c73] : memref<81xf32, #tpu.memory_space<smem>>
    %619 = vector.broadcast %618 : f32 to vector<28x28xf32>
    %620 = arith.mulf %619, %609 : vector<28x28xf32>
    %621 = arith.addf %608, %620 : vector<28x28xf32>
    %622 = vector.extract_strided_slice %595 {offsets = [0, 2], sizes = [28, 28], strides = [1, 1]} : vector<30x30xf32> to vector<28x28xf32>
    %c20_91 = arith.constant 20 : index
    %623 = memref.load %arg3[%c20_91] : memref<81xf32, #tpu.memory_space<smem>>
    %624 = vector.broadcast %623 : f32 to vector<28x28xf32>
    %625 = arith.mulf %624, %622 : vector<28x28xf32>
    %626 = arith.addf %613, %625 : vector<28x28xf32>
    %c47 = arith.constant 47 : index
    %627 = memref.load %arg3[%c47] : memref<81xf32, #tpu.memory_space<smem>>
    %628 = vector.broadcast %627 : f32 to vector<28x28xf32>
    %629 = arith.mulf %628, %622 : vector<28x28xf32>
    %630 = arith.addf %617, %629 : vector<28x28xf32>
    %c74 = arith.constant 74 : index
    %631 = memref.load %arg3[%c74] : memref<81xf32, #tpu.memory_space<smem>>
    %632 = vector.broadcast %631 : f32 to vector<28x28xf32>
    %633 = arith.mulf %632, %622 : vector<28x28xf32>
    %634 = arith.addf %621, %633 : vector<28x28xf32>
    %635 = vector.extract_strided_slice %595 {offsets = [1, 0], sizes = [28, 28], strides = [1, 1]} : vector<30x30xf32> to vector<28x28xf32>
    %c21_92 = arith.constant 21 : index
    %636 = memref.load %arg3[%c21_92] : memref<81xf32, #tpu.memory_space<smem>>
    %637 = vector.broadcast %636 : f32 to vector<28x28xf32>
    %638 = arith.mulf %637, %635 : vector<28x28xf32>
    %639 = arith.addf %626, %638 : vector<28x28xf32>
    %c48 = arith.constant 48 : index
    %640 = memref.load %arg3[%c48] : memref<81xf32, #tpu.memory_space<smem>>
    %641 = vector.broadcast %640 : f32 to vector<28x28xf32>
    %642 = arith.mulf %641, %635 : vector<28x28xf32>
    %643 = arith.addf %630, %642 : vector<28x28xf32>
    %c75 = arith.constant 75 : index
    %644 = memref.load %arg3[%c75] : memref<81xf32, #tpu.memory_space<smem>>
    %645 = vector.broadcast %644 : f32 to vector<28x28xf32>
    %646 = arith.mulf %645, %635 : vector<28x28xf32>
    %647 = arith.addf %634, %646 : vector<28x28xf32>
    %648 = vector.extract_strided_slice %595 {offsets = [1, 1], sizes = [28, 28], strides = [1, 1]} : vector<30x30xf32> to vector<28x28xf32>
    %c22_93 = arith.constant 22 : index
    %649 = memref.load %arg3[%c22_93] : memref<81xf32, #tpu.memory_space<smem>>
    %650 = vector.broadcast %649 : f32 to vector<28x28xf32>
    %651 = arith.mulf %650, %648 : vector<28x28xf32>
    %652 = arith.addf %639, %651 : vector<28x28xf32>
    %c49 = arith.constant 49 : index
    %653 = memref.load %arg3[%c49] : memref<81xf32, #tpu.memory_space<smem>>
    %654 = vector.broadcast %653 : f32 to vector<28x28xf32>
    %655 = arith.mulf %654, %648 : vector<28x28xf32>
    %656 = arith.addf %643, %655 : vector<28x28xf32>
    %c76 = arith.constant 76 : index
    %657 = memref.load %arg3[%c76] : memref<81xf32, #tpu.memory_space<smem>>
    %658 = vector.broadcast %657 : f32 to vector<28x28xf32>
    %659 = arith.mulf %658, %648 : vector<28x28xf32>
    %660 = arith.addf %647, %659 : vector<28x28xf32>
    %661 = vector.extract_strided_slice %595 {offsets = [1, 2], sizes = [28, 28], strides = [1, 1]} : vector<30x30xf32> to vector<28x28xf32>
    %c23_94 = arith.constant 23 : index
    %662 = memref.load %arg3[%c23_94] : memref<81xf32, #tpu.memory_space<smem>>
    %663 = vector.broadcast %662 : f32 to vector<28x28xf32>
    %664 = arith.mulf %663, %661 : vector<28x28xf32>
    %665 = arith.addf %652, %664 : vector<28x28xf32>
    %c50 = arith.constant 50 : index
    %666 = memref.load %arg3[%c50] : memref<81xf32, #tpu.memory_space<smem>>
    %667 = vector.broadcast %666 : f32 to vector<28x28xf32>
    %668 = arith.mulf %667, %661 : vector<28x28xf32>
    %669 = arith.addf %656, %668 : vector<28x28xf32>
    %c77 = arith.constant 77 : index
    %670 = memref.load %arg3[%c77] : memref<81xf32, #tpu.memory_space<smem>>
    %671 = vector.broadcast %670 : f32 to vector<28x28xf32>
    %672 = arith.mulf %671, %661 : vector<28x28xf32>
    %673 = arith.addf %660, %672 : vector<28x28xf32>
    %674 = vector.extract_strided_slice %595 {offsets = [2, 0], sizes = [28, 28], strides = [1, 1]} : vector<30x30xf32> to vector<28x28xf32>
    %c24_95 = arith.constant 24 : index
    %675 = memref.load %arg3[%c24_95] : memref<81xf32, #tpu.memory_space<smem>>
    %676 = vector.broadcast %675 : f32 to vector<28x28xf32>
    %677 = arith.mulf %676, %674 : vector<28x28xf32>
    %678 = arith.addf %665, %677 : vector<28x28xf32>
    %c51 = arith.constant 51 : index
    %679 = memref.load %arg3[%c51] : memref<81xf32, #tpu.memory_space<smem>>
    %680 = vector.broadcast %679 : f32 to vector<28x28xf32>
    %681 = arith.mulf %680, %674 : vector<28x28xf32>
    %682 = arith.addf %669, %681 : vector<28x28xf32>
    %c78 = arith.constant 78 : index
    %683 = memref.load %arg3[%c78] : memref<81xf32, #tpu.memory_space<smem>>
    %684 = vector.broadcast %683 : f32 to vector<28x28xf32>
    %685 = arith.mulf %684, %674 : vector<28x28xf32>
    %686 = arith.addf %673, %685 : vector<28x28xf32>
    %687 = vector.extract_strided_slice %595 {offsets = [2, 1], sizes = [28, 28], strides = [1, 1]} : vector<30x30xf32> to vector<28x28xf32>
    %c25_96 = arith.constant 25 : index
    %688 = memref.load %arg3[%c25_96] : memref<81xf32, #tpu.memory_space<smem>>
    %689 = vector.broadcast %688 : f32 to vector<28x28xf32>
    %690 = arith.mulf %689, %687 : vector<28x28xf32>
    %691 = arith.addf %678, %690 : vector<28x28xf32>
    %c52 = arith.constant 52 : index
    %692 = memref.load %arg3[%c52] : memref<81xf32, #tpu.memory_space<smem>>
    %693 = vector.broadcast %692 : f32 to vector<28x28xf32>
    %694 = arith.mulf %693, %687 : vector<28x28xf32>
    %695 = arith.addf %682, %694 : vector<28x28xf32>
    %c79 = arith.constant 79 : index
    %696 = memref.load %arg3[%c79] : memref<81xf32, #tpu.memory_space<smem>>
    %697 = vector.broadcast %696 : f32 to vector<28x28xf32>
    %698 = arith.mulf %697, %687 : vector<28x28xf32>
    %699 = arith.addf %686, %698 : vector<28x28xf32>
    %700 = vector.extract_strided_slice %595 {offsets = [2, 2], sizes = [28, 28], strides = [1, 1]} : vector<30x30xf32> to vector<28x28xf32>
    %c26_97 = arith.constant 26 : index
    %701 = memref.load %arg3[%c26_97] : memref<81xf32, #tpu.memory_space<smem>>
    %702 = vector.broadcast %701 : f32 to vector<28x28xf32>
    %703 = arith.mulf %702, %700 : vector<28x28xf32>
    %704 = arith.addf %691, %703 : vector<28x28xf32>
    %c53 = arith.constant 53 : index
    %705 = memref.load %arg3[%c53] : memref<81xf32, #tpu.memory_space<smem>>
    %706 = vector.broadcast %705 : f32 to vector<28x28xf32>
    %707 = arith.mulf %706, %700 : vector<28x28xf32>
    %708 = arith.addf %695, %707 : vector<28x28xf32>
    %c80 = arith.constant 80 : index
    %709 = memref.load %arg3[%c80] : memref<81xf32, #tpu.memory_space<smem>>
    %710 = vector.broadcast %709 : f32 to vector<28x28xf32>
    %711 = arith.mulf %710, %700 : vector<28x28xf32>
    %712 = arith.addf %699, %711 : vector<28x28xf32>
    %cst_98 = arith.constant 0.000000e+00 : f32
    %713 = vector.broadcast %cst_98 : f32 to vector<28x28xf32>
    %c0_99 = arith.constant 0 : index
    %714 = memref.load %arg4[%c0_99] : memref<3xf32, #tpu.memory_space<smem>>
    %715 = vector.broadcast %714 : f32 to vector<28x28xf32>
    %716 = arith.addf %713, %715 : vector<28x28xf32>
    %cst_100 = arith.constant 0.000000e+00 : f32
    %717 = vector.broadcast %cst_100 : f32 to vector<28x28xf32>
    %c1_101 = arith.constant 1 : index
    %718 = memref.load %arg4[%c1_101] : memref<3xf32, #tpu.memory_space<smem>>
    %719 = vector.broadcast %718 : f32 to vector<28x28xf32>
    %720 = arith.addf %717, %719 : vector<28x28xf32>
    %cst_102 = arith.constant 0.000000e+00 : f32
    %721 = vector.broadcast %cst_102 : f32 to vector<28x28xf32>
    %c2_103 = arith.constant 2 : index
    %722 = memref.load %arg4[%c2_103] : memref<3xf32, #tpu.memory_space<smem>>
    %723 = vector.broadcast %722 : f32 to vector<28x28xf32>
    %724 = arith.addf %721, %723 : vector<28x28xf32>
    %725 = tpu.concatenate %0, %333, %0 in 0 : vector<1x28xf32>, vector<28x28xf32>, vector<1x28xf32> -> vector<30x28xf32>
    %726 = tpu.concatenate %1, %725, %1 in 1 : vector<30x1xf32>, vector<30x28xf32>, vector<30x1xf32> -> vector<30x30xf32>
    %727 = vector.extract_strided_slice %726 {offsets = [0, 0], sizes = [28, 28], strides = [1, 1]} : vector<30x30xf32> to vector<28x28xf32>
    %c0_104 = arith.constant 0 : index
    %728 = memref.load %arg3[%c0_104] : memref<81xf32, #tpu.memory_space<smem>>
    %729 = vector.broadcast %728 : f32 to vector<28x28xf32>
    %730 = arith.mulf %729, %727 : vector<28x28xf32>
    %731 = arith.addf %716, %730 : vector<28x28xf32>
    %c27_105 = arith.constant 27 : index
    %732 = memref.load %arg3[%c27_105] : memref<81xf32, #tpu.memory_space<smem>>
    %733 = vector.broadcast %732 : f32 to vector<28x28xf32>
    %734 = arith.mulf %733, %727 : vector<28x28xf32>
    %735 = arith.addf %720, %734 : vector<28x28xf32>
    %c54_106 = arith.constant 54 : index
    %736 = memref.load %arg3[%c54_106] : memref<81xf32, #tpu.memory_space<smem>>
    %737 = vector.broadcast %736 : f32 to vector<28x28xf32>
    %738 = arith.mulf %737, %727 : vector<28x28xf32>
    %739 = arith.addf %724, %738 : vector<28x28xf32>
    %740 = vector.extract_strided_slice %726 {offsets = [0, 1], sizes = [28, 28], strides = [1, 1]} : vector<30x30xf32> to vector<28x28xf32>
    %c1_107 = arith.constant 1 : index
    %741 = memref.load %arg3[%c1_107] : memref<81xf32, #tpu.memory_space<smem>>
    %742 = vector.broadcast %741 : f32 to vector<28x28xf32>
    %743 = arith.mulf %742, %740 : vector<28x28xf32>
    %744 = arith.addf %731, %743 : vector<28x28xf32>
    %c28_108 = arith.constant 28 : index
    %745 = memref.load %arg3[%c28_108] : memref<81xf32, #tpu.memory_space<smem>>
    %746 = vector.broadcast %745 : f32 to vector<28x28xf32>
    %747 = arith.mulf %746, %740 : vector<28x28xf32>
    %748 = arith.addf %735, %747 : vector<28x28xf32>
    %c55_109 = arith.constant 55 : index
    %749 = memref.load %arg3[%c55_109] : memref<81xf32, #tpu.memory_space<smem>>
    %750 = vector.broadcast %749 : f32 to vector<28x28xf32>
    %751 = arith.mulf %750, %740 : vector<28x28xf32>
    %752 = arith.addf %739, %751 : vector<28x28xf32>
    %753 = vector.extract_strided_slice %726 {offsets = [0, 2], sizes = [28, 28], strides = [1, 1]} : vector<30x30xf32> to vector<28x28xf32>
    %c2_110 = arith.constant 2 : index
    %754 = memref.load %arg3[%c2_110] : memref<81xf32, #tpu.memory_space<smem>>
    %755 = vector.broadcast %754 : f32 to vector<28x28xf32>
    %756 = arith.mulf %755, %753 : vector<28x28xf32>
    %757 = arith.addf %744, %756 : vector<28x28xf32>
    %c29_111 = arith.constant 29 : index
    %758 = memref.load %arg3[%c29_111] : memref<81xf32, #tpu.memory_space<smem>>
    %759 = vector.broadcast %758 : f32 to vector<28x28xf32>
    %760 = arith.mulf %759, %753 : vector<28x28xf32>
    %761 = arith.addf %748, %760 : vector<28x28xf32>
    %c56_112 = arith.constant 56 : index
    %762 = memref.load %arg3[%c56_112] : memref<81xf32, #tpu.memory_space<smem>>
    %763 = vector.broadcast %762 : f32 to vector<28x28xf32>
    %764 = arith.mulf %763, %753 : vector<28x28xf32>
    %765 = arith.addf %752, %764 : vector<28x28xf32>
    %766 = vector.extract_strided_slice %726 {offsets = [1, 0], sizes = [28, 28], strides = [1, 1]} : vector<30x30xf32> to vector<28x28xf32>
    %c3_113 = arith.constant 3 : index
    %767 = memref.load %arg3[%c3_113] : memref<81xf32, #tpu.memory_space<smem>>
    %768 = vector.broadcast %767 : f32 to vector<28x28xf32>
    %769 = arith.mulf %768, %766 : vector<28x28xf32>
    %770 = arith.addf %757, %769 : vector<28x28xf32>
    %c30_114 = arith.constant 30 : index
    %771 = memref.load %arg3[%c30_114] : memref<81xf32, #tpu.memory_space<smem>>
    %772 = vector.broadcast %771 : f32 to vector<28x28xf32>
    %773 = arith.mulf %772, %766 : vector<28x28xf32>
    %774 = arith.addf %761, %773 : vector<28x28xf32>
    %c57_115 = arith.constant 57 : index
    %775 = memref.load %arg3[%c57_115] : memref<81xf32, #tpu.memory_space<smem>>
    %776 = vector.broadcast %775 : f32 to vector<28x28xf32>
    %777 = arith.mulf %776, %766 : vector<28x28xf32>
    %778 = arith.addf %765, %777 : vector<28x28xf32>
    %779 = vector.extract_strided_slice %726 {offsets = [1, 1], sizes = [28, 28], strides = [1, 1]} : vector<30x30xf32> to vector<28x28xf32>
    %c4_116 = arith.constant 4 : index
    %780 = memref.load %arg3[%c4_116] : memref<81xf32, #tpu.memory_space<smem>>
    %781 = vector.broadcast %780 : f32 to vector<28x28xf32>
    %782 = arith.mulf %781, %779 : vector<28x28xf32>
    %783 = arith.addf %770, %782 : vector<28x28xf32>
    %c31_117 = arith.constant 31 : index
    %784 = memref.load %arg3[%c31_117] : memref<81xf32, #tpu.memory_space<smem>>
    %785 = vector.broadcast %784 : f32 to vector<28x28xf32>
    %786 = arith.mulf %785, %779 : vector<28x28xf32>
    %787 = arith.addf %774, %786 : vector<28x28xf32>
    %c58_118 = arith.constant 58 : index
    %788 = memref.load %arg3[%c58_118] : memref<81xf32, #tpu.memory_space<smem>>
    %789 = vector.broadcast %788 : f32 to vector<28x28xf32>
    %790 = arith.mulf %789, %779 : vector<28x28xf32>
    %791 = arith.addf %778, %790 : vector<28x28xf32>
    %792 = vector.extract_strided_slice %726 {offsets = [1, 2], sizes = [28, 28], strides = [1, 1]} : vector<30x30xf32> to vector<28x28xf32>
    %c5_119 = arith.constant 5 : index
    %793 = memref.load %arg3[%c5_119] : memref<81xf32, #tpu.memory_space<smem>>
    %794 = vector.broadcast %793 : f32 to vector<28x28xf32>
    %795 = arith.mulf %794, %792 : vector<28x28xf32>
    %796 = arith.addf %783, %795 : vector<28x28xf32>
    %c32_120 = arith.constant 32 : index
    %797 = memref.load %arg3[%c32_120] : memref<81xf32, #tpu.memory_space<smem>>
    %798 = vector.broadcast %797 : f32 to vector<28x28xf32>
    %799 = arith.mulf %798, %792 : vector<28x28xf32>
    %800 = arith.addf %787, %799 : vector<28x28xf32>
    %c59_121 = arith.constant 59 : index
    %801 = memref.load %arg3[%c59_121] : memref<81xf32, #tpu.memory_space<smem>>
    %802 = vector.broadcast %801 : f32 to vector<28x28xf32>
    %803 = arith.mulf %802, %792 : vector<28x28xf32>
    %804 = arith.addf %791, %803 : vector<28x28xf32>
    %805 = vector.extract_strided_slice %726 {offsets = [2, 0], sizes = [28, 28], strides = [1, 1]} : vector<30x30xf32> to vector<28x28xf32>
    %c6_122 = arith.constant 6 : index
    %806 = memref.load %arg3[%c6_122] : memref<81xf32, #tpu.memory_space<smem>>
    %807 = vector.broadcast %806 : f32 to vector<28x28xf32>
    %808 = arith.mulf %807, %805 : vector<28x28xf32>
    %809 = arith.addf %796, %808 : vector<28x28xf32>
    %c33_123 = arith.constant 33 : index
    %810 = memref.load %arg3[%c33_123] : memref<81xf32, #tpu.memory_space<smem>>
    %811 = vector.broadcast %810 : f32 to vector<28x28xf32>
    %812 = arith.mulf %811, %805 : vector<28x28xf32>
    %813 = arith.addf %800, %812 : vector<28x28xf32>
    %c60_124 = arith.constant 60 : index
    %814 = memref.load %arg3[%c60_124] : memref<81xf32, #tpu.memory_space<smem>>
    %815 = vector.broadcast %814 : f32 to vector<28x28xf32>
    %816 = arith.mulf %815, %805 : vector<28x28xf32>
    %817 = arith.addf %804, %816 : vector<28x28xf32>
    %818 = vector.extract_strided_slice %726 {offsets = [2, 1], sizes = [28, 28], strides = [1, 1]} : vector<30x30xf32> to vector<28x28xf32>
    %c7_125 = arith.constant 7 : index
    %819 = memref.load %arg3[%c7_125] : memref<81xf32, #tpu.memory_space<smem>>
    %820 = vector.broadcast %819 : f32 to vector<28x28xf32>
    %821 = arith.mulf %820, %818 : vector<28x28xf32>
    %822 = arith.addf %809, %821 : vector<28x28xf32>
    %c34_126 = arith.constant 34 : index
    %823 = memref.load %arg3[%c34_126] : memref<81xf32, #tpu.memory_space<smem>>
    %824 = vector.broadcast %823 : f32 to vector<28x28xf32>
    %825 = arith.mulf %824, %818 : vector<28x28xf32>
    %826 = arith.addf %813, %825 : vector<28x28xf32>
    %c61_127 = arith.constant 61 : index
    %827 = memref.load %arg3[%c61_127] : memref<81xf32, #tpu.memory_space<smem>>
    %828 = vector.broadcast %827 : f32 to vector<28x28xf32>
    %829 = arith.mulf %828, %818 : vector<28x28xf32>
    %830 = arith.addf %817, %829 : vector<28x28xf32>
    %831 = vector.extract_strided_slice %726 {offsets = [2, 2], sizes = [28, 28], strides = [1, 1]} : vector<30x30xf32> to vector<28x28xf32>
    %c8_128 = arith.constant 8 : index
    %832 = memref.load %arg3[%c8_128] : memref<81xf32, #tpu.memory_space<smem>>
    %833 = vector.broadcast %832 : f32 to vector<28x28xf32>
    %834 = arith.mulf %833, %831 : vector<28x28xf32>
    %835 = arith.addf %822, %834 : vector<28x28xf32>
    %c35_129 = arith.constant 35 : index
    %836 = memref.load %arg3[%c35_129] : memref<81xf32, #tpu.memory_space<smem>>
    %837 = vector.broadcast %836 : f32 to vector<28x28xf32>
    %838 = arith.mulf %837, %831 : vector<28x28xf32>
    %839 = arith.addf %826, %838 : vector<28x28xf32>
    %c62_130 = arith.constant 62 : index
    %840 = memref.load %arg3[%c62_130] : memref<81xf32, #tpu.memory_space<smem>>
    %841 = vector.broadcast %840 : f32 to vector<28x28xf32>
    %842 = arith.mulf %841, %831 : vector<28x28xf32>
    %843 = arith.addf %830, %842 : vector<28x28xf32>
    %844 = tpu.concatenate %0, %338, %0 in 0 : vector<1x28xf32>, vector<28x28xf32>, vector<1x28xf32> -> vector<30x28xf32>
    %845 = tpu.concatenate %1, %844, %1 in 1 : vector<30x1xf32>, vector<30x28xf32>, vector<30x1xf32> -> vector<30x30xf32>
    %846 = vector.extract_strided_slice %845 {offsets = [0, 0], sizes = [28, 28], strides = [1, 1]} : vector<30x30xf32> to vector<28x28xf32>
    %c9_131 = arith.constant 9 : index
    %847 = memref.load %arg3[%c9_131] : memref<81xf32, #tpu.memory_space<smem>>
    %848 = vector.broadcast %847 : f32 to vector<28x28xf32>
    %849 = arith.mulf %848, %846 : vector<28x28xf32>
    %850 = arith.addf %835, %849 : vector<28x28xf32>
    %c36_132 = arith.constant 36 : index
    %851 = memref.load %arg3[%c36_132] : memref<81xf32, #tpu.memory_space<smem>>
    %852 = vector.broadcast %851 : f32 to vector<28x28xf32>
    %853 = arith.mulf %852, %846 : vector<28x28xf32>
    %854 = arith.addf %839, %853 : vector<28x28xf32>
    %c63_133 = arith.constant 63 : index
    %855 = memref.load %arg3[%c63_133] : memref<81xf32, #tpu.memory_space<smem>>
    %856 = vector.broadcast %855 : f32 to vector<28x28xf32>
    %857 = arith.mulf %856, %846 : vector<28x28xf32>
    %858 = arith.addf %843, %857 : vector<28x28xf32>
    %859 = vector.extract_strided_slice %845 {offsets = [0, 1], sizes = [28, 28], strides = [1, 1]} : vector<30x30xf32> to vector<28x28xf32>
    %c10_134 = arith.constant 10 : index
    %860 = memref.load %arg3[%c10_134] : memref<81xf32, #tpu.memory_space<smem>>
    %861 = vector.broadcast %860 : f32 to vector<28x28xf32>
    %862 = arith.mulf %861, %859 : vector<28x28xf32>
    %863 = arith.addf %850, %862 : vector<28x28xf32>
    %c37_135 = arith.constant 37 : index
    %864 = memref.load %arg3[%c37_135] : memref<81xf32, #tpu.memory_space<smem>>
    %865 = vector.broadcast %864 : f32 to vector<28x28xf32>
    %866 = arith.mulf %865, %859 : vector<28x28xf32>
    %867 = arith.addf %854, %866 : vector<28x28xf32>
    %c64_136 = arith.constant 64 : index
    %868 = memref.load %arg3[%c64_136] : memref<81xf32, #tpu.memory_space<smem>>
    %869 = vector.broadcast %868 : f32 to vector<28x28xf32>
    %870 = arith.mulf %869, %859 : vector<28x28xf32>
    %871 = arith.addf %858, %870 : vector<28x28xf32>
    %872 = vector.extract_strided_slice %845 {offsets = [0, 2], sizes = [28, 28], strides = [1, 1]} : vector<30x30xf32> to vector<28x28xf32>
    %c11_137 = arith.constant 11 : index
    %873 = memref.load %arg3[%c11_137] : memref<81xf32, #tpu.memory_space<smem>>
    %874 = vector.broadcast %873 : f32 to vector<28x28xf32>
    %875 = arith.mulf %874, %872 : vector<28x28xf32>
    %876 = arith.addf %863, %875 : vector<28x28xf32>
    %c38_138 = arith.constant 38 : index
    %877 = memref.load %arg3[%c38_138] : memref<81xf32, #tpu.memory_space<smem>>
    %878 = vector.broadcast %877 : f32 to vector<28x28xf32>
    %879 = arith.mulf %878, %872 : vector<28x28xf32>
    %880 = arith.addf %867, %879 : vector<28x28xf32>
    %c65_139 = arith.constant 65 : index
    %881 = memref.load %arg3[%c65_139] : memref<81xf32, #tpu.memory_space<smem>>
    %882 = vector.broadcast %881 : f32 to vector<28x28xf32>
    %883 = arith.mulf %882, %872 : vector<28x28xf32>
    %884 = arith.addf %871, %883 : vector<28x28xf32>
    %885 = vector.extract_strided_slice %845 {offsets = [1, 0], sizes = [28, 28], strides = [1, 1]} : vector<30x30xf32> to vector<28x28xf32>
    %c12_140 = arith.constant 12 : index
    %886 = memref.load %arg3[%c12_140] : memref<81xf32, #tpu.memory_space<smem>>
    %887 = vector.broadcast %886 : f32 to vector<28x28xf32>
    %888 = arith.mulf %887, %885 : vector<28x28xf32>
    %889 = arith.addf %876, %888 : vector<28x28xf32>
    %c39_141 = arith.constant 39 : index
    %890 = memref.load %arg3[%c39_141] : memref<81xf32, #tpu.memory_space<smem>>
    %891 = vector.broadcast %890 : f32 to vector<28x28xf32>
    %892 = arith.mulf %891, %885 : vector<28x28xf32>
    %893 = arith.addf %880, %892 : vector<28x28xf32>
    %c66_142 = arith.constant 66 : index
    %894 = memref.load %arg3[%c66_142] : memref<81xf32, #tpu.memory_space<smem>>
    %895 = vector.broadcast %894 : f32 to vector<28x28xf32>
    %896 = arith.mulf %895, %885 : vector<28x28xf32>
    %897 = arith.addf %884, %896 : vector<28x28xf32>
    %898 = vector.extract_strided_slice %845 {offsets = [1, 1], sizes = [28, 28], strides = [1, 1]} : vector<30x30xf32> to vector<28x28xf32>
    %c13_143 = arith.constant 13 : index
    %899 = memref.load %arg3[%c13_143] : memref<81xf32, #tpu.memory_space<smem>>
    %900 = vector.broadcast %899 : f32 to vector<28x28xf32>
    %901 = arith.mulf %900, %898 : vector<28x28xf32>
    %902 = arith.addf %889, %901 : vector<28x28xf32>
    %c40_144 = arith.constant 40 : index
    %903 = memref.load %arg3[%c40_144] : memref<81xf32, #tpu.memory_space<smem>>
    %904 = vector.broadcast %903 : f32 to vector<28x28xf32>
    %905 = arith.mulf %904, %898 : vector<28x28xf32>
    %906 = arith.addf %893, %905 : vector<28x28xf32>
    %c67_145 = arith.constant 67 : index
    %907 = memref.load %arg3[%c67_145] : memref<81xf32, #tpu.memory_space<smem>>
    %908 = vector.broadcast %907 : f32 to vector<28x28xf32>
    %909 = arith.mulf %908, %898 : vector<28x28xf32>
    %910 = arith.addf %897, %909 : vector<28x28xf32>
    %911 = vector.extract_strided_slice %845 {offsets = [1, 2], sizes = [28, 28], strides = [1, 1]} : vector<30x30xf32> to vector<28x28xf32>
    %c14_146 = arith.constant 14 : index
    %912 = memref.load %arg3[%c14_146] : memref<81xf32, #tpu.memory_space<smem>>
    %913 = vector.broadcast %912 : f32 to vector<28x28xf32>
    %914 = arith.mulf %913, %911 : vector<28x28xf32>
    %915 = arith.addf %902, %914 : vector<28x28xf32>
    %c41_147 = arith.constant 41 : index
    %916 = memref.load %arg3[%c41_147] : memref<81xf32, #tpu.memory_space<smem>>
    %917 = vector.broadcast %916 : f32 to vector<28x28xf32>
    %918 = arith.mulf %917, %911 : vector<28x28xf32>
    %919 = arith.addf %906, %918 : vector<28x28xf32>
    %c68_148 = arith.constant 68 : index
    %920 = memref.load %arg3[%c68_148] : memref<81xf32, #tpu.memory_space<smem>>
    %921 = vector.broadcast %920 : f32 to vector<28x28xf32>
    %922 = arith.mulf %921, %911 : vector<28x28xf32>
    %923 = arith.addf %910, %922 : vector<28x28xf32>
    %924 = vector.extract_strided_slice %845 {offsets = [2, 0], sizes = [28, 28], strides = [1, 1]} : vector<30x30xf32> to vector<28x28xf32>
    %c15_149 = arith.constant 15 : index
    %925 = memref.load %arg3[%c15_149] : memref<81xf32, #tpu.memory_space<smem>>
    %926 = vector.broadcast %925 : f32 to vector<28x28xf32>
    %927 = arith.mulf %926, %924 : vector<28x28xf32>
    %928 = arith.addf %915, %927 : vector<28x28xf32>
    %c42_150 = arith.constant 42 : index
    %929 = memref.load %arg3[%c42_150] : memref<81xf32, #tpu.memory_space<smem>>
    %930 = vector.broadcast %929 : f32 to vector<28x28xf32>
    %931 = arith.mulf %930, %924 : vector<28x28xf32>
    %932 = arith.addf %919, %931 : vector<28x28xf32>
    %c69_151 = arith.constant 69 : index
    %933 = memref.load %arg3[%c69_151] : memref<81xf32, #tpu.memory_space<smem>>
    %934 = vector.broadcast %933 : f32 to vector<28x28xf32>
    %935 = arith.mulf %934, %924 : vector<28x28xf32>
    %936 = arith.addf %923, %935 : vector<28x28xf32>
    %937 = vector.extract_strided_slice %845 {offsets = [2, 1], sizes = [28, 28], strides = [1, 1]} : vector<30x30xf32> to vector<28x28xf32>
    %c16_152 = arith.constant 16 : index
    %938 = memref.load %arg3[%c16_152] : memref<81xf32, #tpu.memory_space<smem>>
    %939 = vector.broadcast %938 : f32 to vector<28x28xf32>
    %940 = arith.mulf %939, %937 : vector<28x28xf32>
    %941 = arith.addf %928, %940 : vector<28x28xf32>
    %c43_153 = arith.constant 43 : index
    %942 = memref.load %arg3[%c43_153] : memref<81xf32, #tpu.memory_space<smem>>
    %943 = vector.broadcast %942 : f32 to vector<28x28xf32>
    %944 = arith.mulf %943, %937 : vector<28x28xf32>
    %945 = arith.addf %932, %944 : vector<28x28xf32>
    %c70_154 = arith.constant 70 : index
    %946 = memref.load %arg3[%c70_154] : memref<81xf32, #tpu.memory_space<smem>>
    %947 = vector.broadcast %946 : f32 to vector<28x28xf32>
    %948 = arith.mulf %947, %937 : vector<28x28xf32>
    %949 = arith.addf %936, %948 : vector<28x28xf32>
    %950 = vector.extract_strided_slice %845 {offsets = [2, 2], sizes = [28, 28], strides = [1, 1]} : vector<30x30xf32> to vector<28x28xf32>
    %c17_155 = arith.constant 17 : index
    %951 = memref.load %arg3[%c17_155] : memref<81xf32, #tpu.memory_space<smem>>
    %952 = vector.broadcast %951 : f32 to vector<28x28xf32>
    %953 = arith.mulf %952, %950 : vector<28x28xf32>
    %954 = arith.addf %941, %953 : vector<28x28xf32>
    %c44_156 = arith.constant 44 : index
    %955 = memref.load %arg3[%c44_156] : memref<81xf32, #tpu.memory_space<smem>>
    %956 = vector.broadcast %955 : f32 to vector<28x28xf32>
    %957 = arith.mulf %956, %950 : vector<28x28xf32>
    %958 = arith.addf %945, %957 : vector<28x28xf32>
    %c71_157 = arith.constant 71 : index
    %959 = memref.load %arg3[%c71_157] : memref<81xf32, #tpu.memory_space<smem>>
    %960 = vector.broadcast %959 : f32 to vector<28x28xf32>
    %961 = arith.mulf %960, %950 : vector<28x28xf32>
    %962 = arith.addf %949, %961 : vector<28x28xf32>
    %963 = tpu.concatenate %0, %343, %0 in 0 : vector<1x28xf32>, vector<28x28xf32>, vector<1x28xf32> -> vector<30x28xf32>
    %964 = tpu.concatenate %1, %963, %1 in 1 : vector<30x1xf32>, vector<30x28xf32>, vector<30x1xf32> -> vector<30x30xf32>
    %965 = vector.extract_strided_slice %964 {offsets = [0, 0], sizes = [28, 28], strides = [1, 1]} : vector<30x30xf32> to vector<28x28xf32>
    %c18_158 = arith.constant 18 : index
    %966 = memref.load %arg3[%c18_158] : memref<81xf32, #tpu.memory_space<smem>>
    %967 = vector.broadcast %966 : f32 to vector<28x28xf32>
    %968 = arith.mulf %967, %965 : vector<28x28xf32>
    %969 = arith.addf %954, %968 : vector<28x28xf32>
    %c45_159 = arith.constant 45 : index
    %970 = memref.load %arg3[%c45_159] : memref<81xf32, #tpu.memory_space<smem>>
    %971 = vector.broadcast %970 : f32 to vector<28x28xf32>
    %972 = arith.mulf %971, %965 : vector<28x28xf32>
    %973 = arith.addf %958, %972 : vector<28x28xf32>
    %c72_160 = arith.constant 72 : index
    %974 = memref.load %arg3[%c72_160] : memref<81xf32, #tpu.memory_space<smem>>
    %975 = vector.broadcast %974 : f32 to vector<28x28xf32>
    %976 = arith.mulf %975, %965 : vector<28x28xf32>
    %977 = arith.addf %962, %976 : vector<28x28xf32>
    %978 = vector.extract_strided_slice %964 {offsets = [0, 1], sizes = [28, 28], strides = [1, 1]} : vector<30x30xf32> to vector<28x28xf32>
    %c19_161 = arith.constant 19 : index
    %979 = memref.load %arg3[%c19_161] : memref<81xf32, #tpu.memory_space<smem>>
    %980 = vector.broadcast %979 : f32 to vector<28x28xf32>
    %981 = arith.mulf %980, %978 : vector<28x28xf32>
    %982 = arith.addf %969, %981 : vector<28x28xf32>
    %c46_162 = arith.constant 46 : index
    %983 = memref.load %arg3[%c46_162] : memref<81xf32, #tpu.memory_space<smem>>
    %984 = vector.broadcast %983 : f32 to vector<28x28xf32>
    %985 = arith.mulf %984, %978 : vector<28x28xf32>
    %986 = arith.addf %973, %985 : vector<28x28xf32>
    %c73_163 = arith.constant 73 : index
    %987 = memref.load %arg3[%c73_163] : memref<81xf32, #tpu.memory_space<smem>>
    %988 = vector.broadcast %987 : f32 to vector<28x28xf32>
    %989 = arith.mulf %988, %978 : vector<28x28xf32>
    %990 = arith.addf %977, %989 : vector<28x28xf32>
    %991 = vector.extract_strided_slice %964 {offsets = [0, 2], sizes = [28, 28], strides = [1, 1]} : vector<30x30xf32> to vector<28x28xf32>
    %c20_164 = arith.constant 20 : index
    %992 = memref.load %arg3[%c20_164] : memref<81xf32, #tpu.memory_space<smem>>
    %993 = vector.broadcast %992 : f32 to vector<28x28xf32>
    %994 = arith.mulf %993, %991 : vector<28x28xf32>
    %995 = arith.addf %982, %994 : vector<28x28xf32>
    %c47_165 = arith.constant 47 : index
    %996 = memref.load %arg3[%c47_165] : memref<81xf32, #tpu.memory_space<smem>>
    %997 = vector.broadcast %996 : f32 to vector<28x28xf32>
    %998 = arith.mulf %997, %991 : vector<28x28xf32>
    %999 = arith.addf %986, %998 : vector<28x28xf32>
    %c74_166 = arith.constant 74 : index
    %1000 = memref.load %arg3[%c74_166] : memref<81xf32, #tpu.memory_space<smem>>
    %1001 = vector.broadcast %1000 : f32 to vector<28x28xf32>
    %1002 = arith.mulf %1001, %991 : vector<28x28xf32>
    %1003 = arith.addf %990, %1002 : vector<28x28xf32>
    %1004 = vector.extract_strided_slice %964 {offsets = [1, 0], sizes = [28, 28], strides = [1, 1]} : vector<30x30xf32> to vector<28x28xf32>
    %c21_167 = arith.constant 21 : index
    %1005 = memref.load %arg3[%c21_167] : memref<81xf32, #tpu.memory_space<smem>>
    %1006 = vector.broadcast %1005 : f32 to vector<28x28xf32>
    %1007 = arith.mulf %1006, %1004 : vector<28x28xf32>
    %1008 = arith.addf %995, %1007 : vector<28x28xf32>
    %c48_168 = arith.constant 48 : index
    %1009 = memref.load %arg3[%c48_168] : memref<81xf32, #tpu.memory_space<smem>>
    %1010 = vector.broadcast %1009 : f32 to vector<28x28xf32>
    %1011 = arith.mulf %1010, %1004 : vector<28x28xf32>
    %1012 = arith.addf %999, %1011 : vector<28x28xf32>
    %c75_169 = arith.constant 75 : index
    %1013 = memref.load %arg3[%c75_169] : memref<81xf32, #tpu.memory_space<smem>>
    %1014 = vector.broadcast %1013 : f32 to vector<28x28xf32>
    %1015 = arith.mulf %1014, %1004 : vector<28x28xf32>
    %1016 = arith.addf %1003, %1015 : vector<28x28xf32>
    %1017 = vector.extract_strided_slice %964 {offsets = [1, 1], sizes = [28, 28], strides = [1, 1]} : vector<30x30xf32> to vector<28x28xf32>
    %c22_170 = arith.constant 22 : index
    %1018 = memref.load %arg3[%c22_170] : memref<81xf32, #tpu.memory_space<smem>>
    %1019 = vector.broadcast %1018 : f32 to vector<28x28xf32>
    %1020 = arith.mulf %1019, %1017 : vector<28x28xf32>
    %1021 = arith.addf %1008, %1020 : vector<28x28xf32>
    %c49_171 = arith.constant 49 : index
    %1022 = memref.load %arg3[%c49_171] : memref<81xf32, #tpu.memory_space<smem>>
    %1023 = vector.broadcast %1022 : f32 to vector<28x28xf32>
    %1024 = arith.mulf %1023, %1017 : vector<28x28xf32>
    %1025 = arith.addf %1012, %1024 : vector<28x28xf32>
    %c76_172 = arith.constant 76 : index
    %1026 = memref.load %arg3[%c76_172] : memref<81xf32, #tpu.memory_space<smem>>
    %1027 = vector.broadcast %1026 : f32 to vector<28x28xf32>
    %1028 = arith.mulf %1027, %1017 : vector<28x28xf32>
    %1029 = arith.addf %1016, %1028 : vector<28x28xf32>
    %1030 = vector.extract_strided_slice %964 {offsets = [1, 2], sizes = [28, 28], strides = [1, 1]} : vector<30x30xf32> to vector<28x28xf32>
    %c23_173 = arith.constant 23 : index
    %1031 = memref.load %arg3[%c23_173] : memref<81xf32, #tpu.memory_space<smem>>
    %1032 = vector.broadcast %1031 : f32 to vector<28x28xf32>
    %1033 = arith.mulf %1032, %1030 : vector<28x28xf32>
    %1034 = arith.addf %1021, %1033 : vector<28x28xf32>
    %c50_174 = arith.constant 50 : index
    %1035 = memref.load %arg3[%c50_174] : memref<81xf32, #tpu.memory_space<smem>>
    %1036 = vector.broadcast %1035 : f32 to vector<28x28xf32>
    %1037 = arith.mulf %1036, %1030 : vector<28x28xf32>
    %1038 = arith.addf %1025, %1037 : vector<28x28xf32>
    %c77_175 = arith.constant 77 : index
    %1039 = memref.load %arg3[%c77_175] : memref<81xf32, #tpu.memory_space<smem>>
    %1040 = vector.broadcast %1039 : f32 to vector<28x28xf32>
    %1041 = arith.mulf %1040, %1030 : vector<28x28xf32>
    %1042 = arith.addf %1029, %1041 : vector<28x28xf32>
    %1043 = vector.extract_strided_slice %964 {offsets = [2, 0], sizes = [28, 28], strides = [1, 1]} : vector<30x30xf32> to vector<28x28xf32>
    %c24_176 = arith.constant 24 : index
    %1044 = memref.load %arg3[%c24_176] : memref<81xf32, #tpu.memory_space<smem>>
    %1045 = vector.broadcast %1044 : f32 to vector<28x28xf32>
    %1046 = arith.mulf %1045, %1043 : vector<28x28xf32>
    %1047 = arith.addf %1034, %1046 : vector<28x28xf32>
    %c51_177 = arith.constant 51 : index
    %1048 = memref.load %arg3[%c51_177] : memref<81xf32, #tpu.memory_space<smem>>
    %1049 = vector.broadcast %1048 : f32 to vector<28x28xf32>
    %1050 = arith.mulf %1049, %1043 : vector<28x28xf32>
    %1051 = arith.addf %1038, %1050 : vector<28x28xf32>
    %c78_178 = arith.constant 78 : index
    %1052 = memref.load %arg3[%c78_178] : memref<81xf32, #tpu.memory_space<smem>>
    %1053 = vector.broadcast %1052 : f32 to vector<28x28xf32>
    %1054 = arith.mulf %1053, %1043 : vector<28x28xf32>
    %1055 = arith.addf %1042, %1054 : vector<28x28xf32>
    %1056 = vector.extract_strided_slice %964 {offsets = [2, 1], sizes = [28, 28], strides = [1, 1]} : vector<30x30xf32> to vector<28x28xf32>
    %c25_179 = arith.constant 25 : index
    %1057 = memref.load %arg3[%c25_179] : memref<81xf32, #tpu.memory_space<smem>>
    %1058 = vector.broadcast %1057 : f32 to vector<28x28xf32>
    %1059 = arith.mulf %1058, %1056 : vector<28x28xf32>
    %1060 = arith.addf %1047, %1059 : vector<28x28xf32>
    %c52_180 = arith.constant 52 : index
    %1061 = memref.load %arg3[%c52_180] : memref<81xf32, #tpu.memory_space<smem>>
    %1062 = vector.broadcast %1061 : f32 to vector<28x28xf32>
    %1063 = arith.mulf %1062, %1056 : vector<28x28xf32>
    %1064 = arith.addf %1051, %1063 : vector<28x28xf32>
    %c79_181 = arith.constant 79 : index
    %1065 = memref.load %arg3[%c79_181] : memref<81xf32, #tpu.memory_space<smem>>
    %1066 = vector.broadcast %1065 : f32 to vector<28x28xf32>
    %1067 = arith.mulf %1066, %1056 : vector<28x28xf32>
    %1068 = arith.addf %1055, %1067 : vector<28x28xf32>
    %1069 = vector.extract_strided_slice %964 {offsets = [2, 2], sizes = [28, 28], strides = [1, 1]} : vector<30x30xf32> to vector<28x28xf32>
    %c26_182 = arith.constant 26 : index
    %1070 = memref.load %arg3[%c26_182] : memref<81xf32, #tpu.memory_space<smem>>
    %1071 = vector.broadcast %1070 : f32 to vector<28x28xf32>
    %1072 = arith.mulf %1071, %1069 : vector<28x28xf32>
    %1073 = arith.addf %1060, %1072 : vector<28x28xf32>
    %c53_183 = arith.constant 53 : index
    %1074 = memref.load %arg3[%c53_183] : memref<81xf32, #tpu.memory_space<smem>>
    %1075 = vector.broadcast %1074 : f32 to vector<28x28xf32>
    %1076 = arith.mulf %1075, %1069 : vector<28x28xf32>
    %1077 = arith.addf %1064, %1076 : vector<28x28xf32>
    %c80_184 = arith.constant 80 : index
    %1078 = memref.load %arg3[%c80_184] : memref<81xf32, #tpu.memory_space<smem>>
    %1079 = vector.broadcast %1078 : f32 to vector<28x28xf32>
    %1080 = arith.mulf %1079, %1069 : vector<28x28xf32>
    %1081 = arith.addf %1068, %1080 : vector<28x28xf32>
    %cst_185 = arith.constant 0.000000e+00 : f32
    %1082 = vector.broadcast %cst_185 : f32 to vector<28x28xf32>
    %1083 = arith.maximumf %704, %1082 : vector<28x28xf32>
    %cst_186 = arith.constant 0.000000e+00 : f32
    %1084 = vector.broadcast %cst_186 : f32 to vector<28x28xf32>
    %1085 = arith.maximumf %708, %1084 : vector<28x28xf32>
    %cst_187 = arith.constant 0.000000e+00 : f32
    %1086 = vector.broadcast %cst_187 : f32 to vector<28x28xf32>
    %1087 = arith.maximumf %712, %1086 : vector<28x28xf32>
    %cst_188 = arith.constant 0.000000e+00 : f32
    %1088 = vector.broadcast %cst_188 : f32 to vector<28x28xf32>
    %1089 = arith.maximumf %1073, %1088 : vector<28x28xf32>
    %cst_189 = arith.constant 0.000000e+00 : f32
    %1090 = vector.broadcast %cst_189 : f32 to vector<28x28xf32>
    %1091 = arith.maximumf %1077, %1090 : vector<28x28xf32>
    %cst_190 = arith.constant 0.000000e+00 : f32
    %1092 = vector.broadcast %cst_190 : f32 to vector<28x28xf32>
    %1093 = arith.maximumf %1081, %1092 : vector<28x28xf32>
    %1094 = vector.shape_cast %1083 : vector<28x28xf32> to vector<1x28x28xf32>
    %cst_191 = arith.constant dense<0xFF800000> : vector<1xf32>
    %1095 = vector.multi_reduction <maximumf>, %1094, %cst_191 [1, 2] : vector<1x28x28xf32> to vector<1xf32>
    %1096 = vector.shape_cast %1095 : vector<1xf32> to vector<1x1x1xf32>
    %1097 = vector.extract %1096[0, 0, 0] : f32 from vector<1x1x1xf32>
    %cst_192 = arith.constant 0.000000e+00 : f32
    %1098 = arith.maximumf %cst_192, %1097 : f32
    %1099 = vector.shape_cast %1085 : vector<28x28xf32> to vector<1x28x28xf32>
    %cst_193 = arith.constant dense<0xFF800000> : vector<1xf32>
    %1100 = vector.multi_reduction <maximumf>, %1099, %cst_193 [1, 2] : vector<1x28x28xf32> to vector<1xf32>
    %1101 = vector.shape_cast %1100 : vector<1xf32> to vector<1x1x1xf32>
    %1102 = vector.extract %1101[0, 0, 0] : f32 from vector<1x1x1xf32>
    %1103 = arith.maximumf %1098, %1102 : f32
    %1104 = vector.shape_cast %1087 : vector<28x28xf32> to vector<1x28x28xf32>
    %cst_194 = arith.constant dense<0xFF800000> : vector<1xf32>
    %1105 = vector.multi_reduction <maximumf>, %1104, %cst_194 [1, 2] : vector<1x28x28xf32> to vector<1xf32>
    %1106 = vector.shape_cast %1105 : vector<1xf32> to vector<1x1x1xf32>
    %1107 = vector.extract %1106[0, 0, 0] : f32 from vector<1x1x1xf32>
    %1108 = arith.maximumf %1103, %1107 : f32
    %1109 = vector.shape_cast %1089 : vector<28x28xf32> to vector<1x28x28xf32>
    %cst_195 = arith.constant dense<0xFF800000> : vector<1xf32>
    %1110 = vector.multi_reduction <maximumf>, %1109, %cst_195 [1, 2] : vector<1x28x28xf32> to vector<1xf32>
    %1111 = vector.shape_cast %1110 : vector<1xf32> to vector<1x1x1xf32>
    %1112 = vector.extract %1111[0, 0, 0] : f32 from vector<1x1x1xf32>
    %1113 = arith.maximumf %1108, %1112 : f32
    %1114 = vector.shape_cast %1091 : vector<28x28xf32> to vector<1x28x28xf32>
    %cst_196 = arith.constant dense<0xFF800000> : vector<1xf32>
    %1115 = vector.multi_reduction <maximumf>, %1114, %cst_196 [1, 2] : vector<1x28x28xf32> to vector<1xf32>
    %1116 = vector.shape_cast %1115 : vector<1xf32> to vector<1x1x1xf32>
    %1117 = vector.extract %1116[0, 0, 0] : f32 from vector<1x1x1xf32>
    %1118 = arith.maximumf %1113, %1117 : f32
    %1119 = vector.shape_cast %1093 : vector<28x28xf32> to vector<1x28x28xf32>
    %cst_197 = arith.constant dense<0xFF800000> : vector<1xf32>
    %1120 = vector.multi_reduction <maximumf>, %1119, %cst_197 [1, 2] : vector<1x28x28xf32> to vector<1xf32>
    %1121 = vector.shape_cast %1120 : vector<1xf32> to vector<1x1x1xf32>
    %1122 = vector.extract %1121[0, 0, 0] : f32 from vector<1x1x1xf32>
    %1123 = arith.maximumf %1118, %1122 : f32
    %cst_198 = arith.constant 0.000000e+00 : f32
    %1124 = arith.cmpf ogt, %1123, %cst_198 : f32
    %cst_199 = arith.constant 3.000000e+00 : f32
    %1125 = arith.divf %1123, %cst_199 : f32
    %cst_200 = arith.constant 1.000000e+00 : f32
    %1126 = arith.select %1124, %1125, %cst_200 : f32
    %cst_201 = arith.constant 1.000000e+00 : f32
    %1127 = arith.divf %cst_201, %1126 : f32
    %1128 = vector.broadcast %1127 : f32 to vector<28x28xf32>
    %1129 = arith.mulf %1083, %1128 : vector<28x28xf32>
    %1130 = math.roundeven %1129 : vector<28x28xf32>
    %1131 = vector.broadcast %1126 : f32 to vector<28x28xf32>
    %1132 = arith.mulf %1130, %1131 : vector<28x28xf32>
    %1133 = vector.broadcast %1127 : f32 to vector<28x28xf32>
    %1134 = arith.mulf %1085, %1133 : vector<28x28xf32>
    %1135 = math.roundeven %1134 : vector<28x28xf32>
    %1136 = vector.broadcast %1126 : f32 to vector<28x28xf32>
    %1137 = arith.mulf %1135, %1136 : vector<28x28xf32>
    %1138 = vector.broadcast %1127 : f32 to vector<28x28xf32>
    %1139 = arith.mulf %1087, %1138 : vector<28x28xf32>
    %1140 = math.roundeven %1139 : vector<28x28xf32>
    %1141 = vector.broadcast %1126 : f32 to vector<28x28xf32>
    %1142 = arith.mulf %1140, %1141 : vector<28x28xf32>
    %1143 = vector.broadcast %1127 : f32 to vector<28x28xf32>
    %1144 = arith.mulf %1089, %1143 : vector<28x28xf32>
    %1145 = math.roundeven %1144 : vector<28x28xf32>
    %1146 = vector.broadcast %1126 : f32 to vector<28x28xf32>
    %1147 = arith.mulf %1145, %1146 : vector<28x28xf32>
    %1148 = vector.broadcast %1127 : f32 to vector<28x28xf32>
    %1149 = arith.mulf %1091, %1148 : vector<28x28xf32>
    %1150 = math.roundeven %1149 : vector<28x28xf32>
    %1151 = vector.broadcast %1126 : f32 to vector<28x28xf32>
    %1152 = arith.mulf %1150, %1151 : vector<28x28xf32>
    %1153 = vector.broadcast %1127 : f32 to vector<28x28xf32>
    %1154 = arith.mulf %1093, %1153 : vector<28x28xf32>
    %1155 = math.roundeven %1154 : vector<28x28xf32>
    %1156 = vector.broadcast %1126 : f32 to vector<28x28xf32>
    %1157 = arith.mulf %1155, %1156 : vector<28x28xf32>
    %cst_202 = arith.constant 0.000000e+00 : f32
    %1158 = vector.broadcast %cst_202 : f32 to vector<28x28xf32>
    %c0_203 = arith.constant 0 : index
    %1159 = memref.load %arg6[%c0_203] : memref<1xf32, #tpu.memory_space<smem>>
    %1160 = vector.broadcast %1159 : f32 to vector<28x28xf32>
    %1161 = arith.addf %1158, %1160 : vector<28x28xf32>
    %1162 = tpu.concatenate %0, %1132, %0 in 0 : vector<1x28xf32>, vector<28x28xf32>, vector<1x28xf32> -> vector<30x28xf32>
    %1163 = tpu.concatenate %1, %1162, %1 in 1 : vector<30x1xf32>, vector<30x28xf32>, vector<30x1xf32> -> vector<30x30xf32>
    %1164 = vector.extract_strided_slice %1163 {offsets = [0, 0], sizes = [28, 28], strides = [1, 1]} : vector<30x30xf32> to vector<28x28xf32>
    %c0_204 = arith.constant 0 : index
    %1165 = memref.load %arg5[%c0_204] : memref<27xf32, #tpu.memory_space<smem>>
    %1166 = vector.broadcast %1165 : f32 to vector<28x28xf32>
    %1167 = arith.mulf %1166, %1164 : vector<28x28xf32>
    %1168 = arith.addf %1161, %1167 : vector<28x28xf32>
    %1169 = vector.extract_strided_slice %1163 {offsets = [0, 1], sizes = [28, 28], strides = [1, 1]} : vector<30x30xf32> to vector<28x28xf32>
    %c1_205 = arith.constant 1 : index
    %1170 = memref.load %arg5[%c1_205] : memref<27xf32, #tpu.memory_space<smem>>
    %1171 = vector.broadcast %1170 : f32 to vector<28x28xf32>
    %1172 = arith.mulf %1171, %1169 : vector<28x28xf32>
    %1173 = arith.addf %1168, %1172 : vector<28x28xf32>
    %1174 = vector.extract_strided_slice %1163 {offsets = [0, 2], sizes = [28, 28], strides = [1, 1]} : vector<30x30xf32> to vector<28x28xf32>
    %c2_206 = arith.constant 2 : index
    %1175 = memref.load %arg5[%c2_206] : memref<27xf32, #tpu.memory_space<smem>>
    %1176 = vector.broadcast %1175 : f32 to vector<28x28xf32>
    %1177 = arith.mulf %1176, %1174 : vector<28x28xf32>
    %1178 = arith.addf %1173, %1177 : vector<28x28xf32>
    %1179 = vector.extract_strided_slice %1163 {offsets = [1, 0], sizes = [28, 28], strides = [1, 1]} : vector<30x30xf32> to vector<28x28xf32>
    %c3_207 = arith.constant 3 : index
    %1180 = memref.load %arg5[%c3_207] : memref<27xf32, #tpu.memory_space<smem>>
    %1181 = vector.broadcast %1180 : f32 to vector<28x28xf32>
    %1182 = arith.mulf %1181, %1179 : vector<28x28xf32>
    %1183 = arith.addf %1178, %1182 : vector<28x28xf32>
    %1184 = vector.extract_strided_slice %1163 {offsets = [1, 1], sizes = [28, 28], strides = [1, 1]} : vector<30x30xf32> to vector<28x28xf32>
    %c4_208 = arith.constant 4 : index
    %1185 = memref.load %arg5[%c4_208] : memref<27xf32, #tpu.memory_space<smem>>
    %1186 = vector.broadcast %1185 : f32 to vector<28x28xf32>
    %1187 = arith.mulf %1186, %1184 : vector<28x28xf32>
    %1188 = arith.addf %1183, %1187 : vector<28x28xf32>
    %1189 = vector.extract_strided_slice %1163 {offsets = [1, 2], sizes = [28, 28], strides = [1, 1]} : vector<30x30xf32> to vector<28x28xf32>
    %c5_209 = arith.constant 5 : index
    %1190 = memref.load %arg5[%c5_209] : memref<27xf32, #tpu.memory_space<smem>>
    %1191 = vector.broadcast %1190 : f32 to vector<28x28xf32>
    %1192 = arith.mulf %1191, %1189 : vector<28x28xf32>
    %1193 = arith.addf %1188, %1192 : vector<28x28xf32>
    %1194 = vector.extract_strided_slice %1163 {offsets = [2, 0], sizes = [28, 28], strides = [1, 1]} : vector<30x30xf32> to vector<28x28xf32>
    %c6_210 = arith.constant 6 : index
    %1195 = memref.load %arg5[%c6_210] : memref<27xf32, #tpu.memory_space<smem>>
    %1196 = vector.broadcast %1195 : f32 to vector<28x28xf32>
    %1197 = arith.mulf %1196, %1194 : vector<28x28xf32>
    %1198 = arith.addf %1193, %1197 : vector<28x28xf32>
    %1199 = vector.extract_strided_slice %1163 {offsets = [2, 1], sizes = [28, 28], strides = [1, 1]} : vector<30x30xf32> to vector<28x28xf32>
    %c7_211 = arith.constant 7 : index
    %1200 = memref.load %arg5[%c7_211] : memref<27xf32, #tpu.memory_space<smem>>
    %1201 = vector.broadcast %1200 : f32 to vector<28x28xf32>
    %1202 = arith.mulf %1201, %1199 : vector<28x28xf32>
    %1203 = arith.addf %1198, %1202 : vector<28x28xf32>
    %1204 = vector.extract_strided_slice %1163 {offsets = [2, 2], sizes = [28, 28], strides = [1, 1]} : vector<30x30xf32> to vector<28x28xf32>
    %c8_212 = arith.constant 8 : index
    %1205 = memref.load %arg5[%c8_212] : memref<27xf32, #tpu.memory_space<smem>>
    %1206 = vector.broadcast %1205 : f32 to vector<28x28xf32>
    %1207 = arith.mulf %1206, %1204 : vector<28x28xf32>
    %1208 = arith.addf %1203, %1207 : vector<28x28xf32>
    %1209 = tpu.concatenate %0, %1137, %0 in 0 : vector<1x28xf32>, vector<28x28xf32>, vector<1x28xf32> -> vector<30x28xf32>
    %1210 = tpu.concatenate %1, %1209, %1 in 1 : vector<30x1xf32>, vector<30x28xf32>, vector<30x1xf32> -> vector<30x30xf32>
    %1211 = vector.extract_strided_slice %1210 {offsets = [0, 0], sizes = [28, 28], strides = [1, 1]} : vector<30x30xf32> to vector<28x28xf32>
    %c9_213 = arith.constant 9 : index
    %1212 = memref.load %arg5[%c9_213] : memref<27xf32, #tpu.memory_space<smem>>
    %1213 = vector.broadcast %1212 : f32 to vector<28x28xf32>
    %1214 = arith.mulf %1213, %1211 : vector<28x28xf32>
    %1215 = arith.addf %1208, %1214 : vector<28x28xf32>
    %1216 = vector.extract_strided_slice %1210 {offsets = [0, 1], sizes = [28, 28], strides = [1, 1]} : vector<30x30xf32> to vector<28x28xf32>
    %c10_214 = arith.constant 10 : index
    %1217 = memref.load %arg5[%c10_214] : memref<27xf32, #tpu.memory_space<smem>>
    %1218 = vector.broadcast %1217 : f32 to vector<28x28xf32>
    %1219 = arith.mulf %1218, %1216 : vector<28x28xf32>
    %1220 = arith.addf %1215, %1219 : vector<28x28xf32>
    %1221 = vector.extract_strided_slice %1210 {offsets = [0, 2], sizes = [28, 28], strides = [1, 1]} : vector<30x30xf32> to vector<28x28xf32>
    %c11_215 = arith.constant 11 : index
    %1222 = memref.load %arg5[%c11_215] : memref<27xf32, #tpu.memory_space<smem>>
    %1223 = vector.broadcast %1222 : f32 to vector<28x28xf32>
    %1224 = arith.mulf %1223, %1221 : vector<28x28xf32>
    %1225 = arith.addf %1220, %1224 : vector<28x28xf32>
    %1226 = vector.extract_strided_slice %1210 {offsets = [1, 0], sizes = [28, 28], strides = [1, 1]} : vector<30x30xf32> to vector<28x28xf32>
    %c12_216 = arith.constant 12 : index
    %1227 = memref.load %arg5[%c12_216] : memref<27xf32, #tpu.memory_space<smem>>
    %1228 = vector.broadcast %1227 : f32 to vector<28x28xf32>
    %1229 = arith.mulf %1228, %1226 : vector<28x28xf32>
    %1230 = arith.addf %1225, %1229 : vector<28x28xf32>
    %1231 = vector.extract_strided_slice %1210 {offsets = [1, 1], sizes = [28, 28], strides = [1, 1]} : vector<30x30xf32> to vector<28x28xf32>
    %c13_217 = arith.constant 13 : index
    %1232 = memref.load %arg5[%c13_217] : memref<27xf32, #tpu.memory_space<smem>>
    %1233 = vector.broadcast %1232 : f32 to vector<28x28xf32>
    %1234 = arith.mulf %1233, %1231 : vector<28x28xf32>
    %1235 = arith.addf %1230, %1234 : vector<28x28xf32>
    %1236 = vector.extract_strided_slice %1210 {offsets = [1, 2], sizes = [28, 28], strides = [1, 1]} : vector<30x30xf32> to vector<28x28xf32>
    %c14_218 = arith.constant 14 : index
    %1237 = memref.load %arg5[%c14_218] : memref<27xf32, #tpu.memory_space<smem>>
    %1238 = vector.broadcast %1237 : f32 to vector<28x28xf32>
    %1239 = arith.mulf %1238, %1236 : vector<28x28xf32>
    %1240 = arith.addf %1235, %1239 : vector<28x28xf32>
    %1241 = vector.extract_strided_slice %1210 {offsets = [2, 0], sizes = [28, 28], strides = [1, 1]} : vector<30x30xf32> to vector<28x28xf32>
    %c15_219 = arith.constant 15 : index
    %1242 = memref.load %arg5[%c15_219] : memref<27xf32, #tpu.memory_space<smem>>
    %1243 = vector.broadcast %1242 : f32 to vector<28x28xf32>
    %1244 = arith.mulf %1243, %1241 : vector<28x28xf32>
    %1245 = arith.addf %1240, %1244 : vector<28x28xf32>
    %1246 = vector.extract_strided_slice %1210 {offsets = [2, 1], sizes = [28, 28], strides = [1, 1]} : vector<30x30xf32> to vector<28x28xf32>
    %c16_220 = arith.constant 16 : index
    %1247 = memref.load %arg5[%c16_220] : memref<27xf32, #tpu.memory_space<smem>>
    %1248 = vector.broadcast %1247 : f32 to vector<28x28xf32>
    %1249 = arith.mulf %1248, %1246 : vector<28x28xf32>
    %1250 = arith.addf %1245, %1249 : vector<28x28xf32>
    %1251 = vector.extract_strided_slice %1210 {offsets = [2, 2], sizes = [28, 28], strides = [1, 1]} : vector<30x30xf32> to vector<28x28xf32>
    %c17_221 = arith.constant 17 : index
    %1252 = memref.load %arg5[%c17_221] : memref<27xf32, #tpu.memory_space<smem>>
    %1253 = vector.broadcast %1252 : f32 to vector<28x28xf32>
    %1254 = arith.mulf %1253, %1251 : vector<28x28xf32>
    %1255 = arith.addf %1250, %1254 : vector<28x28xf32>
    %1256 = tpu.concatenate %0, %1142, %0 in 0 : vector<1x28xf32>, vector<28x28xf32>, vector<1x28xf32> -> vector<30x28xf32>
    %1257 = tpu.concatenate %1, %1256, %1 in 1 : vector<30x1xf32>, vector<30x28xf32>, vector<30x1xf32> -> vector<30x30xf32>
    %1258 = vector.extract_strided_slice %1257 {offsets = [0, 0], sizes = [28, 28], strides = [1, 1]} : vector<30x30xf32> to vector<28x28xf32>
    %c18_222 = arith.constant 18 : index
    %1259 = memref.load %arg5[%c18_222] : memref<27xf32, #tpu.memory_space<smem>>
    %1260 = vector.broadcast %1259 : f32 to vector<28x28xf32>
    %1261 = arith.mulf %1260, %1258 : vector<28x28xf32>
    %1262 = arith.addf %1255, %1261 : vector<28x28xf32>
    %1263 = vector.extract_strided_slice %1257 {offsets = [0, 1], sizes = [28, 28], strides = [1, 1]} : vector<30x30xf32> to vector<28x28xf32>
    %c19_223 = arith.constant 19 : index
    %1264 = memref.load %arg5[%c19_223] : memref<27xf32, #tpu.memory_space<smem>>
    %1265 = vector.broadcast %1264 : f32 to vector<28x28xf32>
    %1266 = arith.mulf %1265, %1263 : vector<28x28xf32>
    %1267 = arith.addf %1262, %1266 : vector<28x28xf32>
    %1268 = vector.extract_strided_slice %1257 {offsets = [0, 2], sizes = [28, 28], strides = [1, 1]} : vector<30x30xf32> to vector<28x28xf32>
    %c20_224 = arith.constant 20 : index
    %1269 = memref.load %arg5[%c20_224] : memref<27xf32, #tpu.memory_space<smem>>
    %1270 = vector.broadcast %1269 : f32 to vector<28x28xf32>
    %1271 = arith.mulf %1270, %1268 : vector<28x28xf32>
    %1272 = arith.addf %1267, %1271 : vector<28x28xf32>
    %1273 = vector.extract_strided_slice %1257 {offsets = [1, 0], sizes = [28, 28], strides = [1, 1]} : vector<30x30xf32> to vector<28x28xf32>
    %c21_225 = arith.constant 21 : index
    %1274 = memref.load %arg5[%c21_225] : memref<27xf32, #tpu.memory_space<smem>>
    %1275 = vector.broadcast %1274 : f32 to vector<28x28xf32>
    %1276 = arith.mulf %1275, %1273 : vector<28x28xf32>
    %1277 = arith.addf %1272, %1276 : vector<28x28xf32>
    %1278 = vector.extract_strided_slice %1257 {offsets = [1, 1], sizes = [28, 28], strides = [1, 1]} : vector<30x30xf32> to vector<28x28xf32>
    %c22_226 = arith.constant 22 : index
    %1279 = memref.load %arg5[%c22_226] : memref<27xf32, #tpu.memory_space<smem>>
    %1280 = vector.broadcast %1279 : f32 to vector<28x28xf32>
    %1281 = arith.mulf %1280, %1278 : vector<28x28xf32>
    %1282 = arith.addf %1277, %1281 : vector<28x28xf32>
    %1283 = vector.extract_strided_slice %1257 {offsets = [1, 2], sizes = [28, 28], strides = [1, 1]} : vector<30x30xf32> to vector<28x28xf32>
    %c23_227 = arith.constant 23 : index
    %1284 = memref.load %arg5[%c23_227] : memref<27xf32, #tpu.memory_space<smem>>
    %1285 = vector.broadcast %1284 : f32 to vector<28x28xf32>
    %1286 = arith.mulf %1285, %1283 : vector<28x28xf32>
    %1287 = arith.addf %1282, %1286 : vector<28x28xf32>
    %1288 = vector.extract_strided_slice %1257 {offsets = [2, 0], sizes = [28, 28], strides = [1, 1]} : vector<30x30xf32> to vector<28x28xf32>
    %c24_228 = arith.constant 24 : index
    %1289 = memref.load %arg5[%c24_228] : memref<27xf32, #tpu.memory_space<smem>>
    %1290 = vector.broadcast %1289 : f32 to vector<28x28xf32>
    %1291 = arith.mulf %1290, %1288 : vector<28x28xf32>
    %1292 = arith.addf %1287, %1291 : vector<28x28xf32>
    %1293 = vector.extract_strided_slice %1257 {offsets = [2, 1], sizes = [28, 28], strides = [1, 1]} : vector<30x30xf32> to vector<28x28xf32>
    %c25_229 = arith.constant 25 : index
    %1294 = memref.load %arg5[%c25_229] : memref<27xf32, #tpu.memory_space<smem>>
    %1295 = vector.broadcast %1294 : f32 to vector<28x28xf32>
    %1296 = arith.mulf %1295, %1293 : vector<28x28xf32>
    %1297 = arith.addf %1292, %1296 : vector<28x28xf32>
    %1298 = vector.extract_strided_slice %1257 {offsets = [2, 2], sizes = [28, 28], strides = [1, 1]} : vector<30x30xf32> to vector<28x28xf32>
    %c26_230 = arith.constant 26 : index
    %1299 = memref.load %arg5[%c26_230] : memref<27xf32, #tpu.memory_space<smem>>
    %1300 = vector.broadcast %1299 : f32 to vector<28x28xf32>
    %1301 = arith.mulf %1300, %1298 : vector<28x28xf32>
    %1302 = arith.addf %1297, %1301 : vector<28x28xf32>
    %cst_231 = arith.constant 0.000000e+00 : f32
    %1303 = vector.broadcast %cst_231 : f32 to vector<28x28xf32>
    %c0_232 = arith.constant 0 : index
    %1304 = memref.load %arg6[%c0_232] : memref<1xf32, #tpu.memory_space<smem>>
    %1305 = vector.broadcast %1304 : f32 to vector<28x28xf32>
    %1306 = arith.addf %1303, %1305 : vector<28x28xf32>
    %1307 = tpu.concatenate %0, %1147, %0 in 0 : vector<1x28xf32>, vector<28x28xf32>, vector<1x28xf32> -> vector<30x28xf32>
    %1308 = tpu.concatenate %1, %1307, %1 in 1 : vector<30x1xf32>, vector<30x28xf32>, vector<30x1xf32> -> vector<30x30xf32>
    %1309 = vector.extract_strided_slice %1308 {offsets = [0, 0], sizes = [28, 28], strides = [1, 1]} : vector<30x30xf32> to vector<28x28xf32>
    %c0_233 = arith.constant 0 : index
    %1310 = memref.load %arg5[%c0_233] : memref<27xf32, #tpu.memory_space<smem>>
    %1311 = vector.broadcast %1310 : f32 to vector<28x28xf32>
    %1312 = arith.mulf %1311, %1309 : vector<28x28xf32>
    %1313 = arith.addf %1306, %1312 : vector<28x28xf32>
    %1314 = vector.extract_strided_slice %1308 {offsets = [0, 1], sizes = [28, 28], strides = [1, 1]} : vector<30x30xf32> to vector<28x28xf32>
    %c1_234 = arith.constant 1 : index
    %1315 = memref.load %arg5[%c1_234] : memref<27xf32, #tpu.memory_space<smem>>
    %1316 = vector.broadcast %1315 : f32 to vector<28x28xf32>
    %1317 = arith.mulf %1316, %1314 : vector<28x28xf32>
    %1318 = arith.addf %1313, %1317 : vector<28x28xf32>
    %1319 = vector.extract_strided_slice %1308 {offsets = [0, 2], sizes = [28, 28], strides = [1, 1]} : vector<30x30xf32> to vector<28x28xf32>
    %c2_235 = arith.constant 2 : index
    %1320 = memref.load %arg5[%c2_235] : memref<27xf32, #tpu.memory_space<smem>>
    %1321 = vector.broadcast %1320 : f32 to vector<28x28xf32>
    %1322 = arith.mulf %1321, %1319 : vector<28x28xf32>
    %1323 = arith.addf %1318, %1322 : vector<28x28xf32>
    %1324 = vector.extract_strided_slice %1308 {offsets = [1, 0], sizes = [28, 28], strides = [1, 1]} : vector<30x30xf32> to vector<28x28xf32>
    %c3_236 = arith.constant 3 : index
    %1325 = memref.load %arg5[%c3_236] : memref<27xf32, #tpu.memory_space<smem>>
    %1326 = vector.broadcast %1325 : f32 to vector<28x28xf32>
    %1327 = arith.mulf %1326, %1324 : vector<28x28xf32>
    %1328 = arith.addf %1323, %1327 : vector<28x28xf32>
    %1329 = vector.extract_strided_slice %1308 {offsets = [1, 1], sizes = [28, 28], strides = [1, 1]} : vector<30x30xf32> to vector<28x28xf32>
    %c4_237 = arith.constant 4 : index
    %1330 = memref.load %arg5[%c4_237] : memref<27xf32, #tpu.memory_space<smem>>
    %1331 = vector.broadcast %1330 : f32 to vector<28x28xf32>
    %1332 = arith.mulf %1331, %1329 : vector<28x28xf32>
    %1333 = arith.addf %1328, %1332 : vector<28x28xf32>
    %1334 = vector.extract_strided_slice %1308 {offsets = [1, 2], sizes = [28, 28], strides = [1, 1]} : vector<30x30xf32> to vector<28x28xf32>
    %c5_238 = arith.constant 5 : index
    %1335 = memref.load %arg5[%c5_238] : memref<27xf32, #tpu.memory_space<smem>>
    %1336 = vector.broadcast %1335 : f32 to vector<28x28xf32>
    %1337 = arith.mulf %1336, %1334 : vector<28x28xf32>
    %1338 = arith.addf %1333, %1337 : vector<28x28xf32>
    %1339 = vector.extract_strided_slice %1308 {offsets = [2, 0], sizes = [28, 28], strides = [1, 1]} : vector<30x30xf32> to vector<28x28xf32>
    %c6_239 = arith.constant 6 : index
    %1340 = memref.load %arg5[%c6_239] : memref<27xf32, #tpu.memory_space<smem>>
    %1341 = vector.broadcast %1340 : f32 to vector<28x28xf32>
    %1342 = arith.mulf %1341, %1339 : vector<28x28xf32>
    %1343 = arith.addf %1338, %1342 : vector<28x28xf32>
    %1344 = vector.extract_strided_slice %1308 {offsets = [2, 1], sizes = [28, 28], strides = [1, 1]} : vector<30x30xf32> to vector<28x28xf32>
    %c7_240 = arith.constant 7 : index
    %1345 = memref.load %arg5[%c7_240] : memref<27xf32, #tpu.memory_space<smem>>
    %1346 = vector.broadcast %1345 : f32 to vector<28x28xf32>
    %1347 = arith.mulf %1346, %1344 : vector<28x28xf32>
    %1348 = arith.addf %1343, %1347 : vector<28x28xf32>
    %1349 = vector.extract_strided_slice %1308 {offsets = [2, 2], sizes = [28, 28], strides = [1, 1]} : vector<30x30xf32> to vector<28x28xf32>
    %c8_241 = arith.constant 8 : index
    %1350 = memref.load %arg5[%c8_241] : memref<27xf32, #tpu.memory_space<smem>>
    %1351 = vector.broadcast %1350 : f32 to vector<28x28xf32>
    %1352 = arith.mulf %1351, %1349 : vector<28x28xf32>
    %1353 = arith.addf %1348, %1352 : vector<28x28xf32>
    %1354 = tpu.concatenate %0, %1152, %0 in 0 : vector<1x28xf32>, vector<28x28xf32>, vector<1x28xf32> -> vector<30x28xf32>
    %1355 = tpu.concatenate %1, %1354, %1 in 1 : vector<30x1xf32>, vector<30x28xf32>, vector<30x1xf32> -> vector<30x30xf32>
    %1356 = vector.extract_strided_slice %1355 {offsets = [0, 0], sizes = [28, 28], strides = [1, 1]} : vector<30x30xf32> to vector<28x28xf32>
    %c9_242 = arith.constant 9 : index
    %1357 = memref.load %arg5[%c9_242] : memref<27xf32, #tpu.memory_space<smem>>
    %1358 = vector.broadcast %1357 : f32 to vector<28x28xf32>
    %1359 = arith.mulf %1358, %1356 : vector<28x28xf32>
    %1360 = arith.addf %1353, %1359 : vector<28x28xf32>
    %1361 = vector.extract_strided_slice %1355 {offsets = [0, 1], sizes = [28, 28], strides = [1, 1]} : vector<30x30xf32> to vector<28x28xf32>
    %c10_243 = arith.constant 10 : index
    %1362 = memref.load %arg5[%c10_243] : memref<27xf32, #tpu.memory_space<smem>>
    %1363 = vector.broadcast %1362 : f32 to vector<28x28xf32>
    %1364 = arith.mulf %1363, %1361 : vector<28x28xf32>
    %1365 = arith.addf %1360, %1364 : vector<28x28xf32>
    %1366 = vector.extract_strided_slice %1355 {offsets = [0, 2], sizes = [28, 28], strides = [1, 1]} : vector<30x30xf32> to vector<28x28xf32>
    %c11_244 = arith.constant 11 : index
    %1367 = memref.load %arg5[%c11_244] : memref<27xf32, #tpu.memory_space<smem>>
    %1368 = vector.broadcast %1367 : f32 to vector<28x28xf32>
    %1369 = arith.mulf %1368, %1366 : vector<28x28xf32>
    %1370 = arith.addf %1365, %1369 : vector<28x28xf32>
    %1371 = vector.extract_strided_slice %1355 {offsets = [1, 0], sizes = [28, 28], strides = [1, 1]} : vector<30x30xf32> to vector<28x28xf32>
    %c12_245 = arith.constant 12 : index
    %1372 = memref.load %arg5[%c12_245] : memref<27xf32, #tpu.memory_space<smem>>
    %1373 = vector.broadcast %1372 : f32 to vector<28x28xf32>
    %1374 = arith.mulf %1373, %1371 : vector<28x28xf32>
    %1375 = arith.addf %1370, %1374 : vector<28x28xf32>
    %1376 = vector.extract_strided_slice %1355 {offsets = [1, 1], sizes = [28, 28], strides = [1, 1]} : vector<30x30xf32> to vector<28x28xf32>
    %c13_246 = arith.constant 13 : index
    %1377 = memref.load %arg5[%c13_246] : memref<27xf32, #tpu.memory_space<smem>>
    %1378 = vector.broadcast %1377 : f32 to vector<28x28xf32>
    %1379 = arith.mulf %1378, %1376 : vector<28x28xf32>
    %1380 = arith.addf %1375, %1379 : vector<28x28xf32>
    %1381 = vector.extract_strided_slice %1355 {offsets = [1, 2], sizes = [28, 28], strides = [1, 1]} : vector<30x30xf32> to vector<28x28xf32>
    %c14_247 = arith.constant 14 : index
    %1382 = memref.load %arg5[%c14_247] : memref<27xf32, #tpu.memory_space<smem>>
    %1383 = vector.broadcast %1382 : f32 to vector<28x28xf32>
    %1384 = arith.mulf %1383, %1381 : vector<28x28xf32>
    %1385 = arith.addf %1380, %1384 : vector<28x28xf32>
    %1386 = vector.extract_strided_slice %1355 {offsets = [2, 0], sizes = [28, 28], strides = [1, 1]} : vector<30x30xf32> to vector<28x28xf32>
    %c15_248 = arith.constant 15 : index
    %1387 = memref.load %arg5[%c15_248] : memref<27xf32, #tpu.memory_space<smem>>
    %1388 = vector.broadcast %1387 : f32 to vector<28x28xf32>
    %1389 = arith.mulf %1388, %1386 : vector<28x28xf32>
    %1390 = arith.addf %1385, %1389 : vector<28x28xf32>
    %1391 = vector.extract_strided_slice %1355 {offsets = [2, 1], sizes = [28, 28], strides = [1, 1]} : vector<30x30xf32> to vector<28x28xf32>
    %c16_249 = arith.constant 16 : index
    %1392 = memref.load %arg5[%c16_249] : memref<27xf32, #tpu.memory_space<smem>>
    %1393 = vector.broadcast %1392 : f32 to vector<28x28xf32>
    %1394 = arith.mulf %1393, %1391 : vector<28x28xf32>
    %1395 = arith.addf %1390, %1394 : vector<28x28xf32>
    %1396 = vector.extract_strided_slice %1355 {offsets = [2, 2], sizes = [28, 28], strides = [1, 1]} : vector<30x30xf32> to vector<28x28xf32>
    %c17_250 = arith.constant 17 : index
    %1397 = memref.load %arg5[%c17_250] : memref<27xf32, #tpu.memory_space<smem>>
    %1398 = vector.broadcast %1397 : f32 to vector<28x28xf32>
    %1399 = arith.mulf %1398, %1396 : vector<28x28xf32>
    %1400 = arith.addf %1395, %1399 : vector<28x28xf32>
    %1401 = tpu.concatenate %0, %1157, %0 in 0 : vector<1x28xf32>, vector<28x28xf32>, vector<1x28xf32> -> vector<30x28xf32>
    %1402 = tpu.concatenate %1, %1401, %1 in 1 : vector<30x1xf32>, vector<30x28xf32>, vector<30x1xf32> -> vector<30x30xf32>
    %1403 = vector.extract_strided_slice %1402 {offsets = [0, 0], sizes = [28, 28], strides = [1, 1]} : vector<30x30xf32> to vector<28x28xf32>
    %c18_251 = arith.constant 18 : index
    %1404 = memref.load %arg5[%c18_251] : memref<27xf32, #tpu.memory_space<smem>>
    %1405 = vector.broadcast %1404 : f32 to vector<28x28xf32>
    %1406 = arith.mulf %1405, %1403 : vector<28x28xf32>
    %1407 = arith.addf %1400, %1406 : vector<28x28xf32>
    %1408 = vector.extract_strided_slice %1402 {offsets = [0, 1], sizes = [28, 28], strides = [1, 1]} : vector<30x30xf32> to vector<28x28xf32>
    %c19_252 = arith.constant 19 : index
    %1409 = memref.load %arg5[%c19_252] : memref<27xf32, #tpu.memory_space<smem>>
    %1410 = vector.broadcast %1409 : f32 to vector<28x28xf32>
    %1411 = arith.mulf %1410, %1408 : vector<28x28xf32>
    %1412 = arith.addf %1407, %1411 : vector<28x28xf32>
    %1413 = vector.extract_strided_slice %1402 {offsets = [0, 2], sizes = [28, 28], strides = [1, 1]} : vector<30x30xf32> to vector<28x28xf32>
    %c20_253 = arith.constant 20 : index
    %1414 = memref.load %arg5[%c20_253] : memref<27xf32, #tpu.memory_space<smem>>
    %1415 = vector.broadcast %1414 : f32 to vector<28x28xf32>
    %1416 = arith.mulf %1415, %1413 : vector<28x28xf32>
    %1417 = arith.addf %1412, %1416 : vector<28x28xf32>
    %1418 = vector.extract_strided_slice %1402 {offsets = [1, 0], sizes = [28, 28], strides = [1, 1]} : vector<30x30xf32> to vector<28x28xf32>
    %c21_254 = arith.constant 21 : index
    %1419 = memref.load %arg5[%c21_254] : memref<27xf32, #tpu.memory_space<smem>>
    %1420 = vector.broadcast %1419 : f32 to vector<28x28xf32>
    %1421 = arith.mulf %1420, %1418 : vector<28x28xf32>
    %1422 = arith.addf %1417, %1421 : vector<28x28xf32>
    %1423 = vector.extract_strided_slice %1402 {offsets = [1, 1], sizes = [28, 28], strides = [1, 1]} : vector<30x30xf32> to vector<28x28xf32>
    %c22_255 = arith.constant 22 : index
    %1424 = memref.load %arg5[%c22_255] : memref<27xf32, #tpu.memory_space<smem>>
    %1425 = vector.broadcast %1424 : f32 to vector<28x28xf32>
    %1426 = arith.mulf %1425, %1423 : vector<28x28xf32>
    %1427 = arith.addf %1422, %1426 : vector<28x28xf32>
    %1428 = vector.extract_strided_slice %1402 {offsets = [1, 2], sizes = [28, 28], strides = [1, 1]} : vector<30x30xf32> to vector<28x28xf32>
    %c23_256 = arith.constant 23 : index
    %1429 = memref.load %arg5[%c23_256] : memref<27xf32, #tpu.memory_space<smem>>
    %1430 = vector.broadcast %1429 : f32 to vector<28x28xf32>
    %1431 = arith.mulf %1430, %1428 : vector<28x28xf32>
    %1432 = arith.addf %1427, %1431 : vector<28x28xf32>
    %1433 = vector.extract_strided_slice %1402 {offsets = [2, 0], sizes = [28, 28], strides = [1, 1]} : vector<30x30xf32> to vector<28x28xf32>
    %c24_257 = arith.constant 24 : index
    %1434 = memref.load %arg5[%c24_257] : memref<27xf32, #tpu.memory_space<smem>>
    %1435 = vector.broadcast %1434 : f32 to vector<28x28xf32>
    %1436 = arith.mulf %1435, %1433 : vector<28x28xf32>
    %1437 = arith.addf %1432, %1436 : vector<28x28xf32>
    %1438 = vector.extract_strided_slice %1402 {offsets = [2, 1], sizes = [28, 28], strides = [1, 1]} : vector<30x30xf32> to vector<28x28xf32>
    %c25_258 = arith.constant 25 : index
    %1439 = memref.load %arg5[%c25_258] : memref<27xf32, #tpu.memory_space<smem>>
    %1440 = vector.broadcast %1439 : f32 to vector<28x28xf32>
    %1441 = arith.mulf %1440, %1438 : vector<28x28xf32>
    %1442 = arith.addf %1437, %1441 : vector<28x28xf32>
    %1443 = vector.extract_strided_slice %1402 {offsets = [2, 2], sizes = [28, 28], strides = [1, 1]} : vector<30x30xf32> to vector<28x28xf32>
    %c26_259 = arith.constant 26 : index
    %1444 = memref.load %arg5[%c26_259] : memref<27xf32, #tpu.memory_space<smem>>
    %1445 = vector.broadcast %1444 : f32 to vector<28x28xf32>
    %1446 = arith.mulf %1445, %1443 : vector<28x28xf32>
    %1447 = arith.addf %1442, %1446 : vector<28x28xf32>
    %cst_260 = arith.constant 0.000000e+00 : f32
    %1448 = vector.broadcast %cst_260 : f32 to vector<28x28xf32>
    %1449 = arith.maximumf %1302, %1448 : vector<28x28xf32>
    %cst_261 = arith.constant 0.000000e+00 : f32
    %1450 = vector.broadcast %cst_261 : f32 to vector<28x28xf32>
    %1451 = arith.maximumf %1447, %1450 : vector<28x28xf32>
    %1452 = vector.shape_cast %1449 : vector<28x28xf32> to vector<1x28x28xf32>
    %cst_262 = arith.constant dense<0xFF800000> : vector<1xf32>
    %1453 = vector.multi_reduction <maximumf>, %1452, %cst_262 [1, 2] : vector<1x28x28xf32> to vector<1xf32>
    %1454 = vector.shape_cast %1453 : vector<1xf32> to vector<1x1x1xf32>
    %1455 = vector.extract %1454[0, 0, 0] : f32 from vector<1x1x1xf32>
    %cst_263 = arith.constant 0.000000e+00 : f32
    %1456 = arith.maximumf %cst_263, %1455 : f32
    %1457 = vector.shape_cast %1451 : vector<28x28xf32> to vector<1x28x28xf32>
    %cst_264 = arith.constant dense<0xFF800000> : vector<1xf32>
    %1458 = vector.multi_reduction <maximumf>, %1457, %cst_264 [1, 2] : vector<1x28x28xf32> to vector<1xf32>
    %1459 = vector.shape_cast %1458 : vector<1xf32> to vector<1x1x1xf32>
    %1460 = vector.extract %1459[0, 0, 0] : f32 from vector<1x1x1xf32>
    %1461 = arith.maximumf %1456, %1460 : f32
    %cst_265 = arith.constant 0.000000e+00 : f32
    %1462 = arith.cmpf ogt, %1461, %cst_265 : f32
    %cst_266 = arith.constant 3.000000e+00 : f32
    %1463 = arith.divf %1461, %cst_266 : f32
    %cst_267 = arith.constant 1.000000e+00 : f32
    %1464 = arith.select %1462, %1463, %cst_267 : f32
    %cst_268 = arith.constant 1.000000e+00 : f32
    %1465 = arith.divf %cst_268, %1464 : f32
    %1466 = vector.broadcast %1465 : f32 to vector<28x28xf32>
    %1467 = arith.mulf %1449, %1466 : vector<28x28xf32>
    %1468 = math.roundeven %1467 : vector<28x28xf32>
    %1469 = vector.broadcast %1464 : f32 to vector<28x28xf32>
    %1470 = arith.mulf %1468, %1469 : vector<28x28xf32>
    %1471 = vector.broadcast %1465 : f32 to vector<28x28xf32>
    %1472 = arith.mulf %1451, %1471 : vector<28x28xf32>
    %1473 = math.roundeven %1472 : vector<28x28xf32>
    %1474 = vector.broadcast %1464 : f32 to vector<28x28xf32>
    %1475 = arith.mulf %1473, %1474 : vector<28x28xf32>
    %c0_269 = arith.constant 0 : index
    %c0_270 = arith.constant 0 : index
    %1476 = vector.load %arg8[%c0_269, %c0_270] : memref<1x10xf32, #tpu.memory_space<vmem>>, vector<1x10xf32>
    %1477 = tpu.iota {dimensions = array<i32: 1>} : vector<1x10xi32>
    %c0_271 = arith.constant 0 : index
    %c0_272 = arith.constant 0 : index
    %c0_273 = arith.constant 0 : index
    %1478 = vector.load %arg7[%c0_271, %c0_272, %c0_273] : memref<10x28x28xf32, #tpu.memory_space<vmem>>, vector<1x28x28xf32>
    %1479 = vector.shape_cast %1478 : vector<1x28x28xf32> to vector<28x28xf32>
    %1480 = arith.mulf %1470, %1479 : vector<28x28xf32>
    %1481 = vector.shape_cast %1480 : vector<28x28xf32> to vector<1x28x28xf32>
    %cst_274 = arith.constant dense<0.000000e+00> : vector<1xf32>
    %1482 = vector.multi_reduction <add>, %1481, %cst_274 [1, 2] : vector<1x28x28xf32> to vector<1xf32>
    %1483 = vector.shape_cast %1482 : vector<1xf32> to vector<1x1x1xf32>
    %1484 = vector.extract %1483[0, 0, 0] : f32 from vector<1x1x1xf32>
    %c0_i32 = arith.constant 0 : i32
    %1485 = vector.broadcast %c0_i32 : i32 to vector<1x10xi32>
    %1486 = arith.cmpi eq, %1477, %1485 : vector<1x10xi32>
    %cst_275 = arith.constant 0.000000e+00 : f32
    %1487 = vector.broadcast %1484 : f32 to vector<1x10xf32>
    %1488 = vector.broadcast %cst_275 : f32 to vector<1x10xf32>
    %1489 = arith.select %1486, %1487, %1488 : vector<1x10xi1>, vector<1x10xf32>
    %1490 = arith.addf %1476, %1489 : vector<1x10xf32>
    %c1_276 = arith.constant 1 : index
    %c0_277 = arith.constant 0 : index
    %c0_278 = arith.constant 0 : index
    %1491 = vector.load %arg7[%c1_276, %c0_277, %c0_278] : memref<10x28x28xf32, #tpu.memory_space<vmem>>, vector<1x28x28xf32>
    %1492 = vector.shape_cast %1491 : vector<1x28x28xf32> to vector<28x28xf32>
    %1493 = arith.mulf %1470, %1492 : vector<28x28xf32>
    %1494 = vector.shape_cast %1493 : vector<28x28xf32> to vector<1x28x28xf32>
    %cst_279 = arith.constant dense<0.000000e+00> : vector<1xf32>
    %1495 = vector.multi_reduction <add>, %1494, %cst_279 [1, 2] : vector<1x28x28xf32> to vector<1xf32>
    %1496 = vector.shape_cast %1495 : vector<1xf32> to vector<1x1x1xf32>
    %1497 = vector.extract %1496[0, 0, 0] : f32 from vector<1x1x1xf32>
    %c1_i32 = arith.constant 1 : i32
    %1498 = vector.broadcast %c1_i32 : i32 to vector<1x10xi32>
    %1499 = arith.cmpi eq, %1477, %1498 : vector<1x10xi32>
    %cst_280 = arith.constant 0.000000e+00 : f32
    %1500 = vector.broadcast %1497 : f32 to vector<1x10xf32>
    %1501 = vector.broadcast %cst_280 : f32 to vector<1x10xf32>
    %1502 = arith.select %1499, %1500, %1501 : vector<1x10xi1>, vector<1x10xf32>
    %1503 = arith.addf %1490, %1502 : vector<1x10xf32>
    %c2_281 = arith.constant 2 : index
    %c0_282 = arith.constant 0 : index
    %c0_283 = arith.constant 0 : index
    %1504 = vector.load %arg7[%c2_281, %c0_282, %c0_283] : memref<10x28x28xf32, #tpu.memory_space<vmem>>, vector<1x28x28xf32>
    %1505 = vector.shape_cast %1504 : vector<1x28x28xf32> to vector<28x28xf32>
    %1506 = arith.mulf %1470, %1505 : vector<28x28xf32>
    %1507 = vector.shape_cast %1506 : vector<28x28xf32> to vector<1x28x28xf32>
    %cst_284 = arith.constant dense<0.000000e+00> : vector<1xf32>
    %1508 = vector.multi_reduction <add>, %1507, %cst_284 [1, 2] : vector<1x28x28xf32> to vector<1xf32>
    %1509 = vector.shape_cast %1508 : vector<1xf32> to vector<1x1x1xf32>
    %1510 = vector.extract %1509[0, 0, 0] : f32 from vector<1x1x1xf32>
    %c2_i32 = arith.constant 2 : i32
    %1511 = vector.broadcast %c2_i32 : i32 to vector<1x10xi32>
    %1512 = arith.cmpi eq, %1477, %1511 : vector<1x10xi32>
    %cst_285 = arith.constant 0.000000e+00 : f32
    %1513 = vector.broadcast %1510 : f32 to vector<1x10xf32>
    %1514 = vector.broadcast %cst_285 : f32 to vector<1x10xf32>
    %1515 = arith.select %1512, %1513, %1514 : vector<1x10xi1>, vector<1x10xf32>
    %1516 = arith.addf %1503, %1515 : vector<1x10xf32>
    %c3_286 = arith.constant 3 : index
    %c0_287 = arith.constant 0 : index
    %c0_288 = arith.constant 0 : index
    %1517 = vector.load %arg7[%c3_286, %c0_287, %c0_288] : memref<10x28x28xf32, #tpu.memory_space<vmem>>, vector<1x28x28xf32>
    %1518 = vector.shape_cast %1517 : vector<1x28x28xf32> to vector<28x28xf32>
    %1519 = arith.mulf %1470, %1518 : vector<28x28xf32>
    %1520 = vector.shape_cast %1519 : vector<28x28xf32> to vector<1x28x28xf32>
    %cst_289 = arith.constant dense<0.000000e+00> : vector<1xf32>
    %1521 = vector.multi_reduction <add>, %1520, %cst_289 [1, 2] : vector<1x28x28xf32> to vector<1xf32>
    %1522 = vector.shape_cast %1521 : vector<1xf32> to vector<1x1x1xf32>
    %1523 = vector.extract %1522[0, 0, 0] : f32 from vector<1x1x1xf32>
    %c3_i32 = arith.constant 3 : i32
    %1524 = vector.broadcast %c3_i32 : i32 to vector<1x10xi32>
    %1525 = arith.cmpi eq, %1477, %1524 : vector<1x10xi32>
    %cst_290 = arith.constant 0.000000e+00 : f32
    %1526 = vector.broadcast %1523 : f32 to vector<1x10xf32>
    %1527 = vector.broadcast %cst_290 : f32 to vector<1x10xf32>
    %1528 = arith.select %1525, %1526, %1527 : vector<1x10xi1>, vector<1x10xf32>
    %1529 = arith.addf %1516, %1528 : vector<1x10xf32>
    %c4_291 = arith.constant 4 : index
    %c0_292 = arith.constant 0 : index
    %c0_293 = arith.constant 0 : index
    %1530 = vector.load %arg7[%c4_291, %c0_292, %c0_293] : memref<10x28x28xf32, #tpu.memory_space<vmem>>, vector<1x28x28xf32>
    %1531 = vector.shape_cast %1530 : vector<1x28x28xf32> to vector<28x28xf32>
    %1532 = arith.mulf %1470, %1531 : vector<28x28xf32>
    %1533 = vector.shape_cast %1532 : vector<28x28xf32> to vector<1x28x28xf32>
    %cst_294 = arith.constant dense<0.000000e+00> : vector<1xf32>
    %1534 = vector.multi_reduction <add>, %1533, %cst_294 [1, 2] : vector<1x28x28xf32> to vector<1xf32>
    %1535 = vector.shape_cast %1534 : vector<1xf32> to vector<1x1x1xf32>
    %1536 = vector.extract %1535[0, 0, 0] : f32 from vector<1x1x1xf32>
    %c4_i32 = arith.constant 4 : i32
    %1537 = vector.broadcast %c4_i32 : i32 to vector<1x10xi32>
    %1538 = arith.cmpi eq, %1477, %1537 : vector<1x10xi32>
    %cst_295 = arith.constant 0.000000e+00 : f32
    %1539 = vector.broadcast %1536 : f32 to vector<1x10xf32>
    %1540 = vector.broadcast %cst_295 : f32 to vector<1x10xf32>
    %1541 = arith.select %1538, %1539, %1540 : vector<1x10xi1>, vector<1x10xf32>
    %1542 = arith.addf %1529, %1541 : vector<1x10xf32>
    %c5_296 = arith.constant 5 : index
    %c0_297 = arith.constant 0 : index
    %c0_298 = arith.constant 0 : index
    %1543 = vector.load %arg7[%c5_296, %c0_297, %c0_298] : memref<10x28x28xf32, #tpu.memory_space<vmem>>, vector<1x28x28xf32>
    %1544 = vector.shape_cast %1543 : vector<1x28x28xf32> to vector<28x28xf32>
    %1545 = arith.mulf %1470, %1544 : vector<28x28xf32>
    %1546 = vector.shape_cast %1545 : vector<28x28xf32> to vector<1x28x28xf32>
    %cst_299 = arith.constant dense<0.000000e+00> : vector<1xf32>
    %1547 = vector.multi_reduction <add>, %1546, %cst_299 [1, 2] : vector<1x28x28xf32> to vector<1xf32>
    %1548 = vector.shape_cast %1547 : vector<1xf32> to vector<1x1x1xf32>
    %1549 = vector.extract %1548[0, 0, 0] : f32 from vector<1x1x1xf32>
    %c5_i32 = arith.constant 5 : i32
    %1550 = vector.broadcast %c5_i32 : i32 to vector<1x10xi32>
    %1551 = arith.cmpi eq, %1477, %1550 : vector<1x10xi32>
    %cst_300 = arith.constant 0.000000e+00 : f32
    %1552 = vector.broadcast %1549 : f32 to vector<1x10xf32>
    %1553 = vector.broadcast %cst_300 : f32 to vector<1x10xf32>
    %1554 = arith.select %1551, %1552, %1553 : vector<1x10xi1>, vector<1x10xf32>
    %1555 = arith.addf %1542, %1554 : vector<1x10xf32>
    %c6_301 = arith.constant 6 : index
    %c0_302 = arith.constant 0 : index
    %c0_303 = arith.constant 0 : index
    %1556 = vector.load %arg7[%c6_301, %c0_302, %c0_303] : memref<10x28x28xf32, #tpu.memory_space<vmem>>, vector<1x28x28xf32>
    %1557 = vector.shape_cast %1556 : vector<1x28x28xf32> to vector<28x28xf32>
    %1558 = arith.mulf %1470, %1557 : vector<28x28xf32>
    %1559 = vector.shape_cast %1558 : vector<28x28xf32> to vector<1x28x28xf32>
    %cst_304 = arith.constant dense<0.000000e+00> : vector<1xf32>
    %1560 = vector.multi_reduction <add>, %1559, %cst_304 [1, 2] : vector<1x28x28xf32> to vector<1xf32>
    %1561 = vector.shape_cast %1560 : vector<1xf32> to vector<1x1x1xf32>
    %1562 = vector.extract %1561[0, 0, 0] : f32 from vector<1x1x1xf32>
    %c6_i32 = arith.constant 6 : i32
    %1563 = vector.broadcast %c6_i32 : i32 to vector<1x10xi32>
    %1564 = arith.cmpi eq, %1477, %1563 : vector<1x10xi32>
    %cst_305 = arith.constant 0.000000e+00 : f32
    %1565 = vector.broadcast %1562 : f32 to vector<1x10xf32>
    %1566 = vector.broadcast %cst_305 : f32 to vector<1x10xf32>
    %1567 = arith.select %1564, %1565, %1566 : vector<1x10xi1>, vector<1x10xf32>
    %1568 = arith.addf %1555, %1567 : vector<1x10xf32>
    %c7_306 = arith.constant 7 : index
    %c0_307 = arith.constant 0 : index
    %c0_308 = arith.constant 0 : index
    %1569 = vector.load %arg7[%c7_306, %c0_307, %c0_308] : memref<10x28x28xf32, #tpu.memory_space<vmem>>, vector<1x28x28xf32>
    %1570 = vector.shape_cast %1569 : vector<1x28x28xf32> to vector<28x28xf32>
    %1571 = arith.mulf %1470, %1570 : vector<28x28xf32>
    %1572 = vector.shape_cast %1571 : vector<28x28xf32> to vector<1x28x28xf32>
    %cst_309 = arith.constant dense<0.000000e+00> : vector<1xf32>
    %1573 = vector.multi_reduction <add>, %1572, %cst_309 [1, 2] : vector<1x28x28xf32> to vector<1xf32>
    %1574 = vector.shape_cast %1573 : vector<1xf32> to vector<1x1x1xf32>
    %1575 = vector.extract %1574[0, 0, 0] : f32 from vector<1x1x1xf32>
    %c7_i32 = arith.constant 7 : i32
    %1576 = vector.broadcast %c7_i32 : i32 to vector<1x10xi32>
    %1577 = arith.cmpi eq, %1477, %1576 : vector<1x10xi32>
    %cst_310 = arith.constant 0.000000e+00 : f32
    %1578 = vector.broadcast %1575 : f32 to vector<1x10xf32>
    %1579 = vector.broadcast %cst_310 : f32 to vector<1x10xf32>
    %1580 = arith.select %1577, %1578, %1579 : vector<1x10xi1>, vector<1x10xf32>
    %1581 = arith.addf %1568, %1580 : vector<1x10xf32>
    %c8_311 = arith.constant 8 : index
    %c0_312 = arith.constant 0 : index
    %c0_313 = arith.constant 0 : index
    %1582 = vector.load %arg7[%c8_311, %c0_312, %c0_313] : memref<10x28x28xf32, #tpu.memory_space<vmem>>, vector<1x28x28xf32>
    %1583 = vector.shape_cast %1582 : vector<1x28x28xf32> to vector<28x28xf32>
    %1584 = arith.mulf %1470, %1583 : vector<28x28xf32>
    %1585 = vector.shape_cast %1584 : vector<28x28xf32> to vector<1x28x28xf32>
    %cst_314 = arith.constant dense<0.000000e+00> : vector<1xf32>
    %1586 = vector.multi_reduction <add>, %1585, %cst_314 [1, 2] : vector<1x28x28xf32> to vector<1xf32>
    %1587 = vector.shape_cast %1586 : vector<1xf32> to vector<1x1x1xf32>
    %1588 = vector.extract %1587[0, 0, 0] : f32 from vector<1x1x1xf32>
    %c8_i32 = arith.constant 8 : i32
    %1589 = vector.broadcast %c8_i32 : i32 to vector<1x10xi32>
    %1590 = arith.cmpi eq, %1477, %1589 : vector<1x10xi32>
    %cst_315 = arith.constant 0.000000e+00 : f32
    %1591 = vector.broadcast %1588 : f32 to vector<1x10xf32>
    %1592 = vector.broadcast %cst_315 : f32 to vector<1x10xf32>
    %1593 = arith.select %1590, %1591, %1592 : vector<1x10xi1>, vector<1x10xf32>
    %1594 = arith.addf %1581, %1593 : vector<1x10xf32>
    %c9_316 = arith.constant 9 : index
    %c0_317 = arith.constant 0 : index
    %c0_318 = arith.constant 0 : index
    %1595 = vector.load %arg7[%c9_316, %c0_317, %c0_318] : memref<10x28x28xf32, #tpu.memory_space<vmem>>, vector<1x28x28xf32>
    %1596 = vector.shape_cast %1595 : vector<1x28x28xf32> to vector<28x28xf32>
    %1597 = arith.mulf %1470, %1596 : vector<28x28xf32>
    %1598 = vector.shape_cast %1597 : vector<28x28xf32> to vector<1x28x28xf32>
    %cst_319 = arith.constant dense<0.000000e+00> : vector<1xf32>
    %1599 = vector.multi_reduction <add>, %1598, %cst_319 [1, 2] : vector<1x28x28xf32> to vector<1xf32>
    %1600 = vector.shape_cast %1599 : vector<1xf32> to vector<1x1x1xf32>
    %1601 = vector.extract %1600[0, 0, 0] : f32 from vector<1x1x1xf32>
    %c9_i32 = arith.constant 9 : i32
    %1602 = vector.broadcast %c9_i32 : i32 to vector<1x10xi32>
    %1603 = arith.cmpi eq, %1477, %1602 : vector<1x10xi32>
    %cst_320 = arith.constant 0.000000e+00 : f32
    %1604 = vector.broadcast %1601 : f32 to vector<1x10xf32>
    %1605 = vector.broadcast %cst_320 : f32 to vector<1x10xf32>
    %1606 = arith.select %1603, %1604, %1605 : vector<1x10xi1>, vector<1x10xf32>
    %1607 = arith.addf %1594, %1606 : vector<1x10xf32>
    %c0_321 = arith.constant 0 : index
    %c0_322 = arith.constant 0 : index
    %c0_323 = arith.constant 0 : index
    %1608 = vector.load %arg7[%c0_321, %c0_322, %c0_323] : memref<10x28x28xf32, #tpu.memory_space<vmem>>, vector<1x28x28xf32>
    %1609 = vector.shape_cast %1608 : vector<1x28x28xf32> to vector<28x28xf32>
    %1610 = arith.mulf %1475, %1609 : vector<28x28xf32>
    %1611 = vector.shape_cast %1610 : vector<28x28xf32> to vector<1x28x28xf32>
    %cst_324 = arith.constant dense<0.000000e+00> : vector<1xf32>
    %1612 = vector.multi_reduction <add>, %1611, %cst_324 [1, 2] : vector<1x28x28xf32> to vector<1xf32>
    %1613 = vector.shape_cast %1612 : vector<1xf32> to vector<1x1x1xf32>
    %1614 = vector.extract %1613[0, 0, 0] : f32 from vector<1x1x1xf32>
    %c0_i32_325 = arith.constant 0 : i32
    %1615 = vector.broadcast %c0_i32_325 : i32 to vector<1x10xi32>
    %1616 = arith.cmpi eq, %1477, %1615 : vector<1x10xi32>
    %cst_326 = arith.constant 0.000000e+00 : f32
    %1617 = vector.broadcast %1614 : f32 to vector<1x10xf32>
    %1618 = vector.broadcast %cst_326 : f32 to vector<1x10xf32>
    %1619 = arith.select %1616, %1617, %1618 : vector<1x10xi1>, vector<1x10xf32>
    %1620 = arith.addf %1476, %1619 : vector<1x10xf32>
    %c1_327 = arith.constant 1 : index
    %c0_328 = arith.constant 0 : index
    %c0_329 = arith.constant 0 : index
    %1621 = vector.load %arg7[%c1_327, %c0_328, %c0_329] : memref<10x28x28xf32, #tpu.memory_space<vmem>>, vector<1x28x28xf32>
    %1622 = vector.shape_cast %1621 : vector<1x28x28xf32> to vector<28x28xf32>
    %1623 = arith.mulf %1475, %1622 : vector<28x28xf32>
    %1624 = vector.shape_cast %1623 : vector<28x28xf32> to vector<1x28x28xf32>
    %cst_330 = arith.constant dense<0.000000e+00> : vector<1xf32>
    %1625 = vector.multi_reduction <add>, %1624, %cst_330 [1, 2] : vector<1x28x28xf32> to vector<1xf32>
    %1626 = vector.shape_cast %1625 : vector<1xf32> to vector<1x1x1xf32>
    %1627 = vector.extract %1626[0, 0, 0] : f32 from vector<1x1x1xf32>
    %c1_i32_331 = arith.constant 1 : i32
    %1628 = vector.broadcast %c1_i32_331 : i32 to vector<1x10xi32>
    %1629 = arith.cmpi eq, %1477, %1628 : vector<1x10xi32>
    %cst_332 = arith.constant 0.000000e+00 : f32
    %1630 = vector.broadcast %1627 : f32 to vector<1x10xf32>
    %1631 = vector.broadcast %cst_332 : f32 to vector<1x10xf32>
    %1632 = arith.select %1629, %1630, %1631 : vector<1x10xi1>, vector<1x10xf32>
    %1633 = arith.addf %1620, %1632 : vector<1x10xf32>
    %c2_333 = arith.constant 2 : index
    %c0_334 = arith.constant 0 : index
    %c0_335 = arith.constant 0 : index
    %1634 = vector.load %arg7[%c2_333, %c0_334, %c0_335] : memref<10x28x28xf32, #tpu.memory_space<vmem>>, vector<1x28x28xf32>
    %1635 = vector.shape_cast %1634 : vector<1x28x28xf32> to vector<28x28xf32>
    %1636 = arith.mulf %1475, %1635 : vector<28x28xf32>
    %1637 = vector.shape_cast %1636 : vector<28x28xf32> to vector<1x28x28xf32>
    %cst_336 = arith.constant dense<0.000000e+00> : vector<1xf32>
    %1638 = vector.multi_reduction <add>, %1637, %cst_336 [1, 2] : vector<1x28x28xf32> to vector<1xf32>
    %1639 = vector.shape_cast %1638 : vector<1xf32> to vector<1x1x1xf32>
    %1640 = vector.extract %1639[0, 0, 0] : f32 from vector<1x1x1xf32>
    %c2_i32_337 = arith.constant 2 : i32
    %1641 = vector.broadcast %c2_i32_337 : i32 to vector<1x10xi32>
    %1642 = arith.cmpi eq, %1477, %1641 : vector<1x10xi32>
    %cst_338 = arith.constant 0.000000e+00 : f32
    %1643 = vector.broadcast %1640 : f32 to vector<1x10xf32>
    %1644 = vector.broadcast %cst_338 : f32 to vector<1x10xf32>
    %1645 = arith.select %1642, %1643, %1644 : vector<1x10xi1>, vector<1x10xf32>
    %1646 = arith.addf %1633, %1645 : vector<1x10xf32>
    %c3_339 = arith.constant 3 : index
    %c0_340 = arith.constant 0 : index
    %c0_341 = arith.constant 0 : index
    %1647 = vector.load %arg7[%c3_339, %c0_340, %c0_341] : memref<10x28x28xf32, #tpu.memory_space<vmem>>, vector<1x28x28xf32>
    %1648 = vector.shape_cast %1647 : vector<1x28x28xf32> to vector<28x28xf32>
    %1649 = arith.mulf %1475, %1648 : vector<28x28xf32>
    %1650 = vector.shape_cast %1649 : vector<28x28xf32> to vector<1x28x28xf32>
    %cst_342 = arith.constant dense<0.000000e+00> : vector<1xf32>
    %1651 = vector.multi_reduction <add>, %1650, %cst_342 [1, 2] : vector<1x28x28xf32> to vector<1xf32>
    %1652 = vector.shape_cast %1651 : vector<1xf32> to vector<1x1x1xf32>
    %1653 = vector.extract %1652[0, 0, 0] : f32 from vector<1x1x1xf32>
    %c3_i32_343 = arith.constant 3 : i32
    %1654 = vector.broadcast %c3_i32_343 : i32 to vector<1x10xi32>
    %1655 = arith.cmpi eq, %1477, %1654 : vector<1x10xi32>
    %cst_344 = arith.constant 0.000000e+00 : f32
    %1656 = vector.broadcast %1653 : f32 to vector<1x10xf32>
    %1657 = vector.broadcast %cst_344 : f32 to vector<1x10xf32>
    %1658 = arith.select %1655, %1656, %1657 : vector<1x10xi1>, vector<1x10xf32>
    %1659 = arith.addf %1646, %1658 : vector<1x10xf32>
    %c4_345 = arith.constant 4 : index
    %c0_346 = arith.constant 0 : index
    %c0_347 = arith.constant 0 : index
    %1660 = vector.load %arg7[%c4_345, %c0_346, %c0_347] : memref<10x28x28xf32, #tpu.memory_space<vmem>>, vector<1x28x28xf32>
    %1661 = vector.shape_cast %1660 : vector<1x28x28xf32> to vector<28x28xf32>
    %1662 = arith.mulf %1475, %1661 : vector<28x28xf32>
    %1663 = vector.shape_cast %1662 : vector<28x28xf32> to vector<1x28x28xf32>
    %cst_348 = arith.constant dense<0.000000e+00> : vector<1xf32>
    %1664 = vector.multi_reduction <add>, %1663, %cst_348 [1, 2] : vector<1x28x28xf32> to vector<1xf32>
    %1665 = vector.shape_cast %1664 : vector<1xf32> to vector<1x1x1xf32>
    %1666 = vector.extract %1665[0, 0, 0] : f32 from vector<1x1x1xf32>
    %c4_i32_349 = arith.constant 4 : i32
    %1667 = vector.broadcast %c4_i32_349 : i32 to vector<1x10xi32>
    %1668 = arith.cmpi eq, %1477, %1667 : vector<1x10xi32>
    %cst_350 = arith.constant 0.000000e+00 : f32
    %1669 = vector.broadcast %1666 : f32 to vector<1x10xf32>
    %1670 = vector.broadcast %cst_350 : f32 to vector<1x10xf32>
    %1671 = arith.select %1668, %1669, %1670 : vector<1x10xi1>, vector<1x10xf32>
    %1672 = arith.addf %1659, %1671 : vector<1x10xf32>
    %c5_351 = arith.constant 5 : index
    %c0_352 = arith.constant 0 : index
    %c0_353 = arith.constant 0 : index
    %1673 = vector.load %arg7[%c5_351, %c0_352, %c0_353] : memref<10x28x28xf32, #tpu.memory_space<vmem>>, vector<1x28x28xf32>
    %1674 = vector.shape_cast %1673 : vector<1x28x28xf32> to vector<28x28xf32>
    %1675 = arith.mulf %1475, %1674 : vector<28x28xf32>
    %1676 = vector.shape_cast %1675 : vector<28x28xf32> to vector<1x28x28xf32>
    %cst_354 = arith.constant dense<0.000000e+00> : vector<1xf32>
    %1677 = vector.multi_reduction <add>, %1676, %cst_354 [1, 2] : vector<1x28x28xf32> to vector<1xf32>
    %1678 = vector.shape_cast %1677 : vector<1xf32> to vector<1x1x1xf32>
    %1679 = vector.extract %1678[0, 0, 0] : f32 from vector<1x1x1xf32>
    %c5_i32_355 = arith.constant 5 : i32
    %1680 = vector.broadcast %c5_i32_355 : i32 to vector<1x10xi32>
    %1681 = arith.cmpi eq, %1477, %1680 : vector<1x10xi32>
    %cst_356 = arith.constant 0.000000e+00 : f32
    %1682 = vector.broadcast %1679 : f32 to vector<1x10xf32>
    %1683 = vector.broadcast %cst_356 : f32 to vector<1x10xf32>
    %1684 = arith.select %1681, %1682, %1683 : vector<1x10xi1>, vector<1x10xf32>
    %1685 = arith.addf %1672, %1684 : vector<1x10xf32>
    %c6_357 = arith.constant 6 : index
    %c0_358 = arith.constant 0 : index
    %c0_359 = arith.constant 0 : index
    %1686 = vector.load %arg7[%c6_357, %c0_358, %c0_359] : memref<10x28x28xf32, #tpu.memory_space<vmem>>, vector<1x28x28xf32>
    %1687 = vector.shape_cast %1686 : vector<1x28x28xf32> to vector<28x28xf32>
    %1688 = arith.mulf %1475, %1687 : vector<28x28xf32>
    %1689 = vector.shape_cast %1688 : vector<28x28xf32> to vector<1x28x28xf32>
    %cst_360 = arith.constant dense<0.000000e+00> : vector<1xf32>
    %1690 = vector.multi_reduction <add>, %1689, %cst_360 [1, 2] : vector<1x28x28xf32> to vector<1xf32>
    %1691 = vector.shape_cast %1690 : vector<1xf32> to vector<1x1x1xf32>
    %1692 = vector.extract %1691[0, 0, 0] : f32 from vector<1x1x1xf32>
    %c6_i32_361 = arith.constant 6 : i32
    %1693 = vector.broadcast %c6_i32_361 : i32 to vector<1x10xi32>
    %1694 = arith.cmpi eq, %1477, %1693 : vector<1x10xi32>
    %cst_362 = arith.constant 0.000000e+00 : f32
    %1695 = vector.broadcast %1692 : f32 to vector<1x10xf32>
    %1696 = vector.broadcast %cst_362 : f32 to vector<1x10xf32>
    %1697 = arith.select %1694, %1695, %1696 : vector<1x10xi1>, vector<1x10xf32>
    %1698 = arith.addf %1685, %1697 : vector<1x10xf32>
    %c7_363 = arith.constant 7 : index
    %c0_364 = arith.constant 0 : index
    %c0_365 = arith.constant 0 : index
    %1699 = vector.load %arg7[%c7_363, %c0_364, %c0_365] : memref<10x28x28xf32, #tpu.memory_space<vmem>>, vector<1x28x28xf32>
    %1700 = vector.shape_cast %1699 : vector<1x28x28xf32> to vector<28x28xf32>
    %1701 = arith.mulf %1475, %1700 : vector<28x28xf32>
    %1702 = vector.shape_cast %1701 : vector<28x28xf32> to vector<1x28x28xf32>
    %cst_366 = arith.constant dense<0.000000e+00> : vector<1xf32>
    %1703 = vector.multi_reduction <add>, %1702, %cst_366 [1, 2] : vector<1x28x28xf32> to vector<1xf32>
    %1704 = vector.shape_cast %1703 : vector<1xf32> to vector<1x1x1xf32>
    %1705 = vector.extract %1704[0, 0, 0] : f32 from vector<1x1x1xf32>
    %c7_i32_367 = arith.constant 7 : i32
    %1706 = vector.broadcast %c7_i32_367 : i32 to vector<1x10xi32>
    %1707 = arith.cmpi eq, %1477, %1706 : vector<1x10xi32>
    %cst_368 = arith.constant 0.000000e+00 : f32
    %1708 = vector.broadcast %1705 : f32 to vector<1x10xf32>
    %1709 = vector.broadcast %cst_368 : f32 to vector<1x10xf32>
    %1710 = arith.select %1707, %1708, %1709 : vector<1x10xi1>, vector<1x10xf32>
    %1711 = arith.addf %1698, %1710 : vector<1x10xf32>
    %c8_369 = arith.constant 8 : index
    %c0_370 = arith.constant 0 : index
    %c0_371 = arith.constant 0 : index
    %1712 = vector.load %arg7[%c8_369, %c0_370, %c0_371] : memref<10x28x28xf32, #tpu.memory_space<vmem>>, vector<1x28x28xf32>
    %1713 = vector.shape_cast %1712 : vector<1x28x28xf32> to vector<28x28xf32>
    %1714 = arith.mulf %1475, %1713 : vector<28x28xf32>
    %1715 = vector.shape_cast %1714 : vector<28x28xf32> to vector<1x28x28xf32>
    %cst_372 = arith.constant dense<0.000000e+00> : vector<1xf32>
    %1716 = vector.multi_reduction <add>, %1715, %cst_372 [1, 2] : vector<1x28x28xf32> to vector<1xf32>
    %1717 = vector.shape_cast %1716 : vector<1xf32> to vector<1x1x1xf32>
    %1718 = vector.extract %1717[0, 0, 0] : f32 from vector<1x1x1xf32>
    %c8_i32_373 = arith.constant 8 : i32
    %1719 = vector.broadcast %c8_i32_373 : i32 to vector<1x10xi32>
    %1720 = arith.cmpi eq, %1477, %1719 : vector<1x10xi32>
    %cst_374 = arith.constant 0.000000e+00 : f32
    %1721 = vector.broadcast %1718 : f32 to vector<1x10xf32>
    %1722 = vector.broadcast %cst_374 : f32 to vector<1x10xf32>
    %1723 = arith.select %1720, %1721, %1722 : vector<1x10xi1>, vector<1x10xf32>
    %1724 = arith.addf %1711, %1723 : vector<1x10xf32>
    %c9_375 = arith.constant 9 : index
    %c0_376 = arith.constant 0 : index
    %c0_377 = arith.constant 0 : index
    %1725 = vector.load %arg7[%c9_375, %c0_376, %c0_377] : memref<10x28x28xf32, #tpu.memory_space<vmem>>, vector<1x28x28xf32>
    %1726 = vector.shape_cast %1725 : vector<1x28x28xf32> to vector<28x28xf32>
    %1727 = arith.mulf %1475, %1726 : vector<28x28xf32>
    %1728 = vector.shape_cast %1727 : vector<28x28xf32> to vector<1x28x28xf32>
    %cst_378 = arith.constant dense<0.000000e+00> : vector<1xf32>
    %1729 = vector.multi_reduction <add>, %1728, %cst_378 [1, 2] : vector<1x28x28xf32> to vector<1xf32>
    %1730 = vector.shape_cast %1729 : vector<1xf32> to vector<1x1x1xf32>
    %1731 = vector.extract %1730[0, 0, 0] : f32 from vector<1x1x1xf32>
    %c9_i32_379 = arith.constant 9 : i32
    %1732 = vector.broadcast %c9_i32_379 : i32 to vector<1x10xi32>
    %1733 = arith.cmpi eq, %1477, %1732 : vector<1x10xi32>
    %cst_380 = arith.constant 0.000000e+00 : f32
    %1734 = vector.broadcast %1731 : f32 to vector<1x10xf32>
    %1735 = vector.broadcast %cst_380 : f32 to vector<1x10xf32>
    %1736 = arith.select %1733, %1734, %1735 : vector<1x10xi1>, vector<1x10xf32>
    %1737 = arith.addf %1724, %1736 : vector<1x10xf32>
    %1738 = tpu.concatenate %1607, %1737 in 0 : vector<1x10xf32>, vector<1x10xf32> -> vector<2x10xf32>
    %c0_381 = arith.constant 0 : index
    %c0_382 = arith.constant 0 : index
    %1739 = vector.load %arg9[%c0_381, %c0_382] : memref<2x10xf32, #tpu.memory_space<vmem>>, vector<2x10xf32>
    tpu.vector_store %arg9[%c0_381, %c0_382], %1738 {strides = array<i32>} : memref<2x10xf32, #tpu.memory_space<vmem>>, vector<2x10xf32>,
    return
  }
}

</mosaic_0001>

<llo_original>
// kernel: tpu_custom_call.1
$region0: #{tpu_custom_call.1}
  #allocation0 [shape = 'u32[]', space=smem, size = 0x4, offset = 0x4, fixed_abs, tag = 'smem constant byte address 0x4 - core index']
  #allocation1 [shape = 'u32[144,128]{1,0:T(1,128)}', space=vmem, size = 0x12000, scoped, tag = 'internal scratch']
  #allocation2 [shape = 'f32[1]{0:T(128)S(6)}', space=smem, size = 0x200, scoped, tag = 'scoped memory for tpu_custom_call.1']
  %s0 = inlined_call_operand.vmem [shape: f32[2,1,28,28], index: 0, kind: input, shape index: {}]
  %s1 = inlined_call_operand.vmem [shape: f32[27], index: 1, kind: input, shape index: {}]
  %s2 = inlined_call_operand.vmem [shape: f32[3], index: 2, kind: input, shape index: {}]
  %s3 = inlined_call_operand.vmem [shape: f32[81], index: 3, kind: input, shape index: {}]
  %s4 = inlined_call_operand.vmem [shape: f32[3], index: 4, kind: input, shape index: {}]
  %s5 = inlined_call_operand.vmem [shape: f32[27], index: 5, kind: input, shape index: {}]
  %s6 = inlined_call_operand.<no memory space> [shape: f32[1], index: 6, kind: input, shape index: {}]
  %s7 = inlined_call_operand.hbm [shape: f32[10,28,28], index: 7, kind: input, shape index: {}]
  %s8 = inlined_call_operand.vmem [shape: f32[1,10], index: 8, kind: input, shape index: {}]
  %s9 = inlined_call_operand.hbm [shape: f32[2,10], index: 9, kind: output, shape index: {}]
  %s10 = sld [smem:[#allocation0]]
  $region70: #{tpu_custom_call.1} parent=0
    _
  %s12 = ssub.s32 1, %s10
  %s13 = scalar_select 0, %s12, %s10
  %14 = sst [smem:[#allocation2]] %s6
  $region1: #{tpu_custom_call.1} parent=0
    #allocation3 [shape = 'u8[512]{0}', space=smem, size = 0x200, scoped, tag = 'input window, operand 1, single buffered']
    #allocation4 [shape = 's32[1]{0}', space=sflag, size = 0x4, scoped, tag = 'scoped memory for tpu_custom_call.1']
    #allocation5 [shape = 's32[1]{0}', space=sflag, size = 0x4, scoped, tag = 'scoped memory for tpu_custom_call.1']
    #allocation6 [shape = 's32[1]{0}', space=sflag, size = 0x4, scoped, tag = 'scoped memory for tpu_custom_call.1']
    #allocation7 [shape = 'u8[512]{0}', space=smem, size = 0x200, scoped, tag = 'input window, operand 2, single buffered']
    #allocation8 [shape = 's32[1]{0}', space=sflag, size = 0x4, scoped, tag = 'scoped memory for tpu_custom_call.1']
    #allocation9 [shape = 'u8[512]{0}', space=smem, size = 0x200, scoped, tag = 'input window, operand 3, single buffered']
    #allocation10 [shape = 'u8[512]{0}', space=smem, size = 0x200, scoped, tag = 'input window, operand 4, single buffered']
    #allocation11 [shape = 's32[1]{0}', space=sflag, size = 0x4, scoped, tag = 'scoped memory for tpu_custom_call.1']
    #allocation12 [shape = 'u8[512]{0}', space=smem, size = 0x200, scoped, tag = 'input window, operand 5, single buffered']
    #allocation13 [shape = 'u8[163840]{0}', space=vmem, size = 0x28000, scoped, tag = 'input window, operand 7, single buffered']
    #allocation14 [shape = 'u8[1024]{0}', space=vmem, size = 0x400, scoped, tag = 'output window, operand 0, single buffered']
    %15 = vsyncpa [#allocation6], 0
    %16 = vsyncpa [#allocation8], 0
    %17 = vsyncpa [#allocation11], 0
    %18 = vsyncpa [#allocation4], 0
    %19 = vsyncpa [#allocation5], 0
    // Predicated region
    $region2: #{tpu_custom_call.1} parent=1 // pred_check
      _
    $region3: #{tpu_custom_call.1} parent=1 // pred_check_branch
      %21 = sbr.rel (0) target = $region5
    $region4: #{tpu_custom_call.1} parent=1 // pred_region
      _
    $region5: #{tpu_custom_call.1} parent=1 // pred_fallthru
      _
    // Predicated region
    $region6: #{tpu_custom_call.1} parent=1 // pred_check
      _
    $region7: #{tpu_custom_call.1} parent=1 // pred_check_branch
      %23 = sbr.rel (0) target = $region9
    $region8: #{tpu_custom_call.1} parent=1 // pred_region
      %s25 = ssub.s32 16, 16
      %26 = vsyncadd [#allocation6], %s25
      %s28 = sshll.u32 %s1, 4
      %s29 = int_to_ptr.vmem [resolvable:$true] %s28
      %31 = dma.vmem_to_smem %s29, 16, [#allocation3], [#allocation6]
    $region9: #{tpu_custom_call.1} parent=1 // pred_fallthru
      _
    // Predicated region
    $region10: #{tpu_custom_call.1} parent=1 // pred_check
      _
    $region11: #{tpu_custom_call.1} parent=1 // pred_check_branch
      %33 = sbr.rel (0) target = $region13
    $region12: #{tpu_custom_call.1} parent=1 // pred_region
      %s35 = ssub.s32 16, 16
      %36 = vsyncadd [#allocation8], %s35
      %s38 = sshll.u32 %s2, 4
      %s39 = int_to_ptr.vmem [resolvable:$true] %s38
      %41 = dma.vmem_to_smem %s39, 16, [#allocation7], [#allocation8]
    $region13: #{tpu_custom_call.1} parent=1 // pred_fallthru
      _
    // Predicated region
    $region14: #{tpu_custom_call.1} parent=1 // pred_check
      _
    $region15: #{tpu_custom_call.1} parent=1 // pred_check_branch
      %43 = sbr.rel (0) target = $region17
    $region16: #{tpu_custom_call.1} parent=1 // pred_region
      %s45 = ssub.s32 16, 16
      %46 = vsyncadd [#allocation8], %s45
      %s48 = sshll.u32 %s3, 4
      %s49 = int_to_ptr.vmem [resolvable:$true] %s48
      %51 = dma.vmem_to_smem %s49, 16, [#allocation9], [#allocation8]
    $region17: #{tpu_custom_call.1} parent=1 // pred_fallthru
      _
    // Predicated region
    $region18: #{tpu_custom_call.1} parent=1 // pred_check
      _
    $region19: #{tpu_custom_call.1} parent=1 // pred_check_branch
      %53 = sbr.rel (0) target = $region21
    $region20: #{tpu_custom_call.1} parent=1 // pred_region
      %s55 = ssub.s32 16, 16
      %56 = vsyncadd [#allocation11], %s55
      %s58 = sshll.u32 %s4, 4
      %s59 = int_to_ptr.vmem [resolvable:$true] %s58
      %61 = dma.vmem_to_smem %s59, 16, [#allocation10], [#allocation11]
    $region21: #{tpu_custom_call.1} parent=1 // pred_fallthru
      _
    // Predicated region
    $region22: #{tpu_custom_call.1} parent=1 // pred_check
      _
    $region23: #{tpu_custom_call.1} parent=1 // pred_check_branch
      %63 = sbr.rel (0) target = $region25
    $region24: #{tpu_custom_call.1} parent=1 // pred_region
      %s65 = ssub.s32 16, 16
      %66 = vsyncadd [#allocation11], %s65
      %s68 = sshll.u32 %s5, 4
      %s69 = int_to_ptr.vmem [resolvable:$true] %s68
      %71 = dma.vmem_to_smem %s69, 16, [#allocation12], [#allocation11]
    $region25: #{tpu_custom_call.1} parent=1 // pred_fallthru
      _
    // Predicated region
    $region26: #{tpu_custom_call.1} parent=1 // pred_check
      _
    $region27: #{tpu_custom_call.1} parent=1 // pred_check_branch
      %73 = sbr.rel (0) target = $region29
    $region28: #{tpu_custom_call.1} parent=1 // pred_region
      _
    $region29: #{tpu_custom_call.1} parent=1 // pred_fallthru
      _
    // Predicated region
    $region30: #{tpu_custom_call.1} parent=1 // pred_check
      _
    $region31: #{tpu_custom_call.1} parent=1 // pred_check_branch
      %75 = sbr.rel (0) target = $region33
    $region32: #{tpu_custom_call.1} parent=1 // pred_region
      %s77 = ssub.s32 5120, 5120
      %78 = vsyncadd [#allocation4], %s77
      %s79 = sshll.u32 [#allocation13], 4
      %s80 = int_to_ptr.vmem [resolvable:$true] %s79
      %85 = dma.hbm_to_vmem [thread:$0]  %s7, 5120, %s80, [#allocation4], 128, 128, 8
    $region33: #{tpu_custom_call.1} parent=1 // pred_fallthru
      _
    // Predicated region
    $region34: #{tpu_custom_call.1} parent=1 // pred_check
      _
    $region35: #{tpu_custom_call.1} parent=1 // pred_check_branch
      %87 = sbr.rel (0) target = $region37
    $region36: #{tpu_custom_call.1} parent=1 // pred_region
      _
    $region37: #{tpu_custom_call.1} parent=1 // pred_fallthru
      _
    // Predicated region
    $region38: #{tpu_custom_call.1} parent=1 // pred_check
      _
    $region39: #{tpu_custom_call.1} parent=1 // pred_check_branch
      %89 = sbr.rel (0) target = $region41
    $region40: #{tpu_custom_call.1} parent=1 // pred_region
      %90 = dma.done [#allocation6], 16
    $region41: #{tpu_custom_call.1} parent=1 // pred_fallthru
      _
    // Predicated region
    $region42: #{tpu_custom_call.1} parent=1 // pred_check
      _
    $region43: #{tpu_custom_call.1} parent=1 // pred_check_branch
      %92 = sbr.rel (0) target = $region45
    $region44: #{tpu_custom_call.1} parent=1 // pred_region
      %93 = dma.done [#allocation8], 16
    $region45: #{tpu_custom_call.1} parent=1 // pred_fallthru
      _
    // Predicated region
    $region46: #{tpu_custom_call.1} parent=1 // pred_check
      _
    $region47: #{tpu_custom_call.1} parent=1 // pred_check_branch
      %95 = sbr.rel (0) target = $region49
    $region48: #{tpu_custom_call.1} parent=1 // pred_region
      %96 = dma.done [#allocation8], 16
    $region49: #{tpu_custom_call.1} parent=1 // pred_fallthru
      _
    // Predicated region
    $region50: #{tpu_custom_call.1} parent=1 // pred_check
      _
    $region51: #{tpu_custom_call.1} parent=1 // pred_check_branch
      %98 = sbr.rel (0) target = $region53
    $region52: #{tpu_custom_call.1} parent=1 // pred_region
      %99 = dma.done [#allocation11], 16
    $region53: #{tpu_custom_call.1} parent=1 // pred_fallthru
      _
    // Predicated region
    $region54: #{tpu_custom_call.1} parent=1 // pred_check
      _
    $region55: #{tpu_custom_call.1} parent=1 // pred_check_branch
      %101 = sbr.rel (0) target = $region57
    $region56: #{tpu_custom_call.1} parent=1 // pred_region
      %102 = dma.done [#allocation11], 16
    $region57: #{tpu_custom_call.1} parent=1 // pred_fallthru
      _
    // Predicated region
    $region58: #{tpu_custom_call.1} parent=1 // pred_check
      _
    $region59: #{tpu_custom_call.1} parent=1 // pred_check_branch
      %104 = sbr.rel (0) target = $region61
    $region60: #{tpu_custom_call.1} parent=1 // pred_region
      %105 = dma.done [#allocation4], 5120
    $region61: #{tpu_custom_call.1} parent=1 // pred_fallthru
      _
    %106 = sfence
    %v107 = vld [vmem:[%s0] sm:$0xff]
    %v108 = vld [vmem:[%s0 + $0x8] sm:$0xff]
    %v109 = vld [vmem:[%s0 + $0x10] sm:$0xff]
    %v110 = vld [vmem:[%s0 + $0x18] sm:$0xf]
    %s111 = scalar_lea.vmem %s0, 32
    %v112 = vld [vmem:[%s111] sm:$0xff]
    %v113 = vld [vmem:[%s111 + $0x8] sm:$0xff]
    %v114 = vld [vmem:[%s111 + $0x10] sm:$0xff]
    %v115 = vld [vmem:[%s111 + $0x18] sm:$0xf]
    %s116 = sld [smem:[#allocation7]]
    %v117 = vstv %s116
    %v118 = vadd.f32 %v117, 0.0
    %s119 = sld [smem:[#allocation7 + $0x1]]
    %v120 = vstv %s119
    %v121 = vadd.f32 %v120, 0.0
    %s122 = sld [smem:[#allocation7 + $0x2]]
    %v123 = vstv %s122
    %v124 = vadd.f32 %v123, 0.0
    %vm129 = vcmask 1040384
    %v130 = vrot.slane %v107, 7
    %v131 = vrot.slane %v108, 7
    %v132 = vsel %vm129, %v130, %v131
    %v133 = vrot.slane %v109, 7
    %v134 = vsel %vm129, %v131, %v133
    %v135 = vrot.slane %v110, 7
    %v136 = vsel %vm129, %v133, %v135
    %v139 = vsel %vm129, 0.0, %v130
    %vm140 = vcmask 1044480
    %v141 = vsel %vm140, %v136, 0.0
    %144 = vrot.lane.b32.xlu0 %v139, 1
    %v145 = vpop.permute.xlu0 %144
    %146 = vrot.lane.b32.xlu0 %v132, 1
    %v147 = vpop.permute.xlu0 %146
    %148 = vrot.lane.b32.xlu0 %v134, 1
    %v149 = vpop.permute.xlu0 %148
    %150 = vrot.lane.b32.xlu0 %v141, 1
    %v151 = vpop.permute.xlu0 %150
    %vm156 = vcmask 7168
    %v157 = vsel %vm156, 0.0, %v145
    %v158 = vsel %vm156, 0.0, %v147
    %v159 = vsel %vm156, 0.0, %v149
    %v160 = vsel %vm156, 0.0, %v151
    %vm161 = vcmask 236544
    %v162 = vsel %vm161, %v157, 0.0
    %v163 = vsel %vm161, %v158, 0.0
    %v164 = vsel %vm161, %v159, 0.0
    %v165 = vsel %vm161, %v160, 0.0
    %s166 = sld [smem:[#allocation3]]
    %v167 = vstv %s166
    %v168 = vmul.f32 %v167, %v162
    %v169 = vmul.f32 %v167, %v163
    %v170 = vmul.f32 %v167, %v164
    %v171 = vmul.f32 %v167, %v165
    %v172 = vadd.f32 %v118, %v168
    %v173 = vadd.f32 %v118, %v169
    %v174 = vadd.f32 %v118, %v170
    %v175 = vadd.f32 %v118, %v171
    %s176 = sld [smem:[#allocation3 + $0x9]]
    %v177 = vstv %s176
    %v178 = vmul.f32 %v177, %v162
    %v179 = vmul.f32 %v177, %v163
    %v180 = vmul.f32 %v177, %v164
    %v181 = vmul.f32 %v177, %v165
    %v182 = vadd.f32 %v121, %v178
    %v183 = vadd.f32 %v121, %v179
    %v184 = vadd.f32 %v121, %v180
    %v185 = vadd.f32 %v121, %v181
    %s186 = sld [smem:[#allocation3 + $0x12]]
    %v187 = vstv %s186
    %v188 = vmul.f32 %v187, %v162
    %v189 = vmul.f32 %v187, %v163
    %v190 = vmul.f32 %v187, %v164
    %v191 = vmul.f32 %v187, %v165
    %v192 = vadd.f32 %v124, %v188
    %v193 = vadd.f32 %v124, %v189
    %v194 = vadd.f32 %v124, %v190
    %v195 = vadd.f32 %v124, %v191
    %s196 = sld [smem:[#allocation3 + $0x1]]
    %v197 = vstv %s196
    %v198 = vmul.f32 %v197, %v162
    %v199 = vmul.f32 %v197, %v163
    %v200 = vmul.f32 %v197, %v164
    %v201 = vmul.f32 %v197, %v165
    %206 = vrot.lane.b32.xlu0 %v198, 127
    %v207 = vpop.permute.xlu0 %206
    %208 = vrot.lane.b32.xlu0 %v199, 127
    %v209 = vpop.permute.xlu0 %208
    %210 = vrot.lane.b32.xlu0 %v200, 127
    %v211 = vpop.permute.xlu0 %210
    %212 = vrot.lane.b32.xlu0 %v201, 127
    %v213 = vpop.permute.xlu0 %212
    %v218 = vadd.f32 %v172, %v207
    %v219 = vadd.f32 %v173, %v209
    %v220 = vadd.f32 %v174, %v211
    %v221 = vadd.f32 %v175, %v213
    %s222 = sld [smem:[#allocation3 + $0xa]]
    %v223 = vstv %s222
    %v224 = vmul.f32 %v223, %v162
    %v225 = vmul.f32 %v223, %v163
    %v226 = vmul.f32 %v223, %v164
    %v227 = vmul.f32 %v223, %v165
    %232 = vrot.lane.b32.xlu0 %v224, 127
    %v233 = vpop.permute.xlu0 %232
    %234 = vrot.lane.b32.xlu0 %v225, 127
    %v235 = vpop.permute.xlu0 %234
    %236 = vrot.lane.b32.xlu0 %v226, 127
    %v237 = vpop.permute.xlu0 %236
    %238 = vrot.lane.b32.xlu0 %v227, 127
    %v239 = vpop.permute.xlu0 %238
    %v244 = vadd.f32 %v182, %v233
    %v245 = vadd.f32 %v183, %v235
    %v246 = vadd.f32 %v184, %v237
    %v247 = vadd.f32 %v185, %v239
    %s248 = sld [smem:[#allocation3 + $0x13]]
    %v249 = vstv %s248
    %v250 = vmul.f32 %v249, %v162
    %v251 = vmul.f32 %v249, %v163
    %v252 = vmul.f32 %v249, %v164
    %v253 = vmul.f32 %v249, %v165
    %258 = vrot.lane.b32.xlu0 %v250, 127
    %v259 = vpop.permute.xlu0 %258
    %260 = vrot.lane.b32.xlu0 %v251, 127
    %v261 = vpop.permute.xlu0 %260
    %262 = vrot.lane.b32.xlu0 %v252, 127
    %v263 = vpop.permute.xlu0 %262
    %264 = vrot.lane.b32.xlu0 %v253, 127
    %v265 = vpop.permute.xlu0 %264
    %v270 = vadd.f32 %v192, %v259
    %v271 = vadd.f32 %v193, %v261
    %v272 = vadd.f32 %v194, %v263
    %v273 = vadd.f32 %v195, %v265
    %s274 = sld [smem:[#allocation3 + $0x2]]
    %v275 = vstv %s274
    %v276 = vmul.f32 %v275, %v162
    %v277 = vmul.f32 %v275, %v163
    %v278 = vmul.f32 %v275, %v164
    %v279 = vmul.f32 %v275, %v165
    %284 = vrot.lane.b32.xlu0 %v276, 126
    %v285 = vpop.permute.xlu0 %284
    %286 = vrot.lane.b32.xlu0 %v277, 126
    %v287 = vpop.permute.xlu0 %286
    %288 = vrot.lane.b32.xlu0 %v278, 126
    %v289 = vpop.permute.xlu0 %288
    %290 = vrot.lane.b32.xlu0 %v279, 126
    %v291 = vpop.permute.xlu0 %290
    %v296 = vadd.f32 %v218, %v285
    %v297 = vadd.f32 %v219, %v287
    %v298 = vadd.f32 %v220, %v289
    %v299 = vadd.f32 %v221, %v291
    %s300 = sld [smem:[#allocation3 + $0xb]]
    %v301 = vstv %s300
    %v302 = vmul.f32 %v301, %v162
    %v303 = vmul.f32 %v301, %v163
    %v304 = vmul.f32 %v301, %v164
    %v305 = vmul.f32 %v301, %v165
    %310 = vrot.lane.b32.xlu0 %v302, 126
    %v311 = vpop.permute.xlu0 %310
    %312 = vrot.lane.b32.xlu0 %v303, 126
    %v313 = vpop.permute.xlu0 %312
    %314 = vrot.lane.b32.xlu0 %v304, 126
    %v315 = vpop.permute.xlu0 %314
    %316 = vrot.lane.b32.xlu0 %v305, 126
    %v317 = vpop.permute.xlu0 %316
    %v322 = vadd.f32 %v244, %v311
    %v323 = vadd.f32 %v245, %v313
    %v324 = vadd.f32 %v246, %v315
    %v325 = vadd.f32 %v247, %v317
    %s326 = sld [smem:[#allocation3 + $0x14]]
    %v327 = vstv %s326
    %v328 = vmul.f32 %v327, %v162
    %v329 = vmul.f32 %v327, %v163
    %v330 = vmul.f32 %v327, %v164
    %v331 = vmul.f32 %v327, %v165
    %336 = vrot.lane.b32.xlu0 %v328, 126
    %v337 = vpop.permute.xlu0 %336
    %338 = vrot.lane.b32.xlu0 %v329, 126
    %v339 = vpop.permute.xlu0 %338
    %340 = vrot.lane.b32.xlu0 %v330, 126
    %v341 = vpop.permute.xlu0 %340
    %342 = vrot.lane.b32.xlu0 %v331, 126
    %v343 = vpop.permute.xlu0 %342
    %v348 = vadd.f32 %v270, %v337
    %v349 = vadd.f32 %v271, %v339
    %v350 = vadd.f32 %v272, %v341
    %v351 = vadd.f32 %v273, %v343
    %s352 = sld [smem:[#allocation3 + $0x3]]
    %v353 = vstv %s352
    %v354 = vmul.f32 %v353, %v162
    %v355 = vmul.f32 %v353, %v163
    %v356 = vmul.f32 %v353, %v164
    %v357 = vmul.f32 %v353, %v165
    %vm362 = vcmask 1046528
    %v363 = vrot.slane %v354, 1
    %v364 = vrot.slane %v355, 1
    %v365 = vsel %vm362, %v363, %v364
    %v366 = vrot.slane %v356, 1
    %v367 = vsel %vm362, %v364, %v366
    %v368 = vrot.slane %v357, 1
    %v369 = vsel %vm362, %v366, %v368
    %v374 = vadd.f32 %v296, %v365
    %v375 = vadd.f32 %v297, %v367
    %v376 = vadd.f32 %v298, %v369
    %v377 = vadd.f32 %v299, %v368
    %s378 = sld [smem:[#allocation3 + $0xc]]
    %v379 = vstv %s378
    %v380 = vmul.f32 %v379, %v162
    %v381 = vmul.f32 %v379, %v163
    %v382 = vmul.f32 %v379, %v164
    %v383 = vmul.f32 %v379, %v165
    %v388 = vrot.slane %v380, 1
    %v389 = vrot.slane %v381, 1
    %v390 = vsel %vm362, %v388, %v389
    %v391 = vrot.slane %v382, 1
    %v392 = vsel %vm362, %v389, %v391
    %v393 = vrot.slane %v383, 1
    %v394 = vsel %vm362, %v391, %v393
    %v399 = vadd.f32 %v322, %v390
    %v400 = vadd.f32 %v323, %v392
    %v401 = vadd.f32 %v324, %v394
    %v402 = vadd.f32 %v325, %v393
    %s403 = sld [smem:[#allocation3 + $0x15]]
    %v404 = vstv %s403
    %v405 = vmul.f32 %v404, %v162
    %v406 = vmul.f32 %v404, %v163
    %v407 = vmul.f32 %v404, %v164
    %v408 = vmul.f32 %v404, %v165
    %v413 = vrot.slane %v405, 1
    %v414 = vrot.slane %v406, 1
    %v415 = vsel %vm362, %v413, %v414
    %v416 = vrot.slane %v407, 1
    %v417 = vsel %vm362, %v414, %v416
    %v418 = vrot.slane %v408, 1
    %v419 = vsel %vm362, %v416, %v418
    %v424 = vadd.f32 %v348, %v415
    %v425 = vadd.f32 %v349, %v417
    %v426 = vadd.f32 %v350, %v419
    %v427 = vadd.f32 %v351, %v418
    %s428 = sld [smem:[#allocation3 + $0x4]]
    %v429 = vstv %s428
    %v430 = vmul.f32 %v429, %v162
    %v431 = vmul.f32 %v429, %v163
    %v432 = vmul.f32 %v429, %v164
    %v433 = vmul.f32 %v429, %v165
    %v438 = vrot.slane %v430, 1
    %v439 = vrot.slane %v431, 1
    %v440 = vsel %vm362, %v438, %v439
    %v441 = vrot.slane %v432, 1
    %v442 = vsel %vm362, %v439, %v441
    %v443 = vrot.slane %v433, 1
    %v444 = vsel %vm362, %v441, %v443
    %445 = vrot.lane.b32.xlu0 %v440, 127
    %v446 = vpop.permute.xlu0 %445
    %447 = vrot.lane.b32.xlu0 %v442, 127
    %v448 = vpop.permute.xlu0 %447
    %449 = vrot.lane.b32.xlu0 %v444, 127
    %v450 = vpop.permute.xlu0 %449
    %451 = vrot.lane.b32.xlu0 %v443, 127
    %v452 = vpop.permute.xlu0 %451
    %v457 = vadd.f32 %v374, %v446
    %v458 = vadd.f32 %v375, %v448
    %v459 = vadd.f32 %v376, %v450
    %v460 = vadd.f32 %v377, %v452
    %s461 = sld [smem:[#allocation3 + $0xd]]
    %v462 = vstv %s461
    %v463 = vmul.f32 %v462, %v162
    %v464 = vmul.f32 %v462, %v163
    %v465 = vmul.f32 %v462, %v164
    %v466 = vmul.f32 %v462, %v165
    %v471 = vrot.slane %v463, 1
    %v472 = vrot.slane %v464, 1
    %v473 = vsel %vm362, %v471, %v472
    %v474 = vrot.slane %v465, 1
    %v475 = vsel %vm362, %v472, %v474
    %v476 = vrot.slane %v466, 1
    %v477 = vsel %vm362, %v474, %v476
    %478 = vrot.lane.b32.xlu0 %v473, 127
    %v479 = vpop.permute.xlu0 %478
    %480 = vrot.lane.b32.xlu0 %v475, 127
    %v481 = vpop.permute.xlu0 %480
    %482 = vrot.lane.b32.xlu0 %v477, 127
    %v483 = vpop.permute.xlu0 %482
    %484 = vrot.lane.b32.xlu0 %v476, 127
    %v485 = vpop.permute.xlu0 %484
    %v490 = vadd.f32 %v399, %v479
    %v491 = vadd.f32 %v400, %v481
    %v492 = vadd.f32 %v401, %v483
    %v493 = vadd.f32 %v402, %v485
    %s494 = sld [smem:[#allocation3 + $0x16]]
    %v495 = vstv %s494
    %v496 = vmul.f32 %v495, %v162
    %v497 = vmul.f32 %v495, %v163
    %v498 = vmul.f32 %v495, %v164
    %v499 = vmul.f32 %v495, %v165
    %v504 = vrot.slane %v496, 1
    %v505 = vrot.slane %v497, 1
    %v506 = vsel %vm362, %v504, %v505
    %v507 = vrot.slane %v498, 1
    %v508 = vsel %vm362, %v505, %v507
    %v509 = vrot.slane %v499, 1
    %v510 = vsel %vm362, %v507, %v509
    %511 = vrot.lane.b32.xlu0 %v506, 127
    %v512 = vpop.permute.xlu0 %511
    %513 = vrot.lane.b32.xlu0 %v508, 127
    %v514 = vpop.permute.xlu0 %513
    %515 = vrot.lane.b32.xlu0 %v510, 127
    %v516 = vpop.permute.xlu0 %515
    %517 = vrot.lane.b32.xlu0 %v509, 127
    %v518 = vpop.permute.xlu0 %517
    %v523 = vadd.f32 %v424, %v512
    %v524 = vadd.f32 %v425, %v514
    %v525 = vadd.f32 %v426, %v516
    %v526 = vadd.f32 %v427, %v518
    %s527 = sld [smem:[#allocation3 + $0x5]]
    %v528 = vstv %s527
    %v529 = vmul.f32 %v528, %v162
    %v530 = vmul.f32 %v528, %v163
    %v531 = vmul.f32 %v528, %v164
    %v532 = vmul.f32 %v528, %v165
    %v537 = vrot.slane %v529, 1
    %v538 = vrot.slane %v530, 1
    %v539 = vsel %vm362, %v537, %v538
    %v540 = vrot.slane %v531, 1
    %v541 = vsel %vm362, %v538, %v540
    %v542 = vrot.slane %v532, 1
    %v543 = vsel %vm362, %v540, %v542
    %544 = vrot.lane.b32.xlu0 %v539, 126
    %v545 = vpop.permute.xlu0 %544
    %546 = vrot.lane.b32.xlu0 %v541, 126
    %v547 = vpop.permute.xlu0 %546
    %548 = vrot.lane.b32.xlu0 %v543, 126
    %v549 = vpop.permute.xlu0 %548
    %550 = vrot.lane.b32.xlu0 %v542, 126
    %v551 = vpop.permute.xlu0 %550
    %v556 = vadd.f32 %v457, %v545
    %v557 = vadd.f32 %v458, %v547
    %v558 = vadd.f32 %v459, %v549
    %v559 = vadd.f32 %v460, %v551
    %s560 = sld [smem:[#allocation3 + $0xe]]
    %v561 = vstv %s560
    %v562 = vmul.f32 %v561, %v162
    %v563 = vmul.f32 %v561, %v163
    %v564 = vmul.f32 %v561, %v164
    %v565 = vmul.f32 %v561, %v165
    %v570 = vrot.slane %v562, 1
    %v571 = vrot.slane %v563, 1
    %v572 = vsel %vm362, %v570, %v571
    %v573 = vrot.slane %v564, 1
    %v574 = vsel %vm362, %v571, %v573
    %v575 = vrot.slane %v565, 1
    %v576 = vsel %vm362, %v573, %v575
    %577 = vrot.lane.b32.xlu0 %v572, 126
    %v578 = vpop.permute.xlu0 %577
    %579 = vrot.lane.b32.xlu0 %v574, 126
    %v580 = vpop.permute.xlu0 %579
    %581 = vrot.lane.b32.xlu0 %v576, 126
    %v582 = vpop.permute.xlu0 %581
    %583 = vrot.lane.b32.xlu0 %v575, 126
    %v584 = vpop.permute.xlu0 %583
    %v589 = vadd.f32 %v490, %v578
    %v590 = vadd.f32 %v491, %v580
    %v591 = vadd.f32 %v492, %v582
    %v592 = vadd.f32 %v493, %v584
    %s593 = sld [smem:[#allocation3 + $0x17]]
    %v594 = vstv %s593
    %v595 = vmul.f32 %v594, %v162
    %v596 = vmul.f32 %v594, %v163
    %v597 = vmul.f32 %v594, %v164
    %v598 = vmul.f32 %v594, %v165
    %v603 = vrot.slane %v595, 1
    %v604 = vrot.slane %v596, 1
    %v605 = vsel %vm362, %v603, %v604
    %v606 = vrot.slane %v597, 1
    %v607 = vsel %vm362, %v604, %v606
    %v608 = vrot.slane %v598, 1
    %v609 = vsel %vm362, %v606, %v608
    %610 = vrot.lane.b32.xlu0 %v605, 126
    %v611 = vpop.permute.xlu0 %610
    %612 = vrot.lane.b32.xlu0 %v607, 126
    %v613 = vpop.permute.xlu0 %612
    %614 = vrot.lane.b32.xlu0 %v609, 126
    %v615 = vpop.permute.xlu0 %614
    %616 = vrot.lane.b32.xlu0 %v608, 126
    %v617 = vpop.permute.xlu0 %616
    %v622 = vadd.f32 %v523, %v611
    %v623 = vadd.f32 %v524, %v613
    %v624 = vadd.f32 %v525, %v615
    %v625 = vadd.f32 %v526, %v617
    %s626 = sld [smem:[#allocation3 + $0x6]]
    %v627 = vstv %s626
    %v628 = vmul.f32 %v627, %v162
    %v629 = vmul.f32 %v627, %v163
    %v630 = vmul.f32 %v627, %v164
    %v631 = vmul.f32 %v627, %v165
    %vm636 = vcmask 1045504
    %v637 = vrot.slane %v628, 2
    %v638 = vrot.slane %v629, 2
    %v639 = vsel %vm636, %v637, %v638
    %v640 = vrot.slane %v630, 2
    %v641 = vsel %vm636, %v638, %v640
    %v642 = vrot.slane %v631, 2
    %v643 = vsel %vm636, %v640, %v642
    %v648 = vadd.f32 %v556, %v639
    %v649 = vadd.f32 %v557, %v641
    %v650 = vadd.f32 %v558, %v643
    %v651 = vadd.f32 %v559, %v642
    %s652 = sld [smem:[#allocation3 + $0xf]]
    %v653 = vstv %s652
    %v654 = vmul.f32 %v653, %v162
    %v655 = vmul.f32 %v653, %v163
    %v656 = vmul.f32 %v653, %v164
    %v657 = vmul.f32 %v653, %v165
    %v662 = vrot.slane %v654, 2
    %v663 = vrot.slane %v655, 2
    %v664 = vsel %vm636, %v662, %v663
    %v665 = vrot.slane %v656, 2
    %v666 = vsel %vm636, %v663, %v665
    %v667 = vrot.slane %v657, 2
    %v668 = vsel %vm636, %v665, %v667
    %v673 = vadd.f32 %v589, %v664
    %v674 = vadd.f32 %v590, %v666
    %v675 = vadd.f32 %v591, %v668
    %v676 = vadd.f32 %v592, %v667
    %s677 = sld [smem:[#allocation3 + $0x18]]
    %v678 = vstv %s677
    %v679 = vmul.f32 %v678, %v162
    %v680 = vmul.f32 %v678, %v163
    %v681 = vmul.f32 %v678, %v164
    %v682 = vmul.f32 %v678, %v165
    %v687 = vrot.slane %v679, 2
    %v688 = vrot.slane %v680, 2
    %v689 = vsel %vm636, %v687, %v688
    %v690 = vrot.slane %v681, 2
    %v691 = vsel %vm636, %v688, %v690
    %v692 = vrot.slane %v682, 2
    %v693 = vsel %vm636, %v690, %v692
    %v698 = vadd.f32 %v622, %v689
    %v699 = vadd.f32 %v623, %v691
    %v700 = vadd.f32 %v624, %v693
    %v701 = vadd.f32 %v625, %v692
    %s702 = sld [smem:[#allocation3 + $0x7]]
    %v703 = vstv %s702
    %v704 = vmul.f32 %v703, %v162
    %v705 = vmul.f32 %v703, %v163
    %v706 = vmul.f32 %v703, %v164
    %v707 = vmul.f32 %v703, %v165
    %v712 = vrot.slane %v704, 2
    %v713 = vrot.slane %v705, 2
    %v714 = vsel %vm636, %v712, %v713
    %v715 = vrot.slane %v706, 2
    %v716 = vsel %vm636, %v713, %v715
    %v717 = vrot.slane %v707, 2
    %v718 = vsel %vm636, %v715, %v717
    %719 = vrot.lane.b32.xlu0 %v714, 127
    %v720 = vpop.permute.xlu0 %719
    %721 = vrot.lane.b32.xlu0 %v716, 127
    %v722 = vpop.permute.xlu0 %721
    %723 = vrot.lane.b32.xlu0 %v718, 127
    %v724 = vpop.permute.xlu0 %723
    %725 = vrot.lane.b32.xlu0 %v717, 127
    %v726 = vpop.permute.xlu0 %725
    %v731 = vadd.f32 %v648, %v720
    %v732 = vadd.f32 %v649, %v722
    %v733 = vadd.f32 %v650, %v724
    %v734 = vadd.f32 %v651, %v726
    %s735 = sld [smem:[#allocation3 + $0x10]]
    %v736 = vstv %s735
    %v737 = vmul.f32 %v736, %v162
    %v738 = vmul.f32 %v736, %v163
    %v739 = vmul.f32 %v736, %v164
    %v740 = vmul.f32 %v736, %v165
    %v745 = vrot.slane %v737, 2
    %v746 = vrot.slane %v738, 2
    %v747 = vsel %vm636, %v745, %v746
    %v748 = vrot.slane %v739, 2
    %v749 = vsel %vm636, %v746, %v748
    %v750 = vrot.slane %v740, 2
    %v751 = vsel %vm636, %v748, %v750
    %752 = vrot.lane.b32.xlu0 %v747, 127
    %v753 = vpop.permute.xlu0 %752
    %754 = vrot.lane.b32.xlu0 %v749, 127
    %v755 = vpop.permute.xlu0 %754
    %756 = vrot.lane.b32.xlu0 %v751, 127
    %v757 = vpop.permute.xlu0 %756
    %758 = vrot.lane.b32.xlu0 %v750, 127
    %v759 = vpop.permute.xlu0 %758
    %v764 = vadd.f32 %v673, %v753
    %v765 = vadd.f32 %v674, %v755
    %v766 = vadd.f32 %v675, %v757
    %v767 = vadd.f32 %v676, %v759
    %s768 = sld [smem:[#allocation3 + $0x19]]
    %v769 = vstv %s768
    %v770 = vmul.f32 %v769, %v162
    %v771 = vmul.f32 %v769, %v163
    %v772 = vmul.f32 %v769, %v164
    %v773 = vmul.f32 %v769, %v165
    %v778 = vrot.slane %v770, 2
    %v779 = vrot.slane %v771, 2
    %v780 = vsel %vm636, %v778, %v779
    %v781 = vrot.slane %v772, 2
    %v782 = vsel %vm636, %v779, %v781
    %v783 = vrot.slane %v773, 2
    %v784 = vsel %vm636, %v781, %v783
    %785 = vrot.lane.b32.xlu0 %v780, 127
    %v786 = vpop.permute.xlu0 %785
    %787 = vrot.lane.b32.xlu0 %v782, 127
    %v788 = vpop.permute.xlu0 %787
    %789 = vrot.lane.b32.xlu0 %v784, 127
    %v790 = vpop.permute.xlu0 %789
    %791 = vrot.lane.b32.xlu0 %v783, 127
    %v792 = vpop.permute.xlu0 %791
    %v797 = vadd.f32 %v698, %v786
    %v798 = vadd.f32 %v699, %v788
    %v799 = vadd.f32 %v700, %v790
    %v800 = vadd.f32 %v701, %v792
    %s801 = sld [smem:[#allocation3 + $0x8]]
    %v802 = vstv %s801
    %v803 = vmul.f32 %v802, %v162
    %v804 = vmul.f32 %v802, %v163
    %v805 = vmul.f32 %v802, %v164
    %v806 = vmul.f32 %v802, %v165
    %v811 = vrot.slane %v803, 2
    %v812 = vrot.slane %v804, 2
    %v813 = vsel %vm636, %v811, %v812
    %v814 = vrot.slane %v805, 2
    %v815 = vsel %vm636, %v812, %v814
    %v816 = vrot.slane %v806, 2
    %v817 = vsel %vm636, %v814, %v816
    %818 = vrot.lane.b32.xlu0 %v813, 126
    %v819 = vpop.permute.xlu0 %818
    %820 = vrot.lane.b32.xlu0 %v815, 126
    %v821 = vpop.permute.xlu0 %820
    %822 = vrot.lane.b32.xlu0 %v817, 126
    %v823 = vpop.permute.xlu0 %822
    %824 = vrot.lane.b32.xlu0 %v816, 126
    %v825 = vpop.permute.xlu0 %824
    %v830 = vadd.f32 %v731, %v819
    %v831 = vadd.f32 %v732, %v821
    %v832 = vadd.f32 %v733, %v823
    %v833 = vadd.f32 %v734, %v825
    %s834 = sld [smem:[#allocation3 + $0x11]]
    %v835 = vstv %s834
    %v836 = vmul.f32 %v835, %v162
    %v837 = vmul.f32 %v835, %v163
    %v838 = vmul.f32 %v835, %v164
    %v839 = vmul.f32 %v835, %v165
    %v844 = vrot.slane %v836, 2
    %v845 = vrot.slane %v837, 2
    %v846 = vsel %vm636, %v844, %v845
    %v847 = vrot.slane %v838, 2
    %v848 = vsel %vm636, %v845, %v847
    %v849 = vrot.slane %v839, 2
    %v850 = vsel %vm636, %v847, %v849
    %851 = vrot.lane.b32.xlu0 %v846, 126
    %v852 = vpop.permute.xlu0 %851
    %853 = vrot.lane.b32.xlu0 %v848, 126
    %v854 = vpop.permute.xlu0 %853
    %855 = vrot.lane.b32.xlu0 %v850, 126
    %v856 = vpop.permute.xlu0 %855
    %857 = vrot.lane.b32.xlu0 %v849, 126
    %v858 = vpop.permute.xlu0 %857
    %v863 = vadd.f32 %v764, %v852
    %v864 = vadd.f32 %v765, %v854
    %v865 = vadd.f32 %v766, %v856
    %v866 = vadd.f32 %v767, %v858
    %s867 = sld [smem:[#allocation3 + $0x1a]]
    %v868 = vstv %s867
    %v869 = vmul.f32 %v868, %v162
    %v870 = vmul.f32 %v868, %v163
    %v871 = vmul.f32 %v868, %v164
    %v872 = vmul.f32 %v868, %v165
    %v877 = vrot.slane %v869, 2
    %v878 = vrot.slane %v870, 2
    %v879 = vsel %vm636, %v877, %v878
    %v880 = vrot.slane %v871, 2
    %v881 = vsel %vm636, %v878, %v880
    %v882 = vrot.slane %v872, 2
    %v883 = vsel %vm636, %v880, %v882
    %884 = vrot.lane.b32.xlu0 %v879, 126
    %v885 = vpop.permute.xlu0 %884
    %886 = vrot.lane.b32.xlu0 %v881, 126
    %v887 = vpop.permute.xlu0 %886
    %888 = vrot.lane.b32.xlu0 %v883, 126
    %v889 = vpop.permute.xlu0 %888
    %890 = vrot.lane.b32.xlu0 %v882, 126
    %v891 = vpop.permute.xlu0 %890
    %v896 = vadd.f32 %v797, %v885
    %v897 = vadd.f32 %v798, %v887
    %v898 = vadd.f32 %v799, %v889
    %v899 = vadd.f32 %v800, %v891
    %v904 = vrot.slane %v112, 7
    %v905 = vrot.slane %v113, 7
    %v906 = vsel %vm129, %v904, %v905
    %v907 = vrot.slane %v114, 7
    %v908 = vsel %vm129, %v905, %v907
    %v909 = vrot.slane %v115, 7
    %v910 = vsel %vm129, %v907, %v909
    %v913 = vsel %vm129, 0.0, %v904
    %v914 = vsel %vm140, %v910, 0.0
    %917 = vrot.lane.b32.xlu0 %v913, 1
    %v918 = vpop.permute.xlu0 %917
    %919 = vrot.lane.b32.xlu0 %v906, 1
    %v920 = vpop.permute.xlu0 %919
    %921 = vrot.lane.b32.xlu0 %v908, 1
    %v922 = vpop.permute.xlu0 %921
    %923 = vrot.lane.b32.xlu0 %v914, 1
    %v924 = vpop.permute.xlu0 %923
    %v929 = vsel %vm156, 0.0, %v918
    %v930 = vsel %vm156, 0.0, %v920
    %v931 = vsel %vm156, 0.0, %v922
    %v932 = vsel %vm156, 0.0, %v924
    %v933 = vsel %vm161, %v929, 0.0
    %v934 = vsel %vm161, %v930, 0.0
    %v935 = vsel %vm161, %v931, 0.0
    %v936 = vsel %vm161, %v932, 0.0
    %v937 = vmul.f32 %v167, %v933
    %v938 = vmul.f32 %v167, %v934
    %v939 = vmul.f32 %v167, %v935
    %v940 = vmul.f32 %v167, %v936
    %v941 = vadd.f32 %v118, %v937
    %v942 = vadd.f32 %v118, %v938
    %v943 = vadd.f32 %v118, %v939
    %v944 = vadd.f32 %v118, %v940
    %v945 = vmul.f32 %v177, %v933
    %v946 = vmul.f32 %v177, %v934
    %v947 = vmul.f32 %v177, %v935
    %v948 = vmul.f32 %v177, %v936
    %v949 = vadd.f32 %v121, %v945
    %v950 = vadd.f32 %v121, %v946
    %v951 = vadd.f32 %v121, %v947
    %v952 = vadd.f32 %v121, %v948
    %v953 = vmul.f32 %v187, %v933
    %v954 = vmul.f32 %v187, %v934
    %v955 = vmul.f32 %v187, %v935
    %v956 = vmul.f32 %v187, %v936
    %v957 = vadd.f32 %v124, %v953
    %v958 = vadd.f32 %v124, %v954
    %v959 = vadd.f32 %v124, %v955
    %v960 = vadd.f32 %v124, %v956
    %v961 = vmul.f32 %v197, %v933
    %v962 = vmul.f32 %v197, %v934
    %v963 = vmul.f32 %v197, %v935
    %v964 = vmul.f32 %v197, %v936
    %969 = vrot.lane.b32.xlu0 %v961, 127
    %v970 = vpop.permute.xlu0 %969
    %971 = vrot.lane.b32.xlu0 %v962, 127
    %v972 = vpop.permute.xlu0 %971
    %973 = vrot.lane.b32.xlu0 %v963, 127
    %v974 = vpop.permute.xlu0 %973
    %975 = vrot.lane.b32.xlu0 %v964, 127
    %v976 = vpop.permute.xlu0 %975
    %v981 = vadd.f32 %v941, %v970
    %v982 = vadd.f32 %v942, %v972
    %v983 = vadd.f32 %v943, %v974
    %v984 = vadd.f32 %v944, %v976
    %v985 = vmul.f32 %v223, %v933
    %v986 = vmul.f32 %v223, %v934
    %v987 = vmul.f32 %v223, %v935
    %v988 = vmul.f32 %v223, %v936
    %993 = vrot.lane.b32.xlu0 %v985, 127
    %v994 = vpop.permute.xlu0 %993
    %995 = vrot.lane.b32.xlu0 %v986, 127
    %v996 = vpop.permute.xlu0 %995
    %997 = vrot.lane.b32.xlu0 %v987, 127
    %v998 = vpop.permute.xlu0 %997
    %999 = vrot.lane.b32.xlu0 %v988, 127
    %v1000 = vpop.permute.xlu0 %999
    %v1005 = vadd.f32 %v949, %v994
    %v1006 = vadd.f32 %v950, %v996
    %v1007 = vadd.f32 %v951, %v998
    %v1008 = vadd.f32 %v952, %v1000
    %v1009 = vmul.f32 %v249, %v933
    %v1010 = vmul.f32 %v249, %v934
    %v1011 = vmul.f32 %v249, %v935
    %v1012 = vmul.f32 %v249, %v936
    %1017 = vrot.lane.b32.xlu0 %v1009, 127
    %v1018 = vpop.permute.xlu0 %1017
    %1019 = vrot.lane.b32.xlu0 %v1010, 127
    %v1020 = vpop.permute.xlu0 %1019
    %1021 = vrot.lane.b32.xlu0 %v1011, 127
    %v1022 = vpop.permute.xlu0 %1021
    %1023 = vrot.lane.b32.xlu0 %v1012, 127
    %v1024 = vpop.permute.xlu0 %1023
    %v1029 = vadd.f32 %v957, %v1018
    %v1030 = vadd.f32 %v958, %v1020
    %v1031 = vadd.f32 %v959, %v1022
    %v1032 = vadd.f32 %v960, %v1024
    %v1033 = vmul.f32 %v275, %v933
    %v1034 = vmul.f32 %v275, %v934
    %v1035 = vmul.f32 %v275, %v935
    %v1036 = vmul.f32 %v275, %v936
    %1041 = vrot.lane.b32.xlu0 %v1033, 126
    %v1042 = vpop.permute.xlu0 %1041
    %1043 = vrot.lane.b32.xlu0 %v1034, 126
    %v1044 = vpop.permute.xlu0 %1043
    %1045 = vrot.lane.b32.xlu0 %v1035, 126
    %v1046 = vpop.permute.xlu0 %1045
    %1047 = vrot.lane.b32.xlu0 %v1036, 126
    %v1048 = vpop.permute.xlu0 %1047
    %v1053 = vadd.f32 %v981, %v1042
    %v1054 = vadd.f32 %v982, %v1044
    %v1055 = vadd.f32 %v983, %v1046
    %v1056 = vadd.f32 %v984, %v1048
    %v1057 = vmul.f32 %v301, %v933
    %v1058 = vmul.f32 %v301, %v934
    %v1059 = vmul.f32 %v301, %v935
    %v1060 = vmul.f32 %v301, %v936
    %1065 = vrot.lane.b32.xlu0 %v1057, 126
    %v1066 = vpop.permute.xlu0 %1065
    %1067 = vrot.lane.b32.xlu0 %v1058, 126
    %v1068 = vpop.permute.xlu0 %1067
    %1069 = vrot.lane.b32.xlu0 %v1059, 126
    %v1070 = vpop.permute.xlu0 %1069
    %1071 = vrot.lane.b32.xlu0 %v1060, 126
    %v1072 = vpop.permute.xlu0 %1071
    %v1077 = vadd.f32 %v1005, %v1066
    %v1078 = vadd.f32 %v1006, %v1068
    %v1079 = vadd.f32 %v1007, %v1070
    %v1080 = vadd.f32 %v1008, %v1072
    %v1081 = vmul.f32 %v327, %v933
    %v1082 = vmul.f32 %v327, %v934
    %v1083 = vmul.f32 %v327, %v935
    %v1084 = vmul.f32 %v327, %v936
    %1089 = vrot.lane.b32.xlu0 %v1081, 126
    %v1090 = vpop.permute.xlu0 %1089
    %1091 = vrot.lane.b32.xlu0 %v1082, 126
    %v1092 = vpop.permute.xlu0 %1091
    %1093 = vrot.lane.b32.xlu0 %v1083, 126
    %v1094 = vpop.permute.xlu0 %1093
    %1095 = vrot.lane.b32.xlu0 %v1084, 126
    %v1096 = vpop.permute.xlu0 %1095
    %v1101 = vadd.f32 %v1029, %v1090
    %v1102 = vadd.f32 %v1030, %v1092
    %v1103 = vadd.f32 %v1031, %v1094
    %v1104 = vadd.f32 %v1032, %v1096
    %v1105 = vmul.f32 %v353, %v933
    %v1106 = vmul.f32 %v353, %v934
    %v1107 = vmul.f32 %v353, %v935
    %v1108 = vmul.f32 %v353, %v936
    %v1113 = vrot.slane %v1105, 1
    %v1114 = vrot.slane %v1106, 1
    %v1115 = vsel %vm362, %v1113, %v1114
    %v1116 = vrot.slane %v1107, 1
    %v1117 = vsel %vm362, %v1114, %v1116
    %v1118 = vrot.slane %v1108, 1
    %v1119 = vsel %vm362, %v1116, %v1118
    %v1124 = vadd.f32 %v1053, %v1115
    %v1125 = vadd.f32 %v1054, %v1117
    %v1126 = vadd.f32 %v1055, %v1119
    %v1127 = vadd.f32 %v1056, %v1118
    %v1128 = vmul.f32 %v379, %v933
    %v1129 = vmul.f32 %v379, %v934
    %v1130 = vmul.f32 %v379, %v935
    %v1131 = vmul.f32 %v379, %v936
    %v1136 = vrot.slane %v1128, 1
    %v1137 = vrot.slane %v1129, 1
    %v1138 = vsel %vm362, %v1136, %v1137
    %v1139 = vrot.slane %v1130, 1
    %v1140 = vsel %vm362, %v1137, %v1139
    %v1141 = vrot.slane %v1131, 1
    %v1142 = vsel %vm362, %v1139, %v1141
    %v1147 = vadd.f32 %v1077, %v1138
    %v1148 = vadd.f32 %v1078, %v1140
    %v1149 = vadd.f32 %v1079, %v1142
    %v1150 = vadd.f32 %v1080, %v1141
    %v1151 = vmul.f32 %v404, %v933
    %v1152 = vmul.f32 %v404, %v934
    %v1153 = vmul.f32 %v404, %v935
    %v1154 = vmul.f32 %v404, %v936
    %v1159 = vrot.slane %v1151, 1
    %v1160 = vrot.slane %v1152, 1
    %v1161 = vsel %vm362, %v1159, %v1160
    %v1162 = vrot.slane %v1153, 1
    %v1163 = vsel %vm362, %v1160, %v1162
    %v1164 = vrot.slane %v1154, 1
    %v1165 = vsel %vm362, %v1162, %v1164
    %v1170 = vadd.f32 %v1101, %v1161
    %v1171 = vadd.f32 %v1102, %v1163
    %v1172 = vadd.f32 %v1103, %v1165
    %v1173 = vadd.f32 %v1104, %v1164
    %v1174 = vmul.f32 %v429, %v933
    %v1175 = vmul.f32 %v429, %v934
    %v1176 = vmul.f32 %v429, %v935
    %v1177 = vmul.f32 %v429, %v936
    %v1182 = vrot.slane %v1174, 1
    %v1183 = vrot.slane %v1175, 1
    %v1184 = vsel %vm362, %v1182, %v1183
    %v1185 = vrot.slane %v1176, 1
    %v1186 = vsel %vm362, %v1183, %v1185
    %v1187 = vrot.slane %v1177, 1
    %v1188 = vsel %vm362, %v1185, %v1187
    %1189 = vrot.lane.b32.xlu0 %v1184, 127
    %v1190 = vpop.permute.xlu0 %1189
    %1191 = vrot.lane.b32.xlu0 %v1186, 127
    %v1192 = vpop.permute.xlu0 %1191
    %1193 = vrot.lane.b32.xlu0 %v1188, 127
    %v1194 = vpop.permute.xlu0 %1193
    %1195 = vrot.lane.b32.xlu0 %v1187, 127
    %v1196 = vpop.permute.xlu0 %1195
    %v1201 = vadd.f32 %v1124, %v1190
    %v1202 = vadd.f32 %v1125, %v1192
    %v1203 = vadd.f32 %v1126, %v1194
    %v1204 = vadd.f32 %v1127, %v1196
    %v1205 = vmul.f32 %v462, %v933
    %v1206 = vmul.f32 %v462, %v934
    %v1207 = vmul.f32 %v462, %v935
    %v1208 = vmul.f32 %v462, %v936
    %v1213 = vrot.slane %v1205, 1
    %v1214 = vrot.slane %v1206, 1
    %v1215 = vsel %vm362, %v1213, %v1214
    %v1216 = vrot.slane %v1207, 1
    %v1217 = vsel %vm362, %v1214, %v1216
    %v1218 = vrot.slane %v1208, 1
    %v1219 = vsel %vm362, %v1216, %v1218
    %1220 = vrot.lane.b32.xlu0 %v1215, 127
    %v1221 = vpop.permute.xlu0 %1220
    %1222 = vrot.lane.b32.xlu0 %v1217, 127
    %v1223 = vpop.permute.xlu0 %1222
    %1224 = vrot.lane.b32.xlu0 %v1219, 127
    %v1225 = vpop.permute.xlu0 %1224
    %1226 = vrot.lane.b32.xlu0 %v1218, 127
    %v1227 = vpop.permute.xlu0 %1226
    %v1232 = vadd.f32 %v1147, %v1221
    %v1233 = vadd.f32 %v1148, %v1223
    %v1234 = vadd.f32 %v1149, %v1225
    %v1235 = vadd.f32 %v1150, %v1227
    %v1236 = vmul.f32 %v495, %v933
    %v1237 = vmul.f32 %v495, %v934
    %v1238 = vmul.f32 %v495, %v935
    %v1239 = vmul.f32 %v495, %v936
    %v1244 = vrot.slane %v1236, 1
    %v1245 = vrot.slane %v1237, 1
    %v1246 = vsel %vm362, %v1244, %v1245
    %v1247 = vrot.slane %v1238, 1
    %v1248 = vsel %vm362, %v1245, %v1247
    %v1249 = vrot.slane %v1239, 1
    %v1250 = vsel %vm362, %v1247, %v1249
    %1251 = vrot.lane.b32.xlu0 %v1246, 127
    %v1252 = vpop.permute.xlu0 %1251
    %1253 = vrot.lane.b32.xlu0 %v1248, 127
    %v1254 = vpop.permute.xlu0 %1253
    %1255 = vrot.lane.b32.xlu0 %v1250, 127
    %v1256 = vpop.permute.xlu0 %1255
    %1257 = vrot.lane.b32.xlu0 %v1249, 127
    %v1258 = vpop.permute.xlu0 %1257
    %v1263 = vadd.f32 %v1170, %v1252
    %v1264 = vadd.f32 %v1171, %v1254
    %v1265 = vadd.f32 %v1172, %v1256
    %v1266 = vadd.f32 %v1173, %v1258
    %v1267 = vmul.f32 %v528, %v933
    %v1268 = vmul.f32 %v528, %v934
    %v1269 = vmul.f32 %v528, %v935
    %v1270 = vmul.f32 %v528, %v936
    %v1275 = vrot.slane %v1267, 1
    %v1276 = vrot.slane %v1268, 1
    %v1277 = vsel %vm362, %v1275, %v1276
    %v1278 = vrot.slane %v1269, 1
    %v1279 = vsel %vm362, %v1276, %v1278
    %v1280 = vrot.slane %v1270, 1
    %v1281 = vsel %vm362, %v1278, %v1280
    %1282 = vrot.lane.b32.xlu0 %v1277, 126
    %v1283 = vpop.permute.xlu0 %1282
    %1284 = vrot.lane.b32.xlu0 %v1279, 126
    %v1285 = vpop.permute.xlu0 %1284
    %1286 = vrot.lane.b32.xlu0 %v1281, 126
    %v1287 = vpop.permute.xlu0 %1286
    %1288 = vrot.lane.b32.xlu0 %v1280, 126
    %v1289 = vpop.permute.xlu0 %1288
    %v1294 = vadd.f32 %v1201, %v1283
    %v1295 = vadd.f32 %v1202, %v1285
    %v1296 = vadd.f32 %v1203, %v1287
    %v1297 = vadd.f32 %v1204, %v1289
    %v1298 = vmul.f32 %v561, %v933
    %v1299 = vmul.f32 %v561, %v934
    %v1300 = vmul.f32 %v561, %v935
    %v1301 = vmul.f32 %v561, %v936
    %v1306 = vrot.slane %v1298, 1
    %v1307 = vrot.slane %v1299, 1
    %v1308 = vsel %vm362, %v1306, %v1307
    %v1309 = vrot.slane %v1300, 1
    %v1310 = vsel %vm362, %v1307, %v1309
    %v1311 = vrot.slane %v1301, 1
    %v1312 = vsel %vm362, %v1309, %v1311
    %1313 = vrot.lane.b32.xlu0 %v1308, 126
    %v1314 = vpop.permute.xlu0 %1313
    %1315 = vrot.lane.b32.xlu0 %v1310, 126
    %v1316 = vpop.permute.xlu0 %1315
    %1317 = vrot.lane.b32.xlu0 %v1312, 126
    %v1318 = vpop.permute.xlu0 %1317
    %1319 = vrot.lane.b32.xlu0 %v1311, 126
    %v1320 = vpop.permute.xlu0 %1319
    %v1325 = vadd.f32 %v1232, %v1314
    %v1326 = vadd.f32 %v1233, %v1316
    %v1327 = vadd.f32 %v1234, %v1318
    %v1328 = vadd.f32 %v1235, %v1320
    %v1329 = vmul.f32 %v594, %v933
    %v1330 = vmul.f32 %v594, %v934
    %v1331 = vmul.f32 %v594, %v935
    %v1332 = vmul.f32 %v594, %v936
    %v1337 = vrot.slane %v1329, 1
    %v1338 = vrot.slane %v1330, 1
    %v1339 = vsel %vm362, %v1337, %v1338
    %v1340 = vrot.slane %v1331, 1
    %v1341 = vsel %vm362, %v1338, %v1340
    %v1342 = vrot.slane %v1332, 1
    %v1343 = vsel %vm362, %v1340, %v1342
    %1344 = vrot.lane.b32.xlu0 %v1339, 126
    %v1345 = vpop.permute.xlu0 %1344
    %1346 = vrot.lane.b32.xlu0 %v1341, 126
    %v1347 = vpop.permute.xlu0 %1346
    %1348 = vrot.lane.b32.xlu0 %v1343, 126
    %v1349 = vpop.permute.xlu0 %1348
    %1350 = vrot.lane.b32.xlu0 %v1342, 126
    %v1351 = vpop.permute.xlu0 %1350
    %v1356 = vadd.f32 %v1263, %v1345
    %v1357 = vadd.f32 %v1264, %v1347
    %v1358 = vadd.f32 %v1265, %v1349
    %v1359 = vadd.f32 %v1266, %v1351
    %v1360 = vmul.f32 %v627, %v933
    %v1361 = vmul.f32 %v627, %v934
    %v1362 = vmul.f32 %v627, %v935
    %v1363 = vmul.f32 %v627, %v936
    %v1368 = vrot.slane %v1360, 2
    %v1369 = vrot.slane %v1361, 2
    %v1370 = vsel %vm636, %v1368, %v1369
    %v1371 = vrot.slane %v1362, 2
    %v1372 = vsel %vm636, %v1369, %v1371
    %v1373 = vrot.slane %v1363, 2
    %v1374 = vsel %vm636, %v1371, %v1373
    %v1379 = vadd.f32 %v1294, %v1370
    %v1380 = vadd.f32 %v1295, %v1372
    %v1381 = vadd.f32 %v1296, %v1374
    %v1382 = vadd.f32 %v1297, %v1373
    %v1383 = vmul.f32 %v653, %v933
    %v1384 = vmul.f32 %v653, %v934
    %v1385 = vmul.f32 %v653, %v935
    %v1386 = vmul.f32 %v653, %v936
    %v1391 = vrot.slane %v1383, 2
    %v1392 = vrot.slane %v1384, 2
    %v1393 = vsel %vm636, %v1391, %v1392
    %v1394 = vrot.slane %v1385, 2
    %v1395 = vsel %vm636, %v1392, %v1394
    %v1396 = vrot.slane %v1386, 2
    %v1397 = vsel %vm636, %v1394, %v1396
    %v1402 = vadd.f32 %v1325, %v1393
    %v1403 = vadd.f32 %v1326, %v1395
    %v1404 = vadd.f32 %v1327, %v1397
    %v1405 = vadd.f32 %v1328, %v1396
    %v1406 = vmul.f32 %v678, %v933
    %v1407 = vmul.f32 %v678, %v934
    %v1408 = vmul.f32 %v678, %v935
    %v1409 = vmul.f32 %v678, %v936
    %v1414 = vrot.slane %v1406, 2
    %v1415 = vrot.slane %v1407, 2
    %v1416 = vsel %vm636, %v1414, %v1415
    %v1417 = vrot.slane %v1408, 2
    %v1418 = vsel %vm636, %v1415, %v1417
    %v1419 = vrot.slane %v1409, 2
    %v1420 = vsel %vm636, %v1417, %v1419
    %v1425 = vadd.f32 %v1356, %v1416
    %v1426 = vadd.f32 %v1357, %v1418
    %v1427 = vadd.f32 %v1358, %v1420
    %v1428 = vadd.f32 %v1359, %v1419
    %v1429 = vmul.f32 %v703, %v933
    %v1430 = vmul.f32 %v703, %v934
    %v1431 = vmul.f32 %v703, %v935
    %v1432 = vmul.f32 %v703, %v936
    %v1437 = vrot.slane %v1429, 2
    %v1438 = vrot.slane %v1430, 2
    %v1439 = vsel %vm636, %v1437, %v1438
    %v1440 = vrot.slane %v1431, 2
    %v1441 = vsel %vm636, %v1438, %v1440
    %v1442 = vrot.slane %v1432, 2
    %v1443 = vsel %vm636, %v1440, %v1442
    %1444 = vrot.lane.b32.xlu0 %v1439, 127
    %v1445 = vpop.permute.xlu0 %1444
    %1446 = vrot.lane.b32.xlu0 %v1441, 127
    %v1447 = vpop.permute.xlu0 %1446
    %1448 = vrot.lane.b32.xlu0 %v1443, 127
    %v1449 = vpop.permute.xlu0 %1448
    %1450 = vrot.lane.b32.xlu0 %v1442, 127
    %v1451 = vpop.permute.xlu0 %1450
    %v1456 = vadd.f32 %v1379, %v1445
    %v1457 = vadd.f32 %v1380, %v1447
    %v1458 = vadd.f32 %v1381, %v1449
    %v1459 = vadd.f32 %v1382, %v1451
    %v1460 = vmul.f32 %v736, %v933
    %v1461 = vmul.f32 %v736, %v934
    %v1462 = vmul.f32 %v736, %v935
    %v1463 = vmul.f32 %v736, %v936
    %v1468 = vrot.slane %v1460, 2
    %v1469 = vrot.slane %v1461, 2
    %v1470 = vsel %vm636, %v1468, %v1469
    %v1471 = vrot.slane %v1462, 2
    %v1472 = vsel %vm636, %v1469, %v1471
    %v1473 = vrot.slane %v1463, 2
    %v1474 = vsel %vm636, %v1471, %v1473
    %1475 = vrot.lane.b32.xlu0 %v1470, 127
    %v1476 = vpop.permute.xlu0 %1475
    %1477 = vrot.lane.b32.xlu0 %v1472, 127
    %v1478 = vpop.permute.xlu0 %1477
    %1479 = vrot.lane.b32.xlu0 %v1474, 127
    %v1480 = vpop.permute.xlu0 %1479
    %1481 = vrot.lane.b32.xlu0 %v1473, 127
    %v1482 = vpop.permute.xlu0 %1481
    %v1487 = vadd.f32 %v1402, %v1476
    %v1488 = vadd.f32 %v1403, %v1478
    %v1489 = vadd.f32 %v1404, %v1480
    %v1490 = vadd.f32 %v1405, %v1482
    %v1491 = vmul.f32 %v769, %v933
    %v1492 = vmul.f32 %v769, %v934
    %v1493 = vmul.f32 %v769, %v935
    %v1494 = vmul.f32 %v769, %v936
    %v1499 = vrot.slane %v1491, 2
    %v1500 = vrot.slane %v1492, 2
    %v1501 = vsel %vm636, %v1499, %v1500
    %v1502 = vrot.slane %v1493, 2
    %v1503 = vsel %vm636, %v1500, %v1502
    %v1504 = vrot.slane %v1494, 2
    %v1505 = vsel %vm636, %v1502, %v1504
    %1506 = vrot.lane.b32.xlu0 %v1501, 127
    %v1507 = vpop.permute.xlu0 %1506
    %1508 = vrot.lane.b32.xlu0 %v1503, 127
    %v1509 = vpop.permute.xlu0 %1508
    %1510 = vrot.lane.b32.xlu0 %v1505, 127
    %v1511 = vpop.permute.xlu0 %1510
    %1512 = vrot.lane.b32.xlu0 %v1504, 127
    %v1513 = vpop.permute.xlu0 %1512
    %v1518 = vadd.f32 %v1425, %v1507
    %v1519 = vadd.f32 %v1426, %v1509
    %v1520 = vadd.f32 %v1427, %v1511
    %v1521 = vadd.f32 %v1428, %v1513
    %v1522 = vmul.f32 %v802, %v933
    %v1523 = vmul.f32 %v802, %v934
    %v1524 = vmul.f32 %v802, %v935
    %v1525 = vmul.f32 %v802, %v936
    %v1530 = vrot.slane %v1522, 2
    %v1531 = vrot.slane %v1523, 2
    %v1532 = vsel %vm636, %v1530, %v1531
    %v1533 = vrot.slane %v1524, 2
    %v1534 = vsel %vm636, %v1531, %v1533
    %v1535 = vrot.slane %v1525, 2
    %v1536 = vsel %vm636, %v1533, %v1535
    %1537 = vrot.lane.b32.xlu0 %v1532, 126
    %v1538 = vpop.permute.xlu0 %1537
    %1539 = vrot.lane.b32.xlu0 %v1534, 126
    %v1540 = vpop.permute.xlu0 %1539
    %1541 = vrot.lane.b32.xlu0 %v1536, 126
    %v1542 = vpop.permute.xlu0 %1541
    %1543 = vrot.lane.b32.xlu0 %v1535, 126
    %v1544 = vpop.permute.xlu0 %1543
    %v1549 = vadd.f32 %v1456, %v1538
    %v1550 = vadd.f32 %v1457, %v1540
    %v1551 = vadd.f32 %v1458, %v1542
    %v1552 = vadd.f32 %v1459, %v1544
    %v1553 = vmul.f32 %v835, %v933
    %v1554 = vmul.f32 %v835, %v934
    %v1555 = vmul.f32 %v835, %v935
    %v1556 = vmul.f32 %v835, %v936
    %v1561 = vrot.slane %v1553, 2
    %v1562 = vrot.slane %v1554, 2
    %v1563 = vsel %vm636, %v1561, %v1562
    %v1564 = vrot.slane %v1555, 2
    %v1565 = vsel %vm636, %v1562, %v1564
    %v1566 = vrot.slane %v1556, 2
    %v1567 = vsel %vm636, %v1564, %v1566
    %1568 = vrot.lane.b32.xlu0 %v1563, 126
    %v1569 = vpop.permute.xlu0 %1568
    %1570 = vrot.lane.b32.xlu0 %v1565, 126
    %v1571 = vpop.permute.xlu0 %1570
    %1572 = vrot.lane.b32.xlu0 %v1567, 126
    %v1573 = vpop.permute.xlu0 %1572
    %1574 = vrot.lane.b32.xlu0 %v1566, 126
    %v1575 = vpop.permute.xlu0 %1574
    %v1580 = vadd.f32 %v1487, %v1569
    %v1581 = vadd.f32 %v1488, %v1571
    %v1582 = vadd.f32 %v1489, %v1573
    %v1583 = vadd.f32 %v1490, %v1575
    %v1584 = vmul.f32 %v868, %v933
    %v1585 = vmul.f32 %v868, %v934
    %v1586 = vmul.f32 %v868, %v935
    %v1587 = vmul.f32 %v868, %v936
    %v1592 = vrot.slane %v1584, 2
    %v1593 = vrot.slane %v1585, 2
    %v1594 = vsel %vm636, %v1592, %v1593
    %v1595 = vrot.slane %v1586, 2
    %v1596 = vsel %vm636, %v1593, %v1595
    %v1597 = vrot.slane %v1587, 2
    %v1598 = vsel %vm636, %v1595, %v1597
    %1599 = vrot.lane.b32.xlu0 %v1594, 126
    %v1600 = vpop.permute.xlu0 %1599
    %1601 = vrot.lane.b32.xlu0 %v1596, 126
    %v1602 = vpop.permute.xlu0 %1601
    %1603 = vrot.lane.b32.xlu0 %v1598, 126
    %v1604 = vpop.permute.xlu0 %1603
    %1605 = vrot.lane.b32.xlu0 %v1597, 126
    %v1606 = vpop.permute.xlu0 %1605
    %v1611 = vadd.f32 %v1518, %v1600
    %v1612 = vadd.f32 %v1519, %v1602
    %v1613 = vadd.f32 %v1520, %v1604
    %v1614 = vadd.f32 %v1521, %v1606
    %v1615 = vmax.f32 %v830, 0.0
    %v1616 = vmax.f32 %v831, 0.0
    %v1617 = vmax.f32 %v832, 0.0
    %v1618 = vmax.f32 %v833, 0.0
    %v1619 = vmax.f32 %v863, 0.0
    %v1620 = vmax.f32 %v864, 0.0
    %v1621 = vmax.f32 %v865, 0.0
    %v1622 = vmax.f32 %v866, 0.0
    %v1623 = vmax.f32 %v896, 0.0
    %v1624 = vmax.f32 %v897, 0.0
    %v1625 = vmax.f32 %v898, 0.0
    %v1626 = vmax.f32 %v899, 0.0
    %v1627 = vmax.f32 %v1549, 0.0
    %v1628 = vmax.f32 %v1550, 0.0
    %v1629 = vmax.f32 %v1551, 0.0
    %v1630 = vmax.f32 %v1552, 0.0
    %v1631 = vmax.f32 %v1580, 0.0
    %v1632 = vmax.f32 %v1581, 0.0
    %v1633 = vmax.f32 %v1582, 0.0
    %v1634 = vmax.f32 %v1583, 0.0
    %v1635 = vmax.f32 %v1611, 0.0
    %v1636 = vmax.f32 %v1612, 0.0
    %v1637 = vmax.f32 %v1613, 0.0
    %v1638 = vmax.f32 %v1614, 0.0
    %vm1639 = vcmask 228352
    %v1640 = vsel %vm1639, %v1615, -inf
    %v1641 = vsel %vm1639, %v1616, -inf
    %v1642 = vsel %vm1639, %v1617, -inf
    %vm1643 = vcmask 224256
    %v1644 = vsel %vm1643, %v1618, -inf
    %v1645 = vmax.f32 %v1640, %v1641
    %v1646 = vmax.f32 %v1642, %v1644
    %v1647 = vmax.f32 %v1645, %v1646
    %1648 = vmax.xlane.f32.xlu0 %v1647
    %v1649 = vpop.xlane.xlu0 %1648
    %v1650 = vrot.slane %v1649, 4
    %v1651 = vmax.f32 %v1649, %v1650
    %v1652 = vrot.slane %v1651, 2
    %v1653 = vmax.f32 %v1651, %v1652
    %v1654 = vrot.slane %v1653, 1
    %v1655 = vmax.f32 %v1653, %v1654
    %s1656 = vtos %v1655
    %s1657 = smax.f32 %s1656, 0.0
    %v1658 = vsel %vm1639, %v1619, -inf
    %v1659 = vsel %vm1639, %v1620, -inf
    %v1660 = vsel %vm1639, %v1621, -inf
    %v1661 = vsel %vm1643, %v1622, -inf
    %v1662 = vmax.f32 %v1658, %v1659
    %v1663 = vmax.f32 %v1660, %v1661
    %v1664 = vmax.f32 %v1662, %v1663
    %1665 = vmax.xlane.f32.xlu0 %v1664
    %v1666 = vpop.xlane.xlu0 %1665
    %v1667 = vrot.slane %v1666, 4
    %v1668 = vmax.f32 %v1666, %v1667
    %v1669 = vrot.slane %v1668, 2
    %v1670 = vmax.f32 %v1668, %v1669
    %v1671 = vrot.slane %v1670, 1
    %v1672 = vmax.f32 %v1670, %v1671
    %s1673 = vtos %v1672
    %s1674 = smax.f32 %s1657, %s1673
    %v1675 = vsel %vm1639, %v1623, -inf
    %v1676 = vsel %vm1639, %v1624, -inf
    %v1677 = vsel %vm1639, %v1625, -inf
    %v1678 = vsel %vm1643, %v1626, -inf
    %v1679 = vmax.f32 %v1675, %v1676
    %v1680 = vmax.f32 %v1677, %v1678
    %v1681 = vmax.f32 %v1679, %v1680
    %1682 = vmax.xlane.f32.xlu0 %v1681
    %v1683 = vpop.xlane.xlu0 %1682
    %v1684 = vrot.slane %v1683, 4
    %v1685 = vmax.f32 %v1683, %v1684
    %v1686 = vrot.slane %v1685, 2
    %v1687 = vmax.f32 %v1685, %v1686
    %v1688 = vrot.slane %v1687, 1
    %v1689 = vmax.f32 %v1687, %v1688
    %s1690 = vtos %v1689
    %s1691 = smax.f32 %s1674, %s1690
    %v1692 = vsel %vm1639, %v1627, -inf
    %v1693 = vsel %vm1639, %v1628, -inf
    %v1694 = vsel %vm1639, %v1629, -inf
    %v1695 = vsel %vm1643, %v1630, -inf
    %v1696 = vmax.f32 %v1692, %v1693
    %v1697 = vmax.f32 %v1694, %v1695
    %v1698 = vmax.f32 %v1696, %v1697
    %1699 = vmax.xlane.f32.xlu0 %v1698
    %v1700 = vpop.xlane.xlu0 %1699
    %v1701 = vrot.slane %v1700, 4
    %v1702 = vmax.f32 %v1700, %v1701
    %v1703 = vrot.slane %v1702, 2
    %v1704 = vmax.f32 %v1702, %v1703
    %v1705 = vrot.slane %v1704, 1
    %v1706 = vmax.f32 %v1704, %v1705
    %s1707 = vtos %v1706
    %s1708 = smax.f32 %s1691, %s1707
    %v1709 = vsel %vm1639, %v1631, -inf
    %v1710 = vsel %vm1639, %v1632, -inf
    %v1711 = vsel %vm1639, %v1633, -inf
    %v1712 = vsel %vm1643, %v1634, -inf
    %v1713 = vmax.f32 %v1709, %v1710
    %v1714 = vmax.f32 %v1711, %v1712
    %v1715 = vmax.f32 %v1713, %v1714
    %1716 = vmax.xlane.f32.xlu0 %v1715
    %v1717 = vpop.xlane.xlu0 %1716
    %v1718 = vrot.slane %v1717, 4
    %v1719 = vmax.f32 %v1717, %v1718
    %v1720 = vrot.slane %v1719, 2
    %v1721 = vmax.f32 %v1719, %v1720
    %v1722 = vrot.slane %v1721, 1
    %v1723 = vmax.f32 %v1721, %v1722
    %s1724 = vtos %v1723
    %s1725 = smax.f32 %s1708, %s1724
    %v1726 = vsel %vm1639, %v1635, -inf
    %v1727 = vsel %vm1639, %v1636, -inf
    %v1728 = vsel %vm1639, %v1637, -inf
    %v1729 = vsel %vm1643, %v1638, -inf
    %v1730 = vmax.f32 %v1726, %v1727
    %v1731 = vmax.f32 %v1728, %v1729
    %v1732 = vmax.f32 %v1730, %v1731
    %1733 = vmax.xlane.f32.xlu0 %v1732
    %v1734 = vpop.xlane.xlu0 %1733
    %v1735 = vrot.slane %v1734, 4
    %v1736 = vmax.f32 %v1734, %v1735
    %v1737 = vrot.slane %v1736, 2
    %v1738 = vmax.f32 %v1736, %v1737
    %v1739 = vrot.slane %v1738, 1
    %v1740 = vmax.f32 %v1738, %v1739
    %s1741 = vtos %v1740
    %s1742 = smax.f32 %s1725, %s1741
    %p1743 = scmp.gt.f32.partialorder %s1742, 0.0
    %v1744 = vrcp.pop 3.0
    %s1745 = vtos %v1744
    %s1746 = smul.f32 %s1742, %s1745
    %s1747 = scalar_select %p1743, %s1746, 1.0
    %v1748 = vstv %s1747
    %v1749 = vrcp.pop %v1748
    %s1750 = vtos %v1749
    %v1751 = vstv %s1750
    %v1752 = vmul.f32 %v1615, %v1751
    %v1753 = vmul.f32 %v1616, %v1751
    %v1754 = vmul.f32 %v1617, %v1751
    %v1755 = vmul.f32 %v1618, %v1751
    %v1756 = vround.ne.pseudo %v1752
    %v1757 = vround.ne.pseudo %v1753
    %v1758 = vround.ne.pseudo %v1754
    %v1759 = vround.ne.pseudo %v1755
    %v1760 = vstv %s1747
    %v1761 = vmul.f32 %v1756, %v1760
    %v1762 = vmul.f32 %v1757, %v1760
    %v1763 = vmul.f32 %v1758, %v1760
    %v1764 = vmul.f32 %v1759, %v1760
    %v1765 = vmul.f32 %v1619, %v1751
    %v1766 = vmul.f32 %v1620, %v1751
    %v1767 = vmul.f32 %v1621, %v1751
    %v1768 = vmul.f32 %v1622, %v1751
    %v1769 = vround.ne.pseudo %v1765
    %v1770 = vround.ne.pseudo %v1766
    %v1771 = vround.ne.pseudo %v1767
    %v1772 = vround.ne.pseudo %v1768
    %v1773 = vmul.f32 %v1769, %v1760
    %v1774 = vmul.f32 %v1770, %v1760
    %v1775 = vmul.f32 %v1771, %v1760
    %v1776 = vmul.f32 %v1772, %v1760
    %v1777 = vmul.f32 %v1623, %v1751
    %v1778 = vmul.f32 %v1624, %v1751
    %v1779 = vmul.f32 %v1625, %v1751
    %v1780 = vmul.f32 %v1626, %v1751
    %v1781 = vround.ne.pseudo %v1777
    %v1782 = vround.ne.pseudo %v1778
    %v1783 = vround.ne.pseudo %v1779
    %v1784 = vround.ne.pseudo %v1780
    %v1785 = vmul.f32 %v1781, %v1760
    %v1786 = vmul.f32 %v1782, %v1760
    %v1787 = vmul.f32 %v1783, %v1760
    %v1788 = vmul.f32 %v1784, %v1760
    %v1789 = vmul.f32 %v1627, %v1751
    %v1790 = vmul.f32 %v1628, %v1751
    %v1791 = vmul.f32 %v1629, %v1751
    %v1792 = vmul.f32 %v1630, %v1751
    %v1793 = vround.ne.pseudo %v1789
    %v1794 = vround.ne.pseudo %v1790
    %v1795 = vround.ne.pseudo %v1791
    %v1796 = vround.ne.pseudo %v1792
    %v1797 = vmul.f32 %v1793, %v1760
    %v1798 = vmul.f32 %v1794, %v1760
    %v1799 = vmul.f32 %v1795, %v1760
    %v1800 = vmul.f32 %v1796, %v1760
    %v1801 = vmul.f32 %v1631, %v1751
    %v1802 = vmul.f32 %v1632, %v1751
    %v1803 = vmul.f32 %v1633, %v1751
    %v1804 = vmul.f32 %v1634, %v1751
    %v1805 = vround.ne.pseudo %v1801
    %v1806 = vround.ne.pseudo %v1802
    %v1807 = vround.ne.pseudo %v1803
    %v1808 = vround.ne.pseudo %v1804
    %v1809 = vmul.f32 %v1805, %v1760
    %v1810 = vmul.f32 %v1806, %v1760
    %v1811 = vmul.f32 %v1807, %v1760
    %v1812 = vmul.f32 %v1808, %v1760
    %v1813 = vmul.f32 %v1635, %v1751
    %v1814 = vmul.f32 %v1636, %v1751
    %v1815 = vmul.f32 %v1637, %v1751
    %v1816 = vmul.f32 %v1638, %v1751
    %v1817 = vround.ne.pseudo %v1813
    %v1818 = vround.ne.pseudo %v1814
    %v1819 = vround.ne.pseudo %v1815
    %v1820 = vround.ne.pseudo %v1816
    %v1821 = vmul.f32 %v1817, %v1760
    %v1822 = vmul.f32 %v1818, %v1760
    %v1823 = vmul.f32 %v1819, %v1760
    %v1824 = vmul.f32 %v1820, %v1760
    %s1825 = sld [smem:[#allocation10]]
    %v1826 = vstv %s1825
    %v1827 = vadd.f32 %v1826, 0.0
    %s1828 = sld [smem:[#allocation10 + $0x1]]
    %v1829 = vstv %s1828
    %v1830 = vadd.f32 %v1829, 0.0
    %s1831 = sld [smem:[#allocation10 + $0x2]]
    %v1832 = vstv %s1831
    %v1833 = vadd.f32 %v1832, 0.0
    %v1838 = vrot.slane %v1761, 7
    %v1839 = vrot.slane %v1762, 7
    %v1840 = vsel %vm129, %v1838, %v1839
    %v1841 = vrot.slane %v1763, 7
    %v1842 = vsel %vm129, %v1839, %v1841
    %v1843 = vrot.slane %v1764, 7
    %v1844 = vsel %vm129, %v1841, %v1843
    %v1847 = vsel %vm129, 0.0, %v1838
    %v1848 = vsel %vm140, %v1844, 0.0
    %1851 = vrot.lane.b32.xlu0 %v1847, 1
    %v1852 = vpop.permute.xlu0 %1851
    %1853 = vrot.lane.b32.xlu0 %v1840, 1
    %v1854 = vpop.permute.xlu0 %1853
    %1855 = vrot.lane.b32.xlu0 %v1842, 1
    %v1856 = vpop.permute.xlu0 %1855
    %1857 = vrot.lane.b32.xlu0 %v1848, 1
    %v1858 = vpop.permute.xlu0 %1857
    %v1863 = vsel %vm156, 0.0, %v1852
    %v1864 = vsel %vm156, 0.0, %v1854
    %v1865 = vsel %vm156, 0.0, %v1856
    %v1866 = vsel %vm156, 0.0, %v1858
    %v1867 = vsel %vm161, %v1863, 0.0
    %v1868 = vsel %vm161, %v1864, 0.0
    %v1869 = vsel %vm161, %v1865, 0.0
    %v1870 = vsel %vm161, %v1866, 0.0
    %s1871 = sld [smem:[#allocation9]]
    %v1872 = vstv %s1871
    %v1873 = vmul.f32 %v1872, %v1867
    %v1874 = vmul.f32 %v1872, %v1868
    %v1875 = vmul.f32 %v1872, %v1869
    %v1876 = vmul.f32 %v1872, %v1870
    %v1877 = vadd.f32 %v1827, %v1873
    %v1878 = vadd.f32 %v1827, %v1874
    %v1879 = vadd.f32 %v1827, %v1875
    %v1880 = vadd.f32 %v1827, %v1876
    %s1881 = sld [smem:[#allocation9 + $0x1b]]
    %v1882 = vstv %s1881
    %v1883 = vmul.f32 %v1882, %v1867
    %v1884 = vmul.f32 %v1882, %v1868
    %v1885 = vmul.f32 %v1882, %v1869
    %v1886 = vmul.f32 %v1882, %v1870
    %v1887 = vadd.f32 %v1830, %v1883
    %v1888 = vadd.f32 %v1830, %v1884
    %v1889 = vadd.f32 %v1830, %v1885
    %v1890 = vadd.f32 %v1830, %v1886
    %s1891 = sld [smem:[#allocation9 + $0x36]]
    %v1892 = vstv %s1891
    %v1893 = vmul.f32 %v1892, %v1867
    %v1894 = vmul.f32 %v1892, %v1868
    %v1895 = vmul.f32 %v1892, %v1869
    %v1896 = vmul.f32 %v1892, %v1870
    %v1897 = vadd.f32 %v1833, %v1893
    %v1898 = vadd.f32 %v1833, %v1894
    %v1899 = vadd.f32 %v1833, %v1895
    %v1900 = vadd.f32 %v1833, %v1896
    %s1901 = sld [smem:[#allocation9 + $0x1]]
    %v1902 = vstv %s1901
    %v1903 = vmul.f32 %v1902, %v1867
    %v1904 = vmul.f32 %v1902, %v1868
    %v1905 = vmul.f32 %v1902, %v1869
    %v1906 = vmul.f32 %v1902, %v1870
    %1911 = vrot.lane.b32.xlu0 %v1903, 127
    %v1912 = vpop.permute.xlu0 %1911
    %1913 = vrot.lane.b32.xlu0 %v1904, 127
    %v1914 = vpop.permute.xlu0 %1913
    %1915 = vrot.lane.b32.xlu0 %v1905, 127
    %v1916 = vpop.permute.xlu0 %1915
    %1917 = vrot.lane.b32.xlu0 %v1906, 127
    %v1918 = vpop.permute.xlu0 %1917
    %v1923 = vadd.f32 %v1877, %v1912
    %v1924 = vadd.f32 %v1878, %v1914
    %v1925 = vadd.f32 %v1879, %v1916
    %v1926 = vadd.f32 %v1880, %v1918
    %s1927 = sld [smem:[#allocation9 + $0x1c]]
    %v1928 = vstv %s1927
    %v1929 = vmul.f32 %v1928, %v1867
    %v1930 = vmul.f32 %v1928, %v1868
    %v1931 = vmul.f32 %v1928, %v1869
    %v1932 = vmul.f32 %v1928, %v1870
    %1937 = vrot.lane.b32.xlu0 %v1929, 127
    %v1938 = vpop.permute.xlu0 %1937
    %1939 = vrot.lane.b32.xlu0 %v1930, 127
    %v1940 = vpop.permute.xlu0 %1939
    %1941 = vrot.lane.b32.xlu0 %v1931, 127
    %v1942 = vpop.permute.xlu0 %1941
    %1943 = vrot.lane.b32.xlu0 %v1932, 127
    %v1944 = vpop.permute.xlu0 %1943
    %v1949 = vadd.f32 %v1887, %v1938
    %v1950 = vadd.f32 %v1888, %v1940
    %v1951 = vadd.f32 %v1889, %v1942
    %v1952 = vadd.f32 %v1890, %v1944
    %s1953 = sld [smem:[#allocation9 + $0x37]]
    %v1954 = vstv %s1953
    %v1955 = vmul.f32 %v1954, %v1867
    %v1956 = vmul.f32 %v1954, %v1868
    %v1957 = vmul.f32 %v1954, %v1869
    %v1958 = vmul.f32 %v1954, %v1870
    %1963 = vrot.lane.b32.xlu0 %v1955, 127
    %v1964 = vpop.permute.xlu0 %1963
    %1965 = vrot.lane.b32.xlu0 %v1956, 127
    %v1966 = vpop.permute.xlu0 %1965
    %1967 = vrot.lane.b32.xlu0 %v1957, 127
    %v1968 = vpop.permute.xlu0 %1967
    %1969 = vrot.lane.b32.xlu0 %v1958, 127
    %v1970 = vpop.permute.xlu0 %1969
    %v1975 = vadd.f32 %v1897, %v1964
    %v1976 = vadd.f32 %v1898, %v1966
    %v1977 = vadd.f32 %v1899, %v1968
    %v1978 = vadd.f32 %v1900, %v1970
    %s1979 = sld [smem:[#allocation9 + $0x2]]
    %v1980 = vstv %s1979
    %v1981 = vmul.f32 %v1980, %v1867
    %v1982 = vmul.f32 %v1980, %v1868
    %v1983 = vmul.f32 %v1980, %v1869
    %v1984 = vmul.f32 %v1980, %v1870
    %1989 = vrot.lane.b32.xlu0 %v1981, 126
    %v1990 = vpop.permute.xlu0 %1989
    %1991 = vrot.lane.b32.xlu0 %v1982, 126
    %v1992 = vpop.permute.xlu0 %1991
    %1993 = vrot.lane.b32.xlu0 %v1983, 126
    %v1994 = vpop.permute.xlu0 %1993
    %1995 = vrot.lane.b32.xlu0 %v1984, 126
    %v1996 = vpop.permute.xlu0 %1995
    %v2001 = vadd.f32 %v1923, %v1990
    %v2002 = vadd.f32 %v1924, %v1992
    %v2003 = vadd.f32 %v1925, %v1994
    %v2004 = vadd.f32 %v1926, %v1996
    %s2005 = sld [smem:[#allocation9 + $0x1d]]
    %v2006 = vstv %s2005
    %v2007 = vmul.f32 %v2006, %v1867
    %v2008 = vmul.f32 %v2006, %v1868
    %v2009 = vmul.f32 %v2006, %v1869
    %v2010 = vmul.f32 %v2006, %v1870
    %2015 = vrot.lane.b32.xlu0 %v2007, 126
    %v2016 = vpop.permute.xlu0 %2015
    %2017 = vrot.lane.b32.xlu0 %v2008, 126
    %v2018 = vpop.permute.xlu0 %2017
    %2019 = vrot.lane.b32.xlu0 %v2009, 126
    %v2020 = vpop.permute.xlu0 %2019
    %2021 = vrot.lane.b32.xlu0 %v2010, 126
    %v2022 = vpop.permute.xlu0 %2021
    %v2027 = vadd.f32 %v1949, %v2016
    %v2028 = vadd.f32 %v1950, %v2018
    %v2029 = vadd.f32 %v1951, %v2020
    %v2030 = vadd.f32 %v1952, %v2022
    %s2031 = sld [smem:[#allocation9 + $0x38]]
    %v2032 = vstv %s2031
    %v2033 = vmul.f32 %v2032, %v1867
    %v2034 = vmul.f32 %v2032, %v1868
    %v2035 = vmul.f32 %v2032, %v1869
    %v2036 = vmul.f32 %v2032, %v1870
    %2041 = vrot.lane.b32.xlu0 %v2033, 126
    %v2042 = vpop.permute.xlu0 %2041
    %2043 = vrot.lane.b32.xlu0 %v2034, 126
    %v2044 = vpop.permute.xlu0 %2043
    %2045 = vrot.lane.b32.xlu0 %v2035, 126
    %v2046 = vpop.permute.xlu0 %2045
    %2047 = vrot.lane.b32.xlu0 %v2036, 126
    %v2048 = vpop.permute.xlu0 %2047
    %v2053 = vadd.f32 %v1975, %v2042
    %v2054 = vadd.f32 %v1976, %v2044
    %v2055 = vadd.f32 %v1977, %v2046
    %v2056 = vadd.f32 %v1978, %v2048
    %s2057 = sld [smem:[#allocation9 + $0x3]]
    %v2058 = vstv %s2057
    %v2059 = vmul.f32 %v2058, %v1867
    %v2060 = vmul.f32 %v2058, %v1868
    %v2061 = vmul.f32 %v2058, %v1869
    %v2062 = vmul.f32 %v2058, %v1870
    %v2067 = vrot.slane %v2059, 1
    %v2068 = vrot.slane %v2060, 1
    %v2069 = vsel %vm362, %v2067, %v2068
    %v2070 = vrot.slane %v2061, 1
    %v2071 = vsel %vm362, %v2068, %v2070
    %v2072 = vrot.slane %v2062, 1
    %v2073 = vsel %vm362, %v2070, %v2072
    %v2078 = vadd.f32 %v2001, %v2069
    %v2079 = vadd.f32 %v2002, %v2071
    %v2080 = vadd.f32 %v2003, %v2073
    %v2081 = vadd.f32 %v2004, %v2072
    %s2082 = sld [smem:[#allocation9 + $0x1e]]
    %v2083 = vstv %s2082
    %v2084 = vmul.f32 %v2083, %v1867
    %v2085 = vmul.f32 %v2083, %v1868
    %v2086 = vmul.f32 %v2083, %v1869
    %v2087 = vmul.f32 %v2083, %v1870
    %v2092 = vrot.slane %v2084, 1
    %v2093 = vrot.slane %v2085, 1
    %v2094 = vsel %vm362, %v2092, %v2093
    %v2095 = vrot.slane %v2086, 1
    %v2096 = vsel %vm362, %v2093, %v2095
    %v2097 = vrot.slane %v2087, 1
    %v2098 = vsel %vm362, %v2095, %v2097
    %v2103 = vadd.f32 %v2027, %v2094
    %v2104 = vadd.f32 %v2028, %v2096
    %v2105 = vadd.f32 %v2029, %v2098
    %v2106 = vadd.f32 %v2030, %v2097
    %s2107 = sld [smem:[#allocation9 + $0x39]]
    %v2108 = vstv %s2107
    %v2109 = vmul.f32 %v2108, %v1867
    %v2110 = vmul.f32 %v2108, %v1868
    %v2111 = vmul.f32 %v2108, %v1869
    %v2112 = vmul.f32 %v2108, %v1870
    %v2117 = vrot.slane %v2109, 1
    %v2118 = vrot.slane %v2110, 1
    %v2119 = vsel %vm362, %v2117, %v2118
    %v2120 = vrot.slane %v2111, 1
    %v2121 = vsel %vm362, %v2118, %v2120
    %v2122 = vrot.slane %v2112, 1
    %v2123 = vsel %vm362, %v2120, %v2122
    %v2128 = vadd.f32 %v2053, %v2119
    %v2129 = vadd.f32 %v2054, %v2121
    %v2130 = vadd.f32 %v2055, %v2123
    %v2131 = vadd.f32 %v2056, %v2122
    %s2132 = sld [smem:[#allocation9 + $0x4]]
    %v2133 = vstv %s2132
    %v2134 = vmul.f32 %v2133, %v1867
    %v2135 = vmul.f32 %v2133, %v1868
    %v2136 = vmul.f32 %v2133, %v1869
    %v2137 = vmul.f32 %v2133, %v1870
    %v2142 = vrot.slane %v2134, 1
    %v2143 = vrot.slane %v2135, 1
    %v2144 = vsel %vm362, %v2142, %v2143
    %v2145 = vrot.slane %v2136, 1
    %v2146 = vsel %vm362, %v2143, %v2145
    %v2147 = vrot.slane %v2137, 1
    %v2148 = vsel %vm362, %v2145, %v2147
    %2149 = vrot.lane.b32.xlu0 %v2144, 127
    %v2150 = vpop.permute.xlu0 %2149
    %2151 = vrot.lane.b32.xlu0 %v2146, 127
    %v2152 = vpop.permute.xlu0 %2151
    %2153 = vrot.lane.b32.xlu0 %v2148, 127
    %v2154 = vpop.permute.xlu0 %2153
    %2155 = vrot.lane.b32.xlu0 %v2147, 127
    %v2156 = vpop.permute.xlu0 %2155
    %v2161 = vadd.f32 %v2078, %v2150
    %v2162 = vadd.f32 %v2079, %v2152
    %v2163 = vadd.f32 %v2080, %v2154
    %v2164 = vadd.f32 %v2081, %v2156
    %s2165 = sld [smem:[#allocation9 + $0x1f]]
    %v2166 = vstv %s2165
    %v2167 = vmul.f32 %v2166, %v1867
    %v2168 = vmul.f32 %v2166, %v1868
    %v2169 = vmul.f32 %v2166, %v1869
    %v2170 = vmul.f32 %v2166, %v1870
    %v2175 = vrot.slane %v2167, 1
    %v2176 = vrot.slane %v2168, 1
    %v2177 = vsel %vm362, %v2175, %v2176
    %v2178 = vrot.slane %v2169, 1
    %v2179 = vsel %vm362, %v2176, %v2178
    %v2180 = vrot.slane %v2170, 1
    %v2181 = vsel %vm362, %v2178, %v2180
    %2182 = vrot.lane.b32.xlu0 %v2177, 127
    %v2183 = vpop.permute.xlu0 %2182
    %2184 = vrot.lane.b32.xlu0 %v2179, 127
    %v2185 = vpop.permute.xlu0 %2184
    %2186 = vrot.lane.b32.xlu0 %v2181, 127
    %v2187 = vpop.permute.xlu0 %2186
    %2188 = vrot.lane.b32.xlu0 %v2180, 127
    %v2189 = vpop.permute.xlu0 %2188
    %v2194 = vadd.f32 %v2103, %v2183
    %v2195 = vadd.f32 %v2104, %v2185
    %v2196 = vadd.f32 %v2105, %v2187
    %v2197 = vadd.f32 %v2106, %v2189
    %s2198 = sld [smem:[#allocation9 + $0x3a]]
    %v2199 = vstv %s2198
    %v2200 = vmul.f32 %v2199, %v1867
    %v2201 = vmul.f32 %v2199, %v1868
    %v2202 = vmul.f32 %v2199, %v1869
    %v2203 = vmul.f32 %v2199, %v1870
    %v2208 = vrot.slane %v2200, 1
    %v2209 = vrot.slane %v2201, 1
    %v2210 = vsel %vm362, %v2208, %v2209
    %v2211 = vrot.slane %v2202, 1
    %v2212 = vsel %vm362, %v2209, %v2211
    %v2213 = vrot.slane %v2203, 1
    %v2214 = vsel %vm362, %v2211, %v2213
    %2215 = vrot.lane.b32.xlu0 %v2210, 127
    %v2216 = vpop.permute.xlu0 %2215
    %2217 = vrot.lane.b32.xlu0 %v2212, 127
    %v2218 = vpop.permute.xlu0 %2217
    %2219 = vrot.lane.b32.xlu0 %v2214, 127
    %v2220 = vpop.permute.xlu0 %2219
    %2221 = vrot.lane.b32.xlu0 %v2213, 127
    %v2222 = vpop.permute.xlu0 %2221
    %v2227 = vadd.f32 %v2128, %v2216
    %v2228 = vadd.f32 %v2129, %v2218
    %v2229 = vadd.f32 %v2130, %v2220
    %v2230 = vadd.f32 %v2131, %v2222
    %s2231 = sld [smem:[#allocation9 + $0x5]]
    %v2232 = vstv %s2231
    %v2233 = vmul.f32 %v2232, %v1867
    %v2234 = vmul.f32 %v2232, %v1868
    %v2235 = vmul.f32 %v2232, %v1869
    %v2236 = vmul.f32 %v2232, %v1870
    %v2241 = vrot.slane %v2233, 1
    %v2242 = vrot.slane %v2234, 1
    %v2243 = vsel %vm362, %v2241, %v2242
    %v2244 = vrot.slane %v2235, 1
    %v2245 = vsel %vm362, %v2242, %v2244
    %v2246 = vrot.slane %v2236, 1
    %v2247 = vsel %vm362, %v2244, %v2246
    %2248 = vrot.lane.b32.xlu0 %v2243, 126
    %v2249 = vpop.permute.xlu0 %2248
    %2250 = vrot.lane.b32.xlu0 %v2245, 126
    %v2251 = vpop.permute.xlu0 %2250
    %2252 = vrot.lane.b32.xlu0 %v2247, 126
    %v2253 = vpop.permute.xlu0 %2252
    %2254 = vrot.lane.b32.xlu0 %v2246, 126
    %v2255 = vpop.permute.xlu0 %2254
    %v2260 = vadd.f32 %v2161, %v2249
    %v2261 = vadd.f32 %v2162, %v2251
    %v2262 = vadd.f32 %v2163, %v2253
    %v2263 = vadd.f32 %v2164, %v2255
    %s2264 = sld [smem:[#allocation9 + $0x20]]
    %v2265 = vstv %s2264
    %v2266 = vmul.f32 %v2265, %v1867
    %v2267 = vmul.f32 %v2265, %v1868
    %v2268 = vmul.f32 %v2265, %v1869
    %v2269 = vmul.f32 %v2265, %v1870
    %v2274 = vrot.slane %v2266, 1
    %v2275 = vrot.slane %v2267, 1
    %v2276 = vsel %vm362, %v2274, %v2275
    %v2277 = vrot.slane %v2268, 1
    %v2278 = vsel %vm362, %v2275, %v2277
    %v2279 = vrot.slane %v2269, 1
    %v2280 = vsel %vm362, %v2277, %v2279
    %2281 = vrot.lane.b32.xlu0 %v2276, 126
    %v2282 = vpop.permute.xlu0 %2281
    %2283 = vrot.lane.b32.xlu0 %v2278, 126
    %v2284 = vpop.permute.xlu0 %2283
    %2285 = vrot.lane.b32.xlu0 %v2280, 126
    %v2286 = vpop.permute.xlu0 %2285
    %2287 = vrot.lane.b32.xlu0 %v2279, 126
    %v2288 = vpop.permute.xlu0 %2287
    %v2293 = vadd.f32 %v2194, %v2282
    %v2294 = vadd.f32 %v2195, %v2284
    %v2295 = vadd.f32 %v2196, %v2286
    %v2296 = vadd.f32 %v2197, %v2288
    %s2297 = sld [smem:[#allocation9 + $0x3b]]
    %v2298 = vstv %s2297
    %v2299 = vmul.f32 %v2298, %v1867
    %v2300 = vmul.f32 %v2298, %v1868
    %v2301 = vmul.f32 %v2298, %v1869
    %v2302 = vmul.f32 %v2298, %v1870
    %v2307 = vrot.slane %v2299, 1
    %v2308 = vrot.slane %v2300, 1
    %v2309 = vsel %vm362, %v2307, %v2308
    %v2310 = vrot.slane %v2301, 1
    %v2311 = vsel %vm362, %v2308, %v2310
    %v2312 = vrot.slane %v2302, 1
    %v2313 = vsel %vm362, %v2310, %v2312
    %2314 = vrot.lane.b32.xlu0 %v2309, 126
    %v2315 = vpop.permute.xlu0 %2314
    %2316 = vrot.lane.b32.xlu0 %v2311, 126
    %v2317 = vpop.permute.xlu0 %2316
    %2318 = vrot.lane.b32.xlu0 %v2313, 126
    %v2319 = vpop.permute.xlu0 %2318
    %2320 = vrot.lane.b32.xlu0 %v2312, 126
    %v2321 = vpop.permute.xlu0 %2320
    %v2326 = vadd.f32 %v2227, %v2315
    %v2327 = vadd.f32 %v2228, %v2317
    %v2328 = vadd.f32 %v2229, %v2319
    %v2329 = vadd.f32 %v2230, %v2321
    %s2330 = sld [smem:[#allocation9 + $0x6]]
    %v2331 = vstv %s2330
    %v2332 = vmul.f32 %v2331, %v1867
    %v2333 = vmul.f32 %v2331, %v1868
    %v2334 = vmul.f32 %v2331, %v1869
    %v2335 = vmul.f32 %v2331, %v1870
    %v2340 = vrot.slane %v2332, 2
    %v2341 = vrot.slane %v2333, 2
    %v2342 = vsel %vm636, %v2340, %v2341
    %v2343 = vrot.slane %v2334, 2
    %v2344 = vsel %vm636, %v2341, %v2343
    %v2345 = vrot.slane %v2335, 2
    %v2346 = vsel %vm636, %v2343, %v2345
    %v2351 = vadd.f32 %v2260, %v2342
    %v2352 = vadd.f32 %v2261, %v2344
    %v2353 = vadd.f32 %v2262, %v2346
    %v2354 = vadd.f32 %v2263, %v2345
    %s2355 = sld [smem:[#allocation9 + $0x21]]
    %v2356 = vstv %s2355
    %v2357 = vmul.f32 %v2356, %v1867
    %v2358 = vmul.f32 %v2356, %v1868
    %v2359 = vmul.f32 %v2356, %v1869
    %v2360 = vmul.f32 %v2356, %v1870
    %v2365 = vrot.slane %v2357, 2
    %v2366 = vrot.slane %v2358, 2
    %v2367 = vsel %vm636, %v2365, %v2366
    %v2368 = vrot.slane %v2359, 2
    %v2369 = vsel %vm636, %v2366, %v2368
    %v2370 = vrot.slane %v2360, 2
    %v2371 = vsel %vm636, %v2368, %v2370
    %v2376 = vadd.f32 %v2293, %v2367
    %v2377 = vadd.f32 %v2294, %v2369
    %v2378 = vadd.f32 %v2295, %v2371
    %v2379 = vadd.f32 %v2296, %v2370
    %s2380 = sld [smem:[#allocation9 + $0x3c]]
    %v2381 = vstv %s2380
    %v2382 = vmul.f32 %v2381, %v1867
    %v2383 = vmul.f32 %v2381, %v1868
    %v2384 = vmul.f32 %v2381, %v1869
    %v2385 = vmul.f32 %v2381, %v1870
    %v2390 = vrot.slane %v2382, 2
    %v2391 = vrot.slane %v2383, 2
    %v2392 = vsel %vm636, %v2390, %v2391
    %v2393 = vrot.slane %v2384, 2
    %v2394 = vsel %vm636, %v2391, %v2393
    %v2395 = vrot.slane %v2385, 2
    %v2396 = vsel %vm636, %v2393, %v2395
    %v2401 = vadd.f32 %v2326, %v2392
    %v2402 = vadd.f32 %v2327, %v2394
    %v2403 = vadd.f32 %v2328, %v2396
    %v2404 = vadd.f32 %v2329, %v2395
    %s2405 = sld [smem:[#allocation9 + $0x7]]
    %v2406 = vstv %s2405
    %v2407 = vmul.f32 %v2406, %v1867
    %v2408 = vmul.f32 %v2406, %v1868
    %v2409 = vmul.f32 %v2406, %v1869
    %v2410 = vmul.f32 %v2406, %v1870
    %v2415 = vrot.slane %v2407, 2
    %v2416 = vrot.slane %v2408, 2
    %v2417 = vsel %vm636, %v2415, %v2416
    %v2418 = vrot.slane %v2409, 2
    %v2419 = vsel %vm636, %v2416, %v2418
    %v2420 = vrot.slane %v2410, 2
    %v2421 = vsel %vm636, %v2418, %v2420
    %2422 = vrot.lane.b32.xlu0 %v2417, 127
    %v2423 = vpop.permute.xlu0 %2422
    %2424 = vrot.lane.b32.xlu0 %v2419, 127
    %v2425 = vpop.permute.xlu0 %2424
    %2426 = vrot.lane.b32.xlu0 %v2421, 127
    %v2427 = vpop.permute.xlu0 %2426
    %2428 = vrot.lane.b32.xlu0 %v2420, 127
    %v2429 = vpop.permute.xlu0 %2428
    %v2434 = vadd.f32 %v2351, %v2423
    %v2435 = vadd.f32 %v2352, %v2425
    %v2436 = vadd.f32 %v2353, %v2427
    %v2437 = vadd.f32 %v2354, %v2429
    %s2438 = sld [smem:[#allocation9 + $0x22]]
    %v2439 = vstv %s2438
    %v2440 = vmul.f32 %v2439, %v1867
    %v2441 = vmul.f32 %v2439, %v1868
    %v2442 = vmul.f32 %v2439, %v1869
    %v2443 = vmul.f32 %v2439, %v1870
    %v2448 = vrot.slane %v2440, 2
    %v2449 = vrot.slane %v2441, 2
    %v2450 = vsel %vm636, %v2448, %v2449
    %v2451 = vrot.slane %v2442, 2
    %v2452 = vsel %vm636, %v2449, %v2451
    %v2453 = vrot.slane %v2443, 2
    %v2454 = vsel %vm636, %v2451, %v2453
    %2455 = vrot.lane.b32.xlu0 %v2450, 127
    %v2456 = vpop.permute.xlu0 %2455
    %2457 = vrot.lane.b32.xlu0 %v2452, 127
    %v2458 = vpop.permute.xlu0 %2457
    %2459 = vrot.lane.b32.xlu0 %v2454, 127
    %v2460 = vpop.permute.xlu0 %2459
    %2461 = vrot.lane.b32.xlu0 %v2453, 127
    %v2462 = vpop.permute.xlu0 %2461
    %v2467 = vadd.f32 %v2376, %v2456
    %v2468 = vadd.f32 %v2377, %v2458
    %v2469 = vadd.f32 %v2378, %v2460
    %v2470 = vadd.f32 %v2379, %v2462
    %s2471 = sld [smem:[#allocation9 + $0x3d]]
    %v2472 = vstv %s2471
    %v2473 = vmul.f32 %v2472, %v1867
    %v2474 = vmul.f32 %v2472, %v1868
    %v2475 = vmul.f32 %v2472, %v1869
    %v2476 = vmul.f32 %v2472, %v1870
    %v2481 = vrot.slane %v2473, 2
    %v2482 = vrot.slane %v2474, 2
    %v2483 = vsel %vm636, %v2481, %v2482
    %v2484 = vrot.slane %v2475, 2
    %v2485 = vsel %vm636, %v2482, %v2484
    %v2486 = vrot.slane %v2476, 2
    %v2487 = vsel %vm636, %v2484, %v2486
    %2488 = vrot.lane.b32.xlu0 %v2483, 127
    %v2489 = vpop.permute.xlu0 %2488
    %2490 = vrot.lane.b32.xlu0 %v2485, 127
    %v2491 = vpop.permute.xlu0 %2490
    %2492 = vrot.lane.b32.xlu0 %v2487, 127
    %v2493 = vpop.permute.xlu0 %2492
    %2494 = vrot.lane.b32.xlu0 %v2486, 127
    %v2495 = vpop.permute.xlu0 %2494
    %v2500 = vadd.f32 %v2401, %v2489
    %v2501 = vadd.f32 %v2402, %v2491
    %v2502 = vadd.f32 %v2403, %v2493
    %v2503 = vadd.f32 %v2404, %v2495
    %s2504 = sld [smem:[#allocation9 + $0x8]]
    %v2505 = vstv %s2504
    %v2506 = vmul.f32 %v2505, %v1867
    %v2507 = vmul.f32 %v2505, %v1868
    %v2508 = vmul.f32 %v2505, %v1869
    %v2509 = vmul.f32 %v2505, %v1870
    %v2514 = vrot.slane %v2506, 2
    %v2515 = vrot.slane %v2507, 2
    %v2516 = vsel %vm636, %v2514, %v2515
    %v2517 = vrot.slane %v2508, 2
    %v2518 = vsel %vm636, %v2515, %v2517
    %v2519 = vrot.slane %v2509, 2
    %v2520 = vsel %vm636, %v2517, %v2519
    %2521 = vrot.lane.b32.xlu0 %v2516, 126
    %v2522 = vpop.permute.xlu0 %2521
    %2523 = vrot.lane.b32.xlu0 %v2518, 126
    %v2524 = vpop.permute.xlu0 %2523
    %2525 = vrot.lane.b32.xlu0 %v2520, 126
    %v2526 = vpop.permute.xlu0 %2525
    %2527 = vrot.lane.b32.xlu0 %v2519, 126
    %v2528 = vpop.permute.xlu0 %2527
    %v2533 = vadd.f32 %v2434, %v2522
    %v2534 = vadd.f32 %v2435, %v2524
    %v2535 = vadd.f32 %v2436, %v2526
    %v2536 = vadd.f32 %v2437, %v2528
    %s2537 = sld [smem:[#allocation9 + $0x23]]
    %v2538 = vstv %s2537
    %v2539 = vmul.f32 %v2538, %v1867
    %v2540 = vmul.f32 %v2538, %v1868
    %v2541 = vmul.f32 %v2538, %v1869
    %v2542 = vmul.f32 %v2538, %v1870
    %v2547 = vrot.slane %v2539, 2
    %v2548 = vrot.slane %v2540, 2
    %v2549 = vsel %vm636, %v2547, %v2548
    %v2550 = vrot.slane %v2541, 2
    %v2551 = vsel %vm636, %v2548, %v2550
    %v2552 = vrot.slane %v2542, 2
    %v2553 = vsel %vm636, %v2550, %v2552
    %2554 = vrot.lane.b32.xlu0 %v2549, 126
    %v2555 = vpop.permute.xlu0 %2554
    %2556 = vrot.lane.b32.xlu0 %v2551, 126
    %v2557 = vpop.permute.xlu0 %2556
    %2558 = vrot.lane.b32.xlu0 %v2553, 126
    %v2559 = vpop.permute.xlu0 %2558
    %2560 = vrot.lane.b32.xlu0 %v2552, 126
    %v2561 = vpop.permute.xlu0 %2560
    %v2566 = vadd.f32 %v2467, %v2555
    %v2567 = vadd.f32 %v2468, %v2557
    %v2568 = vadd.f32 %v2469, %v2559
    %v2569 = vadd.f32 %v2470, %v2561
    %s2570 = sld [smem:[#allocation9 + $0x3e]]
    %v2571 = vstv %s2570
    %v2572 = vmul.f32 %v2571, %v1867
    %v2573 = vmul.f32 %v2571, %v1868
    %v2574 = vmul.f32 %v2571, %v1869
    %v2575 = vmul.f32 %v2571, %v1870
    %v2580 = vrot.slane %v2572, 2
    %v2581 = vrot.slane %v2573, 2
    %v2582 = vsel %vm636, %v2580, %v2581
    %v2583 = vrot.slane %v2574, 2
    %v2584 = vsel %vm636, %v2581, %v2583
    %v2585 = vrot.slane %v2575, 2
    %v2586 = vsel %vm636, %v2583, %v2585
    %2587 = vrot.lane.b32.xlu0 %v2582, 126
    %v2588 = vpop.permute.xlu0 %2587
    %2589 = vrot.lane.b32.xlu0 %v2584, 126
    %v2590 = vpop.permute.xlu0 %2589
    %2591 = vrot.lane.b32.xlu0 %v2586, 126
    %v2592 = vpop.permute.xlu0 %2591
    %2593 = vrot.lane.b32.xlu0 %v2585, 126
    %v2594 = vpop.permute.xlu0 %2593
    %v2599 = vadd.f32 %v2500, %v2588
    %v2600 = vadd.f32 %v2501, %v2590
    %v2601 = vadd.f32 %v2502, %v2592
    %v2602 = vadd.f32 %v2503, %v2594
    %v2607 = vrot.slane %v1773, 7
    %v2608 = vrot.slane %v1774, 7
    %v2609 = vsel %vm129, %v2607, %v2608
    %v2610 = vrot.slane %v1775, 7
    %v2611 = vsel %vm129, %v2608, %v2610
    %v2612 = vrot.slane %v1776, 7
    %v2613 = vsel %vm129, %v2610, %v2612
    %v2616 = vsel %vm129, 0.0, %v2607
    %v2617 = vsel %vm140, %v2613, 0.0
    %2620 = vrot.lane.b32.xlu0 %v2616, 1
    %v2621 = vpop.permute.xlu0 %2620
    %2622 = vrot.lane.b32.xlu0 %v2609, 1
    %v2623 = vpop.permute.xlu0 %2622
    %2624 = vrot.lane.b32.xlu0 %v2611, 1
    %v2625 = vpop.permute.xlu0 %2624
    %2626 = vrot.lane.b32.xlu0 %v2617, 1
    %v2627 = vpop.permute.xlu0 %2626
    %v2632 = vsel %vm156, 0.0, %v2621
    %v2633 = vsel %vm156, 0.0, %v2623
    %v2634 = vsel %vm156, 0.0, %v2625
    %v2635 = vsel %vm156, 0.0, %v2627
    %v2636 = vsel %vm161, %v2632, 0.0
    %v2637 = vsel %vm161, %v2633, 0.0
    %v2638 = vsel %vm161, %v2634, 0.0
    %v2639 = vsel %vm161, %v2635, 0.0
    %s2640 = sld [smem:[#allocation9 + $0x9]]
    %v2641 = vstv %s2640
    %v2642 = vmul.f32 %v2641, %v2636
    %v2643 = vmul.f32 %v2641, %v2637
    %v2644 = vmul.f32 %v2641, %v2638
    %v2645 = vmul.f32 %v2641, %v2639
    %v2646 = vadd.f32 %v2533, %v2642
    %v2647 = vadd.f32 %v2534, %v2643
    %v2648 = vadd.f32 %v2535, %v2644
    %v2649 = vadd.f32 %v2536, %v2645
    %s2650 = sld [smem:[#allocation9 + $0x24]]
    %v2651 = vstv %s2650
    %v2652 = vmul.f32 %v2651, %v2636
    %v2653 = vmul.f32 %v2651, %v2637
    %v2654 = vmul.f32 %v2651, %v2638
    %v2655 = vmul.f32 %v2651, %v2639
    %v2656 = vadd.f32 %v2566, %v2652
    %v2657 = vadd.f32 %v2567, %v2653
    %v2658 = vadd.f32 %v2568, %v2654
    %v2659 = vadd.f32 %v2569, %v2655
    %s2660 = sld [smem:[#allocation9 + $0x3f]]
    %v2661 = vstv %s2660
    %v2662 = vmul.f32 %v2661, %v2636
    %v2663 = vmul.f32 %v2661, %v2637
    %v2664 = vmul.f32 %v2661, %v2638
    %v2665 = vmul.f32 %v2661, %v2639
    %v2666 = vadd.f32 %v2599, %v2662
    %v2667 = vadd.f32 %v2600, %v2663
    %v2668 = vadd.f32 %v2601, %v2664
    %v2669 = vadd.f32 %v2602, %v2665
    %s2670 = sld [smem:[#allocation9 + $0xa]]
    %v2671 = vstv %s2670
    %v2672 = vmul.f32 %v2671, %v2636
    %v2673 = vmul.f32 %v2671, %v2637
    %v2674 = vmul.f32 %v2671, %v2638
    %v2675 = vmul.f32 %v2671, %v2639
    %2680 = vrot.lane.b32.xlu0 %v2672, 127
    %v2681 = vpop.permute.xlu0 %2680
    %2682 = vrot.lane.b32.xlu0 %v2673, 127
    %v2683 = vpop.permute.xlu0 %2682
    %2684 = vrot.lane.b32.xlu0 %v2674, 127
    %v2685 = vpop.permute.xlu0 %2684
    %2686 = vrot.lane.b32.xlu0 %v2675, 127
    %v2687 = vpop.permute.xlu0 %2686
    %v2692 = vadd.f32 %v2646, %v2681
    %v2693 = vadd.f32 %v2647, %v2683
    %v2694 = vadd.f32 %v2648, %v2685
    %v2695 = vadd.f32 %v2649, %v2687
    %s2696 = sld [smem:[#allocation9 + $0x25]]
    %v2697 = vstv %s2696
    %v2698 = vmul.f32 %v2697, %v2636
    %v2699 = vmul.f32 %v2697, %v2637
    %v2700 = vmul.f32 %v2697, %v2638
    %v2701 = vmul.f32 %v2697, %v2639
    %2706 = vrot.lane.b32.xlu0 %v2698, 127
    %v2707 = vpop.permute.xlu0 %2706
    %2708 = vrot.lane.b32.xlu0 %v2699, 127
    %v2709 = vpop.permute.xlu0 %2708
    %2710 = vrot.lane.b32.xlu0 %v2700, 127
    %v2711 = vpop.permute.xlu0 %2710
    %2712 = vrot.lane.b32.xlu0 %v2701, 127
    %v2713 = vpop.permute.xlu0 %2712
    %v2718 = vadd.f32 %v2656, %v2707
    %v2719 = vadd.f32 %v2657, %v2709
    %v2720 = vadd.f32 %v2658, %v2711
    %v2721 = vadd.f32 %v2659, %v2713
    %s2722 = sld [smem:[#allocation9 + $0x40]]
    %v2723 = vstv %s2722
    %v2724 = vmul.f32 %v2723, %v2636
    %v2725 = vmul.f32 %v2723, %v2637
    %v2726 = vmul.f32 %v2723, %v2638
    %v2727 = vmul.f32 %v2723, %v2639
    %2732 = vrot.lane.b32.xlu0 %v2724, 127
    %v2733 = vpop.permute.xlu0 %2732
    %2734 = vrot.lane.b32.xlu0 %v2725, 127
    %v2735 = vpop.permute.xlu0 %2734
    %2736 = vrot.lane.b32.xlu0 %v2726, 127
    %v2737 = vpop.permute.xlu0 %2736
    %2738 = vrot.lane.b32.xlu0 %v2727, 127
    %v2739 = vpop.permute.xlu0 %2738
    %v2744 = vadd.f32 %v2666, %v2733
    %v2745 = vadd.f32 %v2667, %v2735
    %v2746 = vadd.f32 %v2668, %v2737
    %v2747 = vadd.f32 %v2669, %v2739
    %s2748 = sld [smem:[#allocation9 + $0xb]]
    %v2749 = vstv %s2748
    %v2750 = vmul.f32 %v2749, %v2636
    %v2751 = vmul.f32 %v2749, %v2637
    %v2752 = vmul.f32 %v2749, %v2638
    %v2753 = vmul.f32 %v2749, %v2639
    %2758 = vrot.lane.b32.xlu0 %v2750, 126
    %v2759 = vpop.permute.xlu0 %2758
    %2760 = vrot.lane.b32.xlu0 %v2751, 126
    %v2761 = vpop.permute.xlu0 %2760
    %2762 = vrot.lane.b32.xlu0 %v2752, 126
    %v2763 = vpop.permute.xlu0 %2762
    %2764 = vrot.lane.b32.xlu0 %v2753, 126
    %v2765 = vpop.permute.xlu0 %2764
    %v2770 = vadd.f32 %v2692, %v2759
    %v2771 = vadd.f32 %v2693, %v2761
    %v2772 = vadd.f32 %v2694, %v2763
    %v2773 = vadd.f32 %v2695, %v2765
    %s2774 = sld [smem:[#allocation9 + $0x26]]
    %v2775 = vstv %s2774
    %v2776 = vmul.f32 %v2775, %v2636
    %v2777 = vmul.f32 %v2775, %v2637
    %v2778 = vmul.f32 %v2775, %v2638
    %v2779 = vmul.f32 %v2775, %v2639
    %2784 = vrot.lane.b32.xlu0 %v2776, 126
    %v2785 = vpop.permute.xlu0 %2784
    %2786 = vrot.lane.b32.xlu0 %v2777, 126
    %v2787 = vpop.permute.xlu0 %2786
    %2788 = vrot.lane.b32.xlu0 %v2778, 126
    %v2789 = vpop.permute.xlu0 %2788
    %2790 = vrot.lane.b32.xlu0 %v2779, 126
    %v2791 = vpop.permute.xlu0 %2790
    %v2796 = vadd.f32 %v2718, %v2785
    %v2797 = vadd.f32 %v2719, %v2787
    %v2798 = vadd.f32 %v2720, %v2789
    %v2799 = vadd.f32 %v2721, %v2791
    %s2800 = sld [smem:[#allocation9 + $0x41]]
    %v2801 = vstv %s2800
    %v2802 = vmul.f32 %v2801, %v2636
    %v2803 = vmul.f32 %v2801, %v2637
    %v2804 = vmul.f32 %v2801, %v2638
    %v2805 = vmul.f32 %v2801, %v2639
    %2810 = vrot.lane.b32.xlu0 %v2802, 126
    %v2811 = vpop.permute.xlu0 %2810
    %2812 = vrot.lane.b32.xlu0 %v2803, 126
    %v2813 = vpop.permute.xlu0 %2812
    %2814 = vrot.lane.b32.xlu0 %v2804, 126
    %v2815 = vpop.permute.xlu0 %2814
    %2816 = vrot.lane.b32.xlu0 %v2805, 126
    %v2817 = vpop.permute.xlu0 %2816
    %v2822 = vadd.f32 %v2744, %v2811
    %v2823 = vadd.f32 %v2745, %v2813
    %v2824 = vadd.f32 %v2746, %v2815
    %v2825 = vadd.f32 %v2747, %v2817
    %s2826 = sld [smem:[#allocation9 + $0xc]]
    %v2827 = vstv %s2826
    %v2828 = vmul.f32 %v2827, %v2636
    %v2829 = vmul.f32 %v2827, %v2637
    %v2830 = vmul.f32 %v2827, %v2638
    %v2831 = vmul.f32 %v2827, %v2639
    %v2836 = vrot.slane %v2828, 1
    %v2837 = vrot.slane %v2829, 1
    %v2838 = vsel %vm362, %v2836, %v2837
    %v2839 = vrot.slane %v2830, 1
    %v2840 = vsel %vm362, %v2837, %v2839
    %v2841 = vrot.slane %v2831, 1
    %v2842 = vsel %vm362, %v2839, %v2841
    %v2847 = vadd.f32 %v2770, %v2838
    %v2848 = vadd.f32 %v2771, %v2840
    %v2849 = vadd.f32 %v2772, %v2842
    %v2850 = vadd.f32 %v2773, %v2841
    %s2851 = sld [smem:[#allocation9 + $0x27]]
    %v2852 = vstv %s2851
    %v2853 = vmul.f32 %v2852, %v2636
    %v2854 = vmul.f32 %v2852, %v2637
    %v2855 = vmul.f32 %v2852, %v2638
    %v2856 = vmul.f32 %v2852, %v2639
    %v2861 = vrot.slane %v2853, 1
    %v2862 = vrot.slane %v2854, 1
    %v2863 = vsel %vm362, %v2861, %v2862
    %v2864 = vrot.slane %v2855, 1
    %v2865 = vsel %vm362, %v2862, %v2864
    %v2866 = vrot.slane %v2856, 1
    %v2867 = vsel %vm362, %v2864, %v2866
    %v2872 = vadd.f32 %v2796, %v2863
    %v2873 = vadd.f32 %v2797, %v2865
    %v2874 = vadd.f32 %v2798, %v2867
    %v2875 = vadd.f32 %v2799, %v2866
    %s2876 = sld [smem:[#allocation9 + $0x42]]
    %v2877 = vstv %s2876
    %v2878 = vmul.f32 %v2877, %v2636
    %v2879 = vmul.f32 %v2877, %v2637
    %v2880 = vmul.f32 %v2877, %v2638
    %v2881 = vmul.f32 %v2877, %v2639
    %v2886 = vrot.slane %v2878, 1
    %v2887 = vrot.slane %v2879, 1
    %v2888 = vsel %vm362, %v2886, %v2887
    %v2889 = vrot.slane %v2880, 1
    %v2890 = vsel %vm362, %v2887, %v2889
    %v2891 = vrot.slane %v2881, 1
    %v2892 = vsel %vm362, %v2889, %v2891
    %v2897 = vadd.f32 %v2822, %v2888
    %v2898 = vadd.f32 %v2823, %v2890
    %v2899 = vadd.f32 %v2824, %v2892
    %v2900 = vadd.f32 %v2825, %v2891
    %s2901 = sld [smem:[#allocation9 + $0xd]]
    %v2902 = vstv %s2901
    %v2903 = vmul.f32 %v2902, %v2636
    %v2904 = vmul.f32 %v2902, %v2637
    %v2905 = vmul.f32 %v2902, %v2638
    %v2906 = vmul.f32 %v2902, %v2639
    %v2911 = vrot.slane %v2903, 1
    %v2912 = vrot.slane %v2904, 1
    %v2913 = vsel %vm362, %v2911, %v2912
    %v2914 = vrot.slane %v2905, 1
    %v2915 = vsel %vm362, %v2912, %v2914
    %v2916 = vrot.slane %v2906, 1
    %v2917 = vsel %vm362, %v2914, %v2916
    %2918 = vrot.lane.b32.xlu0 %v2913, 127
    %v2919 = vpop.permute.xlu0 %2918
    %2920 = vrot.lane.b32.xlu0 %v2915, 127
    %v2921 = vpop.permute.xlu0 %2920
    %2922 = vrot.lane.b32.xlu0 %v2917, 127
    %v2923 = vpop.permute.xlu0 %2922
    %2924 = vrot.lane.b32.xlu0 %v2916, 127
    %v2925 = vpop.permute.xlu0 %2924
    %v2930 = vadd.f32 %v2847, %v2919
    %v2931 = vadd.f32 %v2848, %v2921
    %v2932 = vadd.f32 %v2849, %v2923
    %v2933 = vadd.f32 %v2850, %v2925
    %s2934 = sld [smem:[#allocation9 + $0x28]]
    %v2935 = vstv %s2934
    %v2936 = vmul.f32 %v2935, %v2636
    %v2937 = vmul.f32 %v2935, %v2637
    %v2938 = vmul.f32 %v2935, %v2638
    %v2939 = vmul.f32 %v2935, %v2639
    %v2944 = vrot.slane %v2936, 1
    %v2945 = vrot.slane %v2937, 1
    %v2946 = vsel %vm362, %v2944, %v2945
    %v2947 = vrot.slane %v2938, 1
    %v2948 = vsel %vm362, %v2945, %v2947
    %v2949 = vrot.slane %v2939, 1
    %v2950 = vsel %vm362, %v2947, %v2949
    %2951 = vrot.lane.b32.xlu0 %v2946, 127
    %v2952 = vpop.permute.xlu0 %2951
    %2953 = vrot.lane.b32.xlu0 %v2948, 127
    %v2954 = vpop.permute.xlu0 %2953
    %2955 = vrot.lane.b32.xlu0 %v2950, 127
    %v2956 = vpop.permute.xlu0 %2955
    %2957 = vrot.lane.b32.xlu0 %v2949, 127
    %v2958 = vpop.permute.xlu0 %2957
    %v2963 = vadd.f32 %v2872, %v2952
    %v2964 = vadd.f32 %v2873, %v2954
    %v2965 = vadd.f32 %v2874, %v2956
    %v2966 = vadd.f32 %v2875, %v2958
    %s2967 = sld [smem:[#allocation9 + $0x43]]
    %v2968 = vstv %s2967
    %v2969 = vmul.f32 %v2968, %v2636
    %v2970 = vmul.f32 %v2968, %v2637
    %v2971 = vmul.f32 %v2968, %v2638
    %v2972 = vmul.f32 %v2968, %v2639
    %v2977 = vrot.slane %v2969, 1
    %v2978 = vrot.slane %v2970, 1
    %v2979 = vsel %vm362, %v2977, %v2978
    %v2980 = vrot.slane %v2971, 1
    %v2981 = vsel %vm362, %v2978, %v2980
    %v2982 = vrot.slane %v2972, 1
    %v2983 = vsel %vm362, %v2980, %v2982
    %2984 = vrot.lane.b32.xlu0 %v2979, 127
    %v2985 = vpop.permute.xlu0 %2984
    %2986 = vrot.lane.b32.xlu0 %v2981, 127
    %v2987 = vpop.permute.xlu0 %2986
    %2988 = vrot.lane.b32.xlu0 %v2983, 127
    %v2989 = vpop.permute.xlu0 %2988
    %2990 = vrot.lane.b32.xlu0 %v2982, 127
    %v2991 = vpop.permute.xlu0 %2990
    %v2996 = vadd.f32 %v2897, %v2985
    %v2997 = vadd.f32 %v2898, %v2987
    %v2998 = vadd.f32 %v2899, %v2989
    %v2999 = vadd.f32 %v2900, %v2991
    %s3000 = sld [smem:[#allocation9 + $0xe]]
    %v3001 = vstv %s3000
    %v3002 = vmul.f32 %v3001, %v2636
    %v3003 = vmul.f32 %v3001, %v2637
    %v3004 = vmul.f32 %v3001, %v2638
    %v3005 = vmul.f32 %v3001, %v2639
    %v3010 = vrot.slane %v3002, 1
    %v3011 = vrot.slane %v3003, 1
    %v3012 = vsel %vm362, %v3010, %v3011
    %v3013 = vrot.slane %v3004, 1
    %v3014 = vsel %vm362, %v3011, %v3013
    %v3015 = vrot.slane %v3005, 1
    %v3016 = vsel %vm362, %v3013, %v3015
    %3017 = vrot.lane.b32.xlu0 %v3012, 126
    %v3018 = vpop.permute.xlu0 %3017
    %3019 = vrot.lane.b32.xlu0 %v3014, 126
    %v3020 = vpop.permute.xlu0 %3019
    %3021 = vrot.lane.b32.xlu0 %v3016, 126
    %v3022 = vpop.permute.xlu0 %3021
    %3023 = vrot.lane.b32.xlu0 %v3015, 126
    %v3024 = vpop.permute.xlu0 %3023
    %v3029 = vadd.f32 %v2930, %v3018
    %v3030 = vadd.f32 %v2931, %v3020
    %v3031 = vadd.f32 %v2932, %v3022
    %v3032 = vadd.f32 %v2933, %v3024
    %s3033 = sld [smem:[#allocation9 + $0x29]]
    %v3034 = vstv %s3033
    %v3035 = vmul.f32 %v3034, %v2636
    %v3036 = vmul.f32 %v3034, %v2637
    %v3037 = vmul.f32 %v3034, %v2638
    %v3038 = vmul.f32 %v3034, %v2639
    %v3043 = vrot.slane %v3035, 1
    %v3044 = vrot.slane %v3036, 1
    %v3045 = vsel %vm362, %v3043, %v3044
    %v3046 = vrot.slane %v3037, 1
    %v3047 = vsel %vm362, %v3044, %v3046
    %v3048 = vrot.slane %v3038, 1
    %v3049 = vsel %vm362, %v3046, %v3048
    %3050 = vrot.lane.b32.xlu0 %v3045, 126
    %v3051 = vpop.permute.xlu0 %3050
    %3052 = vrot.lane.b32.xlu0 %v3047, 126
    %v3053 = vpop.permute.xlu0 %3052
    %3054 = vrot.lane.b32.xlu0 %v3049, 126
    %v3055 = vpop.permute.xlu0 %3054
    %3056 = vrot.lane.b32.xlu0 %v3048, 126
    %v3057 = vpop.permute.xlu0 %3056
    %v3062 = vadd.f32 %v2963, %v3051
    %v3063 = vadd.f32 %v2964, %v3053
    %v3064 = vadd.f32 %v2965, %v3055
    %v3065 = vadd.f32 %v2966, %v3057
    %s3066 = sld [smem:[#allocation9 + $0x44]]
    %v3067 = vstv %s3066
    %v3068 = vmul.f32 %v3067, %v2636
    %v3069 = vmul.f32 %v3067, %v2637
    %v3070 = vmul.f32 %v3067, %v2638
    %v3071 = vmul.f32 %v3067, %v2639
    %v3076 = vrot.slane %v3068, 1
    %v3077 = vrot.slane %v3069, 1
    %v3078 = vsel %vm362, %v3076, %v3077
    %v3079 = vrot.slane %v3070, 1
    %v3080 = vsel %vm362, %v3077, %v3079
    %v3081 = vrot.slane %v3071, 1
    %v3082 = vsel %vm362, %v3079, %v3081
    %3083 = vrot.lane.b32.xlu0 %v3078, 126
    %v3084 = vpop.permute.xlu0 %3083
    %3085 = vrot.lane.b32.xlu0 %v3080, 126
    %v3086 = vpop.permute.xlu0 %3085
    %3087 = vrot.lane.b32.xlu0 %v3082, 126
    %v3088 = vpop.permute.xlu0 %3087
    %3089 = vrot.lane.b32.xlu0 %v3081, 126
    %v3090 = vpop.permute.xlu0 %3089
    %v3095 = vadd.f32 %v2996, %v3084
    %v3096 = vadd.f32 %v2997, %v3086
    %v3097 = vadd.f32 %v2998, %v3088
    %v3098 = vadd.f32 %v2999, %v3090
    %s3099 = sld [smem:[#allocation9 + $0xf]]
    %v3100 = vstv %s3099
    %v3101 = vmul.f32 %v3100, %v2636
    %v3102 = vmul.f32 %v3100, %v2637
    %v3103 = vmul.f32 %v3100, %v2638
    %v3104 = vmul.f32 %v3100, %v2639
    %v3109 = vrot.slane %v3101, 2
    %v3110 = vrot.slane %v3102, 2
    %v3111 = vsel %vm636, %v3109, %v3110
    %v3112 = vrot.slane %v3103, 2
    %v3113 = vsel %vm636, %v3110, %v3112
    %v3114 = vrot.slane %v3104, 2
    %v3115 = vsel %vm636, %v3112, %v3114
    %v3120 = vadd.f32 %v3029, %v3111
    %v3121 = vadd.f32 %v3030, %v3113
    %v3122 = vadd.f32 %v3031, %v3115
    %v3123 = vadd.f32 %v3032, %v3114
    %s3124 = sld [smem:[#allocation9 + $0x2a]]
    %v3125 = vstv %s3124
    %v3126 = vmul.f32 %v3125, %v2636
    %v3127 = vmul.f32 %v3125, %v2637
    %v3128 = vmul.f32 %v3125, %v2638
    %v3129 = vmul.f32 %v3125, %v2639
    %v3134 = vrot.slane %v3126, 2
    %v3135 = vrot.slane %v3127, 2
    %v3136 = vsel %vm636, %v3134, %v3135
    %v3137 = vrot.slane %v3128, 2
    %v3138 = vsel %vm636, %v3135, %v3137
    %v3139 = vrot.slane %v3129, 2
    %v3140 = vsel %vm636, %v3137, %v3139
    %v3145 = vadd.f32 %v3062, %v3136
    %v3146 = vadd.f32 %v3063, %v3138
    %v3147 = vadd.f32 %v3064, %v3140
    %v3148 = vadd.f32 %v3065, %v3139
    %s3149 = sld [smem:[#allocation9 + $0x45]]
    %v3150 = vstv %s3149
    %v3151 = vmul.f32 %v3150, %v2636
    %v3152 = vmul.f32 %v3150, %v2637
    %v3153 = vmul.f32 %v3150, %v2638
    %v3154 = vmul.f32 %v3150, %v2639
    %v3159 = vrot.slane %v3151, 2
    %v3160 = vrot.slane %v3152, 2
    %v3161 = vsel %vm636, %v3159, %v3160
    %v3162 = vrot.slane %v3153, 2
    %v3163 = vsel %vm636, %v3160, %v3162
    %v3164 = vrot.slane %v3154, 2
    %v3165 = vsel %vm636, %v3162, %v3164
    %v3170 = vadd.f32 %v3095, %v3161
    %v3171 = vadd.f32 %v3096, %v3163
    %v3172 = vadd.f32 %v3097, %v3165
    %v3173 = vadd.f32 %v3098, %v3164
    %s3174 = sld [smem:[#allocation9 + $0x10]]
    %v3175 = vstv %s3174
    %v3176 = vmul.f32 %v3175, %v2636
    %v3177 = vmul.f32 %v3175, %v2637
    %v3178 = vmul.f32 %v3175, %v2638
    %v3179 = vmul.f32 %v3175, %v2639
    %v3184 = vrot.slane %v3176, 2
    %v3185 = vrot.slane %v3177, 2
    %v3186 = vsel %vm636, %v3184, %v3185
    %v3187 = vrot.slane %v3178, 2
    %v3188 = vsel %vm636, %v3185, %v3187
    %v3189 = vrot.slane %v3179, 2
    %v3190 = vsel %vm636, %v3187, %v3189
    %3191 = vrot.lane.b32.xlu0 %v3186, 127
    %v3192 = vpop.permute.xlu0 %3191
    %3193 = vrot.lane.b32.xlu0 %v3188, 127
    %v3194 = vpop.permute.xlu0 %3193
    %3195 = vrot.lane.b32.xlu0 %v3190, 127
    %v3196 = vpop.permute.xlu0 %3195
    %3197 = vrot.lane.b32.xlu0 %v3189, 127
    %v3198 = vpop.permute.xlu0 %3197
    %v3203 = vadd.f32 %v3120, %v3192
    %v3204 = vadd.f32 %v3121, %v3194
    %v3205 = vadd.f32 %v3122, %v3196
    %v3206 = vadd.f32 %v3123, %v3198
    %s3207 = sld [smem:[#allocation9 + $0x2b]]
    %v3208 = vstv %s3207
    %v3209 = vmul.f32 %v3208, %v2636
    %v3210 = vmul.f32 %v3208, %v2637
    %v3211 = vmul.f32 %v3208, %v2638
    %v3212 = vmul.f32 %v3208, %v2639
    %v3217 = vrot.slane %v3209, 2
    %v3218 = vrot.slane %v3210, 2
    %v3219 = vsel %vm636, %v3217, %v3218
    %v3220 = vrot.slane %v3211, 2
    %v3221 = vsel %vm636, %v3218, %v3220
    %v3222 = vrot.slane %v3212, 2
    %v3223 = vsel %vm636, %v3220, %v3222
    %3224 = vrot.lane.b32.xlu0 %v3219, 127
    %v3225 = vpop.permute.xlu0 %3224
    %3226 = vrot.lane.b32.xlu0 %v3221, 127
    %v3227 = vpop.permute.xlu0 %3226
    %3228 = vrot.lane.b32.xlu0 %v3223, 127
    %v3229 = vpop.permute.xlu0 %3228
    %3230 = vrot.lane.b32.xlu0 %v3222, 127
    %v3231 = vpop.permute.xlu0 %3230
    %v3236 = vadd.f32 %v3145, %v3225
    %v3237 = vadd.f32 %v3146, %v3227
    %v3238 = vadd.f32 %v3147, %v3229
    %v3239 = vadd.f32 %v3148, %v3231
    %s3240 = sld [smem:[#allocation9 + $0x46]]
    %v3241 = vstv %s3240
    %v3242 = vmul.f32 %v3241, %v2636
    %v3243 = vmul.f32 %v3241, %v2637
    %v3244 = vmul.f32 %v3241, %v2638
    %v3245 = vmul.f32 %v3241, %v2639
    %v3250 = vrot.slane %v3242, 2
    %v3251 = vrot.slane %v3243, 2
    %v3252 = vsel %vm636, %v3250, %v3251
    %v3253 = vrot.slane %v3244, 2
    %v3254 = vsel %vm636, %v3251, %v3253
    %v3255 = vrot.slane %v3245, 2
    %v3256 = vsel %vm636, %v3253, %v3255
    %3257 = vrot.lane.b32.xlu0 %v3252, 127
    %v3258 = vpop.permute.xlu0 %3257
    %3259 = vrot.lane.b32.xlu0 %v3254, 127
    %v3260 = vpop.permute.xlu0 %3259
    %3261 = vrot.lane.b32.xlu0 %v3256, 127
    %v3262 = vpop.permute.xlu0 %3261
    %3263 = vrot.lane.b32.xlu0 %v3255, 127
    %v3264 = vpop.permute.xlu0 %3263
    %v3269 = vadd.f32 %v3170, %v3258
    %v3270 = vadd.f32 %v3171, %v3260
    %v3271 = vadd.f32 %v3172, %v3262
    %v3272 = vadd.f32 %v3173, %v3264
    %s3273 = sld [smem:[#allocation9 + $0x11]]
    %v3274 = vstv %s3273
    %v3275 = vmul.f32 %v3274, %v2636
    %v3276 = vmul.f32 %v3274, %v2637
    %v3277 = vmul.f32 %v3274, %v2638
    %v3278 = vmul.f32 %v3274, %v2639
    %v3283 = vrot.slane %v3275, 2
    %v3284 = vrot.slane %v3276, 2
    %v3285 = vsel %vm636, %v3283, %v3284
    %v3286 = vrot.slane %v3277, 2
    %v3287 = vsel %vm636, %v3284, %v3286
    %v3288 = vrot.slane %v3278, 2
    %v3289 = vsel %vm636, %v3286, %v3288
    %3290 = vrot.lane.b32.xlu0 %v3285, 126
    %v3291 = vpop.permute.xlu0 %3290
    %3292 = vrot.lane.b32.xlu0 %v3287, 126
    %v3293 = vpop.permute.xlu0 %3292
    %3294 = vrot.lane.b32.xlu0 %v3289, 126
    %v3295 = vpop.permute.xlu0 %3294
    %3296 = vrot.lane.b32.xlu0 %v3288, 126
    %v3297 = vpop.permute.xlu0 %3296
    %v3302 = vadd.f32 %v3203, %v3291
    %v3303 = vadd.f32 %v3204, %v3293
    %v3304 = vadd.f32 %v3205, %v3295
    %v3305 = vadd.f32 %v3206, %v3297
    %s3306 = sld [smem:[#allocation9 + $0x2c]]
    %v3307 = vstv %s3306
    %v3308 = vmul.f32 %v3307, %v2636
    %v3309 = vmul.f32 %v3307, %v2637
    %v3310 = vmul.f32 %v3307, %v2638
    %v3311 = vmul.f32 %v3307, %v2639
    %v3316 = vrot.slane %v3308, 2
    %v3317 = vrot.slane %v3309, 2
    %v3318 = vsel %vm636, %v3316, %v3317
    %v3319 = vrot.slane %v3310, 2
    %v3320 = vsel %vm636, %v3317, %v3319
    %v3321 = vrot.slane %v3311, 2
    %v3322 = vsel %vm636, %v3319, %v3321
    %3323 = vrot.lane.b32.xlu0 %v3318, 126
    %v3324 = vpop.permute.xlu0 %3323
    %3325 = vrot.lane.b32.xlu0 %v3320, 126
    %v3326 = vpop.permute.xlu0 %3325
    %3327 = vrot.lane.b32.xlu0 %v3322, 126
    %v3328 = vpop.permute.xlu0 %3327
    %3329 = vrot.lane.b32.xlu0 %v3321, 126
    %v3330 = vpop.permute.xlu0 %3329
    %v3335 = vadd.f32 %v3236, %v3324
    %v3336 = vadd.f32 %v3237, %v3326
    %v3337 = vadd.f32 %v3238, %v3328
    %v3338 = vadd.f32 %v3239, %v3330
    %s3339 = sld [smem:[#allocation9 + $0x47]]
    %v3340 = vstv %s3339
    %v3341 = vmul.f32 %v3340, %v2636
    %v3342 = vmul.f32 %v3340, %v2637
    %v3343 = vmul.f32 %v3340, %v2638
    %v3344 = vmul.f32 %v3340, %v2639
    %v3349 = vrot.slane %v3341, 2
    %v3350 = vrot.slane %v3342, 2
    %v3351 = vsel %vm636, %v3349, %v3350
    %v3352 = vrot.slane %v3343, 2
    %v3353 = vsel %vm636, %v3350, %v3352
    %v3354 = vrot.slane %v3344, 2
    %v3355 = vsel %vm636, %v3352, %v3354
    %3356 = vrot.lane.b32.xlu0 %v3351, 126
    %v3357 = vpop.permute.xlu0 %3356
    %3358 = vrot.lane.b32.xlu0 %v3353, 126
    %v3359 = vpop.permute.xlu0 %3358
    %3360 = vrot.lane.b32.xlu0 %v3355, 126
    %v3361 = vpop.permute.xlu0 %3360
    %3362 = vrot.lane.b32.xlu0 %v3354, 126
    %v3363 = vpop.permute.xlu0 %3362
    %v3368 = vadd.f32 %v3269, %v3357
    %v3369 = vadd.f32 %v3270, %v3359
    %v3370 = vadd.f32 %v3271, %v3361
    %v3371 = vadd.f32 %v3272, %v3363
    %v3376 = vrot.slane %v1785, 7
    %v3377 = vrot.slane %v1786, 7
    %v3378 = vsel %vm129, %v3376, %v3377
    %v3379 = vrot.slane %v1787, 7
    %v3380 = vsel %vm129, %v3377, %v3379
    %v3381 = vrot.slane %v1788, 7
    %v3382 = vsel %vm129, %v3379, %v3381
    %v3385 = vsel %vm129, 0.0, %v3376
    %v3386 = vsel %vm140, %v3382, 0.0
    %3389 = vrot.lane.b32.xlu0 %v3385, 1
    %v3390 = vpop.permute.xlu0 %3389
    %3391 = vrot.lane.b32.xlu0 %v3378, 1
    %v3392 = vpop.permute.xlu0 %3391
    %3393 = vrot.lane.b32.xlu0 %v3380, 1
    %v3394 = vpop.permute.xlu0 %3393
    %3395 = vrot.lane.b32.xlu0 %v3386, 1
    %v3396 = vpop.permute.xlu0 %3395
    %v3401 = vsel %vm156, 0.0, %v3390
    %v3402 = vsel %vm156, 0.0, %v3392
    %v3403 = vsel %vm156, 0.0, %v3394
    %v3404 = vsel %vm156, 0.0, %v3396
    %v3405 = vsel %vm161, %v3401, 0.0
    %v3406 = vsel %vm161, %v3402, 0.0
    %v3407 = vsel %vm161, %v3403, 0.0
    %v3408 = vsel %vm161, %v3404, 0.0
    %s3409 = sld [smem:[#allocation9 + $0x12]]
    %v3410 = vstv %s3409
    %v3411 = vmul.f32 %v3410, %v3405
    %v3412 = vmul.f32 %v3410, %v3406
    %v3413 = vmul.f32 %v3410, %v3407
    %v3414 = vmul.f32 %v3410, %v3408
    %v3415 = vadd.f32 %v3302, %v3411
    %v3416 = vadd.f32 %v3303, %v3412
    %v3417 = vadd.f32 %v3304, %v3413
    %v3418 = vadd.f32 %v3305, %v3414
    %s3419 = sld [smem:[#allocation9 + $0x2d]]
    %v3420 = vstv %s3419
    %v3421 = vmul.f32 %v3420, %v3405
    %v3422 = vmul.f32 %v3420, %v3406
    %v3423 = vmul.f32 %v3420, %v3407
    %v3424 = vmul.f32 %v3420, %v3408
    %v3425 = vadd.f32 %v3335, %v3421
    %v3426 = vadd.f32 %v3336, %v3422
    %v3427 = vadd.f32 %v3337, %v3423
    %v3428 = vadd.f32 %v3338, %v3424
    %s3429 = sld [smem:[#allocation9 + $0x48]]
    %v3430 = vstv %s3429
    %v3431 = vmul.f32 %v3430, %v3405
    %v3432 = vmul.f32 %v3430, %v3406
    %v3433 = vmul.f32 %v3430, %v3407
    %v3434 = vmul.f32 %v3430, %v3408
    %v3435 = vadd.f32 %v3368, %v3431
    %v3436 = vadd.f32 %v3369, %v3432
    %v3437 = vadd.f32 %v3370, %v3433
    %v3438 = vadd.f32 %v3371, %v3434
    %s3439 = sld [smem:[#allocation9 + $0x13]]
    %v3440 = vstv %s3439
    %v3441 = vmul.f32 %v3440, %v3405
    %v3442 = vmul.f32 %v3440, %v3406
    %v3443 = vmul.f32 %v3440, %v3407
    %v3444 = vmul.f32 %v3440, %v3408
    %3449 = vrot.lane.b32.xlu0 %v3441, 127
    %v3450 = vpop.permute.xlu0 %3449
    %3451 = vrot.lane.b32.xlu0 %v3442, 127
    %v3452 = vpop.permute.xlu0 %3451
    %3453 = vrot.lane.b32.xlu0 %v3443, 127
    %v3454 = vpop.permute.xlu0 %3453
    %3455 = vrot.lane.b32.xlu0 %v3444, 127
    %v3456 = vpop.permute.xlu0 %3455
    %v3461 = vadd.f32 %v3415, %v3450
    %v3462 = vadd.f32 %v3416, %v3452
    %v3463 = vadd.f32 %v3417, %v3454
    %v3464 = vadd.f32 %v3418, %v3456
    %s3465 = sld [smem:[#allocation9 + $0x2e]]
    %v3466 = vstv %s3465
    %v3467 = vmul.f32 %v3466, %v3405
    %v3468 = vmul.f32 %v3466, %v3406
    %v3469 = vmul.f32 %v3466, %v3407
    %v3470 = vmul.f32 %v3466, %v3408
    %3475 = vrot.lane.b32.xlu0 %v3467, 127
    %v3476 = vpop.permute.xlu0 %3475
    %3477 = vrot.lane.b32.xlu0 %v3468, 127
    %v3478 = vpop.permute.xlu0 %3477
    %3479 = vrot.lane.b32.xlu0 %v3469, 127
    %v3480 = vpop.permute.xlu0 %3479
    %3481 = vrot.lane.b32.xlu0 %v3470, 127
    %v3482 = vpop.permute.xlu0 %3481
    %v3487 = vadd.f32 %v3425, %v3476
    %v3488 = vadd.f32 %v3426, %v3478
    %v3489 = vadd.f32 %v3427, %v3480
    %v3490 = vadd.f32 %v3428, %v3482
    %s3491 = sld [smem:[#allocation9 + $0x49]]
    %v3492 = vstv %s3491
    %v3493 = vmul.f32 %v3492, %v3405
    %v3494 = vmul.f32 %v3492, %v3406
    %v3495 = vmul.f32 %v3492, %v3407
    %v3496 = vmul.f32 %v3492, %v3408
    %3501 = vrot.lane.b32.xlu0 %v3493, 127
    %v3502 = vpop.permute.xlu0 %3501
    %3503 = vrot.lane.b32.xlu0 %v3494, 127
    %v3504 = vpop.permute.xlu0 %3503
    %3505 = vrot.lane.b32.xlu0 %v3495, 127
    %v3506 = vpop.permute.xlu0 %3505
    %3507 = vrot.lane.b32.xlu0 %v3496, 127
    %v3508 = vpop.permute.xlu0 %3507
    %v3513 = vadd.f32 %v3435, %v3502
    %v3514 = vadd.f32 %v3436, %v3504
    %v3515 = vadd.f32 %v3437, %v3506
    %v3516 = vadd.f32 %v3438, %v3508
    %s3517 = sld [smem:[#allocation9 + $0x14]]
    %v3518 = vstv %s3517
    %v3519 = vmul.f32 %v3518, %v3405
    %v3520 = vmul.f32 %v3518, %v3406
    %v3521 = vmul.f32 %v3518, %v3407
    %v3522 = vmul.f32 %v3518, %v3408
    %3527 = vrot.lane.b32.xlu0 %v3519, 126
    %v3528 = vpop.permute.xlu0 %3527
    %3529 = vrot.lane.b32.xlu0 %v3520, 126
    %v3530 = vpop.permute.xlu0 %3529
    %3531 = vrot.lane.b32.xlu0 %v3521, 126
    %v3532 = vpop.permute.xlu0 %3531
    %3533 = vrot.lane.b32.xlu0 %v3522, 126
    %v3534 = vpop.permute.xlu0 %3533
    %v3539 = vadd.f32 %v3461, %v3528
    %v3540 = vadd.f32 %v3462, %v3530
    %v3541 = vadd.f32 %v3463, %v3532
    %v3542 = vadd.f32 %v3464, %v3534
    %s3543 = sld [smem:[#allocation9 + $0x2f]]
    %v3544 = vstv %s3543
    %v3545 = vmul.f32 %v3544, %v3405
    %v3546 = vmul.f32 %v3544, %v3406
    %v3547 = vmul.f32 %v3544, %v3407
    %v3548 = vmul.f32 %v3544, %v3408
    %3553 = vrot.lane.b32.xlu0 %v3545, 126
    %v3554 = vpop.permute.xlu0 %3553
    %3555 = vrot.lane.b32.xlu0 %v3546, 126
    %v3556 = vpop.permute.xlu0 %3555
    %3557 = vrot.lane.b32.xlu0 %v3547, 126
    %v3558 = vpop.permute.xlu0 %3557
    %3559 = vrot.lane.b32.xlu0 %v3548, 126
    %v3560 = vpop.permute.xlu0 %3559
    %v3565 = vadd.f32 %v3487, %v3554
    %v3566 = vadd.f32 %v3488, %v3556
    %v3567 = vadd.f32 %v3489, %v3558
    %v3568 = vadd.f32 %v3490, %v3560
    %s3569 = sld [smem:[#allocation9 + $0x4a]]
    %v3570 = vstv %s3569
    %v3571 = vmul.f32 %v3570, %v3405
    %v3572 = vmul.f32 %v3570, %v3406
    %v3573 = vmul.f32 %v3570, %v3407
    %v3574 = vmul.f32 %v3570, %v3408
    %3579 = vrot.lane.b32.xlu0 %v3571, 126
    %v3580 = vpop.permute.xlu0 %3579
    %3581 = vrot.lane.b32.xlu0 %v3572, 126
    %v3582 = vpop.permute.xlu0 %3581
    %3583 = vrot.lane.b32.xlu0 %v3573, 126
    %v3584 = vpop.permute.xlu0 %3583
    %3585 = vrot.lane.b32.xlu0 %v3574, 126
    %v3586 = vpop.permute.xlu0 %3585
    %v3591 = vadd.f32 %v3513, %v3580
    %v3592 = vadd.f32 %v3514, %v3582
    %v3593 = vadd.f32 %v3515, %v3584
    %v3594 = vadd.f32 %v3516, %v3586
    %s3595 = sld [smem:[#allocation9 + $0x15]]
    %v3596 = vstv %s3595
    %v3597 = vmul.f32 %v3596, %v3405
    %v3598 = vmul.f32 %v3596, %v3406
    %v3599 = vmul.f32 %v3596, %v3407
    %v3600 = vmul.f32 %v3596, %v3408
    %v3605 = vrot.slane %v3597, 1
    %v3606 = vrot.slane %v3598, 1
    %v3607 = vsel %vm362, %v3605, %v3606
    %v3608 = vrot.slane %v3599, 1
    %v3609 = vsel %vm362, %v3606, %v3608
    %v3610 = vrot.slane %v3600, 1
    %v3611 = vsel %vm362, %v3608, %v3610
    %v3616 = vadd.f32 %v3539, %v3607
    %v3617 = vadd.f32 %v3540, %v3609
    %v3618 = vadd.f32 %v3541, %v3611
    %v3619 = vadd.f32 %v3542, %v3610
    %s3620 = sld [smem:[#allocation9 + $0x30]]
    %v3621 = vstv %s3620
    %v3622 = vmul.f32 %v3621, %v3405
    %v3623 = vmul.f32 %v3621, %v3406
    %v3624 = vmul.f32 %v3621, %v3407
    %v3625 = vmul.f32 %v3621, %v3408
    %v3630 = vrot.slane %v3622, 1
    %v3631 = vrot.slane %v3623, 1
    %v3632 = vsel %vm362, %v3630, %v3631
    %v3633 = vrot.slane %v3624, 1
    %v3634 = vsel %vm362, %v3631, %v3633
    %v3635 = vrot.slane %v3625, 1
    %v3636 = vsel %vm362, %v3633, %v3635
    %v3641 = vadd.f32 %v3565, %v3632
    %v3642 = vadd.f32 %v3566, %v3634
    %v3643 = vadd.f32 %v3567, %v3636
    %v3644 = vadd.f32 %v3568, %v3635
    %s3645 = sld [smem:[#allocation9 + $0x4b]]
    %v3646 = vstv %s3645
    %v3647 = vmul.f32 %v3646, %v3405
    %v3648 = vmul.f32 %v3646, %v3406
    %v3649 = vmul.f32 %v3646, %v3407
    %v3650 = vmul.f32 %v3646, %v3408
    %v3655 = vrot.slane %v3647, 1
    %v3656 = vrot.slane %v3648, 1
    %v3657 = vsel %vm362, %v3655, %v3656
    %v3658 = vrot.slane %v3649, 1
    %v3659 = vsel %vm362, %v3656, %v3658
    %v3660 = vrot.slane %v3650, 1
    %v3661 = vsel %vm362, %v3658, %v3660
    %v3666 = vadd.f32 %v3591, %v3657
    %v3667 = vadd.f32 %v3592, %v3659
    %v3668 = vadd.f32 %v3593, %v3661
    %v3669 = vadd.f32 %v3594, %v3660
    %s3670 = sld [smem:[#allocation9 + $0x16]]
    %v3671 = vstv %s3670
    %v3672 = vmul.f32 %v3671, %v3405
    %v3673 = vmul.f32 %v3671, %v3406
    %v3674 = vmul.f32 %v3671, %v3407
    %v3675 = vmul.f32 %v3671, %v3408
    %v3680 = vrot.slane %v3672, 1
    %v3681 = vrot.slane %v3673, 1
    %v3682 = vsel %vm362, %v3680, %v3681
    %v3683 = vrot.slane %v3674, 1
    %v3684 = vsel %vm362, %v3681, %v3683
    %v3685 = vrot.slane %v3675, 1
    %v3686 = vsel %vm362, %v3683, %v3685
    %3687 = vrot.lane.b32.xlu0 %v3682, 127
    %v3688 = vpop.permute.xlu0 %3687
    %3689 = vrot.lane.b32.xlu0 %v3684, 127
    %v3690 = vpop.permute.xlu0 %3689
    %3691 = vrot.lane.b32.xlu0 %v3686, 127
    %v3692 = vpop.permute.xlu0 %3691
    %3693 = vrot.lane.b32.xlu0 %v3685, 127
    %v3694 = vpop.permute.xlu0 %3693
    %v3699 = vadd.f32 %v3616, %v3688
    %v3700 = vadd.f32 %v3617, %v3690
    %v3701 = vadd.f32 %v3618, %v3692
    %v3702 = vadd.f32 %v3619, %v3694
    %s3703 = sld [smem:[#allocation9 + $0x31]]
    %v3704 = vstv %s3703
    %v3705 = vmul.f32 %v3704, %v3405
    %v3706 = vmul.f32 %v3704, %v3406
    %v3707 = vmul.f32 %v3704, %v3407
    %v3708 = vmul.f32 %v3704, %v3408
    %v3713 = vrot.slane %v3705, 1
    %v3714 = vrot.slane %v3706, 1
    %v3715 = vsel %vm362, %v3713, %v3714
    %v3716 = vrot.slane %v3707, 1
    %v3717 = vsel %vm362, %v3714, %v3716
    %v3718 = vrot.slane %v3708, 1
    %v3719 = vsel %vm362, %v3716, %v3718
    %3720 = vrot.lane.b32.xlu0 %v3715, 127
    %v3721 = vpop.permute.xlu0 %3720
    %3722 = vrot.lane.b32.xlu0 %v3717, 127
    %v3723 = vpop.permute.xlu0 %3722
    %3724 = vrot.lane.b32.xlu0 %v3719, 127
    %v3725 = vpop.permute.xlu0 %3724
    %3726 = vrot.lane.b32.xlu0 %v3718, 127
    %v3727 = vpop.permute.xlu0 %3726
    %v3732 = vadd.f32 %v3641, %v3721
    %v3733 = vadd.f32 %v3642, %v3723
    %v3734 = vadd.f32 %v3643, %v3725
    %v3735 = vadd.f32 %v3644, %v3727
    %s3736 = sld [smem:[#allocation9 + $0x4c]]
    %v3737 = vstv %s3736
    %v3738 = vmul.f32 %v3737, %v3405
    %v3739 = vmul.f32 %v3737, %v3406
    %v3740 = vmul.f32 %v3737, %v3407
    %v3741 = vmul.f32 %v3737, %v3408
    %v3746 = vrot.slane %v3738, 1
    %v3747 = vrot.slane %v3739, 1
    %v3748 = vsel %vm362, %v3746, %v3747
    %v3749 = vrot.slane %v3740, 1
    %v3750 = vsel %vm362, %v3747, %v3749
    %v3751 = vrot.slane %v3741, 1
    %v3752 = vsel %vm362, %v3749, %v3751
    %3753 = vrot.lane.b32.xlu0 %v3748, 127
    %v3754 = vpop.permute.xlu0 %3753
    %3755 = vrot.lane.b32.xlu0 %v3750, 127
    %v3756 = vpop.permute.xlu0 %3755
    %3757 = vrot.lane.b32.xlu0 %v3752, 127
    %v3758 = vpop.permute.xlu0 %3757
    %3759 = vrot.lane.b32.xlu0 %v3751, 127
    %v3760 = vpop.permute.xlu0 %3759
    %v3765 = vadd.f32 %v3666, %v3754
    %v3766 = vadd.f32 %v3667, %v3756
    %v3767 = vadd.f32 %v3668, %v3758
    %v3768 = vadd.f32 %v3669, %v3760
    %s3769 = sld [smem:[#allocation9 + $0x17]]
    %v3770 = vstv %s3769
    %v3771 = vmul.f32 %v3770, %v3405
    %v3772 = vmul.f32 %v3770, %v3406
    %v3773 = vmul.f32 %v3770, %v3407
    %v3774 = vmul.f32 %v3770, %v3408
    %v3779 = vrot.slane %v3771, 1
    %v3780 = vrot.slane %v3772, 1
    %v3781 = vsel %vm362, %v3779, %v3780
    %v3782 = vrot.slane %v3773, 1
    %v3783 = vsel %vm362, %v3780, %v3782
    %v3784 = vrot.slane %v3774, 1
    %v3785 = vsel %vm362, %v3782, %v3784
    %3786 = vrot.lane.b32.xlu0 %v3781, 126
    %v3787 = vpop.permute.xlu0 %3786
    %3788 = vrot.lane.b32.xlu0 %v3783, 126
    %v3789 = vpop.permute.xlu0 %3788
    %3790 = vrot.lane.b32.xlu0 %v3785, 126
    %v3791 = vpop.permute.xlu0 %3790
    %3792 = vrot.lane.b32.xlu0 %v3784, 126
    %v3793 = vpop.permute.xlu0 %3792
    %v3798 = vadd.f32 %v3699, %v3787
    %v3799 = vadd.f32 %v3700, %v3789
    %v3800 = vadd.f32 %v3701, %v3791
    %v3801 = vadd.f32 %v3702, %v3793
    %s3802 = sld [smem:[#allocation9 + $0x32]]
    %v3803 = vstv %s3802
    %v3804 = vmul.f32 %v3803, %v3405
    %v3805 = vmul.f32 %v3803, %v3406
    %v3806 = vmul.f32 %v3803, %v3407
    %v3807 = vmul.f32 %v3803, %v3408
    %v3812 = vrot.slane %v3804, 1
    %v3813 = vrot.slane %v3805, 1
    %v3814 = vsel %vm362, %v3812, %v3813
    %v3815 = vrot.slane %v3806, 1
    %v3816 = vsel %vm362, %v3813, %v3815
    %v3817 = vrot.slane %v3807, 1
    %v3818 = vsel %vm362, %v3815, %v3817
    %3819 = vrot.lane.b32.xlu0 %v3814, 126
    %v3820 = vpop.permute.xlu0 %3819
    %3821 = vrot.lane.b32.xlu0 %v3816, 126
    %v3822 = vpop.permute.xlu0 %3821
    %3823 = vrot.lane.b32.xlu0 %v3818, 126
    %v3824 = vpop.permute.xlu0 %3823
    %3825 = vrot.lane.b32.xlu0 %v3817, 126
    %v3826 = vpop.permute.xlu0 %3825
    %v3831 = vadd.f32 %v3732, %v3820
    %v3832 = vadd.f32 %v3733, %v3822
    %v3833 = vadd.f32 %v3734, %v3824
    %v3834 = vadd.f32 %v3735, %v3826
    %s3835 = sld [smem:[#allocation9 + $0x4d]]
    %v3836 = vstv %s3835
    %v3837 = vmul.f32 %v3836, %v3405
    %v3838 = vmul.f32 %v3836, %v3406
    %v3839 = vmul.f32 %v3836, %v3407
    %v3840 = vmul.f32 %v3836, %v3408
    %v3845 = vrot.slane %v3837, 1
    %v3846 = vrot.slane %v3838, 1
    %v3847 = vsel %vm362, %v3845, %v3846
    %v3848 = vrot.slane %v3839, 1
    %v3849 = vsel %vm362, %v3846, %v3848
    %v3850 = vrot.slane %v3840, 1
    %v3851 = vsel %vm362, %v3848, %v3850
    %3852 = vrot.lane.b32.xlu0 %v3847, 126
    %v3853 = vpop.permute.xlu0 %3852
    %3854 = vrot.lane.b32.xlu0 %v3849, 126
    %v3855 = vpop.permute.xlu0 %3854
    %3856 = vrot.lane.b32.xlu0 %v3851, 126
    %v3857 = vpop.permute.xlu0 %3856
    %3858 = vrot.lane.b32.xlu0 %v3850, 126
    %v3859 = vpop.permute.xlu0 %3858
    %v3864 = vadd.f32 %v3765, %v3853
    %v3865 = vadd.f32 %v3766, %v3855
    %v3866 = vadd.f32 %v3767, %v3857
    %v3867 = vadd.f32 %v3768, %v3859
    %s3868 = sld [smem:[#allocation9 + $0x18]]
    %v3869 = vstv %s3868
    %v3870 = vmul.f32 %v3869, %v3405
    %v3871 = vmul.f32 %v3869, %v3406
    %v3872 = vmul.f32 %v3869, %v3407
    %v3873 = vmul.f32 %v3869, %v3408
    %v3878 = vrot.slane %v3870, 2
    %v3879 = vrot.slane %v3871, 2
    %v3880 = vsel %vm636, %v3878, %v3879
    %v3881 = vrot.slane %v3872, 2
    %v3882 = vsel %vm636, %v3879, %v3881
    %v3883 = vrot.slane %v3873, 2
    %v3884 = vsel %vm636, %v3881, %v3883
    %v3889 = vadd.f32 %v3798, %v3880
    %v3890 = vadd.f32 %v3799, %v3882
    %v3891 = vadd.f32 %v3800, %v3884
    %v3892 = vadd.f32 %v3801, %v3883
    %s3893 = sld [smem:[#allocation9 + $0x33]]
    %v3894 = vstv %s3893
    %v3895 = vmul.f32 %v3894, %v3405
    %v3896 = vmul.f32 %v3894, %v3406
    %v3897 = vmul.f32 %v3894, %v3407
    %v3898 = vmul.f32 %v3894, %v3408
    %v3903 = vrot.slane %v3895, 2
    %v3904 = vrot.slane %v3896, 2
    %v3905 = vsel %vm636, %v3903, %v3904
    %v3906 = vrot.slane %v3897, 2
    %v3907 = vsel %vm636, %v3904, %v3906
    %v3908 = vrot.slane %v3898, 2
    %v3909 = vsel %vm636, %v3906, %v3908
    %v3914 = vadd.f32 %v3831, %v3905
    %v3915 = vadd.f32 %v3832, %v3907
    %v3916 = vadd.f32 %v3833, %v3909
    %v3917 = vadd.f32 %v3834, %v3908
    %s3918 = sld [smem:[#allocation9 + $0x4e]]
    %v3919 = vstv %s3918
    %v3920 = vmul.f32 %v3919, %v3405
    %v3921 = vmul.f32 %v3919, %v3406
    %v3922 = vmul.f32 %v3919, %v3407
    %v3923 = vmul.f32 %v3919, %v3408
    %v3928 = vrot.slane %v3920, 2
    %v3929 = vrot.slane %v3921, 2
    %v3930 = vsel %vm636, %v3928, %v3929
    %v3931 = vrot.slane %v3922, 2
    %v3932 = vsel %vm636, %v3929, %v3931
    %v3933 = vrot.slane %v3923, 2
    %v3934 = vsel %vm636, %v3931, %v3933
    %v3939 = vadd.f32 %v3864, %v3930
    %v3940 = vadd.f32 %v3865, %v3932
    %v3941 = vadd.f32 %v3866, %v3934
    %v3942 = vadd.f32 %v3867, %v3933
    %s3943 = sld [smem:[#allocation9 + $0x19]]
    %v3944 = vstv %s3943
    %v3945 = vmul.f32 %v3944, %v3405
    %v3946 = vmul.f32 %v3944, %v3406
    %v3947 = vmul.f32 %v3944, %v3407
    %v3948 = vmul.f32 %v3944, %v3408
    %v3953 = vrot.slane %v3945, 2
    %v3954 = vrot.slane %v3946, 2
    %v3955 = vsel %vm636, %v3953, %v3954
    %v3956 = vrot.slane %v3947, 2
    %v3957 = vsel %vm636, %v3954, %v3956
    %v3958 = vrot.slane %v3948, 2
    %v3959 = vsel %vm636, %v3956, %v3958
    %3960 = vrot.lane.b32.xlu0 %v3955, 127
    %v3961 = vpop.permute.xlu0 %3960
    %3962 = vrot.lane.b32.xlu0 %v3957, 127
    %v3963 = vpop.permute.xlu0 %3962
    %3964 = vrot.lane.b32.xlu0 %v3959, 127
    %v3965 = vpop.permute.xlu0 %3964
    %3966 = vrot.lane.b32.xlu0 %v3958, 127
    %v3967 = vpop.permute.xlu0 %3966
    %v3972 = vadd.f32 %v3889, %v3961
    %v3973 = vadd.f32 %v3890, %v3963
    %v3974 = vadd.f32 %v3891, %v3965
    %v3975 = vadd.f32 %v3892, %v3967
    %s3976 = sld [smem:[#allocation9 + $0x34]]
    %v3977 = vstv %s3976
    %v3978 = vmul.f32 %v3977, %v3405
    %v3979 = vmul.f32 %v3977, %v3406
    %v3980 = vmul.f32 %v3977, %v3407
    %v3981 = vmul.f32 %v3977, %v3408
    %v3986 = vrot.slane %v3978, 2
    %v3987 = vrot.slane %v3979, 2
    %v3988 = vsel %vm636, %v3986, %v3987
    %v3989 = vrot.slane %v3980, 2
    %v3990 = vsel %vm636, %v3987, %v3989
    %v3991 = vrot.slane %v3981, 2
    %v3992 = vsel %vm636, %v3989, %v3991
    %3993 = vrot.lane.b32.xlu0 %v3988, 127
    %v3994 = vpop.permute.xlu0 %3993
    %3995 = vrot.lane.b32.xlu0 %v3990, 127
    %v3996 = vpop.permute.xlu0 %3995
    %3997 = vrot.lane.b32.xlu0 %v3992, 127
    %v3998 = vpop.permute.xlu0 %3997
    %3999 = vrot.lane.b32.xlu0 %v3991, 127
    %v4000 = vpop.permute.xlu0 %3999
    %v4005 = vadd.f32 %v3914, %v3994
    %v4006 = vadd.f32 %v3915, %v3996
    %v4007 = vadd.f32 %v3916, %v3998
    %v4008 = vadd.f32 %v3917, %v4000
    %s4009 = sld [smem:[#allocation9 + $0x4f]]
    %v4010 = vstv %s4009
    %v4011 = vmul.f32 %v4010, %v3405
    %v4012 = vmul.f32 %v4010, %v3406
    %v4013 = vmul.f32 %v4010, %v3407
    %v4014 = vmul.f32 %v4010, %v3408
    %v4019 = vrot.slane %v4011, 2
    %v4020 = vrot.slane %v4012, 2
    %v4021 = vsel %vm636, %v4019, %v4020
    %v4022 = vrot.slane %v4013, 2
    %v4023 = vsel %vm636, %v4020, %v4022
    %v4024 = vrot.slane %v4014, 2
    %v4025 = vsel %vm636, %v4022, %v4024
    %4026 = vrot.lane.b32.xlu0 %v4021, 127
    %v4027 = vpop.permute.xlu0 %4026
    %4028 = vrot.lane.b32.xlu0 %v4023, 127
    %v4029 = vpop.permute.xlu0 %4028
    %4030 = vrot.lane.b32.xlu0 %v4025, 127
    %v4031 = vpop.permute.xlu0 %4030
    %4032 = vrot.lane.b32.xlu0 %v4024, 127
    %v4033 = vpop.permute.xlu0 %4032
    %v4038 = vadd.f32 %v3939, %v4027
    %v4039 = vadd.f32 %v3940, %v4029
    %v4040 = vadd.f32 %v3941, %v4031
    %v4041 = vadd.f32 %v3942, %v4033
    %s4042 = sld [smem:[#allocation9 + $0x1a]]
    %v4043 = vstv %s4042
    %v4044 = vmul.f32 %v4043, %v3405
    %v4045 = vmul.f32 %v4043, %v3406
    %v4046 = vmul.f32 %v4043, %v3407
    %v4047 = vmul.f32 %v4043, %v3408
    %v4052 = vrot.slane %v4044, 2
    %v4053 = vrot.slane %v4045, 2
    %v4054 = vsel %vm636, %v4052, %v4053
    %v4055 = vrot.slane %v4046, 2
    %v4056 = vsel %vm636, %v4053, %v4055
    %v4057 = vrot.slane %v4047, 2
    %v4058 = vsel %vm636, %v4055, %v4057
    %4059 = vrot.lane.b32.xlu0 %v4054, 126
    %v4060 = vpop.permute.xlu0 %4059
    %4061 = vrot.lane.b32.xlu0 %v4056, 126
    %v4062 = vpop.permute.xlu0 %4061
    %4063 = vrot.lane.b32.xlu0 %v4058, 126
    %v4064 = vpop.permute.xlu0 %4063
    %4065 = vrot.lane.b32.xlu0 %v4057, 126
    %v4066 = vpop.permute.xlu0 %4065
    %v4071 = vadd.f32 %v3972, %v4060
    %v4072 = vadd.f32 %v3973, %v4062
    %v4073 = vadd.f32 %v3974, %v4064
    %v4074 = vadd.f32 %v3975, %v4066
    %s4075 = sld [smem:[#allocation9 + $0x35]]
    %v4076 = vstv %s4075
    %v4077 = vmul.f32 %v4076, %v3405
    %v4078 = vmul.f32 %v4076, %v3406
    %v4079 = vmul.f32 %v4076, %v3407
    %v4080 = vmul.f32 %v4076, %v3408
    %v4085 = vrot.slane %v4077, 2
    %v4086 = vrot.slane %v4078, 2
    %v4087 = vsel %vm636, %v4085, %v4086
    %v4088 = vrot.slane %v4079, 2
    %v4089 = vsel %vm636, %v4086, %v4088
    %v4090 = vrot.slane %v4080, 2
    %v4091 = vsel %vm636, %v4088, %v4090
    %4092 = vrot.lane.b32.xlu0 %v4087, 126
    %v4093 = vpop.permute.xlu0 %4092
    %4094 = vrot.lane.b32.xlu0 %v4089, 126
    %v4095 = vpop.permute.xlu0 %4094
    %4096 = vrot.lane.b32.xlu0 %v4091, 126
    %v4097 = vpop.permute.xlu0 %4096
    %4098 = vrot.lane.b32.xlu0 %v4090, 126
    %v4099 = vpop.permute.xlu0 %4098
    %v4104 = vadd.f32 %v4005, %v4093
    %v4105 = vadd.f32 %v4006, %v4095
    %v4106 = vadd.f32 %v4007, %v4097
    %v4107 = vadd.f32 %v4008, %v4099
    %s4108 = sld [smem:[#allocation9 + $0x50]]
    %v4109 = vstv %s4108
    %v4110 = vmul.f32 %v4109, %v3405
    %v4111 = vmul.f32 %v4109, %v3406
    %v4112 = vmul.f32 %v4109, %v3407
    %v4113 = vmul.f32 %v4109, %v3408
    %v4118 = vrot.slane %v4110, 2
    %v4119 = vrot.slane %v4111, 2
    %v4120 = vsel %vm636, %v4118, %v4119
    %v4121 = vrot.slane %v4112, 2
    %v4122 = vsel %vm636, %v4119, %v4121
    %v4123 = vrot.slane %v4113, 2
    %v4124 = vsel %vm636, %v4121, %v4123
    %4125 = vrot.lane.b32.xlu0 %v4120, 126
    %v4126 = vpop.permute.xlu0 %4125
    %4127 = vrot.lane.b32.xlu0 %v4122, 126
    %v4128 = vpop.permute.xlu0 %4127
    %4129 = vrot.lane.b32.xlu0 %v4124, 126
    %v4130 = vpop.permute.xlu0 %4129
    %4131 = vrot.lane.b32.xlu0 %v4123, 126
    %v4132 = vpop.permute.xlu0 %4131
    %v4137 = vadd.f32 %v4038, %v4126
    %v4138 = vadd.f32 %v4039, %v4128
    %v4139 = vadd.f32 %v4040, %v4130
    %v4140 = vadd.f32 %v4041, %v4132
    %v4145 = vrot.slane %v1797, 7
    %v4146 = vrot.slane %v1798, 7
    %v4147 = vsel %vm129, %v4145, %v4146
    %v4148 = vrot.slane %v1799, 7
    %v4149 = vsel %vm129, %v4146, %v4148
    %v4150 = vrot.slane %v1800, 7
    %v4151 = vsel %vm129, %v4148, %v4150
    %v4154 = vsel %vm129, 0.0, %v4145
    %v4155 = vsel %vm140, %v4151, 0.0
    %4158 = vrot.lane.b32.xlu0 %v4154, 1
    %v4159 = vpop.permute.xlu0 %4158
    %4160 = vrot.lane.b32.xlu0 %v4147, 1
    %v4161 = vpop.permute.xlu0 %4160
    %4162 = vrot.lane.b32.xlu0 %v4149, 1
    %v4163 = vpop.permute.xlu0 %4162
    %4164 = vrot.lane.b32.xlu0 %v4155, 1
    %v4165 = vpop.permute.xlu0 %4164
    %v4170 = vsel %vm156, 0.0, %v4159
    %v4171 = vsel %vm156, 0.0, %v4161
    %v4172 = vsel %vm156, 0.0, %v4163
    %v4173 = vsel %vm156, 0.0, %v4165
    %v4174 = vsel %vm161, %v4170, 0.0
    %v4175 = vsel %vm161, %v4171, 0.0
    %v4176 = vsel %vm161, %v4172, 0.0
    %v4177 = vsel %vm161, %v4173, 0.0
    %v4178 = vmul.f32 %v1872, %v4174
    %v4179 = vmul.f32 %v1872, %v4175
    %v4180 = vmul.f32 %v1872, %v4176
    %v4181 = vmul.f32 %v1872, %v4177
    %v4182 = vadd.f32 %v1827, %v4178
    %v4183 = vadd.f32 %v1827, %v4179
    %v4184 = vadd.f32 %v1827, %v4180
    %v4185 = vadd.f32 %v1827, %v4181
    %v4186 = vmul.f32 %v1882, %v4174
    %v4187 = vmul.f32 %v1882, %v4175
    %v4188 = vmul.f32 %v1882, %v4176
    %v4189 = vmul.f32 %v1882, %v4177
    %v4190 = vadd.f32 %v1830, %v4186
    %v4191 = vadd.f32 %v1830, %v4187
    %v4192 = vadd.f32 %v1830, %v4188
    %v4193 = vadd.f32 %v1830, %v4189
    %v4194 = vmul.f32 %v1892, %v4174
    %v4195 = vmul.f32 %v1892, %v4175
    %v4196 = vmul.f32 %v1892, %v4176
    %v4197 = vmul.f32 %v1892, %v4177
    %v4198 = vadd.f32 %v1833, %v4194
    %v4199 = vadd.f32 %v1833, %v4195
    %v4200 = vadd.f32 %v1833, %v4196
    %v4201 = vadd.f32 %v1833, %v4197
    %v4202 = vmul.f32 %v1902, %v4174
    %v4203 = vmul.f32 %v1902, %v4175
    %v4204 = vmul.f32 %v1902, %v4176
    %v4205 = vmul.f32 %v1902, %v4177
    %4210 = vrot.lane.b32.xlu0 %v4202, 127
    %v4211 = vpop.permute.xlu0 %4210
    %4212 = vrot.lane.b32.xlu0 %v4203, 127
    %v4213 = vpop.permute.xlu0 %4212
    %4214 = vrot.lane.b32.xlu0 %v4204, 127
    %v4215 = vpop.permute.xlu0 %4214
    %4216 = vrot.lane.b32.xlu0 %v4205, 127
    %v4217 = vpop.permute.xlu0 %4216
    %v4222 = vadd.f32 %v4182, %v4211
    %v4223 = vadd.f32 %v4183, %v4213
    %v4224 = vadd.f32 %v4184, %v4215
    %v4225 = vadd.f32 %v4185, %v4217
    %v4226 = vmul.f32 %v1928, %v4174
    %v4227 = vmul.f32 %v1928, %v4175
    %v4228 = vmul.f32 %v1928, %v4176
    %v4229 = vmul.f32 %v1928, %v4177
    %4234 = vrot.lane.b32.xlu0 %v4226, 127
    %v4235 = vpop.permute.xlu0 %4234
    %4236 = vrot.lane.b32.xlu0 %v4227, 127
    %v4237 = vpop.permute.xlu0 %4236
    %4238 = vrot.lane.b32.xlu0 %v4228, 127
    %v4239 = vpop.permute.xlu0 %4238
    %4240 = vrot.lane.b32.xlu0 %v4229, 127
    %v4241 = vpop.permute.xlu0 %4240
    %v4246 = vadd.f32 %v4190, %v4235
    %v4247 = vadd.f32 %v4191, %v4237
    %v4248 = vadd.f32 %v4192, %v4239
    %v4249 = vadd.f32 %v4193, %v4241
    %v4250 = vmul.f32 %v1954, %v4174
    %v4251 = vmul.f32 %v1954, %v4175
    %v4252 = vmul.f32 %v1954, %v4176
    %v4253 = vmul.f32 %v1954, %v4177
    %4258 = vrot.lane.b32.xlu0 %v4250, 127
    %v4259 = vpop.permute.xlu0 %4258
    %4260 = vrot.lane.b32.xlu0 %v4251, 127
    %v4261 = vpop.permute.xlu0 %4260
    %4262 = vrot.lane.b32.xlu0 %v4252, 127
    %v4263 = vpop.permute.xlu0 %4262
    %4264 = vrot.lane.b32.xlu0 %v4253, 127
    %v4265 = vpop.permute.xlu0 %4264
    %v4270 = vadd.f32 %v4198, %v4259
    %v4271 = vadd.f32 %v4199, %v4261
    %v4272 = vadd.f32 %v4200, %v4263
    %v4273 = vadd.f32 %v4201, %v4265
    %v4274 = vmul.f32 %v1980, %v4174
    %v4275 = vmul.f32 %v1980, %v4175
    %v4276 = vmul.f32 %v1980, %v4176
    %v4277 = vmul.f32 %v1980, %v4177
    %4282 = vrot.lane.b32.xlu0 %v4274, 126
    %v4283 = vpop.permute.xlu0 %4282
    %4284 = vrot.lane.b32.xlu0 %v4275, 126
    %v4285 = vpop.permute.xlu0 %4284
    %4286 = vrot.lane.b32.xlu0 %v4276, 126
    %v4287 = vpop.permute.xlu0 %4286
    %4288 = vrot.lane.b32.xlu0 %v4277, 126
    %v4289 = vpop.permute.xlu0 %4288
    %v4294 = vadd.f32 %v4222, %v4283
    %v4295 = vadd.f32 %v4223, %v4285
    %v4296 = vadd.f32 %v4224, %v4287
    %v4297 = vadd.f32 %v4225, %v4289
    %v4298 = vmul.f32 %v2006, %v4174
    %v4299 = vmul.f32 %v2006, %v4175
    %v4300 = vmul.f32 %v2006, %v4176
    %v4301 = vmul.f32 %v2006, %v4177
    %4306 = vrot.lane.b32.xlu0 %v4298, 126
    %v4307 = vpop.permute.xlu0 %4306
    %4308 = vrot.lane.b32.xlu0 %v4299, 126
    %v4309 = vpop.permute.xlu0 %4308
    %4310 = vrot.lane.b32.xlu0 %v4300, 126
    %v4311 = vpop.permute.xlu0 %4310
    %4312 = vrot.lane.b32.xlu0 %v4301, 126
    %v4313 = vpop.permute.xlu0 %4312
    %v4318 = vadd.f32 %v4246, %v4307
    %v4319 = vadd.f32 %v4247, %v4309
    %v4320 = vadd.f32 %v4248, %v4311
    %v4321 = vadd.f32 %v4249, %v4313
    %v4322 = vmul.f32 %v2032, %v4174
    %v4323 = vmul.f32 %v2032, %v4175
    %v4324 = vmul.f32 %v2032, %v4176
    %v4325 = vmul.f32 %v2032, %v4177
    %4330 = vrot.lane.b32.xlu0 %v4322, 126
    %v4331 = vpop.permute.xlu0 %4330
    %4332 = vrot.lane.b32.xlu0 %v4323, 126
    %v4333 = vpop.permute.xlu0 %4332
    %4334 = vrot.lane.b32.xlu0 %v4324, 126
    %v4335 = vpop.permute.xlu0 %4334
    %4336 = vrot.lane.b32.xlu0 %v4325, 126
    %v4337 = vpop.permute.xlu0 %4336
    %v4342 = vadd.f32 %v4270, %v4331
    %v4343 = vadd.f32 %v4271, %v4333
    %v4344 = vadd.f32 %v4272, %v4335
    %v4345 = vadd.f32 %v4273, %v4337
    %v4346 = vmul.f32 %v2058, %v4174
    %v4347 = vmul.f32 %v2058, %v4175
    %v4348 = vmul.f32 %v2058, %v4176
    %v4349 = vmul.f32 %v2058, %v4177
    %v4354 = vrot.slane %v4346, 1
    %v4355 = vrot.slane %v4347, 1
    %v4356 = vsel %vm362, %v4354, %v4355
    %v4357 = vrot.slane %v4348, 1
    %v4358 = vsel %vm362, %v4355, %v4357
    %v4359 = vrot.slane %v4349, 1
    %v4360 = vsel %vm362, %v4357, %v4359
    %v4365 = vadd.f32 %v4294, %v4356
    %v4366 = vadd.f32 %v4295, %v4358
    %v4367 = vadd.f32 %v4296, %v4360
    %v4368 = vadd.f32 %v4297, %v4359
    %v4369 = vmul.f32 %v2083, %v4174
    %v4370 = vmul.f32 %v2083, %v4175
    %v4371 = vmul.f32 %v2083, %v4176
    %v4372 = vmul.f32 %v2083, %v4177
    %v4377 = vrot.slane %v4369, 1
    %v4378 = vrot.slane %v4370, 1
    %v4379 = vsel %vm362, %v4377, %v4378
    %v4380 = vrot.slane %v4371, 1
    %v4381 = vsel %vm362, %v4378, %v4380
    %v4382 = vrot.slane %v4372, 1
    %v4383 = vsel %vm362, %v4380, %v4382
    %v4388 = vadd.f32 %v4318, %v4379
    %v4389 = vadd.f32 %v4319, %v4381
    %v4390 = vadd.f32 %v4320, %v4383
    %v4391 = vadd.f32 %v4321, %v4382
    %v4392 = vmul.f32 %v2108, %v4174
    %v4393 = vmul.f32 %v2108, %v4175
    %v4394 = vmul.f32 %v2108, %v4176
    %v4395 = vmul.f32 %v2108, %v4177
    %v4400 = vrot.slane %v4392, 1
    %v4401 = vrot.slane %v4393, 1
    %v4402 = vsel %vm362, %v4400, %v4401
    %v4403 = vrot.slane %v4394, 1
    %v4404 = vsel %vm362, %v4401, %v4403
    %v4405 = vrot.slane %v4395, 1
    %v4406 = vsel %vm362, %v4403, %v4405
    %v4411 = vadd.f32 %v4342, %v4402
    %v4412 = vadd.f32 %v4343, %v4404
    %v4413 = vadd.f32 %v4344, %v4406
    %v4414 = vadd.f32 %v4345, %v4405
    %v4415 = vmul.f32 %v2133, %v4174
    %v4416 = vmul.f32 %v2133, %v4175
    %v4417 = vmul.f32 %v2133, %v4176
    %v4418 = vmul.f32 %v2133, %v4177
    %v4423 = vrot.slane %v4415, 1
    %v4424 = vrot.slane %v4416, 1
    %v4425 = vsel %vm362, %v4423, %v4424
    %v4426 = vrot.slane %v4417, 1
    %v4427 = vsel %vm362, %v4424, %v4426
    %v4428 = vrot.slane %v4418, 1
    %v4429 = vsel %vm362, %v4426, %v4428
    %4430 = vrot.lane.b32.xlu0 %v4425, 127
    %v4431 = vpop.permute.xlu0 %4430
    %4432 = vrot.lane.b32.xlu0 %v4427, 127
    %v4433 = vpop.permute.xlu0 %4432
    %4434 = vrot.lane.b32.xlu0 %v4429, 127
    %v4435 = vpop.permute.xlu0 %4434
    %4436 = vrot.lane.b32.xlu0 %v4428, 127
    %v4437 = vpop.permute.xlu0 %4436
    %v4442 = vadd.f32 %v4365, %v4431
    %v4443 = vadd.f32 %v4366, %v4433
    %v4444 = vadd.f32 %v4367, %v4435
    %v4445 = vadd.f32 %v4368, %v4437
    %v4446 = vmul.f32 %v2166, %v4174
    %v4447 = vmul.f32 %v2166, %v4175
    %v4448 = vmul.f32 %v2166, %v4176
    %v4449 = vmul.f32 %v2166, %v4177
    %v4454 = vrot.slane %v4446, 1
    %v4455 = vrot.slane %v4447, 1
    %v4456 = vsel %vm362, %v4454, %v4455
    %v4457 = vrot.slane %v4448, 1
    %v4458 = vsel %vm362, %v4455, %v4457
    %v4459 = vrot.slane %v4449, 1
    %v4460 = vsel %vm362, %v4457, %v4459
    %4461 = vrot.lane.b32.xlu0 %v4456, 127
    %v4462 = vpop.permute.xlu0 %4461
    %4463 = vrot.lane.b32.xlu0 %v4458, 127
    %v4464 = vpop.permute.xlu0 %4463
    %4465 = vrot.lane.b32.xlu0 %v4460, 127
    %v4466 = vpop.permute.xlu0 %4465
    %4467 = vrot.lane.b32.xlu0 %v4459, 127
    %v4468 = vpop.permute.xlu0 %4467
    %v4473 = vadd.f32 %v4388, %v4462
    %v4474 = vadd.f32 %v4389, %v4464
    %v4475 = vadd.f32 %v4390, %v4466
    %v4476 = vadd.f32 %v4391, %v4468
    %v4477 = vmul.f32 %v2199, %v4174
    %v4478 = vmul.f32 %v2199, %v4175
    %v4479 = vmul.f32 %v2199, %v4176
    %v4480 = vmul.f32 %v2199, %v4177
    %v4485 = vrot.slane %v4477, 1
    %v4486 = vrot.slane %v4478, 1
    %v4487 = vsel %vm362, %v4485, %v4486
    %v4488 = vrot.slane %v4479, 1
    %v4489 = vsel %vm362, %v4486, %v4488
    %v4490 = vrot.slane %v4480, 1
    %v4491 = vsel %vm362, %v4488, %v4490
    %4492 = vrot.lane.b32.xlu0 %v4487, 127
    %v4493 = vpop.permute.xlu0 %4492
    %4494 = vrot.lane.b32.xlu0 %v4489, 127
    %v4495 = vpop.permute.xlu0 %4494
    %4496 = vrot.lane.b32.xlu0 %v4491, 127
    %v4497 = vpop.permute.xlu0 %4496
    %4498 = vrot.lane.b32.xlu0 %v4490, 127
    %v4499 = vpop.permute.xlu0 %4498
    %v4504 = vadd.f32 %v4411, %v4493
    %v4505 = vadd.f32 %v4412, %v4495
    %v4506 = vadd.f32 %v4413, %v4497
    %v4507 = vadd.f32 %v4414, %v4499
    %v4508 = vmul.f32 %v2232, %v4174
    %v4509 = vmul.f32 %v2232, %v4175
    %v4510 = vmul.f32 %v2232, %v4176
    %v4511 = vmul.f32 %v2232, %v4177
    %v4516 = vrot.slane %v4508, 1
    %v4517 = vrot.slane %v4509, 1
    %v4518 = vsel %vm362, %v4516, %v4517
    %v4519 = vrot.slane %v4510, 1
    %v4520 = vsel %vm362, %v4517, %v4519
    %v4521 = vrot.slane %v4511, 1
    %v4522 = vsel %vm362, %v4519, %v4521
    %4523 = vrot.lane.b32.xlu0 %v4518, 126
    %v4524 = vpop.permute.xlu0 %4523
    %4525 = vrot.lane.b32.xlu0 %v4520, 126
    %v4526 = vpop.permute.xlu0 %4525
    %4527 = vrot.lane.b32.xlu0 %v4522, 126
    %v4528 = vpop.permute.xlu0 %4527
    %4529 = vrot.lane.b32.xlu0 %v4521, 126
    %v4530 = vpop.permute.xlu0 %4529
    %v4535 = vadd.f32 %v4442, %v4524
    %v4536 = vadd.f32 %v4443, %v4526
    %v4537 = vadd.f32 %v4444, %v4528
    %v4538 = vadd.f32 %v4445, %v4530
    %v4539 = vmul.f32 %v2265, %v4174
    %v4540 = vmul.f32 %v2265, %v4175
    %v4541 = vmul.f32 %v2265, %v4176
    %v4542 = vmul.f32 %v2265, %v4177
    %v4547 = vrot.slane %v4539, 1
    %v4548 = vrot.slane %v4540, 1
    %v4549 = vsel %vm362, %v4547, %v4548
    %v4550 = vrot.slane %v4541, 1
    %v4551 = vsel %vm362, %v4548, %v4550
    %v4552 = vrot.slane %v4542, 1
    %v4553 = vsel %vm362, %v4550, %v4552
    %4554 = vrot.lane.b32.xlu0 %v4549, 126
    %v4555 = vpop.permute.xlu0 %4554
    %4556 = vrot.lane.b32.xlu0 %v4551, 126
    %v4557 = vpop.permute.xlu0 %4556
    %4558 = vrot.lane.b32.xlu0 %v4553, 126
    %v4559 = vpop.permute.xlu0 %4558
    %4560 = vrot.lane.b32.xlu0 %v4552, 126
    %v4561 = vpop.permute.xlu0 %4560
    %v4566 = vadd.f32 %v4473, %v4555
    %v4567 = vadd.f32 %v4474, %v4557
    %v4568 = vadd.f32 %v4475, %v4559
    %v4569 = vadd.f32 %v4476, %v4561
    %v4570 = vmul.f32 %v2298, %v4174
    %v4571 = vmul.f32 %v2298, %v4175
    %v4572 = vmul.f32 %v2298, %v4176
    %v4573 = vmul.f32 %v2298, %v4177
    %v4578 = vrot.slane %v4570, 1
    %v4579 = vrot.slane %v4571, 1
    %v4580 = vsel %vm362, %v4578, %v4579
    %v4581 = vrot.slane %v4572, 1
    %v4582 = vsel %vm362, %v4579, %v4581
    %v4583 = vrot.slane %v4573, 1
    %v4584 = vsel %vm362, %v4581, %v4583
    %4585 = vrot.lane.b32.xlu0 %v4580, 126
    %v4586 = vpop.permute.xlu0 %4585
    %4587 = vrot.lane.b32.xlu0 %v4582, 126
    %v4588 = vpop.permute.xlu0 %4587
    %4589 = vrot.lane.b32.xlu0 %v4584, 126
    %v4590 = vpop.permute.xlu0 %4589
    %4591 = vrot.lane.b32.xlu0 %v4583, 126
    %v4592 = vpop.permute.xlu0 %4591
    %v4597 = vadd.f32 %v4504, %v4586
    %v4598 = vadd.f32 %v4505, %v4588
    %v4599 = vadd.f32 %v4506, %v4590
    %v4600 = vadd.f32 %v4507, %v4592
    %v4601 = vmul.f32 %v2331, %v4174
    %v4602 = vmul.f32 %v2331, %v4175
    %v4603 = vmul.f32 %v2331, %v4176
    %v4604 = vmul.f32 %v2331, %v4177
    %v4609 = vrot.slane %v4601, 2
    %v4610 = vrot.slane %v4602, 2
    %v4611 = vsel %vm636, %v4609, %v4610
    %v4612 = vrot.slane %v4603, 2
    %v4613 = vsel %vm636, %v4610, %v4612
    %v4614 = vrot.slane %v4604, 2
    %v4615 = vsel %vm636, %v4612, %v4614
    %v4620 = vadd.f32 %v4535, %v4611
    %v4621 = vadd.f32 %v4536, %v4613
    %v4622 = vadd.f32 %v4537, %v4615
    %v4623 = vadd.f32 %v4538, %v4614
    %v4624 = vmul.f32 %v2356, %v4174
    %v4625 = vmul.f32 %v2356, %v4175
    %v4626 = vmul.f32 %v2356, %v4176
    %v4627 = vmul.f32 %v2356, %v4177
    %v4632 = vrot.slane %v4624, 2
    %v4633 = vrot.slane %v4625, 2
    %v4634 = vsel %vm636, %v4632, %v4633
    %v4635 = vrot.slane %v4626, 2
    %v4636 = vsel %vm636, %v4633, %v4635
    %v4637 = vrot.slane %v4627, 2
    %v4638 = vsel %vm636, %v4635, %v4637
    %v4643 = vadd.f32 %v4566, %v4634
    %v4644 = vadd.f32 %v4567, %v4636
    %v4645 = vadd.f32 %v4568, %v4638
    %v4646 = vadd.f32 %v4569, %v4637
    %v4647 = vmul.f32 %v2381, %v4174
    %v4648 = vmul.f32 %v2381, %v4175
    %v4649 = vmul.f32 %v2381, %v4176
    %v4650 = vmul.f32 %v2381, %v4177
    %v4655 = vrot.slane %v4647, 2
    %v4656 = vrot.slane %v4648, 2
    %v4657 = vsel %vm636, %v4655, %v4656
    %v4658 = vrot.slane %v4649, 2
    %v4659 = vsel %vm636, %v4656, %v4658
    %v4660 = vrot.slane %v4650, 2
    %v4661 = vsel %vm636, %v4658, %v4660
    %v4666 = vadd.f32 %v4597, %v4657
    %v4667 = vadd.f32 %v4598, %v4659
    %v4668 = vadd.f32 %v4599, %v4661
    %v4669 = vadd.f32 %v4600, %v4660
    %v4670 = vmul.f32 %v2406, %v4174
    %v4671 = vmul.f32 %v2406, %v4175
    %v4672 = vmul.f32 %v2406, %v4176
    %v4673 = vmul.f32 %v2406, %v4177
    %v4678 = vrot.slane %v4670, 2
    %v4679 = vrot.slane %v4671, 2
    %v4680 = vsel %vm636, %v4678, %v4679
    %v4681 = vrot.slane %v4672, 2
    %v4682 = vsel %vm636, %v4679, %v4681
    %v4683 = vrot.slane %v4673, 2
    %v4684 = vsel %vm636, %v4681, %v4683
    %4685 = vrot.lane.b32.xlu0 %v4680, 127
    %v4686 = vpop.permute.xlu0 %4685
    %4687 = vrot.lane.b32.xlu0 %v4682, 127
    %v4688 = vpop.permute.xlu0 %4687
    %4689 = vrot.lane.b32.xlu0 %v4684, 127
    %v4690 = vpop.permute.xlu0 %4689
    %4691 = vrot.lane.b32.xlu0 %v4683, 127
    %v4692 = vpop.permute.xlu0 %4691
    %v4697 = vadd.f32 %v4620, %v4686
    %v4698 = vadd.f32 %v4621, %v4688
    %v4699 = vadd.f32 %v4622, %v4690
    %v4700 = vadd.f32 %v4623, %v4692
    %v4701 = vmul.f32 %v2439, %v4174
    %v4702 = vmul.f32 %v2439, %v4175
    %v4703 = vmul.f32 %v2439, %v4176
    %v4704 = vmul.f32 %v2439, %v4177
    %v4709 = vrot.slane %v4701, 2
    %v4710 = vrot.slane %v4702, 2
    %v4711 = vsel %vm636, %v4709, %v4710
    %v4712 = vrot.slane %v4703, 2
    %v4713 = vsel %vm636, %v4710, %v4712
    %v4714 = vrot.slane %v4704, 2
    %v4715 = vsel %vm636, %v4712, %v4714
    %4716 = vrot.lane.b32.xlu0 %v4711, 127
    %v4717 = vpop.permute.xlu0 %4716
    %4718 = vrot.lane.b32.xlu0 %v4713, 127
    %v4719 = vpop.permute.xlu0 %4718
    %4720 = vrot.lane.b32.xlu0 %v4715, 127
    %v4721 = vpop.permute.xlu0 %4720
    %4722 = vrot.lane.b32.xlu0 %v4714, 127
    %v4723 = vpop.permute.xlu0 %4722
    %v4728 = vadd.f32 %v4643, %v4717
    %v4729 = vadd.f32 %v4644, %v4719
    %v4730 = vadd.f32 %v4645, %v4721
    %v4731 = vadd.f32 %v4646, %v4723
    %v4732 = vmul.f32 %v2472, %v4174
    %v4733 = vmul.f32 %v2472, %v4175
    %v4734 = vmul.f32 %v2472, %v4176
    %v4735 = vmul.f32 %v2472, %v4177
    %v4740 = vrot.slane %v4732, 2
    %v4741 = vrot.slane %v4733, 2
    %v4742 = vsel %vm636, %v4740, %v4741
    %v4743 = vrot.slane %v4734, 2
    %v4744 = vsel %vm636, %v4741, %v4743
    %v4745 = vrot.slane %v4735, 2
    %v4746 = vsel %vm636, %v4743, %v4745
    %4747 = vrot.lane.b32.xlu0 %v4742, 127
    %v4748 = vpop.permute.xlu0 %4747
    %4749 = vrot.lane.b32.xlu0 %v4744, 127
    %v4750 = vpop.permute.xlu0 %4749
    %4751 = vrot.lane.b32.xlu0 %v4746, 127
    %v4752 = vpop.permute.xlu0 %4751
    %4753 = vrot.lane.b32.xlu0 %v4745, 127
    %v4754 = vpop.permute.xlu0 %4753
    %v4759 = vadd.f32 %v4666, %v4748
    %v4760 = vadd.f32 %v4667, %v4750
    %v4761 = vadd.f32 %v4668, %v4752
    %v4762 = vadd.f32 %v4669, %v4754
    %v4763 = vmul.f32 %v2505, %v4174
    %v4764 = vmul.f32 %v2505, %v4175
    %v4765 = vmul.f32 %v2505, %v4176
    %v4766 = vmul.f32 %v2505, %v4177
    %v4771 = vrot.slane %v4763, 2
    %v4772 = vrot.slane %v4764, 2
    %v4773 = vsel %vm636, %v4771, %v4772
    %v4774 = vrot.slane %v4765, 2
    %v4775 = vsel %vm636, %v4772, %v4774
    %v4776 = vrot.slane %v4766, 2
    %v4777 = vsel %vm636, %v4774, %v4776
    %4778 = vrot.lane.b32.xlu0 %v4773, 126
    %v4779 = vpop.permute.xlu0 %4778
    %4780 = vrot.lane.b32.xlu0 %v4775, 126
    %v4781 = vpop.permute.xlu0 %4780
    %4782 = vrot.lane.b32.xlu0 %v4777, 126
    %v4783 = vpop.permute.xlu0 %4782
    %4784 = vrot.lane.b32.xlu0 %v4776, 126
    %v4785 = vpop.permute.xlu0 %4784
    %v4790 = vadd.f32 %v4697, %v4779
    %v4791 = vadd.f32 %v4698, %v4781
    %v4792 = vadd.f32 %v4699, %v4783
    %v4793 = vadd.f32 %v4700, %v4785
    %v4794 = vmul.f32 %v2538, %v4174
    %v4795 = vmul.f32 %v2538, %v4175
    %v4796 = vmul.f32 %v2538, %v4176
    %v4797 = vmul.f32 %v2538, %v4177
    %v4802 = vrot.slane %v4794, 2
    %v4803 = vrot.slane %v4795, 2
    %v4804 = vsel %vm636, %v4802, %v4803
    %v4805 = vrot.slane %v4796, 2
    %v4806 = vsel %vm636, %v4803, %v4805
    %v4807 = vrot.slane %v4797, 2
    %v4808 = vsel %vm636, %v4805, %v4807
    %4809 = vrot.lane.b32.xlu0 %v4804, 126
    %v4810 = vpop.permute.xlu0 %4809
    %4811 = vrot.lane.b32.xlu0 %v4806, 126
    %v4812 = vpop.permute.xlu0 %4811
    %4813 = vrot.lane.b32.xlu0 %v4808, 126
    %v4814 = vpop.permute.xlu0 %4813
    %4815 = vrot.lane.b32.xlu0 %v4807, 126
    %v4816 = vpop.permute.xlu0 %4815
    %v4821 = vadd.f32 %v4728, %v4810
    %v4822 = vadd.f32 %v4729, %v4812
    %v4823 = vadd.f32 %v4730, %v4814
    %v4824 = vadd.f32 %v4731, %v4816
    %v4825 = vmul.f32 %v2571, %v4174
    %v4826 = vmul.f32 %v2571, %v4175
    %v4827 = vmul.f32 %v2571, %v4176
    %v4828 = vmul.f32 %v2571, %v4177
    %v4833 = vrot.slane %v4825, 2
    %v4834 = vrot.slane %v4826, 2
    %v4835 = vsel %vm636, %v4833, %v4834
    %v4836 = vrot.slane %v4827, 2
    %v4837 = vsel %vm636, %v4834, %v4836
    %v4838 = vrot.slane %v4828, 2
    %v4839 = vsel %vm636, %v4836, %v4838
    %4840 = vrot.lane.b32.xlu0 %v4835, 126
    %v4841 = vpop.permute.xlu0 %4840
    %4842 = vrot.lane.b32.xlu0 %v4837, 126
    %v4843 = vpop.permute.xlu0 %4842
    %4844 = vrot.lane.b32.xlu0 %v4839, 126
    %v4845 = vpop.permute.xlu0 %4844
    %4846 = vrot.lane.b32.xlu0 %v4838, 126
    %v4847 = vpop.permute.xlu0 %4846
    %v4852 = vadd.f32 %v4759, %v4841
    %v4853 = vadd.f32 %v4760, %v4843
    %v4854 = vadd.f32 %v4761, %v4845
    %v4855 = vadd.f32 %v4762, %v4847
    %v4860 = vrot.slane %v1809, 7
    %v4861 = vrot.slane %v1810, 7
    %v4862 = vsel %vm129, %v4860, %v4861
    %v4863 = vrot.slane %v1811, 7
    %v4864 = vsel %vm129, %v4861, %v4863
    %v4865 = vrot.slane %v1812, 7
    %v4866 = vsel %vm129, %v4863, %v4865
    %v4869 = vsel %vm129, 0.0, %v4860
    %v4870 = vsel %vm140, %v4866, 0.0
    %4873 = vrot.lane.b32.xlu0 %v4869, 1
    %v4874 = vpop.permute.xlu0 %4873
    %4875 = vrot.lane.b32.xlu0 %v4862, 1
    %v4876 = vpop.permute.xlu0 %4875
    %4877 = vrot.lane.b32.xlu0 %v4864, 1
    %v4878 = vpop.permute.xlu0 %4877
    %4879 = vrot.lane.b32.xlu0 %v4870, 1
    %v4880 = vpop.permute.xlu0 %4879
    %v4885 = vsel %vm156, 0.0, %v4874
    %v4886 = vsel %vm156, 0.0, %v4876
    %v4887 = vsel %vm156, 0.0, %v4878
    %v4888 = vsel %vm156, 0.0, %v4880
    %v4889 = vsel %vm161, %v4885, 0.0
    %v4890 = vsel %vm161, %v4886, 0.0
    %v4891 = vsel %vm161, %v4887, 0.0
    %v4892 = vsel %vm161, %v4888, 0.0
    %v4893 = vmul.f32 %v2641, %v4889
    %v4894 = vmul.f32 %v2641, %v4890
    %v4895 = vmul.f32 %v2641, %v4891
    %v4896 = vmul.f32 %v2641, %v4892
    %v4897 = vadd.f32 %v4790, %v4893
    %v4898 = vadd.f32 %v4791, %v4894
    %v4899 = vadd.f32 %v4792, %v4895
    %v4900 = vadd.f32 %v4793, %v4896
    %v4901 = vmul.f32 %v2651, %v4889
    %v4902 = vmul.f32 %v2651, %v4890
    %v4903 = vmul.f32 %v2651, %v4891
    %v4904 = vmul.f32 %v2651, %v4892
    %v4905 = vadd.f32 %v4821, %v4901
    %v4906 = vadd.f32 %v4822, %v4902
    %v4907 = vadd.f32 %v4823, %v4903
    %v4908 = vadd.f32 %v4824, %v4904
    %v4909 = vmul.f32 %v2661, %v4889
    %v4910 = vmul.f32 %v2661, %v4890
    %v4911 = vmul.f32 %v2661, %v4891
    %v4912 = vmul.f32 %v2661, %v4892
    %v4913 = vadd.f32 %v4852, %v4909
    %v4914 = vadd.f32 %v4853, %v4910
    %v4915 = vadd.f32 %v4854, %v4911
    %v4916 = vadd.f32 %v4855, %v4912
    %v4917 = vmul.f32 %v2671, %v4889
    %v4918 = vmul.f32 %v2671, %v4890
    %v4919 = vmul.f32 %v2671, %v4891
    %v4920 = vmul.f32 %v2671, %v4892
    %4925 = vrot.lane.b32.xlu0 %v4917, 127
    %v4926 = vpop.permute.xlu0 %4925
    %4927 = vrot.lane.b32.xlu0 %v4918, 127
    %v4928 = vpop.permute.xlu0 %4927
    %4929 = vrot.lane.b32.xlu0 %v4919, 127
    %v4930 = vpop.permute.xlu0 %4929
    %4931 = vrot.lane.b32.xlu0 %v4920, 127
    %v4932 = vpop.permute.xlu0 %4931
    %v4937 = vadd.f32 %v4897, %v4926
    %v4938 = vadd.f32 %v4898, %v4928
    %v4939 = vadd.f32 %v4899, %v4930
    %v4940 = vadd.f32 %v4900, %v4932
    %v4941 = vmul.f32 %v2697, %v4889
    %v4942 = vmul.f32 %v2697, %v4890
    %v4943 = vmul.f32 %v2697, %v4891
    %v4944 = vmul.f32 %v2697, %v4892
    %4949 = vrot.lane.b32.xlu0 %v4941, 127
    %v4950 = vpop.permute.xlu0 %4949
    %4951 = vrot.lane.b32.xlu0 %v4942, 127
    %v4952 = vpop.permute.xlu0 %4951
    %4953 = vrot.lane.b32.xlu0 %v4943, 127
    %v4954 = vpop.permute.xlu0 %4953
    %4955 = vrot.lane.b32.xlu0 %v4944, 127
    %v4956 = vpop.permute.xlu0 %4955
    %v4961 = vadd.f32 %v4905, %v4950
    %v4962 = vadd.f32 %v4906, %v4952
    %v4963 = vadd.f32 %v4907, %v4954
    %v4964 = vadd.f32 %v4908, %v4956
    %v4965 = vmul.f32 %v2723, %v4889
    %v4966 = vmul.f32 %v2723, %v4890
    %v4967 = vmul.f32 %v2723, %v4891
    %v4968 = vmul.f32 %v2723, %v4892
    %4973 = vrot.lane.b32.xlu0 %v4965, 127
    %v4974 = vpop.permute.xlu0 %4973
    %4975 = vrot.lane.b32.xlu0 %v4966, 127
    %v4976 = vpop.permute.xlu0 %4975
    %4977 = vrot.lane.b32.xlu0 %v4967, 127
    %v4978 = vpop.permute.xlu0 %4977
    %4979 = vrot.lane.b32.xlu0 %v4968, 127
    %v4980 = vpop.permute.xlu0 %4979
    %v4985 = vadd.f32 %v4913, %v4974
    %v4986 = vadd.f32 %v4914, %v4976
    %v4987 = vadd.f32 %v4915, %v4978
    %v4988 = vadd.f32 %v4916, %v4980
    %v4989 = vmul.f32 %v2749, %v4889
    %v4990 = vmul.f32 %v2749, %v4890
    %v4991 = vmul.f32 %v2749, %v4891
    %v4992 = vmul.f32 %v2749, %v4892
    %4997 = vrot.lane.b32.xlu0 %v4989, 126
    %v4998 = vpop.permute.xlu0 %4997
    %4999 = vrot.lane.b32.xlu0 %v4990, 126
    %v5000 = vpop.permute.xlu0 %4999
    %5001 = vrot.lane.b32.xlu0 %v4991, 126
    %v5002 = vpop.permute.xlu0 %5001
    %5003 = vrot.lane.b32.xlu0 %v4992, 126
    %v5004 = vpop.permute.xlu0 %5003
    %v5009 = vadd.f32 %v4937, %v4998
    %v5010 = vadd.f32 %v4938, %v5000
    %v5011 = vadd.f32 %v4939, %v5002
    %v5012 = vadd.f32 %v4940, %v5004
    %v5013 = vmul.f32 %v2775, %v4889
    %v5014 = vmul.f32 %v2775, %v4890
    %v5015 = vmul.f32 %v2775, %v4891
    %v5016 = vmul.f32 %v2775, %v4892
    %5021 = vrot.lane.b32.xlu0 %v5013, 126
    %v5022 = vpop.permute.xlu0 %5021
    %5023 = vrot.lane.b32.xlu0 %v5014, 126
    %v5024 = vpop.permute.xlu0 %5023
    %5025 = vrot.lane.b32.xlu0 %v5015, 126
    %v5026 = vpop.permute.xlu0 %5025
    %5027 = vrot.lane.b32.xlu0 %v5016, 126
    %v5028 = vpop.permute.xlu0 %5027
    %v5033 = vadd.f32 %v4961, %v5022
    %v5034 = vadd.f32 %v4962, %v5024
    %v5035 = vadd.f32 %v4963, %v5026
    %v5036 = vadd.f32 %v4964, %v5028
    %v5037 = vmul.f32 %v2801, %v4889
    %v5038 = vmul.f32 %v2801, %v4890
    %v5039 = vmul.f32 %v2801, %v4891
    %v5040 = vmul.f32 %v2801, %v4892
    %5045 = vrot.lane.b32.xlu0 %v5037, 126
    %v5046 = vpop.permute.xlu0 %5045
    %5047 = vrot.lane.b32.xlu0 %v5038, 126
    %v5048 = vpop.permute.xlu0 %5047
    %5049 = vrot.lane.b32.xlu0 %v5039, 126
    %v5050 = vpop.permute.xlu0 %5049
    %5051 = vrot.lane.b32.xlu0 %v5040, 126
    %v5052 = vpop.permute.xlu0 %5051
    %v5057 = vadd.f32 %v4985, %v5046
    %v5058 = vadd.f32 %v4986, %v5048
    %v5059 = vadd.f32 %v4987, %v5050
    %v5060 = vadd.f32 %v4988, %v5052
    %v5061 = vmul.f32 %v2827, %v4889
    %v5062 = vmul.f32 %v2827, %v4890
    %v5063 = vmul.f32 %v2827, %v4891
    %v5064 = vmul.f32 %v2827, %v4892
    %v5069 = vrot.slane %v5061, 1
    %v5070 = vrot.slane %v5062, 1
    %v5071 = vsel %vm362, %v5069, %v5070
    %v5072 = vrot.slane %v5063, 1
    %v5073 = vsel %vm362, %v5070, %v5072
    %v5074 = vrot.slane %v5064, 1
    %v5075 = vsel %vm362, %v5072, %v5074
    %v5080 = vadd.f32 %v5009, %v5071
    %v5081 = vadd.f32 %v5010, %v5073
    %v5082 = vadd.f32 %v5011, %v5075
    %v5083 = vadd.f32 %v5012, %v5074
    %v5084 = vmul.f32 %v2852, %v4889
    %v5085 = vmul.f32 %v2852, %v4890
    %v5086 = vmul.f32 %v2852, %v4891
    %v5087 = vmul.f32 %v2852, %v4892
    %v5092 = vrot.slane %v5084, 1
    %v5093 = vrot.slane %v5085, 1
    %v5094 = vsel %vm362, %v5092, %v5093
    %v5095 = vrot.slane %v5086, 1
    %v5096 = vsel %vm362, %v5093, %v5095
    %v5097 = vrot.slane %v5087, 1
    %v5098 = vsel %vm362, %v5095, %v5097
    %v5103 = vadd.f32 %v5033, %v5094
    %v5104 = vadd.f32 %v5034, %v5096
    %v5105 = vadd.f32 %v5035, %v5098
    %v5106 = vadd.f32 %v5036, %v5097
    %v5107 = vmul.f32 %v2877, %v4889
    %v5108 = vmul.f32 %v2877, %v4890
    %v5109 = vmul.f32 %v2877, %v4891
    %v5110 = vmul.f32 %v2877, %v4892
    %v5115 = vrot.slane %v5107, 1
    %v5116 = vrot.slane %v5108, 1
    %v5117 = vsel %vm362, %v5115, %v5116
    %v5118 = vrot.slane %v5109, 1
    %v5119 = vsel %vm362, %v5116, %v5118
    %v5120 = vrot.slane %v5110, 1
    %v5121 = vsel %vm362, %v5118, %v5120
    %v5126 = vadd.f32 %v5057, %v5117
    %v5127 = vadd.f32 %v5058, %v5119
    %v5128 = vadd.f32 %v5059, %v5121
    %v5129 = vadd.f32 %v5060, %v5120
    %v5130 = vmul.f32 %v2902, %v4889
    %v5131 = vmul.f32 %v2902, %v4890
    %v5132 = vmul.f32 %v2902, %v4891
    %v5133 = vmul.f32 %v2902, %v4892
    %v5138 = vrot.slane %v5130, 1
    %v5139 = vrot.slane %v5131, 1
    %v5140 = vsel %vm362, %v5138, %v5139
    %v5141 = vrot.slane %v5132, 1
    %v5142 = vsel %vm362, %v5139, %v5141
    %v5143 = vrot.slane %v5133, 1
    %v5144 = vsel %vm362, %v5141, %v5143
    %5145 = vrot.lane.b32.xlu0 %v5140, 127
    %v5146 = vpop.permute.xlu0 %5145
    %5147 = vrot.lane.b32.xlu0 %v5142, 127
    %v5148 = vpop.permute.xlu0 %5147
    %5149 = vrot.lane.b32.xlu0 %v5144, 127
    %v5150 = vpop.permute.xlu0 %5149
    %5151 = vrot.lane.b32.xlu0 %v5143, 127
    %v5152 = vpop.permute.xlu0 %5151
    %v5157 = vadd.f32 %v5080, %v5146
    %v5158 = vadd.f32 %v5081, %v5148
    %v5159 = vadd.f32 %v5082, %v5150
    %v5160 = vadd.f32 %v5083, %v5152
    %v5161 = vmul.f32 %v2935, %v4889
    %v5162 = vmul.f32 %v2935, %v4890
    %v5163 = vmul.f32 %v2935, %v4891
    %v5164 = vmul.f32 %v2935, %v4892
    %v5169 = vrot.slane %v5161, 1
    %v5170 = vrot.slane %v5162, 1
    %v5171 = vsel %vm362, %v5169, %v5170
    %v5172 = vrot.slane %v5163, 1
    %v5173 = vsel %vm362, %v5170, %v5172
    %v5174 = vrot.slane %v5164, 1
    %v5175 = vsel %vm362, %v5172, %v5174
    %5176 = vrot.lane.b32.xlu0 %v5171, 127
    %v5177 = vpop.permute.xlu0 %5176
    %5178 = vrot.lane.b32.xlu0 %v5173, 127
    %v5179 = vpop.permute.xlu0 %5178
    %5180 = vrot.lane.b32.xlu0 %v5175, 127
    %v5181 = vpop.permute.xlu0 %5180
    %5182 = vrot.lane.b32.xlu0 %v5174, 127
    %v5183 = vpop.permute.xlu0 %5182
    %v5188 = vadd.f32 %v5103, %v5177
    %v5189 = vadd.f32 %v5104, %v5179
    %v5190 = vadd.f32 %v5105, %v5181
    %v5191 = vadd.f32 %v5106, %v5183
    %v5192 = vmul.f32 %v2968, %v4889
    %v5193 = vmul.f32 %v2968, %v4890
    %v5194 = vmul.f32 %v2968, %v4891
    %v5195 = vmul.f32 %v2968, %v4892
    %v5200 = vrot.slane %v5192, 1
    %v5201 = vrot.slane %v5193, 1
    %v5202 = vsel %vm362, %v5200, %v5201
    %v5203 = vrot.slane %v5194, 1
    %v5204 = vsel %vm362, %v5201, %v5203
    %v5205 = vrot.slane %v5195, 1
    %v5206 = vsel %vm362, %v5203, %v5205
    %5207 = vrot.lane.b32.xlu0 %v5202, 127
    %v5208 = vpop.permute.xlu0 %5207
    %5209 = vrot.lane.b32.xlu0 %v5204, 127
    %v5210 = vpop.permute.xlu0 %5209
    %5211 = vrot.lane.b32.xlu0 %v5206, 127
    %v5212 = vpop.permute.xlu0 %5211
    %5213 = vrot.lane.b32.xlu0 %v5205, 127
    %v5214 = vpop.permute.xlu0 %5213
    %v5219 = vadd.f32 %v5126, %v5208
    %v5220 = vadd.f32 %v5127, %v5210
    %v5221 = vadd.f32 %v5128, %v5212
    %v5222 = vadd.f32 %v5129, %v5214
    %v5223 = vmul.f32 %v3001, %v4889
    %v5224 = vmul.f32 %v3001, %v4890
    %v5225 = vmul.f32 %v3001, %v4891
    %v5226 = vmul.f32 %v3001, %v4892
    %v5231 = vrot.slane %v5223, 1
    %v5232 = vrot.slane %v5224, 1
    %v5233 = vsel %vm362, %v5231, %v5232
    %v5234 = vrot.slane %v5225, 1
    %v5235 = vsel %vm362, %v5232, %v5234
    %v5236 = vrot.slane %v5226, 1
    %v5237 = vsel %vm362, %v5234, %v5236
    %5238 = vrot.lane.b32.xlu0 %v5233, 126
    %v5239 = vpop.permute.xlu0 %5238
    %5240 = vrot.lane.b32.xlu0 %v5235, 126
    %v5241 = vpop.permute.xlu0 %5240
    %5242 = vrot.lane.b32.xlu0 %v5237, 126
    %v5243 = vpop.permute.xlu0 %5242
    %5244 = vrot.lane.b32.xlu0 %v5236, 126
    %v5245 = vpop.permute.xlu0 %5244
    %v5250 = vadd.f32 %v5157, %v5239
    %v5251 = vadd.f32 %v5158, %v5241
    %v5252 = vadd.f32 %v5159, %v5243
    %v5253 = vadd.f32 %v5160, %v5245
    %v5254 = vmul.f32 %v3034, %v4889
    %v5255 = vmul.f32 %v3034, %v4890
    %v5256 = vmul.f32 %v3034, %v4891
    %v5257 = vmul.f32 %v3034, %v4892
    %v5262 = vrot.slane %v5254, 1
    %v5263 = vrot.slane %v5255, 1
    %v5264 = vsel %vm362, %v5262, %v5263
    %v5265 = vrot.slane %v5256, 1
    %v5266 = vsel %vm362, %v5263, %v5265
    %v5267 = vrot.slane %v5257, 1
    %v5268 = vsel %vm362, %v5265, %v5267
    %5269 = vrot.lane.b32.xlu0 %v5264, 126
    %v5270 = vpop.permute.xlu0 %5269
    %5271 = vrot.lane.b32.xlu0 %v5266, 126
    %v5272 = vpop.permute.xlu0 %5271
    %5273 = vrot.lane.b32.xlu0 %v5268, 126
    %v5274 = vpop.permute.xlu0 %5273
    %5275 = vrot.lane.b32.xlu0 %v5267, 126
    %v5276 = vpop.permute.xlu0 %5275
    %v5281 = vadd.f32 %v5188, %v5270
    %v5282 = vadd.f32 %v5189, %v5272
    %v5283 = vadd.f32 %v5190, %v5274
    %v5284 = vadd.f32 %v5191, %v5276
    %v5285 = vmul.f32 %v3067, %v4889
    %v5286 = vmul.f32 %v3067, %v4890
    %v5287 = vmul.f32 %v3067, %v4891
    %v5288 = vmul.f32 %v3067, %v4892
    %v5293 = vrot.slane %v5285, 1
    %v5294 = vrot.slane %v5286, 1
    %v5295 = vsel %vm362, %v5293, %v5294
    %v5296 = vrot.slane %v5287, 1
    %v5297 = vsel %vm362, %v5294, %v5296
    %v5298 = vrot.slane %v5288, 1
    %v5299 = vsel %vm362, %v5296, %v5298
    %5300 = vrot.lane.b32.xlu0 %v5295, 126
    %v5301 = vpop.permute.xlu0 %5300
    %5302 = vrot.lane.b32.xlu0 %v5297, 126
    %v5303 = vpop.permute.xlu0 %5302
    %5304 = vrot.lane.b32.xlu0 %v5299, 126
    %v5305 = vpop.permute.xlu0 %5304
    %5306 = vrot.lane.b32.xlu0 %v5298, 126
    %v5307 = vpop.permute.xlu0 %5306
    %v5312 = vadd.f32 %v5219, %v5301
    %v5313 = vadd.f32 %v5220, %v5303
    %v5314 = vadd.f32 %v5221, %v5305
    %v5315 = vadd.f32 %v5222, %v5307
    %v5316 = vmul.f32 %v3100, %v4889
    %v5317 = vmul.f32 %v3100, %v4890
    %v5318 = vmul.f32 %v3100, %v4891
    %v5319 = vmul.f32 %v3100, %v4892
    %v5324 = vrot.slane %v5316, 2
    %v5325 = vrot.slane %v5317, 2
    %v5326 = vsel %vm636, %v5324, %v5325
    %v5327 = vrot.slane %v5318, 2
    %v5328 = vsel %vm636, %v5325, %v5327
    %v5329 = vrot.slane %v5319, 2
    %v5330 = vsel %vm636, %v5327, %v5329
    %v5335 = vadd.f32 %v5250, %v5326
    %v5336 = vadd.f32 %v5251, %v5328
    %v5337 = vadd.f32 %v5252, %v5330
    %v5338 = vadd.f32 %v5253, %v5329
    %v5339 = vmul.f32 %v3125, %v4889
    %v5340 = vmul.f32 %v3125, %v4890
    %v5341 = vmul.f32 %v3125, %v4891
    %v5342 = vmul.f32 %v3125, %v4892
    %v5347 = vrot.slane %v5339, 2
    %v5348 = vrot.slane %v5340, 2
    %v5349 = vsel %vm636, %v5347, %v5348
    %v5350 = vrot.slane %v5341, 2
    %v5351 = vsel %vm636, %v5348, %v5350
    %v5352 = vrot.slane %v5342, 2
    %v5353 = vsel %vm636, %v5350, %v5352
    %v5358 = vadd.f32 %v5281, %v5349
    %v5359 = vadd.f32 %v5282, %v5351
    %v5360 = vadd.f32 %v5283, %v5353
    %v5361 = vadd.f32 %v5284, %v5352
    %v5362 = vmul.f32 %v3150, %v4889
    %v5363 = vmul.f32 %v3150, %v4890
    %v5364 = vmul.f32 %v3150, %v4891
    %v5365 = vmul.f32 %v3150, %v4892
    %v5370 = vrot.slane %v5362, 2
    %v5371 = vrot.slane %v5363, 2
    %v5372 = vsel %vm636, %v5370, %v5371
    %v5373 = vrot.slane %v5364, 2
    %v5374 = vsel %vm636, %v5371, %v5373
    %v5375 = vrot.slane %v5365, 2
    %v5376 = vsel %vm636, %v5373, %v5375
    %v5381 = vadd.f32 %v5312, %v5372
    %v5382 = vadd.f32 %v5313, %v5374
    %v5383 = vadd.f32 %v5314, %v5376
    %v5384 = vadd.f32 %v5315, %v5375
    %v5385 = vmul.f32 %v3175, %v4889
    %v5386 = vmul.f32 %v3175, %v4890
    %v5387 = vmul.f32 %v3175, %v4891
    %v5388 = vmul.f32 %v3175, %v4892
    %v5393 = vrot.slane %v5385, 2
    %v5394 = vrot.slane %v5386, 2
    %v5395 = vsel %vm636, %v5393, %v5394
    %v5396 = vrot.slane %v5387, 2
    %v5397 = vsel %vm636, %v5394, %v5396
    %v5398 = vrot.slane %v5388, 2
    %v5399 = vsel %vm636, %v5396, %v5398
    %5400 = vrot.lane.b32.xlu0 %v5395, 127
    %v5401 = vpop.permute.xlu0 %5400
    %5402 = vrot.lane.b32.xlu0 %v5397, 127
    %v5403 = vpop.permute.xlu0 %5402
    %5404 = vrot.lane.b32.xlu0 %v5399, 127
    %v5405 = vpop.permute.xlu0 %5404
    %5406 = vrot.lane.b32.xlu0 %v5398, 127
    %v5407 = vpop.permute.xlu0 %5406
    %v5412 = vadd.f32 %v5335, %v5401
    %v5413 = vadd.f32 %v5336, %v5403
    %v5414 = vadd.f32 %v5337, %v5405
    %v5415 = vadd.f32 %v5338, %v5407
    %v5416 = vmul.f32 %v3208, %v4889
    %v5417 = vmul.f32 %v3208, %v4890
    %v5418 = vmul.f32 %v3208, %v4891
    %v5419 = vmul.f32 %v3208, %v4892
    %v5424 = vrot.slane %v5416, 2
    %v5425 = vrot.slane %v5417, 2
    %v5426 = vsel %vm636, %v5424, %v5425
    %v5427 = vrot.slane %v5418, 2
    %v5428 = vsel %vm636, %v5425, %v5427
    %v5429 = vrot.slane %v5419, 2
    %v5430 = vsel %vm636, %v5427, %v5429
    %5431 = vrot.lane.b32.xlu0 %v5426, 127
    %v5432 = vpop.permute.xlu0 %5431
    %5433 = vrot.lane.b32.xlu0 %v5428, 127
    %v5434 = vpop.permute.xlu0 %5433
    %5435 = vrot.lane.b32.xlu0 %v5430, 127
    %v5436 = vpop.permute.xlu0 %5435
    %5437 = vrot.lane.b32.xlu0 %v5429, 127
    %v5438 = vpop.permute.xlu0 %5437
    %v5443 = vadd.f32 %v5358, %v5432
    %v5444 = vadd.f32 %v5359, %v5434
    %v5445 = vadd.f32 %v5360, %v5436
    %v5446 = vadd.f32 %v5361, %v5438
    %v5447 = vmul.f32 %v3241, %v4889
    %v5448 = vmul.f32 %v3241, %v4890
    %v5449 = vmul.f32 %v3241, %v4891
    %v5450 = vmul.f32 %v3241, %v4892
    %v5455 = vrot.slane %v5447, 2
    %v5456 = vrot.slane %v5448, 2
    %v5457 = vsel %vm636, %v5455, %v5456
    %v5458 = vrot.slane %v5449, 2
    %v5459 = vsel %vm636, %v5456, %v5458
    %v5460 = vrot.slane %v5450, 2
    %v5461 = vsel %vm636, %v5458, %v5460
    %5462 = vrot.lane.b32.xlu0 %v5457, 127
    %v5463 = vpop.permute.xlu0 %5462
    %5464 = vrot.lane.b32.xlu0 %v5459, 127
    %v5465 = vpop.permute.xlu0 %5464
    %5466 = vrot.lane.b32.xlu0 %v5461, 127
    %v5467 = vpop.permute.xlu0 %5466
    %5468 = vrot.lane.b32.xlu0 %v5460, 127
    %v5469 = vpop.permute.xlu0 %5468
    %v5474 = vadd.f32 %v5381, %v5463
    %v5475 = vadd.f32 %v5382, %v5465
    %v5476 = vadd.f32 %v5383, %v5467
    %v5477 = vadd.f32 %v5384, %v5469
    %v5478 = vmul.f32 %v3274, %v4889
    %v5479 = vmul.f32 %v3274, %v4890
    %v5480 = vmul.f32 %v3274, %v4891
    %v5481 = vmul.f32 %v3274, %v4892
    %v5486 = vrot.slane %v5478, 2
    %v5487 = vrot.slane %v5479, 2
    %v5488 = vsel %vm636, %v5486, %v5487
    %v5489 = vrot.slane %v5480, 2
    %v5490 = vsel %vm636, %v5487, %v5489
    %v5491 = vrot.slane %v5481, 2
    %v5492 = vsel %vm636, %v5489, %v5491
    %5493 = vrot.lane.b32.xlu0 %v5488, 126
    %v5494 = vpop.permute.xlu0 %5493
    %5495 = vrot.lane.b32.xlu0 %v5490, 126
    %v5496 = vpop.permute.xlu0 %5495
    %5497 = vrot.lane.b32.xlu0 %v5492, 126
    %v5498 = vpop.permute.xlu0 %5497
    %5499 = vrot.lane.b32.xlu0 %v5491, 126
    %v5500 = vpop.permute.xlu0 %5499
    %v5505 = vadd.f32 %v5412, %v5494
    %v5506 = vadd.f32 %v5413, %v5496
    %v5507 = vadd.f32 %v5414, %v5498
    %v5508 = vadd.f32 %v5415, %v5500
    %v5509 = vmul.f32 %v3307, %v4889
    %v5510 = vmul.f32 %v3307, %v4890
    %v5511 = vmul.f32 %v3307, %v4891
    %v5512 = vmul.f32 %v3307, %v4892
    %v5517 = vrot.slane %v5509, 2
    %v5518 = vrot.slane %v5510, 2
    %v5519 = vsel %vm636, %v5517, %v5518
    %v5520 = vrot.slane %v5511, 2
    %v5521 = vsel %vm636, %v5518, %v5520
    %v5522 = vrot.slane %v5512, 2
    %v5523 = vsel %vm636, %v5520, %v5522
    %5524 = vrot.lane.b32.xlu0 %v5519, 126
    %v5525 = vpop.permute.xlu0 %5524
    %5526 = vrot.lane.b32.xlu0 %v5521, 126
    %v5527 = vpop.permute.xlu0 %5526
    %5528 = vrot.lane.b32.xlu0 %v5523, 126
    %v5529 = vpop.permute.xlu0 %5528
    %5530 = vrot.lane.b32.xlu0 %v5522, 126
    %v5531 = vpop.permute.xlu0 %5530
    %v5536 = vadd.f32 %v5443, %v5525
    %v5537 = vadd.f32 %v5444, %v5527
    %v5538 = vadd.f32 %v5445, %v5529
    %v5539 = vadd.f32 %v5446, %v5531
    %v5540 = vmul.f32 %v3340, %v4889
    %v5541 = vmul.f32 %v3340, %v4890
    %v5542 = vmul.f32 %v3340, %v4891
    %v5543 = vmul.f32 %v3340, %v4892
    %v5548 = vrot.slane %v5540, 2
    %v5549 = vrot.slane %v5541, 2
    %v5550 = vsel %vm636, %v5548, %v5549
    %v5551 = vrot.slane %v5542, 2
    %v5552 = vsel %vm636, %v5549, %v5551
    %v5553 = vrot.slane %v5543, 2
    %v5554 = vsel %vm636, %v5551, %v5553
    %5555 = vrot.lane.b32.xlu0 %v5550, 126
    %v5556 = vpop.permute.xlu0 %5555
    %5557 = vrot.lane.b32.xlu0 %v5552, 126
    %v5558 = vpop.permute.xlu0 %5557
    %5559 = vrot.lane.b32.xlu0 %v5554, 126
    %v5560 = vpop.permute.xlu0 %5559
    %5561 = vrot.lane.b32.xlu0 %v5553, 126
    %v5562 = vpop.permute.xlu0 %5561
    %v5567 = vadd.f32 %v5474, %v5556
    %v5568 = vadd.f32 %v5475, %v5558
    %v5569 = vadd.f32 %v5476, %v5560
    %v5570 = vadd.f32 %v5477, %v5562
    %v5575 = vrot.slane %v1821, 7
    %v5576 = vrot.slane %v1822, 7
    %v5577 = vsel %vm129, %v5575, %v5576
    %v5578 = vrot.slane %v1823, 7
    %v5579 = vsel %vm129, %v5576, %v5578
    %v5580 = vrot.slane %v1824, 7
    %v5581 = vsel %vm129, %v5578, %v5580
    %v5584 = vsel %vm129, 0.0, %v5575
    %v5585 = vsel %vm140, %v5581, 0.0
    %5588 = vrot.lane.b32.xlu0 %v5584, 1
    %v5589 = vpop.permute.xlu0 %5588
    %5590 = vrot.lane.b32.xlu0 %v5577, 1
    %v5591 = vpop.permute.xlu0 %5590
    %5592 = vrot.lane.b32.xlu0 %v5579, 1
    %v5593 = vpop.permute.xlu0 %5592
    %5594 = vrot.lane.b32.xlu0 %v5585, 1
    %v5595 = vpop.permute.xlu0 %5594
    %v5600 = vsel %vm156, 0.0, %v5589
    %v5601 = vsel %vm156, 0.0, %v5591
    %v5602 = vsel %vm156, 0.0, %v5593
    %v5603 = vsel %vm156, 0.0, %v5595
    %v5604 = vsel %vm161, %v5600, 0.0
    %v5605 = vsel %vm161, %v5601, 0.0
    %v5606 = vsel %vm161, %v5602, 0.0
    %v5607 = vsel %vm161, %v5603, 0.0
    %v5608 = vmul.f32 %v3410, %v5604
    %v5609 = vmul.f32 %v3410, %v5605
    %v5610 = vmul.f32 %v3410, %v5606
    %v5611 = vmul.f32 %v3410, %v5607
    %v5612 = vadd.f32 %v5505, %v5608
    %v5613 = vadd.f32 %v5506, %v5609
    %v5614 = vadd.f32 %v5507, %v5610
    %v5615 = vadd.f32 %v5508, %v5611
    %v5616 = vmul.f32 %v3420, %v5604
    %v5617 = vmul.f32 %v3420, %v5605
    %v5618 = vmul.f32 %v3420, %v5606
    %v5619 = vmul.f32 %v3420, %v5607
    %v5620 = vadd.f32 %v5536, %v5616
    %v5621 = vadd.f32 %v5537, %v5617
    %v5622 = vadd.f32 %v5538, %v5618
    %v5623 = vadd.f32 %v5539, %v5619
    %v5624 = vmul.f32 %v3430, %v5604
    %v5625 = vmul.f32 %v3430, %v5605
    %v5626 = vmul.f32 %v3430, %v5606
    %v5627 = vmul.f32 %v3430, %v5607
    %v5628 = vadd.f32 %v5567, %v5624
    %v5629 = vadd.f32 %v5568, %v5625
    %v5630 = vadd.f32 %v5569, %v5626
    %v5631 = vadd.f32 %v5570, %v5627
    %v5632 = vmul.f32 %v3440, %v5604
    %v5633 = vmul.f32 %v3440, %v5605
    %v5634 = vmul.f32 %v3440, %v5606
    %v5635 = vmul.f32 %v3440, %v5607
    %5640 = vrot.lane.b32.xlu0 %v5632, 127
    %v5641 = vpop.permute.xlu0 %5640
    %5642 = vrot.lane.b32.xlu0 %v5633, 127
    %v5643 = vpop.permute.xlu0 %5642
    %5644 = vrot.lane.b32.xlu0 %v5634, 127
    %v5645 = vpop.permute.xlu0 %5644
    %5646 = vrot.lane.b32.xlu0 %v5635, 127
    %v5647 = vpop.permute.xlu0 %5646
    %v5652 = vadd.f32 %v5612, %v5641
    %v5653 = vadd.f32 %v5613, %v5643
    %v5654 = vadd.f32 %v5614, %v5645
    %v5655 = vadd.f32 %v5615, %v5647
    %v5656 = vmul.f32 %v3466, %v5604
    %v5657 = vmul.f32 %v3466, %v5605
    %v5658 = vmul.f32 %v3466, %v5606
    %v5659 = vmul.f32 %v3466, %v5607
    %5664 = vrot.lane.b32.xlu0 %v5656, 127
    %v5665 = vpop.permute.xlu0 %5664
    %5666 = vrot.lane.b32.xlu0 %v5657, 127
    %v5667 = vpop.permute.xlu0 %5666
    %5668 = vrot.lane.b32.xlu0 %v5658, 127
    %v5669 = vpop.permute.xlu0 %5668
    %5670 = vrot.lane.b32.xlu0 %v5659, 127
    %v5671 = vpop.permute.xlu0 %5670
    %v5676 = vadd.f32 %v5620, %v5665
    %v5677 = vadd.f32 %v5621, %v5667
    %v5678 = vadd.f32 %v5622, %v5669
    %v5679 = vadd.f32 %v5623, %v5671
    %v5680 = vmul.f32 %v3492, %v5604
    %v5681 = vmul.f32 %v3492, %v5605
    %v5682 = vmul.f32 %v3492, %v5606
    %v5683 = vmul.f32 %v3492, %v5607
    %5688 = vrot.lane.b32.xlu0 %v5680, 127
    %v5689 = vpop.permute.xlu0 %5688
    %5690 = vrot.lane.b32.xlu0 %v5681, 127
    %v5691 = vpop.permute.xlu0 %5690
    %5692 = vrot.lane.b32.xlu0 %v5682, 127
    %v5693 = vpop.permute.xlu0 %5692
    %5694 = vrot.lane.b32.xlu0 %v5683, 127
    %v5695 = vpop.permute.xlu0 %5694
    %v5700 = vadd.f32 %v5628, %v5689
    %v5701 = vadd.f32 %v5629, %v5691
    %v5702 = vadd.f32 %v5630, %v5693
    %v5703 = vadd.f32 %v5631, %v5695
    %v5704 = vmul.f32 %v3518, %v5604
    %v5705 = vmul.f32 %v3518, %v5605
    %v5706 = vmul.f32 %v3518, %v5606
    %v5707 = vmul.f32 %v3518, %v5607
    %5712 = vrot.lane.b32.xlu0 %v5704, 126
    %v5713 = vpop.permute.xlu0 %5712
    %5714 = vrot.lane.b32.xlu0 %v5705, 126
    %v5715 = vpop.permute.xlu0 %5714
    %5716 = vrot.lane.b32.xlu0 %v5706, 126
    %v5717 = vpop.permute.xlu0 %5716
    %5718 = vrot.lane.b32.xlu0 %v5707, 126
    %v5719 = vpop.permute.xlu0 %5718
    %v5724 = vadd.f32 %v5652, %v5713
    %v5725 = vadd.f32 %v5653, %v5715
    %v5726 = vadd.f32 %v5654, %v5717
    %v5727 = vadd.f32 %v5655, %v5719
    %v5728 = vmul.f32 %v3544, %v5604
    %v5729 = vmul.f32 %v3544, %v5605
    %v5730 = vmul.f32 %v3544, %v5606
    %v5731 = vmul.f32 %v3544, %v5607
    %5736 = vrot.lane.b32.xlu0 %v5728, 126
    %v5737 = vpop.permute.xlu0 %5736
    %5738 = vrot.lane.b32.xlu0 %v5729, 126
    %v5739 = vpop.permute.xlu0 %5738
    %5740 = vrot.lane.b32.xlu0 %v5730, 126
    %v5741 = vpop.permute.xlu0 %5740
    %5742 = vrot.lane.b32.xlu0 %v5731, 126
    %v5743 = vpop.permute.xlu0 %5742
    %v5748 = vadd.f32 %v5676, %v5737
    %v5749 = vadd.f32 %v5677, %v5739
    %v5750 = vadd.f32 %v5678, %v5741
    %v5751 = vadd.f32 %v5679, %v5743
    %v5752 = vmul.f32 %v3570, %v5604
    %v5753 = vmul.f32 %v3570, %v5605
    %v5754 = vmul.f32 %v3570, %v5606
    %v5755 = vmul.f32 %v3570, %v5607
    %5760 = vrot.lane.b32.xlu0 %v5752, 126
    %v5761 = vpop.permute.xlu0 %5760
    %5762 = vrot.lane.b32.xlu0 %v5753, 126
    %v5763 = vpop.permute.xlu0 %5762
    %5764 = vrot.lane.b32.xlu0 %v5754, 126
    %v5765 = vpop.permute.xlu0 %5764
    %5766 = vrot.lane.b32.xlu0 %v5755, 126
    %v5767 = vpop.permute.xlu0 %5766
    %v5772 = vadd.f32 %v5700, %v5761
    %v5773 = vadd.f32 %v5701, %v5763
    %v5774 = vadd.f32 %v5702, %v5765
    %v5775 = vadd.f32 %v5703, %v5767
    %v5776 = vmul.f32 %v3596, %v5604
    %v5777 = vmul.f32 %v3596, %v5605
    %v5778 = vmul.f32 %v3596, %v5606
    %v5779 = vmul.f32 %v3596, %v5607
    %v5784 = vrot.slane %v5776, 1
    %v5785 = vrot.slane %v5777, 1
    %v5786 = vsel %vm362, %v5784, %v5785
    %v5787 = vrot.slane %v5778, 1
    %v5788 = vsel %vm362, %v5785, %v5787
    %v5789 = vrot.slane %v5779, 1
    %v5790 = vsel %vm362, %v5787, %v5789
    %v5795 = vadd.f32 %v5724, %v5786
    %v5796 = vadd.f32 %v5725, %v5788
    %v5797 = vadd.f32 %v5726, %v5790
    %v5798 = vadd.f32 %v5727, %v5789
    %v5799 = vmul.f32 %v3621, %v5604
    %v5800 = vmul.f32 %v3621, %v5605
    %v5801 = vmul.f32 %v3621, %v5606
    %v5802 = vmul.f32 %v3621, %v5607
    %v5807 = vrot.slane %v5799, 1
    %v5808 = vrot.slane %v5800, 1
    %v5809 = vsel %vm362, %v5807, %v5808
    %v5810 = vrot.slane %v5801, 1
    %v5811 = vsel %vm362, %v5808, %v5810
    %v5812 = vrot.slane %v5802, 1
    %v5813 = vsel %vm362, %v5810, %v5812
    %v5818 = vadd.f32 %v5748, %v5809
    %v5819 = vadd.f32 %v5749, %v5811
    %v5820 = vadd.f32 %v5750, %v5813
    %v5821 = vadd.f32 %v5751, %v5812
    %v5822 = vmul.f32 %v3646, %v5604
    %v5823 = vmul.f32 %v3646, %v5605
    %v5824 = vmul.f32 %v3646, %v5606
    %v5825 = vmul.f32 %v3646, %v5607
    %v5830 = vrot.slane %v5822, 1
    %v5831 = vrot.slane %v5823, 1
    %v5832 = vsel %vm362, %v5830, %v5831
    %v5833 = vrot.slane %v5824, 1
    %v5834 = vsel %vm362, %v5831, %v5833
    %v5835 = vrot.slane %v5825, 1
    %v5836 = vsel %vm362, %v5833, %v5835
    %v5841 = vadd.f32 %v5772, %v5832
    %v5842 = vadd.f32 %v5773, %v5834
    %v5843 = vadd.f32 %v5774, %v5836
    %v5844 = vadd.f32 %v5775, %v5835
    %v5845 = vmul.f32 %v3671, %v5604
    %v5846 = vmul.f32 %v3671, %v5605
    %v5847 = vmul.f32 %v3671, %v5606
    %v5848 = vmul.f32 %v3671, %v5607
    %v5853 = vrot.slane %v5845, 1
    %v5854 = vrot.slane %v5846, 1
    %v5855 = vsel %vm362, %v5853, %v5854
    %v5856 = vrot.slane %v5847, 1
    %v5857 = vsel %vm362, %v5854, %v5856
    %v5858 = vrot.slane %v5848, 1
    %v5859 = vsel %vm362, %v5856, %v5858
    %5860 = vrot.lane.b32.xlu0 %v5855, 127
    %v5861 = vpop.permute.xlu0 %5860
    %5862 = vrot.lane.b32.xlu0 %v5857, 127
    %v5863 = vpop.permute.xlu0 %5862
    %5864 = vrot.lane.b32.xlu0 %v5859, 127
    %v5865 = vpop.permute.xlu0 %5864
    %5866 = vrot.lane.b32.xlu0 %v5858, 127
    %v5867 = vpop.permute.xlu0 %5866
    %v5872 = vadd.f32 %v5795, %v5861
    %v5873 = vadd.f32 %v5796, %v5863
    %v5874 = vadd.f32 %v5797, %v5865
    %v5875 = vadd.f32 %v5798, %v5867
    %v5876 = vmul.f32 %v3704, %v5604
    %v5877 = vmul.f32 %v3704, %v5605
    %v5878 = vmul.f32 %v3704, %v5606
    %v5879 = vmul.f32 %v3704, %v5607
    %v5884 = vrot.slane %v5876, 1
    %v5885 = vrot.slane %v5877, 1
    %v5886 = vsel %vm362, %v5884, %v5885
    %v5887 = vrot.slane %v5878, 1
    %v5888 = vsel %vm362, %v5885, %v5887
    %v5889 = vrot.slane %v5879, 1
    %v5890 = vsel %vm362, %v5887, %v5889
    %5891 = vrot.lane.b32.xlu0 %v5886, 127
    %v5892 = vpop.permute.xlu0 %5891
    %5893 = vrot.lane.b32.xlu0 %v5888, 127
    %v5894 = vpop.permute.xlu0 %5893
    %5895 = vrot.lane.b32.xlu0 %v5890, 127
    %v5896 = vpop.permute.xlu0 %5895
    %5897 = vrot.lane.b32.xlu0 %v5889, 127
    %v5898 = vpop.permute.xlu0 %5897
    %v5903 = vadd.f32 %v5818, %v5892
    %v5904 = vadd.f32 %v5819, %v5894
    %v5905 = vadd.f32 %v5820, %v5896
    %v5906 = vadd.f32 %v5821, %v5898
    %v5907 = vmul.f32 %v3737, %v5604
    %v5908 = vmul.f32 %v3737, %v5605
    %v5909 = vmul.f32 %v3737, %v5606
    %v5910 = vmul.f32 %v3737, %v5607
    %v5915 = vrot.slane %v5907, 1
    %v5916 = vrot.slane %v5908, 1
    %v5917 = vsel %vm362, %v5915, %v5916
    %v5918 = vrot.slane %v5909, 1
    %v5919 = vsel %vm362, %v5916, %v5918
    %v5920 = vrot.slane %v5910, 1
    %v5921 = vsel %vm362, %v5918, %v5920
    %5922 = vrot.lane.b32.xlu0 %v5917, 127
    %v5923 = vpop.permute.xlu0 %5922
    %5924 = vrot.lane.b32.xlu0 %v5919, 127
    %v5925 = vpop.permute.xlu0 %5924
    %5926 = vrot.lane.b32.xlu0 %v5921, 127
    %v5927 = vpop.permute.xlu0 %5926
    %5928 = vrot.lane.b32.xlu0 %v5920, 127
    %v5929 = vpop.permute.xlu0 %5928
    %v5934 = vadd.f32 %v5841, %v5923
    %v5935 = vadd.f32 %v5842, %v5925
    %v5936 = vadd.f32 %v5843, %v5927
    %v5937 = vadd.f32 %v5844, %v5929
    %v5938 = vmul.f32 %v3770, %v5604
    %v5939 = vmul.f32 %v3770, %v5605
    %v5940 = vmul.f32 %v3770, %v5606
    %v5941 = vmul.f32 %v3770, %v5607
    %v5946 = vrot.slane %v5938, 1
    %v5947 = vrot.slane %v5939, 1
    %v5948 = vsel %vm362, %v5946, %v5947
    %v5949 = vrot.slane %v5940, 1
    %v5950 = vsel %vm362, %v5947, %v5949
    %v5951 = vrot.slane %v5941, 1
    %v5952 = vsel %vm362, %v5949, %v5951
    %5953 = vrot.lane.b32.xlu0 %v5948, 126
    %v5954 = vpop.permute.xlu0 %5953
    %5955 = vrot.lane.b32.xlu0 %v5950, 126
    %v5956 = vpop.permute.xlu0 %5955
    %5957 = vrot.lane.b32.xlu0 %v5952, 126
    %v5958 = vpop.permute.xlu0 %5957
    %5959 = vrot.lane.b32.xlu0 %v5951, 126
    %v5960 = vpop.permute.xlu0 %5959
    %v5965 = vadd.f32 %v5872, %v5954
    %v5966 = vadd.f32 %v5873, %v5956
    %v5967 = vadd.f32 %v5874, %v5958
    %v5968 = vadd.f32 %v5875, %v5960
    %v5969 = vmul.f32 %v3803, %v5604
    %v5970 = vmul.f32 %v3803, %v5605
    %v5971 = vmul.f32 %v3803, %v5606
    %v5972 = vmul.f32 %v3803, %v5607
    %v5977 = vrot.slane %v5969, 1
    %v5978 = vrot.slane %v5970, 1
    %v5979 = vsel %vm362, %v5977, %v5978
    %v5980 = vrot.slane %v5971, 1
    %v5981 = vsel %vm362, %v5978, %v5980
    %v5982 = vrot.slane %v5972, 1
    %v5983 = vsel %vm362, %v5980, %v5982
    %5984 = vrot.lane.b32.xlu0 %v5979, 126
    %v5985 = vpop.permute.xlu0 %5984
    %5986 = vrot.lane.b32.xlu0 %v5981, 126
    %v5987 = vpop.permute.xlu0 %5986
    %5988 = vrot.lane.b32.xlu0 %v5983, 126
    %v5989 = vpop.permute.xlu0 %5988
    %5990 = vrot.lane.b32.xlu0 %v5982, 126
    %v5991 = vpop.permute.xlu0 %5990
    %v5996 = vadd.f32 %v5903, %v5985
    %v5997 = vadd.f32 %v5904, %v5987
    %v5998 = vadd.f32 %v5905, %v5989
    %v5999 = vadd.f32 %v5906, %v5991
    %v6000 = vmul.f32 %v3836, %v5604
    %v6001 = vmul.f32 %v3836, %v5605
    %v6002 = vmul.f32 %v3836, %v5606
    %v6003 = vmul.f32 %v3836, %v5607
    %v6008 = vrot.slane %v6000, 1
    %v6009 = vrot.slane %v6001, 1
    %v6010 = vsel %vm362, %v6008, %v6009
    %v6011 = vrot.slane %v6002, 1
    %v6012 = vsel %vm362, %v6009, %v6011
    %v6013 = vrot.slane %v6003, 1
    %v6014 = vsel %vm362, %v6011, %v6013
    %6015 = vrot.lane.b32.xlu0 %v6010, 126
    %v6016 = vpop.permute.xlu0 %6015
    %6017 = vrot.lane.b32.xlu0 %v6012, 126
    %v6018 = vpop.permute.xlu0 %6017
    %6019 = vrot.lane.b32.xlu0 %v6014, 126
    %v6020 = vpop.permute.xlu0 %6019
    %6021 = vrot.lane.b32.xlu0 %v6013, 126
    %v6022 = vpop.permute.xlu0 %6021
    %v6027 = vadd.f32 %v5934, %v6016
    %v6028 = vadd.f32 %v5935, %v6018
    %v6029 = vadd.f32 %v5936, %v6020
    %v6030 = vadd.f32 %v5937, %v6022
    %v6031 = vmul.f32 %v3869, %v5604
    %v6032 = vmul.f32 %v3869, %v5605
    %v6033 = vmul.f32 %v3869, %v5606
    %v6034 = vmul.f32 %v3869, %v5607
    %v6039 = vrot.slane %v6031, 2
    %v6040 = vrot.slane %v6032, 2
    %v6041 = vsel %vm636, %v6039, %v6040
    %v6042 = vrot.slane %v6033, 2
    %v6043 = vsel %vm636, %v6040, %v6042
    %v6044 = vrot.slane %v6034, 2
    %v6045 = vsel %vm636, %v6042, %v6044
    %v6050 = vadd.f32 %v5965, %v6041
    %v6051 = vadd.f32 %v5966, %v6043
    %v6052 = vadd.f32 %v5967, %v6045
    %v6053 = vadd.f32 %v5968, %v6044
    %v6054 = vmul.f32 %v3894, %v5604
    %v6055 = vmul.f32 %v3894, %v5605
    %v6056 = vmul.f32 %v3894, %v5606
    %v6057 = vmul.f32 %v3894, %v5607
    %v6062 = vrot.slane %v6054, 2
    %v6063 = vrot.slane %v6055, 2
    %v6064 = vsel %vm636, %v6062, %v6063
    %v6065 = vrot.slane %v6056, 2
    %v6066 = vsel %vm636, %v6063, %v6065
    %v6067 = vrot.slane %v6057, 2
    %v6068 = vsel %vm636, %v6065, %v6067
    %v6073 = vadd.f32 %v5996, %v6064
    %v6074 = vadd.f32 %v5997, %v6066
    %v6075 = vadd.f32 %v5998, %v6068
    %v6076 = vadd.f32 %v5999, %v6067
    %v6077 = vmul.f32 %v3919, %v5604
    %v6078 = vmul.f32 %v3919, %v5605
    %v6079 = vmul.f32 %v3919, %v5606
    %v6080 = vmul.f32 %v3919, %v5607
    %v6085 = vrot.slane %v6077, 2
    %v6086 = vrot.slane %v6078, 2
    %v6087 = vsel %vm636, %v6085, %v6086
    %v6088 = vrot.slane %v6079, 2
    %v6089 = vsel %vm636, %v6086, %v6088
    %v6090 = vrot.slane %v6080, 2
    %v6091 = vsel %vm636, %v6088, %v6090
    %v6096 = vadd.f32 %v6027, %v6087
    %v6097 = vadd.f32 %v6028, %v6089
    %v6098 = vadd.f32 %v6029, %v6091
    %v6099 = vadd.f32 %v6030, %v6090
    %v6100 = vmul.f32 %v3944, %v5604
    %v6101 = vmul.f32 %v3944, %v5605
    %v6102 = vmul.f32 %v3944, %v5606
    %v6103 = vmul.f32 %v3944, %v5607
    %v6108 = vrot.slane %v6100, 2
    %v6109 = vrot.slane %v6101, 2
    %v6110 = vsel %vm636, %v6108, %v6109
    %v6111 = vrot.slane %v6102, 2
    %v6112 = vsel %vm636, %v6109, %v6111
    %v6113 = vrot.slane %v6103, 2
    %v6114 = vsel %vm636, %v6111, %v6113
    %6115 = vrot.lane.b32.xlu0 %v6110, 127
    %v6116 = vpop.permute.xlu0 %6115
    %6117 = vrot.lane.b32.xlu0 %v6112, 127
    %v6118 = vpop.permute.xlu0 %6117
    %6119 = vrot.lane.b32.xlu0 %v6114, 127
    %v6120 = vpop.permute.xlu0 %6119
    %6121 = vrot.lane.b32.xlu0 %v6113, 127
    %v6122 = vpop.permute.xlu0 %6121
    %v6127 = vadd.f32 %v6050, %v6116
    %v6128 = vadd.f32 %v6051, %v6118
    %v6129 = vadd.f32 %v6052, %v6120
    %v6130 = vadd.f32 %v6053, %v6122
    %v6131 = vmul.f32 %v3977, %v5604
    %v6132 = vmul.f32 %v3977, %v5605
    %v6133 = vmul.f32 %v3977, %v5606
    %v6134 = vmul.f32 %v3977, %v5607
    %v6139 = vrot.slane %v6131, 2
    %v6140 = vrot.slane %v6132, 2
    %v6141 = vsel %vm636, %v6139, %v6140
    %v6142 = vrot.slane %v6133, 2
    %v6143 = vsel %vm636, %v6140, %v6142
    %v6144 = vrot.slane %v6134, 2
    %v6145 = vsel %vm636, %v6142, %v6144
    %6146 = vrot.lane.b32.xlu0 %v6141, 127
    %v6147 = vpop.permute.xlu0 %6146
    %6148 = vrot.lane.b32.xlu0 %v6143, 127
    %v6149 = vpop.permute.xlu0 %6148
    %6150 = vrot.lane.b32.xlu0 %v6145, 127
    %v6151 = vpop.permute.xlu0 %6150
    %6152 = vrot.lane.b32.xlu0 %v6144, 127
    %v6153 = vpop.permute.xlu0 %6152
    %v6158 = vadd.f32 %v6073, %v6147
    %v6159 = vadd.f32 %v6074, %v6149
    %v6160 = vadd.f32 %v6075, %v6151
    %v6161 = vadd.f32 %v6076, %v6153
    %v6162 = vmul.f32 %v4010, %v5604
    %v6163 = vmul.f32 %v4010, %v5605
    %v6164 = vmul.f32 %v4010, %v5606
    %v6165 = vmul.f32 %v4010, %v5607
    %v6170 = vrot.slane %v6162, 2
    %v6171 = vrot.slane %v6163, 2
    %v6172 = vsel %vm636, %v6170, %v6171
    %v6173 = vrot.slane %v6164, 2
    %v6174 = vsel %vm636, %v6171, %v6173
    %v6175 = vrot.slane %v6165, 2
    %v6176 = vsel %vm636, %v6173, %v6175
    %6177 = vrot.lane.b32.xlu0 %v6172, 127
    %v6178 = vpop.permute.xlu0 %6177
    %6179 = vrot.lane.b32.xlu0 %v6174, 127
    %v6180 = vpop.permute.xlu0 %6179
    %6181 = vrot.lane.b32.xlu0 %v6176, 127
    %v6182 = vpop.permute.xlu0 %6181
    %6183 = vrot.lane.b32.xlu0 %v6175, 127
    %v6184 = vpop.permute.xlu0 %6183
    %v6189 = vadd.f32 %v6096, %v6178
    %v6190 = vadd.f32 %v6097, %v6180
    %v6191 = vadd.f32 %v6098, %v6182
    %v6192 = vadd.f32 %v6099, %v6184
    %v6193 = vmul.f32 %v4043, %v5604
    %v6194 = vmul.f32 %v4043, %v5605
    %v6195 = vmul.f32 %v4043, %v5606
    %v6196 = vmul.f32 %v4043, %v5607
    %v6201 = vrot.slane %v6193, 2
    %v6202 = vrot.slane %v6194, 2
    %v6203 = vsel %vm636, %v6201, %v6202
    %v6204 = vrot.slane %v6195, 2
    %v6205 = vsel %vm636, %v6202, %v6204
    %v6206 = vrot.slane %v6196, 2
    %v6207 = vsel %vm636, %v6204, %v6206
    %6208 = vrot.lane.b32.xlu0 %v6203, 126
    %v6209 = vpop.permute.xlu0 %6208
    %6210 = vrot.lane.b32.xlu0 %v6205, 126
    %v6211 = vpop.permute.xlu0 %6210
    %6212 = vrot.lane.b32.xlu0 %v6207, 126
    %v6213 = vpop.permute.xlu0 %6212
    %6214 = vrot.lane.b32.xlu0 %v6206, 126
    %v6215 = vpop.permute.xlu0 %6214
    %v6220 = vadd.f32 %v6127, %v6209
    %v6221 = vadd.f32 %v6128, %v6211
    %v6222 = vadd.f32 %v6129, %v6213
    %v6223 = vadd.f32 %v6130, %v6215
    %v6224 = vmul.f32 %v4076, %v5604
    %v6225 = vmul.f32 %v4076, %v5605
    %v6226 = vmul.f32 %v4076, %v5606
    %v6227 = vmul.f32 %v4076, %v5607
    %v6232 = vrot.slane %v6224, 2
    %v6233 = vrot.slane %v6225, 2
    %v6234 = vsel %vm636, %v6232, %v6233
    %v6235 = vrot.slane %v6226, 2
    %v6236 = vsel %vm636, %v6233, %v6235
    %v6237 = vrot.slane %v6227, 2
    %v6238 = vsel %vm636, %v6235, %v6237
    %6239 = vrot.lane.b32.xlu0 %v6234, 126
    %v6240 = vpop.permute.xlu0 %6239
    %6241 = vrot.lane.b32.xlu0 %v6236, 126
    %v6242 = vpop.permute.xlu0 %6241
    %6243 = vrot.lane.b32.xlu0 %v6238, 126
    %v6244 = vpop.permute.xlu0 %6243
    %6245 = vrot.lane.b32.xlu0 %v6237, 126
    %v6246 = vpop.permute.xlu0 %6245
    %v6251 = vadd.f32 %v6158, %v6240
    %v6252 = vadd.f32 %v6159, %v6242
    %v6253 = vadd.f32 %v6160, %v6244
    %v6254 = vadd.f32 %v6161, %v6246
    %v6255 = vmul.f32 %v4109, %v5604
    %v6256 = vmul.f32 %v4109, %v5605
    %v6257 = vmul.f32 %v4109, %v5606
    %v6258 = vmul.f32 %v4109, %v5607
    %v6263 = vrot.slane %v6255, 2
    %v6264 = vrot.slane %v6256, 2
    %v6265 = vsel %vm636, %v6263, %v6264
    %v6266 = vrot.slane %v6257, 2
    %v6267 = vsel %vm636, %v6264, %v6266
    %v6268 = vrot.slane %v6258, 2
    %v6269 = vsel %vm636, %v6266, %v6268
    %6270 = vrot.lane.b32.xlu0 %v6265, 126
    %v6271 = vpop.permute.xlu0 %6270
    %6272 = vrot.lane.b32.xlu0 %v6267, 126
    %v6273 = vpop.permute.xlu0 %6272
    %6274 = vrot.lane.b32.xlu0 %v6269, 126
    %v6275 = vpop.permute.xlu0 %6274
    %6276 = vrot.lane.b32.xlu0 %v6268, 126
    %v6277 = vpop.permute.xlu0 %6276
    %v6282 = vadd.f32 %v6189, %v6271
    %v6283 = vadd.f32 %v6190, %v6273
    %v6284 = vadd.f32 %v6191, %v6275
    %v6285 = vadd.f32 %v6192, %v6277
    %v6286 = vmax.f32 %v4071, 0.0
    %v6287 = vmax.f32 %v4072, 0.0
    %v6288 = vmax.f32 %v4073, 0.0
    %v6289 = vmax.f32 %v4074, 0.0
    %v6290 = vmax.f32 %v4104, 0.0
    %v6291 = vmax.f32 %v4105, 0.0
    %v6292 = vmax.f32 %v4106, 0.0
    %v6293 = vmax.f32 %v4107, 0.0
    %v6294 = vmax.f32 %v4137, 0.0
    %v6295 = vmax.f32 %v4138, 0.0
    %v6296 = vmax.f32 %v4139, 0.0
    %v6297 = vmax.f32 %v4140, 0.0
    %v6298 = vmax.f32 %v6220, 0.0
    %v6299 = vmax.f32 %v6221, 0.0
    %v6300 = vmax.f32 %v6222, 0.0
    %v6301 = vmax.f32 %v6223, 0.0
    %v6302 = vmax.f32 %v6251, 0.0
    %v6303 = vmax.f32 %v6252, 0.0
    %v6304 = vmax.f32 %v6253, 0.0
    %v6305 = vmax.f32 %v6254, 0.0
    %v6306 = vmax.f32 %v6282, 0.0
    %v6307 = vmax.f32 %v6283, 0.0
    %v6308 = vmax.f32 %v6284, 0.0
    %v6309 = vmax.f32 %v6285, 0.0
    %v6310 = vsel %vm1639, %v6286, -inf
    %v6311 = vsel %vm1639, %v6287, -inf
    %v6312 = vsel %vm1639, %v6288, -inf
    %v6313 = vsel %vm1643, %v6289, -inf
    %v6314 = vmax.f32 %v6310, %v6311
    %v6315 = vmax.f32 %v6312, %v6313
    %v6316 = vmax.f32 %v6314, %v6315
    %6317 = vmax.xlane.f32.xlu0 %v6316
    %v6318 = vpop.xlane.xlu0 %6317
    %v6319 = vrot.slane %v6318, 4
    %v6320 = vmax.f32 %v6318, %v6319
    %v6321 = vrot.slane %v6320, 2
    %v6322 = vmax.f32 %v6320, %v6321
    %v6323 = vrot.slane %v6322, 1
    %v6324 = vmax.f32 %v6322, %v6323
    %s6325 = vtos %v6324
    %s6326 = smax.f32 %s6325, 0.0
    %v6327 = vsel %vm1639, %v6290, -inf
    %v6328 = vsel %vm1639, %v6291, -inf
    %v6329 = vsel %vm1639, %v6292, -inf
    %v6330 = vsel %vm1643, %v6293, -inf
    %v6331 = vmax.f32 %v6327, %v6328
    %v6332 = vmax.f32 %v6329, %v6330
    %v6333 = vmax.f32 %v6331, %v6332
    %6334 = vmax.xlane.f32.xlu0 %v6333
    %v6335 = vpop.xlane.xlu0 %6334
    %v6336 = vrot.slane %v6335, 4
    %v6337 = vmax.f32 %v6335, %v6336
    %v6338 = vrot.slane %v6337, 2
    %v6339 = vmax.f32 %v6337, %v6338
    %v6340 = vrot.slane %v6339, 1
    %v6341 = vmax.f32 %v6339, %v6340
    %s6342 = vtos %v6341
    %s6343 = smax.f32 %s6326, %s6342
    %v6344 = vsel %vm1639, %v6294, -inf
    %v6345 = vsel %vm1639, %v6295, -inf
    %v6346 = vsel %vm1639, %v6296, -inf
    %v6347 = vsel %vm1643, %v6297, -inf
    %v6348 = vmax.f32 %v6344, %v6345
    %v6349 = vmax.f32 %v6346, %v6347
    %v6350 = vmax.f32 %v6348, %v6349
    %6351 = vmax.xlane.f32.xlu0 %v6350
    %v6352 = vpop.xlane.xlu0 %6351
    %v6353 = vrot.slane %v6352, 4
    %v6354 = vmax.f32 %v6352, %v6353
    %v6355 = vrot.slane %v6354, 2
    %v6356 = vmax.f32 %v6354, %v6355
    %v6357 = vrot.slane %v6356, 1
    %v6358 = vmax.f32 %v6356, %v6357
    %s6359 = vtos %v6358
    %s6360 = smax.f32 %s6343, %s6359
    %v6361 = vsel %vm1639, %v6298, -inf
    %v6362 = vsel %vm1639, %v6299, -inf
    %v6363 = vsel %vm1639, %v6300, -inf
    %v6364 = vsel %vm1643, %v6301, -inf
    %v6365 = vmax.f32 %v6361, %v6362
    %v6366 = vmax.f32 %v6363, %v6364
    %v6367 = vmax.f32 %v6365, %v6366
    %6368 = vmax.xlane.f32.xlu0 %v6367
    %v6369 = vpop.xlane.xlu0 %6368
    %v6370 = vrot.slane %v6369, 4
    %v6371 = vmax.f32 %v6369, %v6370
    %v6372 = vrot.slane %v6371, 2
    %v6373 = vmax.f32 %v6371, %v6372
    %v6374 = vrot.slane %v6373, 1
    %v6375 = vmax.f32 %v6373, %v6374
    %s6376 = vtos %v6375
    %s6377 = smax.f32 %s6360, %s6376
    %v6378 = vsel %vm1639, %v6302, -inf
    %v6379 = vsel %vm1639, %v6303, -inf
    %v6380 = vsel %vm1639, %v6304, -inf
    %v6381 = vsel %vm1643, %v6305, -inf
    %v6382 = vmax.f32 %v6378, %v6379
    %v6383 = vmax.f32 %v6380, %v6381
    %v6384 = vmax.f32 %v6382, %v6383
    %6385 = vmax.xlane.f32.xlu0 %v6384
    %v6386 = vpop.xlane.xlu0 %6385
    %v6387 = vrot.slane %v6386, 4
    %v6388 = vmax.f32 %v6386, %v6387
    %v6389 = vrot.slane %v6388, 2
    %v6390 = vmax.f32 %v6388, %v6389
    %v6391 = vrot.slane %v6390, 1
    %v6392 = vmax.f32 %v6390, %v6391
    %s6393 = vtos %v6392
    %s6394 = smax.f32 %s6377, %s6393
    %v6395 = vsel %vm1639, %v6306, -inf
    %v6396 = vsel %vm1639, %v6307, -inf
    %v6397 = vsel %vm1639, %v6308, -inf
    %v6398 = vsel %vm1643, %v6309, -inf
    %v6399 = vmax.f32 %v6395, %v6396
    %v6400 = vmax.f32 %v6397, %v6398
    %v6401 = vmax.f32 %v6399, %v6400
    %6402 = vmax.xlane.f32.xlu0 %v6401
    %v6403 = vpop.xlane.xlu0 %6402
    %v6404 = vrot.slane %v6403, 4
    %v6405 = vmax.f32 %v6403, %v6404
    %v6406 = vrot.slane %v6405, 2
    %v6407 = vmax.f32 %v6405, %v6406
    %v6408 = vrot.slane %v6407, 1
    %v6409 = vmax.f32 %v6407, %v6408
    %s6410 = vtos %v6409
    %s6411 = smax.f32 %s6394, %s6410
    %p6412 = scmp.gt.f32.partialorder %s6411, 0.0
    %v6413 = vrcp.pop 3.0
    %s6414 = vtos %v6413
    %s6415 = smul.f32 %s6411, %s6414
    %s6416 = scalar_select %p6412, %s6415, 1.0
    %v6417 = vstv %s6416
    %v6418 = vrcp.pop %v6417
    %s6419 = vtos %v6418
    %v6420 = vstv %s6419
    %v6421 = vmul.f32 %v6286, %v6420
    %v6422 = vmul.f32 %v6287, %v6420
    %v6423 = vmul.f32 %v6288, %v6420
    %v6424 = vmul.f32 %v6289, %v6420
    %v6425 = vround.ne.pseudo %v6421
    %v6426 = vround.ne.pseudo %v6422
    %v6427 = vround.ne.pseudo %v6423
    %v6428 = vround.ne.pseudo %v6424
    %v6429 = vstv %s6416
    %v6430 = vmul.f32 %v6425, %v6429
    %v6431 = vmul.f32 %v6426, %v6429
    %v6432 = vmul.f32 %v6427, %v6429
    %v6433 = vmul.f32 %v6428, %v6429
    %v6434 = vmul.f32 %v6290, %v6420
    %v6435 = vmul.f32 %v6291, %v6420
    %v6436 = vmul.f32 %v6292, %v6420
    %v6437 = vmul.f32 %v6293, %v6420
    %v6438 = vround.ne.pseudo %v6434
    %v6439 = vround.ne.pseudo %v6435
    %v6440 = vround.ne.pseudo %v6436
    %v6441 = vround.ne.pseudo %v6437
    %v6442 = vmul.f32 %v6438, %v6429
    %v6443 = vmul.f32 %v6439, %v6429
    %v6444 = vmul.f32 %v6440, %v6429
    %v6445 = vmul.f32 %v6441, %v6429
    %v6446 = vmul.f32 %v6294, %v6420
    %v6447 = vmul.f32 %v6295, %v6420
    %v6448 = vmul.f32 %v6296, %v6420
    %v6449 = vmul.f32 %v6297, %v6420
    %v6450 = vround.ne.pseudo %v6446
    %v6451 = vround.ne.pseudo %v6447
    %v6452 = vround.ne.pseudo %v6448
    %v6453 = vround.ne.pseudo %v6449
    %v6454 = vmul.f32 %v6450, %v6429
    %v6455 = vmul.f32 %v6451, %v6429
    %v6456 = vmul.f32 %v6452, %v6429
    %v6457 = vmul.f32 %v6453, %v6429
    %v6458 = vmul.f32 %v6298, %v6420
    %v6459 = vmul.f32 %v6299, %v6420
    %v6460 = vmul.f32 %v6300, %v6420
    %v6461 = vmul.f32 %v6301, %v6420
    %v6462 = vround.ne.pseudo %v6458
    %v6463 = vround.ne.pseudo %v6459
    %v6464 = vround.ne.pseudo %v6460
    %v6465 = vround.ne.pseudo %v6461
    %v6466 = vmul.f32 %v6462, %v6429
    %v6467 = vmul.f32 %v6463, %v6429
    %v6468 = vmul.f32 %v6464, %v6429
    %v6469 = vmul.f32 %v6465, %v6429
    %v6470 = vmul.f32 %v6302, %v6420
    %v6471 = vmul.f32 %v6303, %v6420
    %v6472 = vmul.f32 %v6304, %v6420
    %v6473 = vmul.f32 %v6305, %v6420
    %v6474 = vround.ne.pseudo %v6470
    %v6475 = vround.ne.pseudo %v6471
    %v6476 = vround.ne.pseudo %v6472
    %v6477 = vround.ne.pseudo %v6473
    %v6478 = vmul.f32 %v6474, %v6429
    %v6479 = vmul.f32 %v6475, %v6429
    %v6480 = vmul.f32 %v6476, %v6429
    %v6481 = vmul.f32 %v6477, %v6429
    %v6482 = vmul.f32 %v6306, %v6420
    %v6483 = vmul.f32 %v6307, %v6420
    %v6484 = vmul.f32 %v6308, %v6420
    %v6485 = vmul.f32 %v6309, %v6420
    %v6486 = vround.ne.pseudo %v6482
    %v6487 = vround.ne.pseudo %v6483
    %v6488 = vround.ne.pseudo %v6484
    %v6489 = vround.ne.pseudo %v6485
    %v6490 = vmul.f32 %v6486, %v6429
    %v6491 = vmul.f32 %v6487, %v6429
    %v6492 = vmul.f32 %v6488, %v6429
    %v6493 = vmul.f32 %v6489, %v6429
    %s6494 = sld [smem:[#allocation2]]
    %v6495 = vstv %s6494
    %v6496 = vadd.f32 %v6495, 0.0
    %v6501 = vrot.slane %v6430, 7
    %v6502 = vrot.slane %v6431, 7
    %v6503 = vsel %vm129, %v6501, %v6502
    %v6504 = vrot.slane %v6432, 7
    %v6505 = vsel %vm129, %v6502, %v6504
    %v6506 = vrot.slane %v6433, 7
    %v6507 = vsel %vm129, %v6504, %v6506
    %v6510 = vsel %vm129, 0.0, %v6501
    %v6511 = vsel %vm140, %v6507, 0.0
    %6514 = vrot.lane.b32.xlu0 %v6510, 1
    %v6515 = vpop.permute.xlu0 %6514
    %6516 = vrot.lane.b32.xlu0 %v6503, 1
    %v6517 = vpop.permute.xlu0 %6516
    %6518 = vrot.lane.b32.xlu0 %v6505, 1
    %v6519 = vpop.permute.xlu0 %6518
    %6520 = vrot.lane.b32.xlu0 %v6511, 1
    %v6521 = vpop.permute.xlu0 %6520
    %v6526 = vsel %vm156, 0.0, %v6515
    %v6527 = vsel %vm156, 0.0, %v6517
    %v6528 = vsel %vm156, 0.0, %v6519
    %v6529 = vsel %vm156, 0.0, %v6521
    %v6530 = vsel %vm161, %v6526, 0.0
    %v6531 = vsel %vm161, %v6527, 0.0
    %v6532 = vsel %vm161, %v6528, 0.0
    %v6533 = vsel %vm161, %v6529, 0.0
    %s6534 = sld [smem:[#allocation12]]
    %v6535 = vstv %s6534
    %v6536 = vmul.f32 %v6535, %v6530
    %v6537 = vmul.f32 %v6535, %v6531
    %v6538 = vmul.f32 %v6535, %v6532
    %v6539 = vmul.f32 %v6535, %v6533
    %v6540 = vadd.f32 %v6496, %v6536
    %v6541 = vadd.f32 %v6496, %v6537
    %v6542 = vadd.f32 %v6496, %v6538
    %v6543 = vadd.f32 %v6496, %v6539
    %s6544 = sld [smem:[#allocation12 + $0x1]]
    %v6545 = vstv %s6544
    %v6546 = vmul.f32 %v6545, %v6530
    %v6547 = vmul.f32 %v6545, %v6531
    %v6548 = vmul.f32 %v6545, %v6532
    %v6549 = vmul.f32 %v6545, %v6533
    %6554 = vrot.lane.b32.xlu0 %v6546, 127
    %v6555 = vpop.permute.xlu0 %6554
    %6556 = vrot.lane.b32.xlu0 %v6547, 127
    %v6557 = vpop.permute.xlu0 %6556
    %6558 = vrot.lane.b32.xlu0 %v6548, 127
    %v6559 = vpop.permute.xlu0 %6558
    %6560 = vrot.lane.b32.xlu0 %v6549, 127
    %v6561 = vpop.permute.xlu0 %6560
    %v6566 = vadd.f32 %v6540, %v6555
    %v6567 = vadd.f32 %v6541, %v6557
    %v6568 = vadd.f32 %v6542, %v6559
    %v6569 = vadd.f32 %v6543, %v6561
    %s6570 = sld [smem:[#allocation12 + $0x2]]
    %v6571 = vstv %s6570
    %v6572 = vmul.f32 %v6571, %v6530
    %v6573 = vmul.f32 %v6571, %v6531
    %v6574 = vmul.f32 %v6571, %v6532
    %v6575 = vmul.f32 %v6571, %v6533
    %6580 = vrot.lane.b32.xlu0 %v6572, 126
    %v6581 = vpop.permute.xlu0 %6580
    %6582 = vrot.lane.b32.xlu0 %v6573, 126
    %v6583 = vpop.permute.xlu0 %6582
    %6584 = vrot.lane.b32.xlu0 %v6574, 126
    %v6585 = vpop.permute.xlu0 %6584
    %6586 = vrot.lane.b32.xlu0 %v6575, 126
    %v6587 = vpop.permute.xlu0 %6586
    %v6592 = vadd.f32 %v6566, %v6581
    %v6593 = vadd.f32 %v6567, %v6583
    %v6594 = vadd.f32 %v6568, %v6585
    %v6595 = vadd.f32 %v6569, %v6587
    %s6596 = sld [smem:[#allocation12 + $0x3]]
    %v6597 = vstv %s6596
    %v6598 = vmul.f32 %v6597, %v6530
    %v6599 = vmul.f32 %v6597, %v6531
    %v6600 = vmul.f32 %v6597, %v6532
    %v6601 = vmul.f32 %v6597, %v6533
    %v6606 = vrot.slane %v6598, 1
    %v6607 = vrot.slane %v6599, 1
    %v6608 = vsel %vm362, %v6606, %v6607
    %v6609 = vrot.slane %v6600, 1
    %v6610 = vsel %vm362, %v6607, %v6609
    %v6611 = vrot.slane %v6601, 1
    %v6612 = vsel %vm362, %v6609, %v6611
    %v6617 = vadd.f32 %v6592, %v6608
    %v6618 = vadd.f32 %v6593, %v6610
    %v6619 = vadd.f32 %v6594, %v6612
    %v6620 = vadd.f32 %v6595, %v6611
    %s6621 = sld [smem:[#allocation12 + $0x4]]
    %v6622 = vstv %s6621
    %v6623 = vmul.f32 %v6622, %v6530
    %v6624 = vmul.f32 %v6622, %v6531
    %v6625 = vmul.f32 %v6622, %v6532
    %v6626 = vmul.f32 %v6622, %v6533
    %v6631 = vrot.slane %v6623, 1
    %v6632 = vrot.slane %v6624, 1
    %v6633 = vsel %vm362, %v6631, %v6632
    %v6634 = vrot.slane %v6625, 1
    %v6635 = vsel %vm362, %v6632, %v6634
    %v6636 = vrot.slane %v6626, 1
    %v6637 = vsel %vm362, %v6634, %v6636
    %6638 = vrot.lane.b32.xlu0 %v6633, 127
    %v6639 = vpop.permute.xlu0 %6638
    %6640 = vrot.lane.b32.xlu0 %v6635, 127
    %v6641 = vpop.permute.xlu0 %6640
    %6642 = vrot.lane.b32.xlu0 %v6637, 127
    %v6643 = vpop.permute.xlu0 %6642
    %6644 = vrot.lane.b32.xlu0 %v6636, 127
    %v6645 = vpop.permute.xlu0 %6644
    %v6650 = vadd.f32 %v6617, %v6639
    %v6651 = vadd.f32 %v6618, %v6641
    %v6652 = vadd.f32 %v6619, %v6643
    %v6653 = vadd.f32 %v6620, %v6645
    %s6654 = sld [smem:[#allocation12 + $0x5]]
    %v6655 = vstv %s6654
    %v6656 = vmul.f32 %v6655, %v6530
    %v6657 = vmul.f32 %v6655, %v6531
    %v6658 = vmul.f32 %v6655, %v6532
    %v6659 = vmul.f32 %v6655, %v6533
    %v6664 = vrot.slane %v6656, 1
    %v6665 = vrot.slane %v6657, 1
    %v6666 = vsel %vm362, %v6664, %v6665
    %v6667 = vrot.slane %v6658, 1
    %v6668 = vsel %vm362, %v6665, %v6667
    %v6669 = vrot.slane %v6659, 1
    %v6670 = vsel %vm362, %v6667, %v6669
    %6671 = vrot.lane.b32.xlu0 %v6666, 126
    %v6672 = vpop.permute.xlu0 %6671
    %6673 = vrot.lane.b32.xlu0 %v6668, 126
    %v6674 = vpop.permute.xlu0 %6673
    %6675 = vrot.lane.b32.xlu0 %v6670, 126
    %v6676 = vpop.permute.xlu0 %6675
    %6677 = vrot.lane.b32.xlu0 %v6669, 126
    %v6678 = vpop.permute.xlu0 %6677
    %v6683 = vadd.f32 %v6650, %v6672
    %v6684 = vadd.f32 %v6651, %v6674
    %v6685 = vadd.f32 %v6652, %v6676
    %v6686 = vadd.f32 %v6653, %v6678
    %s6687 = sld [smem:[#allocation12 + $0x6]]
    %v6688 = vstv %s6687
    %v6689 = vmul.f32 %v6688, %v6530
    %v6690 = vmul.f32 %v6688, %v6531
    %v6691 = vmul.f32 %v6688, %v6532
    %v6692 = vmul.f32 %v6688, %v6533
    %v6697 = vrot.slane %v6689, 2
    %v6698 = vrot.slane %v6690, 2
    %v6699 = vsel %vm636, %v6697, %v6698
    %v6700 = vrot.slane %v6691, 2
    %v6701 = vsel %vm636, %v6698, %v6700
    %v6702 = vrot.slane %v6692, 2
    %v6703 = vsel %vm636, %v6700, %v6702
    %v6708 = vadd.f32 %v6683, %v6699
    %v6709 = vadd.f32 %v6684, %v6701
    %v6710 = vadd.f32 %v6685, %v6703
    %v6711 = vadd.f32 %v6686, %v6702
    %s6712 = sld [smem:[#allocation12 + $0x7]]
    %v6713 = vstv %s6712
    %v6714 = vmul.f32 %v6713, %v6530
    %v6715 = vmul.f32 %v6713, %v6531
    %v6716 = vmul.f32 %v6713, %v6532
    %v6717 = vmul.f32 %v6713, %v6533
    %v6722 = vrot.slane %v6714, 2
    %v6723 = vrot.slane %v6715, 2
    %v6724 = vsel %vm636, %v6722, %v6723
    %v6725 = vrot.slane %v6716, 2
    %v6726 = vsel %vm636, %v6723, %v6725
    %v6727 = vrot.slane %v6717, 2
    %v6728 = vsel %vm636, %v6725, %v6727
    %6729 = vrot.lane.b32.xlu0 %v6724, 127
    %v6730 = vpop.permute.xlu0 %6729
    %6731 = vrot.lane.b32.xlu0 %v6726, 127
    %v6732 = vpop.permute.xlu0 %6731
    %6733 = vrot.lane.b32.xlu0 %v6728, 127
    %v6734 = vpop.permute.xlu0 %6733
    %6735 = vrot.lane.b32.xlu0 %v6727, 127
    %v6736 = vpop.permute.xlu0 %6735
    %v6741 = vadd.f32 %v6708, %v6730
    %v6742 = vadd.f32 %v6709, %v6732
    %v6743 = vadd.f32 %v6710, %v6734
    %v6744 = vadd.f32 %v6711, %v6736
    %s6745 = sld [smem:[#allocation12 + $0x8]]
    %v6746 = vstv %s6745
    %v6747 = vmul.f32 %v6746, %v6530
    %v6748 = vmul.f32 %v6746, %v6531
    %v6749 = vmul.f32 %v6746, %v6532
    %v6750 = vmul.f32 %v6746, %v6533
    %v6755 = vrot.slane %v6747, 2
    %v6756 = vrot.slane %v6748, 2
    %v6757 = vsel %vm636, %v6755, %v6756
    %v6758 = vrot.slane %v6749, 2
    %v6759 = vsel %vm636, %v6756, %v6758
    %v6760 = vrot.slane %v6750, 2
    %v6761 = vsel %vm636, %v6758, %v6760
    %6762 = vrot.lane.b32.xlu0 %v6757, 126
    %v6763 = vpop.permute.xlu0 %6762
    %6764 = vrot.lane.b32.xlu0 %v6759, 126
    %v6765 = vpop.permute.xlu0 %6764
    %6766 = vrot.lane.b32.xlu0 %v6761, 126
    %v6767 = vpop.permute.xlu0 %6766
    %6768 = vrot.lane.b32.xlu0 %v6760, 126
    %v6769 = vpop.permute.xlu0 %6768
    %v6774 = vadd.f32 %v6741, %v6763
    %v6775 = vadd.f32 %v6742, %v6765
    %v6776 = vadd.f32 %v6743, %v6767
    %v6777 = vadd.f32 %v6744, %v6769
    %v6782 = vrot.slane %v6442, 7
    %v6783 = vrot.slane %v6443, 7
    %v6784 = vsel %vm129, %v6782, %v6783
    %v6785 = vrot.slane %v6444, 7
    %v6786 = vsel %vm129, %v6783, %v6785
    %v6787 = vrot.slane %v6445, 7
    %v6788 = vsel %vm129, %v6785, %v6787
    %v6791 = vsel %vm129, 0.0, %v6782
    %v6792 = vsel %vm140, %v6788, 0.0
    %6795 = vrot.lane.b32.xlu0 %v6791, 1
    %v6796 = vpop.permute.xlu0 %6795
    %6797 = vrot.lane.b32.xlu0 %v6784, 1
    %v6798 = vpop.permute.xlu0 %6797
    %6799 = vrot.lane.b32.xlu0 %v6786, 1
    %v6800 = vpop.permute.xlu0 %6799
    %6801 = vrot.lane.b32.xlu0 %v6792, 1
    %v6802 = vpop.permute.xlu0 %6801
    %v6807 = vsel %vm156, 0.0, %v6796
    %v6808 = vsel %vm156, 0.0, %v6798
    %v6809 = vsel %vm156, 0.0, %v6800
    %v6810 = vsel %vm156, 0.0, %v6802
    %v6811 = vsel %vm161, %v6807, 0.0
    %v6812 = vsel %vm161, %v6808, 0.0
    %v6813 = vsel %vm161, %v6809, 0.0
    %v6814 = vsel %vm161, %v6810, 0.0
    %s6815 = sld [smem:[#allocation12 + $0x9]]
    %v6816 = vstv %s6815
    %v6817 = vmul.f32 %v6816, %v6811
    %v6818 = vmul.f32 %v6816, %v6812
    %v6819 = vmul.f32 %v6816, %v6813
    %v6820 = vmul.f32 %v6816, %v6814
    %v6821 = vadd.f32 %v6774, %v6817
    %v6822 = vadd.f32 %v6775, %v6818
    %v6823 = vadd.f32 %v6776, %v6819
    %v6824 = vadd.f32 %v6777, %v6820
    %s6825 = sld [smem:[#allocation12 + $0xa]]
    %v6826 = vstv %s6825
    %v6827 = vmul.f32 %v6826, %v6811
    %v6828 = vmul.f32 %v6826, %v6812
    %v6829 = vmul.f32 %v6826, %v6813
    %v6830 = vmul.f32 %v6826, %v6814
    %6835 = vrot.lane.b32.xlu0 %v6827, 127
    %v6836 = vpop.permute.xlu0 %6835
    %6837 = vrot.lane.b32.xlu0 %v6828, 127
    %v6838 = vpop.permute.xlu0 %6837
    %6839 = vrot.lane.b32.xlu0 %v6829, 127
    %v6840 = vpop.permute.xlu0 %6839
    %6841 = vrot.lane.b32.xlu0 %v6830, 127
    %v6842 = vpop.permute.xlu0 %6841
    %v6847 = vadd.f32 %v6821, %v6836
    %v6848 = vadd.f32 %v6822, %v6838
    %v6849 = vadd.f32 %v6823, %v6840
    %v6850 = vadd.f32 %v6824, %v6842
    %s6851 = sld [smem:[#allocation12 + $0xb]]
    %v6852 = vstv %s6851
    %v6853 = vmul.f32 %v6852, %v6811
    %v6854 = vmul.f32 %v6852, %v6812
    %v6855 = vmul.f32 %v6852, %v6813
    %v6856 = vmul.f32 %v6852, %v6814
    %6861 = vrot.lane.b32.xlu0 %v6853, 126
    %v6862 = vpop.permute.xlu0 %6861
    %6863 = vrot.lane.b32.xlu0 %v6854, 126
    %v6864 = vpop.permute.xlu0 %6863
    %6865 = vrot.lane.b32.xlu0 %v6855, 126
    %v6866 = vpop.permute.xlu0 %6865
    %6867 = vrot.lane.b32.xlu0 %v6856, 126
    %v6868 = vpop.permute.xlu0 %6867
    %v6873 = vadd.f32 %v6847, %v6862
    %v6874 = vadd.f32 %v6848, %v6864
    %v6875 = vadd.f32 %v6849, %v6866
    %v6876 = vadd.f32 %v6850, %v6868
    %s6877 = sld [smem:[#allocation12 + $0xc]]
    %v6878 = vstv %s6877
    %v6879 = vmul.f32 %v6878, %v6811
    %v6880 = vmul.f32 %v6878, %v6812
    %v6881 = vmul.f32 %v6878, %v6813
    %v6882 = vmul.f32 %v6878, %v6814
    %v6887 = vrot.slane %v6879, 1
    %v6888 = vrot.slane %v6880, 1
    %v6889 = vsel %vm362, %v6887, %v6888
    %v6890 = vrot.slane %v6881, 1
    %v6891 = vsel %vm362, %v6888, %v6890
    %v6892 = vrot.slane %v6882, 1
    %v6893 = vsel %vm362, %v6890, %v6892
    %v6898 = vadd.f32 %v6873, %v6889
    %v6899 = vadd.f32 %v6874, %v6891
    %v6900 = vadd.f32 %v6875, %v6893
    %v6901 = vadd.f32 %v6876, %v6892
    %s6902 = sld [smem:[#allocation12 + $0xd]]
    %v6903 = vstv %s6902
    %v6904 = vmul.f32 %v6903, %v6811
    %v6905 = vmul.f32 %v6903, %v6812
    %v6906 = vmul.f32 %v6903, %v6813
    %v6907 = vmul.f32 %v6903, %v6814
    %v6912 = vrot.slane %v6904, 1
    %v6913 = vrot.slane %v6905, 1
    %v6914 = vsel %vm362, %v6912, %v6913
    %v6915 = vrot.slane %v6906, 1
    %v6916 = vsel %vm362, %v6913, %v6915
    %v6917 = vrot.slane %v6907, 1
    %v6918 = vsel %vm362, %v6915, %v6917
    %6919 = vrot.lane.b32.xlu0 %v6914, 127
    %v6920 = vpop.permute.xlu0 %6919
    %6921 = vrot.lane.b32.xlu0 %v6916, 127
    %v6922 = vpop.permute.xlu0 %6921
    %6923 = vrot.lane.b32.xlu0 %v6918, 127
    %v6924 = vpop.permute.xlu0 %6923
    %6925 = vrot.lane.b32.xlu0 %v6917, 127
    %v6926 = vpop.permute.xlu0 %6925
    %v6931 = vadd.f32 %v6898, %v6920
    %v6932 = vadd.f32 %v6899, %v6922
    %v6933 = vadd.f32 %v6900, %v6924
    %v6934 = vadd.f32 %v6901, %v6926
    %s6935 = sld [smem:[#allocation12 + $0xe]]
    %v6936 = vstv %s6935
    %v6937 = vmul.f32 %v6936, %v6811
    %v6938 = vmul.f32 %v6936, %v6812
    %v6939 = vmul.f32 %v6936, %v6813
    %v6940 = vmul.f32 %v6936, %v6814
    %v6945 = vrot.slane %v6937, 1
    %v6946 = vrot.slane %v6938, 1
    %v6947 = vsel %vm362, %v6945, %v6946
    %v6948 = vrot.slane %v6939, 1
    %v6949 = vsel %vm362, %v6946, %v6948
    %v6950 = vrot.slane %v6940, 1
    %v6951 = vsel %vm362, %v6948, %v6950
    %6952 = vrot.lane.b32.xlu0 %v6947, 126
    %v6953 = vpop.permute.xlu0 %6952
    %6954 = vrot.lane.b32.xlu0 %v6949, 126
    %v6955 = vpop.permute.xlu0 %6954
    %6956 = vrot.lane.b32.xlu0 %v6951, 126
    %v6957 = vpop.permute.xlu0 %6956
    %6958 = vrot.lane.b32.xlu0 %v6950, 126
    %v6959 = vpop.permute.xlu0 %6958
    %v6964 = vadd.f32 %v6931, %v6953
    %v6965 = vadd.f32 %v6932, %v6955
    %v6966 = vadd.f32 %v6933, %v6957
    %v6967 = vadd.f32 %v6934, %v6959
    %s6968 = sld [smem:[#allocation12 + $0xf]]
    %v6969 = vstv %s6968
    %v6970 = vmul.f32 %v6969, %v6811
    %v6971 = vmul.f32 %v6969, %v6812
    %v6972 = vmul.f32 %v6969, %v6813
    %v6973 = vmul.f32 %v6969, %v6814
    %v6978 = vrot.slane %v6970, 2
    %v6979 = vrot.slane %v6971, 2
    %v6980 = vsel %vm636, %v6978, %v6979
    %v6981 = vrot.slane %v6972, 2
    %v6982 = vsel %vm636, %v6979, %v6981
    %v6983 = vrot.slane %v6973, 2
    %v6984 = vsel %vm636, %v6981, %v6983
    %v6989 = vadd.f32 %v6964, %v6980
    %v6990 = vadd.f32 %v6965, %v6982
    %v6991 = vadd.f32 %v6966, %v6984
    %v6992 = vadd.f32 %v6967, %v6983
    %s6993 = sld [smem:[#allocation12 + $0x10]]
    %v6994 = vstv %s6993
    %v6995 = vmul.f32 %v6994, %v6811
    %v6996 = vmul.f32 %v6994, %v6812
    %v6997 = vmul.f32 %v6994, %v6813
    %v6998 = vmul.f32 %v6994, %v6814
    %v7003 = vrot.slane %v6995, 2
    %v7004 = vrot.slane %v6996, 2
    %v7005 = vsel %vm636, %v7003, %v7004
    %v7006 = vrot.slane %v6997, 2
    %v7007 = vsel %vm636, %v7004, %v7006
    %v7008 = vrot.slane %v6998, 2
    %v7009 = vsel %vm636, %v7006, %v7008
    %7010 = vrot.lane.b32.xlu0 %v7005, 127
    %v7011 = vpop.permute.xlu0 %7010
    %7012 = vrot.lane.b32.xlu0 %v7007, 127
    %v7013 = vpop.permute.xlu0 %7012
    %7014 = vrot.lane.b32.xlu0 %v7009, 127
    %v7015 = vpop.permute.xlu0 %7014
    %7016 = vrot.lane.b32.xlu0 %v7008, 127
    %v7017 = vpop.permute.xlu0 %7016
    %v7022 = vadd.f32 %v6989, %v7011
    %v7023 = vadd.f32 %v6990, %v7013
    %v7024 = vadd.f32 %v6991, %v7015
    %v7025 = vadd.f32 %v6992, %v7017
    %s7026 = sld [smem:[#allocation12 + $0x11]]
    %v7027 = vstv %s7026
    %v7028 = vmul.f32 %v7027, %v6811
    %v7029 = vmul.f32 %v7027, %v6812
    %v7030 = vmul.f32 %v7027, %v6813
    %v7031 = vmul.f32 %v7027, %v6814
    %v7036 = vrot.slane %v7028, 2
    %v7037 = vrot.slane %v7029, 2
    %v7038 = vsel %vm636, %v7036, %v7037
    %v7039 = vrot.slane %v7030, 2
    %v7040 = vsel %vm636, %v7037, %v7039
    %v7041 = vrot.slane %v7031, 2
    %v7042 = vsel %vm636, %v7039, %v7041
    %7043 = vrot.lane.b32.xlu0 %v7038, 126
    %v7044 = vpop.permute.xlu0 %7043
    %7045 = vrot.lane.b32.xlu0 %v7040, 126
    %v7046 = vpop.permute.xlu0 %7045
    %7047 = vrot.lane.b32.xlu0 %v7042, 126
    %v7048 = vpop.permute.xlu0 %7047
    %7049 = vrot.lane.b32.xlu0 %v7041, 126
    %v7050 = vpop.permute.xlu0 %7049
    %v7055 = vadd.f32 %v7022, %v7044
    %v7056 = vadd.f32 %v7023, %v7046
    %v7057 = vadd.f32 %v7024, %v7048
    %v7058 = vadd.f32 %v7025, %v7050
    %v7063 = vrot.slane %v6454, 7
    %v7064 = vrot.slane %v6455, 7
    %v7065 = vsel %vm129, %v7063, %v7064
    %v7066 = vrot.slane %v6456, 7
    %v7067 = vsel %vm129, %v7064, %v7066
    %v7068 = vrot.slane %v6457, 7
    %v7069 = vsel %vm129, %v7066, %v7068
    %v7072 = vsel %vm129, 0.0, %v7063
    %v7073 = vsel %vm140, %v7069, 0.0
    %7076 = vrot.lane.b32.xlu0 %v7072, 1
    %v7077 = vpop.permute.xlu0 %7076
    %7078 = vrot.lane.b32.xlu0 %v7065, 1
    %v7079 = vpop.permute.xlu0 %7078
    %7080 = vrot.lane.b32.xlu0 %v7067, 1
    %v7081 = vpop.permute.xlu0 %7080
    %7082 = vrot.lane.b32.xlu0 %v7073, 1
    %v7083 = vpop.permute.xlu0 %7082
    %v7088 = vsel %vm156, 0.0, %v7077
    %v7089 = vsel %vm156, 0.0, %v7079
    %v7090 = vsel %vm156, 0.0, %v7081
    %v7091 = vsel %vm156, 0.0, %v7083
    %v7092 = vsel %vm161, %v7088, 0.0
    %v7093 = vsel %vm161, %v7089, 0.0
    %v7094 = vsel %vm161, %v7090, 0.0
    %v7095 = vsel %vm161, %v7091, 0.0
    %s7096 = sld [smem:[#allocation12 + $0x12]]
    %v7097 = vstv %s7096
    %v7098 = vmul.f32 %v7097, %v7092
    %v7099 = vmul.f32 %v7097, %v7093
    %v7100 = vmul.f32 %v7097, %v7094
    %v7101 = vmul.f32 %v7097, %v7095
    %v7102 = vadd.f32 %v7055, %v7098
    %v7103 = vadd.f32 %v7056, %v7099
    %v7104 = vadd.f32 %v7057, %v7100
    %v7105 = vadd.f32 %v7058, %v7101
    %s7106 = sld [smem:[#allocation12 + $0x13]]
    %v7107 = vstv %s7106
    %v7108 = vmul.f32 %v7107, %v7092
    %v7109 = vmul.f32 %v7107, %v7093
    %v7110 = vmul.f32 %v7107, %v7094
    %v7111 = vmul.f32 %v7107, %v7095
    %7116 = vrot.lane.b32.xlu0 %v7108, 127
    %v7117 = vpop.permute.xlu0 %7116
    %7118 = vrot.lane.b32.xlu0 %v7109, 127
    %v7119 = vpop.permute.xlu0 %7118
    %7120 = vrot.lane.b32.xlu0 %v7110, 127
    %v7121 = vpop.permute.xlu0 %7120
    %7122 = vrot.lane.b32.xlu0 %v7111, 127
    %v7123 = vpop.permute.xlu0 %7122
    %v7128 = vadd.f32 %v7102, %v7117
    %v7129 = vadd.f32 %v7103, %v7119
    %v7130 = vadd.f32 %v7104, %v7121
    %v7131 = vadd.f32 %v7105, %v7123
    %s7132 = sld [smem:[#allocation12 + $0x14]]
    %v7133 = vstv %s7132
    %v7134 = vmul.f32 %v7133, %v7092
    %v7135 = vmul.f32 %v7133, %v7093
    %v7136 = vmul.f32 %v7133, %v7094
    %v7137 = vmul.f32 %v7133, %v7095
    %7142 = vrot.lane.b32.xlu0 %v7134, 126
    %v7143 = vpop.permute.xlu0 %7142
    %7144 = vrot.lane.b32.xlu0 %v7135, 126
    %v7145 = vpop.permute.xlu0 %7144
    %7146 = vrot.lane.b32.xlu0 %v7136, 126
    %v7147 = vpop.permute.xlu0 %7146
    %7148 = vrot.lane.b32.xlu0 %v7137, 126
    %v7149 = vpop.permute.xlu0 %7148
    %v7154 = vadd.f32 %v7128, %v7143
    %v7155 = vadd.f32 %v7129, %v7145
    %v7156 = vadd.f32 %v7130, %v7147
    %v7157 = vadd.f32 %v7131, %v7149
    %s7158 = sld [smem:[#allocation12 + $0x15]]
    %v7159 = vstv %s7158
    %v7160 = vmul.f32 %v7159, %v7092
    %v7161 = vmul.f32 %v7159, %v7093
    %v7162 = vmul.f32 %v7159, %v7094
    %v7163 = vmul.f32 %v7159, %v7095
    %v7168 = vrot.slane %v7160, 1
    %v7169 = vrot.slane %v7161, 1
    %v7170 = vsel %vm362, %v7168, %v7169
    %v7171 = vrot.slane %v7162, 1
    %v7172 = vsel %vm362, %v7169, %v7171
    %v7173 = vrot.slane %v7163, 1
    %v7174 = vsel %vm362, %v7171, %v7173
    %v7179 = vadd.f32 %v7154, %v7170
    %v7180 = vadd.f32 %v7155, %v7172
    %v7181 = vadd.f32 %v7156, %v7174
    %v7182 = vadd.f32 %v7157, %v7173
    %s7183 = sld [smem:[#allocation12 + $0x16]]
    %v7184 = vstv %s7183
    %v7185 = vmul.f32 %v7184, %v7092
    %v7186 = vmul.f32 %v7184, %v7093
    %v7187 = vmul.f32 %v7184, %v7094
    %v7188 = vmul.f32 %v7184, %v7095
    %v7193 = vrot.slane %v7185, 1
    %v7194 = vrot.slane %v7186, 1
    %v7195 = vsel %vm362, %v7193, %v7194
    %v7196 = vrot.slane %v7187, 1
    %v7197 = vsel %vm362, %v7194, %v7196
    %v7198 = vrot.slane %v7188, 1
    %v7199 = vsel %vm362, %v7196, %v7198
    %7200 = vrot.lane.b32.xlu0 %v7195, 127
    %v7201 = vpop.permute.xlu0 %7200
    %7202 = vrot.lane.b32.xlu0 %v7197, 127
    %v7203 = vpop.permute.xlu0 %7202
    %7204 = vrot.lane.b32.xlu0 %v7199, 127
    %v7205 = vpop.permute.xlu0 %7204
    %7206 = vrot.lane.b32.xlu0 %v7198, 127
    %v7207 = vpop.permute.xlu0 %7206
    %v7212 = vadd.f32 %v7179, %v7201
    %v7213 = vadd.f32 %v7180, %v7203
    %v7214 = vadd.f32 %v7181, %v7205
    %v7215 = vadd.f32 %v7182, %v7207
    %s7216 = sld [smem:[#allocation12 + $0x17]]
    %v7217 = vstv %s7216
    %v7218 = vmul.f32 %v7217, %v7092
    %v7219 = vmul.f32 %v7217, %v7093
    %v7220 = vmul.f32 %v7217, %v7094
    %v7221 = vmul.f32 %v7217, %v7095
    %v7226 = vrot.slane %v7218, 1
    %v7227 = vrot.slane %v7219, 1
    %v7228 = vsel %vm362, %v7226, %v7227
    %v7229 = vrot.slane %v7220, 1
    %v7230 = vsel %vm362, %v7227, %v7229
    %v7231 = vrot.slane %v7221, 1
    %v7232 = vsel %vm362, %v7229, %v7231
    %7233 = vrot.lane.b32.xlu0 %v7228, 126
    %v7234 = vpop.permute.xlu0 %7233
    %7235 = vrot.lane.b32.xlu0 %v7230, 126
    %v7236 = vpop.permute.xlu0 %7235
    %7237 = vrot.lane.b32.xlu0 %v7232, 126
    %v7238 = vpop.permute.xlu0 %7237
    %7239 = vrot.lane.b32.xlu0 %v7231, 126
    %v7240 = vpop.permute.xlu0 %7239
    %v7245 = vadd.f32 %v7212, %v7234
    %v7246 = vadd.f32 %v7213, %v7236
    %v7247 = vadd.f32 %v7214, %v7238
    %v7248 = vadd.f32 %v7215, %v7240
    %s7249 = sld [smem:[#allocation12 + $0x18]]
    %v7250 = vstv %s7249
    %v7251 = vmul.f32 %v7250, %v7092
    %v7252 = vmul.f32 %v7250, %v7093
    %v7253 = vmul.f32 %v7250, %v7094
    %v7254 = vmul.f32 %v7250, %v7095
    %v7259 = vrot.slane %v7251, 2
    %v7260 = vrot.slane %v7252, 2
    %v7261 = vsel %vm636, %v7259, %v7260
    %v7262 = vrot.slane %v7253, 2
    %v7263 = vsel %vm636, %v7260, %v7262
    %v7264 = vrot.slane %v7254, 2
    %v7265 = vsel %vm636, %v7262, %v7264
    %v7270 = vadd.f32 %v7245, %v7261
    %v7271 = vadd.f32 %v7246, %v7263
    %v7272 = vadd.f32 %v7247, %v7265
    %v7273 = vadd.f32 %v7248, %v7264
    %s7274 = sld [smem:[#allocation12 + $0x19]]
    %v7275 = vstv %s7274
    %v7276 = vmul.f32 %v7275, %v7092
    %v7277 = vmul.f32 %v7275, %v7093
    %v7278 = vmul.f32 %v7275, %v7094
    %v7279 = vmul.f32 %v7275, %v7095
    %v7284 = vrot.slane %v7276, 2
    %v7285 = vrot.slane %v7277, 2
    %v7286 = vsel %vm636, %v7284, %v7285
    %v7287 = vrot.slane %v7278, 2
    %v7288 = vsel %vm636, %v7285, %v7287
    %v7289 = vrot.slane %v7279, 2
    %v7290 = vsel %vm636, %v7287, %v7289
    %7291 = vrot.lane.b32.xlu0 %v7286, 127
    %v7292 = vpop.permute.xlu0 %7291
    %7293 = vrot.lane.b32.xlu0 %v7288, 127
    %v7294 = vpop.permute.xlu0 %7293
    %7295 = vrot.lane.b32.xlu0 %v7290, 127
    %v7296 = vpop.permute.xlu0 %7295
    %7297 = vrot.lane.b32.xlu0 %v7289, 127
    %v7298 = vpop.permute.xlu0 %7297
    %v7303 = vadd.f32 %v7270, %v7292
    %v7304 = vadd.f32 %v7271, %v7294
    %v7305 = vadd.f32 %v7272, %v7296
    %v7306 = vadd.f32 %v7273, %v7298
    %s7307 = sld [smem:[#allocation12 + $0x1a]]
    %v7308 = vstv %s7307
    %v7309 = vmul.f32 %v7308, %v7092
    %v7310 = vmul.f32 %v7308, %v7093
    %v7311 = vmul.f32 %v7308, %v7094
    %v7312 = vmul.f32 %v7308, %v7095
    %v7317 = vrot.slane %v7309, 2
    %v7318 = vrot.slane %v7310, 2
    %v7319 = vsel %vm636, %v7317, %v7318
    %v7320 = vrot.slane %v7311, 2
    %v7321 = vsel %vm636, %v7318, %v7320
    %v7322 = vrot.slane %v7312, 2
    %v7323 = vsel %vm636, %v7320, %v7322
    %7324 = vrot.lane.b32.xlu0 %v7319, 126
    %v7325 = vpop.permute.xlu0 %7324
    %7326 = vrot.lane.b32.xlu0 %v7321, 126
    %v7327 = vpop.permute.xlu0 %7326
    %7328 = vrot.lane.b32.xlu0 %v7323, 126
    %v7329 = vpop.permute.xlu0 %7328
    %7330 = vrot.lane.b32.xlu0 %v7322, 126
    %v7331 = vpop.permute.xlu0 %7330
    %v7336 = vadd.f32 %v7303, %v7325
    %v7337 = vadd.f32 %v7304, %v7327
    %v7338 = vadd.f32 %v7305, %v7329
    %v7339 = vadd.f32 %v7306, %v7331
    %v7344 = vrot.slane %v6466, 7
    %v7345 = vrot.slane %v6467, 7
    %v7346 = vsel %vm129, %v7344, %v7345
    %v7347 = vrot.slane %v6468, 7
    %v7348 = vsel %vm129, %v7345, %v7347
    %v7349 = vrot.slane %v6469, 7
    %v7350 = vsel %vm129, %v7347, %v7349
    %v7353 = vsel %vm129, 0.0, %v7344
    %v7354 = vsel %vm140, %v7350, 0.0
    %7357 = vrot.lane.b32.xlu0 %v7353, 1
    %v7358 = vpop.permute.xlu0 %7357
    %7359 = vrot.lane.b32.xlu0 %v7346, 1
    %v7360 = vpop.permute.xlu0 %7359
    %7361 = vrot.lane.b32.xlu0 %v7348, 1
    %v7362 = vpop.permute.xlu0 %7361
    %7363 = vrot.lane.b32.xlu0 %v7354, 1
    %v7364 = vpop.permute.xlu0 %7363
    %v7369 = vsel %vm156, 0.0, %v7358
    %v7370 = vsel %vm156, 0.0, %v7360
    %v7371 = vsel %vm156, 0.0, %v7362
    %v7372 = vsel %vm156, 0.0, %v7364
    %v7373 = vsel %vm161, %v7369, 0.0
    %v7374 = vsel %vm161, %v7370, 0.0
    %v7375 = vsel %vm161, %v7371, 0.0
    %v7376 = vsel %vm161, %v7372, 0.0
    %v7377 = vmul.f32 %v6535, %v7373
    %v7378 = vmul.f32 %v6535, %v7374
    %v7379 = vmul.f32 %v6535, %v7375
    %v7380 = vmul.f32 %v6535, %v7376
    %v7381 = vadd.f32 %v6496, %v7377
    %v7382 = vadd.f32 %v6496, %v7378
    %v7383 = vadd.f32 %v6496, %v7379
    %v7384 = vadd.f32 %v6496, %v7380
    %v7385 = vmul.f32 %v6545, %v7373
    %v7386 = vmul.f32 %v6545, %v7374
    %v7387 = vmul.f32 %v6545, %v7375
    %v7388 = vmul.f32 %v6545, %v7376
    %7393 = vrot.lane.b32.xlu0 %v7385, 127
    %v7394 = vpop.permute.xlu0 %7393
    %7395 = vrot.lane.b32.xlu0 %v7386, 127
    %v7396 = vpop.permute.xlu0 %7395
    %7397 = vrot.lane.b32.xlu0 %v7387, 127
    %v7398 = vpop.permute.xlu0 %7397
    %7399 = vrot.lane.b32.xlu0 %v7388, 127
    %v7400 = vpop.permute.xlu0 %7399
    %v7405 = vadd.f32 %v7381, %v7394
    %v7406 = vadd.f32 %v7382, %v7396
    %v7407 = vadd.f32 %v7383, %v7398
    %v7408 = vadd.f32 %v7384, %v7400
    %v7409 = vmul.f32 %v6571, %v7373
    %v7410 = vmul.f32 %v6571, %v7374
    %v7411 = vmul.f32 %v6571, %v7375
    %v7412 = vmul.f32 %v6571, %v7376
    %7417 = vrot.lane.b32.xlu0 %v7409, 126
    %v7418 = vpop.permute.xlu0 %7417
    %7419 = vrot.lane.b32.xlu0 %v7410, 126
    %v7420 = vpop.permute.xlu0 %7419
    %7421 = vrot.lane.b32.xlu0 %v7411, 126
    %v7422 = vpop.permute.xlu0 %7421
    %7423 = vrot.lane.b32.xlu0 %v7412, 126
    %v7424 = vpop.permute.xlu0 %7423
    %v7429 = vadd.f32 %v7405, %v7418
    %v7430 = vadd.f32 %v7406, %v7420
    %v7431 = vadd.f32 %v7407, %v7422
    %v7432 = vadd.f32 %v7408, %v7424
    %v7433 = vmul.f32 %v6597, %v7373
    %v7434 = vmul.f32 %v6597, %v7374
    %v7435 = vmul.f32 %v6597, %v7375
    %v7436 = vmul.f32 %v6597, %v7376
    %v7441 = vrot.slane %v7433, 1
    %v7442 = vrot.slane %v7434, 1
    %v7443 = vsel %vm362, %v7441, %v7442
    %v7444 = vrot.slane %v7435, 1
    %v7445 = vsel %vm362, %v7442, %v7444
    %v7446 = vrot.slane %v7436, 1
    %v7447 = vsel %vm362, %v7444, %v7446
    %v7452 = vadd.f32 %v7429, %v7443
    %v7453 = vadd.f32 %v7430, %v7445
    %v7454 = vadd.f32 %v7431, %v7447
    %v7455 = vadd.f32 %v7432, %v7446
    %v7456 = vmul.f32 %v6622, %v7373
    %v7457 = vmul.f32 %v6622, %v7374
    %v7458 = vmul.f32 %v6622, %v7375
    %v7459 = vmul.f32 %v6622, %v7376
    %v7464 = vrot.slane %v7456, 1
    %v7465 = vrot.slane %v7457, 1
    %v7466 = vsel %vm362, %v7464, %v7465
    %v7467 = vrot.slane %v7458, 1
    %v7468 = vsel %vm362, %v7465, %v7467
    %v7469 = vrot.slane %v7459, 1
    %v7470 = vsel %vm362, %v7467, %v7469
    %7471 = vrot.lane.b32.xlu0 %v7466, 127
    %v7472 = vpop.permute.xlu0 %7471
    %7473 = vrot.lane.b32.xlu0 %v7468, 127
    %v7474 = vpop.permute.xlu0 %7473
    %7475 = vrot.lane.b32.xlu0 %v7470, 127
    %v7476 = vpop.permute.xlu0 %7475
    %7477 = vrot.lane.b32.xlu0 %v7469, 127
    %v7478 = vpop.permute.xlu0 %7477
    %v7483 = vadd.f32 %v7452, %v7472
    %v7484 = vadd.f32 %v7453, %v7474
    %v7485 = vadd.f32 %v7454, %v7476
    %v7486 = vadd.f32 %v7455, %v7478
    %v7487 = vmul.f32 %v6655, %v7373
    %v7488 = vmul.f32 %v6655, %v7374
    %v7489 = vmul.f32 %v6655, %v7375
    %v7490 = vmul.f32 %v6655, %v7376
    %v7495 = vrot.slane %v7487, 1
    %v7496 = vrot.slane %v7488, 1
    %v7497 = vsel %vm362, %v7495, %v7496
    %v7498 = vrot.slane %v7489, 1
    %v7499 = vsel %vm362, %v7496, %v7498
    %v7500 = vrot.slane %v7490, 1
    %v7501 = vsel %vm362, %v7498, %v7500
    %7502 = vrot.lane.b32.xlu0 %v7497, 126
    %v7503 = vpop.permute.xlu0 %7502
    %7504 = vrot.lane.b32.xlu0 %v7499, 126
    %v7505 = vpop.permute.xlu0 %7504
    %7506 = vrot.lane.b32.xlu0 %v7501, 126
    %v7507 = vpop.permute.xlu0 %7506
    %7508 = vrot.lane.b32.xlu0 %v7500, 126
    %v7509 = vpop.permute.xlu0 %7508
    %v7514 = vadd.f32 %v7483, %v7503
    %v7515 = vadd.f32 %v7484, %v7505
    %v7516 = vadd.f32 %v7485, %v7507
    %v7517 = vadd.f32 %v7486, %v7509
    %v7518 = vmul.f32 %v6688, %v7373
    %v7519 = vmul.f32 %v6688, %v7374
    %v7520 = vmul.f32 %v6688, %v7375
    %v7521 = vmul.f32 %v6688, %v7376
    %v7526 = vrot.slane %v7518, 2
    %v7527 = vrot.slane %v7519, 2
    %v7528 = vsel %vm636, %v7526, %v7527
    %v7529 = vrot.slane %v7520, 2
    %v7530 = vsel %vm636, %v7527, %v7529
    %v7531 = vrot.slane %v7521, 2
    %v7532 = vsel %vm636, %v7529, %v7531
    %v7537 = vadd.f32 %v7514, %v7528
    %v7538 = vadd.f32 %v7515, %v7530
    %v7539 = vadd.f32 %v7516, %v7532
    %v7540 = vadd.f32 %v7517, %v7531
    %v7541 = vmul.f32 %v6713, %v7373
    %v7542 = vmul.f32 %v6713, %v7374
    %v7543 = vmul.f32 %v6713, %v7375
    %v7544 = vmul.f32 %v6713, %v7376
    %v7549 = vrot.slane %v7541, 2
    %v7550 = vrot.slane %v7542, 2
    %v7551 = vsel %vm636, %v7549, %v7550
    %v7552 = vrot.slane %v7543, 2
    %v7553 = vsel %vm636, %v7550, %v7552
    %v7554 = vrot.slane %v7544, 2
    %v7555 = vsel %vm636, %v7552, %v7554
    %7556 = vrot.lane.b32.xlu0 %v7551, 127
    %v7557 = vpop.permute.xlu0 %7556
    %7558 = vrot.lane.b32.xlu0 %v7553, 127
    %v7559 = vpop.permute.xlu0 %7558
    %7560 = vrot.lane.b32.xlu0 %v7555, 127
    %v7561 = vpop.permute.xlu0 %7560
    %7562 = vrot.lane.b32.xlu0 %v7554, 127
    %v7563 = vpop.permute.xlu0 %7562
    %v7568 = vadd.f32 %v7537, %v7557
    %v7569 = vadd.f32 %v7538, %v7559
    %v7570 = vadd.f32 %v7539, %v7561
    %v7571 = vadd.f32 %v7540, %v7563
    %v7572 = vmul.f32 %v6746, %v7373
    %v7573 = vmul.f32 %v6746, %v7374
    %v7574 = vmul.f32 %v6746, %v7375
    %v7575 = vmul.f32 %v6746, %v7376
    %v7580 = vrot.slane %v7572, 2
    %v7581 = vrot.slane %v7573, 2
    %v7582 = vsel %vm636, %v7580, %v7581
    %v7583 = vrot.slane %v7574, 2
    %v7584 = vsel %vm636, %v7581, %v7583
    %v7585 = vrot.slane %v7575, 2
    %v7586 = vsel %vm636, %v7583, %v7585
    %7587 = vrot.lane.b32.xlu0 %v7582, 126
    %v7588 = vpop.permute.xlu0 %7587
    %7589 = vrot.lane.b32.xlu0 %v7584, 126
    %v7590 = vpop.permute.xlu0 %7589
    %7591 = vrot.lane.b32.xlu0 %v7586, 126
    %v7592 = vpop.permute.xlu0 %7591
    %7593 = vrot.lane.b32.xlu0 %v7585, 126
    %v7594 = vpop.permute.xlu0 %7593
    %v7599 = vadd.f32 %v7568, %v7588
    %v7600 = vadd.f32 %v7569, %v7590
    %v7601 = vadd.f32 %v7570, %v7592
    %v7602 = vadd.f32 %v7571, %v7594
    %v7607 = vrot.slane %v6478, 7
    %v7608 = vrot.slane %v6479, 7
    %v7609 = vsel %vm129, %v7607, %v7608
    %v7610 = vrot.slane %v6480, 7
    %v7611 = vsel %vm129, %v7608, %v7610
    %v7612 = vrot.slane %v6481, 7
    %v7613 = vsel %vm129, %v7610, %v7612
    %v7616 = vsel %vm129, 0.0, %v7607
    %v7617 = vsel %vm140, %v7613, 0.0
    %7620 = vrot.lane.b32.xlu0 %v7616, 1
    %v7621 = vpop.permute.xlu0 %7620
    %7622 = vrot.lane.b32.xlu0 %v7609, 1
    %v7623 = vpop.permute.xlu0 %7622
    %7624 = vrot.lane.b32.xlu0 %v7611, 1
    %v7625 = vpop.permute.xlu0 %7624
    %7626 = vrot.lane.b32.xlu0 %v7617, 1
    %v7627 = vpop.permute.xlu0 %7626
    %v7632 = vsel %vm156, 0.0, %v7621
    %v7633 = vsel %vm156, 0.0, %v7623
    %v7634 = vsel %vm156, 0.0, %v7625
    %v7635 = vsel %vm156, 0.0, %v7627
    %v7636 = vsel %vm161, %v7632, 0.0
    %v7637 = vsel %vm161, %v7633, 0.0
    %v7638 = vsel %vm161, %v7634, 0.0
    %v7639 = vsel %vm161, %v7635, 0.0
    %v7640 = vmul.f32 %v6816, %v7636
    %v7641 = vmul.f32 %v6816, %v7637
    %v7642 = vmul.f32 %v6816, %v7638
    %v7643 = vmul.f32 %v6816, %v7639
    %v7644 = vadd.f32 %v7599, %v7640
    %v7645 = vadd.f32 %v7600, %v7641
    %v7646 = vadd.f32 %v7601, %v7642
    %v7647 = vadd.f32 %v7602, %v7643
    %v7648 = vmul.f32 %v6826, %v7636
    %v7649 = vmul.f32 %v6826, %v7637
    %v7650 = vmul.f32 %v6826, %v7638
    %v7651 = vmul.f32 %v6826, %v7639
    %7656 = vrot.lane.b32.xlu0 %v7648, 127
    %v7657 = vpop.permute.xlu0 %7656
    %7658 = vrot.lane.b32.xlu0 %v7649, 127
    %v7659 = vpop.permute.xlu0 %7658
    %7660 = vrot.lane.b32.xlu0 %v7650, 127
    %v7661 = vpop.permute.xlu0 %7660
    %7662 = vrot.lane.b32.xlu0 %v7651, 127
    %v7663 = vpop.permute.xlu0 %7662
    %v7668 = vadd.f32 %v7644, %v7657
    %v7669 = vadd.f32 %v7645, %v7659
    %v7670 = vadd.f32 %v7646, %v7661
    %v7671 = vadd.f32 %v7647, %v7663
    %v7672 = vmul.f32 %v6852, %v7636
    %v7673 = vmul.f32 %v6852, %v7637
    %v7674 = vmul.f32 %v6852, %v7638
    %v7675 = vmul.f32 %v6852, %v7639
    %7680 = vrot.lane.b32.xlu0 %v7672, 126
    %v7681 = vpop.permute.xlu0 %7680
    %7682 = vrot.lane.b32.xlu0 %v7673, 126
    %v7683 = vpop.permute.xlu0 %7682
    %7684 = vrot.lane.b32.xlu0 %v7674, 126
    %v7685 = vpop.permute.xlu0 %7684
    %7686 = vrot.lane.b32.xlu0 %v7675, 126
    %v7687 = vpop.permute.xlu0 %7686
    %v7692 = vadd.f32 %v7668, %v7681
    %v7693 = vadd.f32 %v7669, %v7683
    %v7694 = vadd.f32 %v7670, %v7685
    %v7695 = vadd.f32 %v7671, %v7687
    %v7696 = vmul.f32 %v6878, %v7636
    %v7697 = vmul.f32 %v6878, %v7637
    %v7698 = vmul.f32 %v6878, %v7638
    %v7699 = vmul.f32 %v6878, %v7639
    %v7704 = vrot.slane %v7696, 1
    %v7705 = vrot.slane %v7697, 1
    %v7706 = vsel %vm362, %v7704, %v7705
    %v7707 = vrot.slane %v7698, 1
    %v7708 = vsel %vm362, %v7705, %v7707
    %v7709 = vrot.slane %v7699, 1
    %v7710 = vsel %vm362, %v7707, %v7709
    %v7715 = vadd.f32 %v7692, %v7706
    %v7716 = vadd.f32 %v7693, %v7708
    %v7717 = vadd.f32 %v7694, %v7710
    %v7718 = vadd.f32 %v7695, %v7709
    %v7719 = vmul.f32 %v6903, %v7636
    %v7720 = vmul.f32 %v6903, %v7637
    %v7721 = vmul.f32 %v6903, %v7638
    %v7722 = vmul.f32 %v6903, %v7639
    %v7727 = vrot.slane %v7719, 1
    %v7728 = vrot.slane %v7720, 1
    %v7729 = vsel %vm362, %v7727, %v7728
    %v7730 = vrot.slane %v7721, 1
    %v7731 = vsel %vm362, %v7728, %v7730
    %v7732 = vrot.slane %v7722, 1
    %v7733 = vsel %vm362, %v7730, %v7732
    %7734 = vrot.lane.b32.xlu0 %v7729, 127
    %v7735 = vpop.permute.xlu0 %7734
    %7736 = vrot.lane.b32.xlu0 %v7731, 127
    %v7737 = vpop.permute.xlu0 %7736
    %7738 = vrot.lane.b32.xlu0 %v7733, 127
    %v7739 = vpop.permute.xlu0 %7738
    %7740 = vrot.lane.b32.xlu0 %v7732, 127
    %v7741 = vpop.permute.xlu0 %7740
    %v7746 = vadd.f32 %v7715, %v7735
    %v7747 = vadd.f32 %v7716, %v7737
    %v7748 = vadd.f32 %v7717, %v7739
    %v7749 = vadd.f32 %v7718, %v7741
    %v7750 = vmul.f32 %v6936, %v7636
    %v7751 = vmul.f32 %v6936, %v7637
    %v7752 = vmul.f32 %v6936, %v7638
    %v7753 = vmul.f32 %v6936, %v7639
    %v7758 = vrot.slane %v7750, 1
    %v7759 = vrot.slane %v7751, 1
    %v7760 = vsel %vm362, %v7758, %v7759
    %v7761 = vrot.slane %v7752, 1
    %v7762 = vsel %vm362, %v7759, %v7761
    %v7763 = vrot.slane %v7753, 1
    %v7764 = vsel %vm362, %v7761, %v7763
    %7765 = vrot.lane.b32.xlu0 %v7760, 126
    %v7766 = vpop.permute.xlu0 %7765
    %7767 = vrot.lane.b32.xlu0 %v7762, 126
    %v7768 = vpop.permute.xlu0 %7767
    %7769 = vrot.lane.b32.xlu0 %v7764, 126
    %v7770 = vpop.permute.xlu0 %7769
    %7771 = vrot.lane.b32.xlu0 %v7763, 126
    %v7772 = vpop.permute.xlu0 %7771
    %v7777 = vadd.f32 %v7746, %v7766
    %v7778 = vadd.f32 %v7747, %v7768
    %v7779 = vadd.f32 %v7748, %v7770
    %v7780 = vadd.f32 %v7749, %v7772
    %v7781 = vmul.f32 %v6969, %v7636
    %v7782 = vmul.f32 %v6969, %v7637
    %v7783 = vmul.f32 %v6969, %v7638
    %v7784 = vmul.f32 %v6969, %v7639
    %v7789 = vrot.slane %v7781, 2
    %v7790 = vrot.slane %v7782, 2
    %v7791 = vsel %vm636, %v7789, %v7790
    %v7792 = vrot.slane %v7783, 2
    %v7793 = vsel %vm636, %v7790, %v7792
    %v7794 = vrot.slane %v7784, 2
    %v7795 = vsel %vm636, %v7792, %v7794
    %v7800 = vadd.f32 %v7777, %v7791
    %v7801 = vadd.f32 %v7778, %v7793
    %v7802 = vadd.f32 %v7779, %v7795
    %v7803 = vadd.f32 %v7780, %v7794
    %v7804 = vmul.f32 %v6994, %v7636
    %v7805 = vmul.f32 %v6994, %v7637
    %v7806 = vmul.f32 %v6994, %v7638
    %v7807 = vmul.f32 %v6994, %v7639
    %v7812 = vrot.slane %v7804, 2
    %v7813 = vrot.slane %v7805, 2
    %v7814 = vsel %vm636, %v7812, %v7813
    %v7815 = vrot.slane %v7806, 2
    %v7816 = vsel %vm636, %v7813, %v7815
    %v7817 = vrot.slane %v7807, 2
    %v7818 = vsel %vm636, %v7815, %v7817
    %7819 = vrot.lane.b32.xlu0 %v7814, 127
    %v7820 = vpop.permute.xlu0 %7819
    %7821 = vrot.lane.b32.xlu0 %v7816, 127
    %v7822 = vpop.permute.xlu0 %7821
    %7823 = vrot.lane.b32.xlu0 %v7818, 127
    %v7824 = vpop.permute.xlu0 %7823
    %7825 = vrot.lane.b32.xlu0 %v7817, 127
    %v7826 = vpop.permute.xlu0 %7825
    %v7831 = vadd.f32 %v7800, %v7820
    %v7832 = vadd.f32 %v7801, %v7822
    %v7833 = vadd.f32 %v7802, %v7824
    %v7834 = vadd.f32 %v7803, %v7826
    %v7835 = vmul.f32 %v7027, %v7636
    %v7836 = vmul.f32 %v7027, %v7637
    %v7837 = vmul.f32 %v7027, %v7638
    %v7838 = vmul.f32 %v7027, %v7639
    %v7843 = vrot.slane %v7835, 2
    %v7844 = vrot.slane %v7836, 2
    %v7845 = vsel %vm636, %v7843, %v7844
    %v7846 = vrot.slane %v7837, 2
    %v7847 = vsel %vm636, %v7844, %v7846
    %v7848 = vrot.slane %v7838, 2
    %v7849 = vsel %vm636, %v7846, %v7848
    %7850 = vrot.lane.b32.xlu0 %v7845, 126
    %v7851 = vpop.permute.xlu0 %7850
    %7852 = vrot.lane.b32.xlu0 %v7847, 126
    %v7853 = vpop.permute.xlu0 %7852
    %7854 = vrot.lane.b32.xlu0 %v7849, 126
    %v7855 = vpop.permute.xlu0 %7854
    %7856 = vrot.lane.b32.xlu0 %v7848, 126
    %v7857 = vpop.permute.xlu0 %7856
    %v7862 = vadd.f32 %v7831, %v7851
    %v7863 = vadd.f32 %v7832, %v7853
    %v7864 = vadd.f32 %v7833, %v7855
    %v7865 = vadd.f32 %v7834, %v7857
    %v7870 = vrot.slane %v6490, 7
    %v7871 = vrot.slane %v6491, 7
    %v7872 = vsel %vm129, %v7870, %v7871
    %v7873 = vrot.slane %v6492, 7
    %v7874 = vsel %vm129, %v7871, %v7873
    %v7875 = vrot.slane %v6493, 7
    %v7876 = vsel %vm129, %v7873, %v7875
    %v7879 = vsel %vm129, 0.0, %v7870
    %v7880 = vsel %vm140, %v7876, 0.0
    %7883 = vrot.lane.b32.xlu0 %v7879, 1
    %v7884 = vpop.permute.xlu0 %7883
    %7885 = vrot.lane.b32.xlu0 %v7872, 1
    %v7886 = vpop.permute.xlu0 %7885
    %7887 = vrot.lane.b32.xlu0 %v7874, 1
    %v7888 = vpop.permute.xlu0 %7887
    %7889 = vrot.lane.b32.xlu0 %v7880, 1
    %v7890 = vpop.permute.xlu0 %7889
    %v7895 = vsel %vm156, 0.0, %v7884
    %v7896 = vsel %vm156, 0.0, %v7886
    %v7897 = vsel %vm156, 0.0, %v7888
    %v7898 = vsel %vm156, 0.0, %v7890
    %v7899 = vsel %vm161, %v7895, 0.0
    %v7900 = vsel %vm161, %v7896, 0.0
    %v7901 = vsel %vm161, %v7897, 0.0
    %v7902 = vsel %vm161, %v7898, 0.0
    %v7903 = vmul.f32 %v7097, %v7899
    %v7904 = vmul.f32 %v7097, %v7900
    %v7905 = vmul.f32 %v7097, %v7901
    %v7906 = vmul.f32 %v7097, %v7902
    %v7907 = vadd.f32 %v7862, %v7903
    %v7908 = vadd.f32 %v7863, %v7904
    %v7909 = vadd.f32 %v7864, %v7905
    %v7910 = vadd.f32 %v7865, %v7906
    %v7911 = vmul.f32 %v7107, %v7899
    %v7912 = vmul.f32 %v7107, %v7900
    %v7913 = vmul.f32 %v7107, %v7901
    %v7914 = vmul.f32 %v7107, %v7902
    %7919 = vrot.lane.b32.xlu0 %v7911, 127
    %v7920 = vpop.permute.xlu0 %7919
    %7921 = vrot.lane.b32.xlu0 %v7912, 127
    %v7922 = vpop.permute.xlu0 %7921
    %7923 = vrot.lane.b32.xlu0 %v7913, 127
    %v7924 = vpop.permute.xlu0 %7923
    %7925 = vrot.lane.b32.xlu0 %v7914, 127
    %v7926 = vpop.permute.xlu0 %7925
    %v7931 = vadd.f32 %v7907, %v7920
    %v7932 = vadd.f32 %v7908, %v7922
    %v7933 = vadd.f32 %v7909, %v7924
    %v7934 = vadd.f32 %v7910, %v7926
    %v7935 = vmul.f32 %v7133, %v7899
    %v7936 = vmul.f32 %v7133, %v7900
    %v7937 = vmul.f32 %v7133, %v7901
    %v7938 = vmul.f32 %v7133, %v7902
    %7943 = vrot.lane.b32.xlu0 %v7935, 126
    %v7944 = vpop.permute.xlu0 %7943
    %7945 = vrot.lane.b32.xlu0 %v7936, 126
    %v7946 = vpop.permute.xlu0 %7945
    %7947 = vrot.lane.b32.xlu0 %v7937, 126
    %v7948 = vpop.permute.xlu0 %7947
    %7949 = vrot.lane.b32.xlu0 %v7938, 126
    %v7950 = vpop.permute.xlu0 %7949
    %v7955 = vadd.f32 %v7931, %v7944
    %v7956 = vadd.f32 %v7932, %v7946
    %v7957 = vadd.f32 %v7933, %v7948
    %v7958 = vadd.f32 %v7934, %v7950
    %v7959 = vmul.f32 %v7159, %v7899
    %v7960 = vmul.f32 %v7159, %v7900
    %v7961 = vmul.f32 %v7159, %v7901
    %v7962 = vmul.f32 %v7159, %v7902
    %v7967 = vrot.slane %v7959, 1
    %v7968 = vrot.slane %v7960, 1
    %v7969 = vsel %vm362, %v7967, %v7968
    %v7970 = vrot.slane %v7961, 1
    %v7971 = vsel %vm362, %v7968, %v7970
    %v7972 = vrot.slane %v7962, 1
    %v7973 = vsel %vm362, %v7970, %v7972
    %v7978 = vadd.f32 %v7955, %v7969
    %v7979 = vadd.f32 %v7956, %v7971
    %v7980 = vadd.f32 %v7957, %v7973
    %v7981 = vadd.f32 %v7958, %v7972
    %v7982 = vmul.f32 %v7184, %v7899
    %v7983 = vmul.f32 %v7184, %v7900
    %v7984 = vmul.f32 %v7184, %v7901
    %v7985 = vmul.f32 %v7184, %v7902
    %v7990 = vrot.slane %v7982, 1
    %v7991 = vrot.slane %v7983, 1
    %v7992 = vsel %vm362, %v7990, %v7991
    %v7993 = vrot.slane %v7984, 1
    %v7994 = vsel %vm362, %v7991, %v7993
    %v7995 = vrot.slane %v7985, 1
    %v7996 = vsel %vm362, %v7993, %v7995
    %7997 = vrot.lane.b32.xlu0 %v7992, 127
    %v7998 = vpop.permute.xlu0 %7997
    %7999 = vrot.lane.b32.xlu0 %v7994, 127
    %v8000 = vpop.permute.xlu0 %7999
    %8001 = vrot.lane.b32.xlu0 %v7996, 127
    %v8002 = vpop.permute.xlu0 %8001
    %8003 = vrot.lane.b32.xlu0 %v7995, 127
    %v8004 = vpop.permute.xlu0 %8003
    %v8009 = vadd.f32 %v7978, %v7998
    %v8010 = vadd.f32 %v7979, %v8000
    %v8011 = vadd.f32 %v7980, %v8002
    %v8012 = vadd.f32 %v7981, %v8004
    %v8013 = vmul.f32 %v7217, %v7899
    %v8014 = vmul.f32 %v7217, %v7900
    %v8015 = vmul.f32 %v7217, %v7901
    %v8016 = vmul.f32 %v7217, %v7902
    %v8021 = vrot.slane %v8013, 1
    %v8022 = vrot.slane %v8014, 1
    %v8023 = vsel %vm362, %v8021, %v8022
    %v8024 = vrot.slane %v8015, 1
    %v8025 = vsel %vm362, %v8022, %v8024
    %v8026 = vrot.slane %v8016, 1
    %v8027 = vsel %vm362, %v8024, %v8026
    %8028 = vrot.lane.b32.xlu0 %v8023, 126
    %v8029 = vpop.permute.xlu0 %8028
    %8030 = vrot.lane.b32.xlu0 %v8025, 126
    %v8031 = vpop.permute.xlu0 %8030
    %8032 = vrot.lane.b32.xlu0 %v8027, 126
    %v8033 = vpop.permute.xlu0 %8032
    %8034 = vrot.lane.b32.xlu0 %v8026, 126
    %v8035 = vpop.permute.xlu0 %8034
    %v8040 = vadd.f32 %v8009, %v8029
    %v8041 = vadd.f32 %v8010, %v8031
    %v8042 = vadd.f32 %v8011, %v8033
    %v8043 = vadd.f32 %v8012, %v8035
    %v8044 = vmul.f32 %v7250, %v7899
    %v8045 = vmul.f32 %v7250, %v7900
    %v8046 = vmul.f32 %v7250, %v7901
    %v8047 = vmul.f32 %v7250, %v7902
    %v8052 = vrot.slane %v8044, 2
    %v8053 = vrot.slane %v8045, 2
    %v8054 = vsel %vm636, %v8052, %v8053
    %v8055 = vrot.slane %v8046, 2
    %v8056 = vsel %vm636, %v8053, %v8055
    %v8057 = vrot.slane %v8047, 2
    %v8058 = vsel %vm636, %v8055, %v8057
    %v8063 = vadd.f32 %v8040, %v8054
    %v8064 = vadd.f32 %v8041, %v8056
    %v8065 = vadd.f32 %v8042, %v8058
    %v8066 = vadd.f32 %v8043, %v8057
    %v8067 = vmul.f32 %v7275, %v7899
    %v8068 = vmul.f32 %v7275, %v7900
    %v8069 = vmul.f32 %v7275, %v7901
    %v8070 = vmul.f32 %v7275, %v7902
    %v8075 = vrot.slane %v8067, 2
    %v8076 = vrot.slane %v8068, 2
    %v8077 = vsel %vm636, %v8075, %v8076
    %v8078 = vrot.slane %v8069, 2
    %v8079 = vsel %vm636, %v8076, %v8078
    %v8080 = vrot.slane %v8070, 2
    %v8081 = vsel %vm636, %v8078, %v8080
    %8082 = vrot.lane.b32.xlu0 %v8077, 127
    %v8083 = vpop.permute.xlu0 %8082
    %8084 = vrot.lane.b32.xlu0 %v8079, 127
    %v8085 = vpop.permute.xlu0 %8084
    %8086 = vrot.lane.b32.xlu0 %v8081, 127
    %v8087 = vpop.permute.xlu0 %8086
    %8088 = vrot.lane.b32.xlu0 %v8080, 127
    %v8089 = vpop.permute.xlu0 %8088
    %v8094 = vadd.f32 %v8063, %v8083
    %v8095 = vadd.f32 %v8064, %v8085
    %v8096 = vadd.f32 %v8065, %v8087
    %v8097 = vadd.f32 %v8066, %v8089
    %v8098 = vmul.f32 %v7308, %v7899
    %v8099 = vmul.f32 %v7308, %v7900
    %v8100 = vmul.f32 %v7308, %v7901
    %v8101 = vmul.f32 %v7308, %v7902
    %v8106 = vrot.slane %v8098, 2
    %v8107 = vrot.slane %v8099, 2
    %v8108 = vsel %vm636, %v8106, %v8107
    %v8109 = vrot.slane %v8100, 2
    %v8110 = vsel %vm636, %v8107, %v8109
    %v8111 = vrot.slane %v8101, 2
    %v8112 = vsel %vm636, %v8109, %v8111
    %8113 = vrot.lane.b32.xlu0 %v8108, 126
    %v8114 = vpop.permute.xlu0 %8113
    %8115 = vrot.lane.b32.xlu0 %v8110, 126
    %v8116 = vpop.permute.xlu0 %8115
    %8117 = vrot.lane.b32.xlu0 %v8112, 126
    %v8118 = vpop.permute.xlu0 %8117
    %8119 = vrot.lane.b32.xlu0 %v8111, 126
    %v8120 = vpop.permute.xlu0 %8119
    %v8125 = vadd.f32 %v8094, %v8114
    %v8126 = vadd.f32 %v8095, %v8116
    %v8127 = vadd.f32 %v8096, %v8118
    %v8128 = vadd.f32 %v8097, %v8120
    %v8129 = vmax.f32 %v7336, 0.0
    %v8130 = vmax.f32 %v7337, 0.0
    %v8131 = vmax.f32 %v7338, 0.0
    %v8132 = vmax.f32 %v7339, 0.0
    %v8133 = vmax.f32 %v8125, 0.0
    %v8134 = vmax.f32 %v8126, 0.0
    %v8135 = vmax.f32 %v8127, 0.0
    %v8136 = vmax.f32 %v8128, 0.0
    %v8137 = vsel %vm1639, %v8129, -inf
    %v8138 = vsel %vm1639, %v8130, -inf
    %v8139 = vsel %vm1639, %v8131, -inf
    %v8140 = vsel %vm1643, %v8132, -inf
    %v8141 = vmax.f32 %v8137, %v8138
    %v8142 = vmax.f32 %v8139, %v8140
    %v8143 = vmax.f32 %v8141, %v8142
    %8144 = vmax.xlane.f32.xlu0 %v8143
    %v8145 = vpop.xlane.xlu0 %8144
    %v8146 = vrot.slane %v8145, 4
    %v8147 = vmax.f32 %v8145, %v8146
    %v8148 = vrot.slane %v8147, 2
    %v8149 = vmax.f32 %v8147, %v8148
    %v8150 = vrot.slane %v8149, 1
    %v8151 = vmax.f32 %v8149, %v8150
    %s8152 = vtos %v8151
    %s8153 = smax.f32 %s8152, 0.0
    %v8154 = vsel %vm1639, %v8133, -inf
    %v8155 = vsel %vm1639, %v8134, -inf
    %v8156 = vsel %vm1639, %v8135, -inf
    %v8157 = vsel %vm1643, %v8136, -inf
    %v8158 = vmax.f32 %v8154, %v8155
    %v8159 = vmax.f32 %v8156, %v8157
    %v8160 = vmax.f32 %v8158, %v8159
    %8161 = vmax.xlane.f32.xlu0 %v8160
    %v8162 = vpop.xlane.xlu0 %8161
    %v8163 = vrot.slane %v8162, 4
    %v8164 = vmax.f32 %v8162, %v8163
    %v8165 = vrot.slane %v8164, 2
    %v8166 = vmax.f32 %v8164, %v8165
    %v8167 = vrot.slane %v8166, 1
    %v8168 = vmax.f32 %v8166, %v8167
    %s8169 = vtos %v8168
    %s8170 = smax.f32 %s8153, %s8169
    %p8171 = scmp.gt.f32.partialorder %s8170, 0.0
    %v8172 = vrcp.pop 3.0
    %s8173 = vtos %v8172
    %s8174 = smul.f32 %s8170, %s8173
    %s8175 = scalar_select %p8171, %s8174, 1.0
    %v8176 = vstv %s8175
    %v8177 = vrcp.pop %v8176
    %s8178 = vtos %v8177
    %v8179 = vstv %s8178
    %v8180 = vmul.f32 %v8129, %v8179
    %v8181 = vmul.f32 %v8130, %v8179
    %v8182 = vmul.f32 %v8131, %v8179
    %v8183 = vmul.f32 %v8132, %v8179
    %v8184 = vround.ne.pseudo %v8180
    %v8185 = vround.ne.pseudo %v8181
    %v8186 = vround.ne.pseudo %v8182
    %v8187 = vround.ne.pseudo %v8183
    %v8188 = vstv %s8175
    %v8189 = vmul.f32 %v8184, %v8188
    %v8190 = vmul.f32 %v8185, %v8188
    %v8191 = vmul.f32 %v8186, %v8188
    %v8192 = vmul.f32 %v8187, %v8188
    %v8193 = vmul.f32 %v8133, %v8179
    %v8194 = vmul.f32 %v8134, %v8179
    %v8195 = vmul.f32 %v8135, %v8179
    %v8196 = vmul.f32 %v8136, %v8179
    %v8197 = vround.ne.pseudo %v8193
    %v8198 = vround.ne.pseudo %v8194
    %v8199 = vround.ne.pseudo %v8195
    %v8200 = vround.ne.pseudo %v8196
    %v8201 = vmul.f32 %v8197, %v8188
    %v8202 = vmul.f32 %v8198, %v8188
    %v8203 = vmul.f32 %v8199, %v8188
    %v8204 = vmul.f32 %v8200, %v8188
    %v8205 = vld [vmem:[%s8] sm:$0x1]
    %v8206 = vlaneseq
    %v8207 = vand.u32 %v8206, 127
    %v8208 = vld [vmem:[#allocation13] sm:$0xff]
    %v8209 = vld [vmem:[#allocation13 + $0x8] sm:$0xff]
    %v8210 = vld [vmem:[#allocation13 + $0x10] sm:$0xff]
    %v8211 = vld [vmem:[#allocation13 + $0x18] sm:$0xf]
    %v8212 = vmul.f32 %v8189, %v8208
    %v8213 = vmul.f32 %v8190, %v8209
    %v8214 = vmul.f32 %v8191, %v8210
    %v8215 = vmul.f32 %v8192, %v8211
    %v8216 = vsel %vm1639, %v8212, 0.0
    %v8217 = vsel %vm1639, %v8213, 0.0
    %v8218 = vadd.f32 %v8216, %v8217
    %v8219 = vsel %vm1639, %v8214, 0.0
    %v8220 = vadd.f32 %v8218, %v8219
    %v8221 = vsel %vm1643, %v8215, 0.0
    %v8222 = vadd.f32 %v8220, %v8221
    %8223 = vadd.xlane.f32.xlu0 %v8222
    %v8224 = vpop.xlane.xlu0 %8223
    %v8225 = vrot.slane %v8224, 4
    %v8226 = vadd.f32 %v8224, %v8225
    %v8227 = vrot.slane %v8226, 2
    %v8228 = vadd.f32 %v8226, %v8227
    %v8229 = vrot.slane %v8228, 1
    %v8230 = vadd.f32 %v8228, %v8229
    %s8231 = vtos %v8230
    %vm8232 = vcmp.eq.s32.totalorder %v8207, 0
    %v8233 = vstv %s8231
    %v8234 = vsel %vm8232, %v8233, 0.0
    %v8235 = vadd.f32 %v8205, %v8234
    %s8236 = scalar_lea.vmem [#allocation13], 32
    %v8237 = vld [vmem:[%s8236] sm:$0xff]
    %v8238 = vld [vmem:[%s8236 + $0x8] sm:$0xff]
    %v8239 = vld [vmem:[%s8236 + $0x10] sm:$0xff]
    %v8240 = vld [vmem:[%s8236 + $0x18] sm:$0xf]
    %v8241 = vmul.f32 %v8189, %v8237
    %v8242 = vmul.f32 %v8190, %v8238
    %v8243 = vmul.f32 %v8191, %v8239
    %v8244 = vmul.f32 %v8192, %v8240
    %v8245 = vsel %vm1639, %v8241, 0.0
    %v8246 = vsel %vm1639, %v8242, 0.0
    %v8247 = vadd.f32 %v8245, %v8246
    %v8248 = vsel %vm1639, %v8243, 0.0
    %v8249 = vadd.f32 %v8247, %v8248
    %v8250 = vsel %vm1643, %v8244, 0.0
    %v8251 = vadd.f32 %v8249, %v8250
    %8252 = vadd.xlane.f32.xlu0 %v8251
    %v8253 = vpop.xlane.xlu0 %8252
    %v8254 = vrot.slane %v8253, 4
    %v8255 = vadd.f32 %v8253, %v8254
    %v8256 = vrot.slane %v8255, 2
    %v8257 = vadd.f32 %v8255, %v8256
    %v8258 = vrot.slane %v8257, 1
    %v8259 = vadd.f32 %v8257, %v8258
    %s8260 = vtos %v8259
    %vm8261 = vcmp.eq.s32.totalorder %v8207, 1
    %v8262 = vstv %s8260
    %v8263 = vsel %vm8261, %v8262, 0.0
    %v8264 = vadd.f32 %v8235, %v8263
    %s8265 = scalar_lea.vmem [#allocation13], 64
    %v8266 = vld [vmem:[%s8265] sm:$0xff]
    %v8267 = vld [vmem:[%s8265 + $0x8] sm:$0xff]
    %v8268 = vld [vmem:[%s8265 + $0x10] sm:$0xff]
    %v8269 = vld [vmem:[%s8265 + $0x18] sm:$0xf]
    %v8270 = vmul.f32 %v8189, %v8266
    %v8271 = vmul.f32 %v8190, %v8267
    %v8272 = vmul.f32 %v8191, %v8268
    %v8273 = vmul.f32 %v8192, %v8269
    %v8274 = vsel %vm1639, %v8270, 0.0
    %v8275 = vsel %vm1639, %v8271, 0.0
    %v8276 = vadd.f32 %v8274, %v8275
    %v8277 = vsel %vm1639, %v8272, 0.0
    %v8278 = vadd.f32 %v8276, %v8277
    %v8279 = vsel %vm1643, %v8273, 0.0
    %v8280 = vadd.f32 %v8278, %v8279
    %8281 = vadd.xlane.f32.xlu0 %v8280
    %v8282 = vpop.xlane.xlu0 %8281
    %v8283 = vrot.slane %v8282, 4
    %v8284 = vadd.f32 %v8282, %v8283
    %v8285 = vrot.slane %v8284, 2
    %v8286 = vadd.f32 %v8284, %v8285
    %v8287 = vrot.slane %v8286, 1
    %v8288 = vadd.f32 %v8286, %v8287
    %s8289 = vtos %v8288
    %vm8290 = vcmp.eq.s32.totalorder %v8207, 2
    %v8291 = vstv %s8289
    %v8292 = vsel %vm8290, %v8291, 0.0
    %v8293 = vadd.f32 %v8264, %v8292
    %s8294 = scalar_lea.vmem [#allocation13], 96
    %v8295 = vld [vmem:[%s8294] sm:$0xff]
    %v8296 = vld [vmem:[%s8294 + $0x8] sm:$0xff]
    %v8297 = vld [vmem:[%s8294 + $0x10] sm:$0xff]
    %v8298 = vld [vmem:[%s8294 + $0x18] sm:$0xf]
    %v8299 = vmul.f32 %v8189, %v8295
    %v8300 = vmul.f32 %v8190, %v8296
    %v8301 = vmul.f32 %v8191, %v8297
    %v8302 = vmul.f32 %v8192, %v8298
    %v8303 = vsel %vm1639, %v8299, 0.0
    %v8304 = vsel %vm1639, %v8300, 0.0
    %v8305 = vadd.f32 %v8303, %v8304
    %v8306 = vsel %vm1639, %v8301, 0.0
    %v8307 = vadd.f32 %v8305, %v8306
    %v8308 = vsel %vm1643, %v8302, 0.0
    %v8309 = vadd.f32 %v8307, %v8308
    %8310 = vadd.xlane.f32.xlu0 %v8309
    %v8311 = vpop.xlane.xlu0 %8310
    %v8312 = vrot.slane %v8311, 4
    %v8313 = vadd.f32 %v8311, %v8312
    %v8314 = vrot.slane %v8313, 2
    %v8315 = vadd.f32 %v8313, %v8314
    %v8316 = vrot.slane %v8315, 1
    %v8317 = vadd.f32 %v8315, %v8316
    %s8318 = vtos %v8317
    %vm8319 = vcmp.eq.s32.totalorder %v8207, 3
    %v8320 = vstv %s8318
    %v8321 = vsel %vm8319, %v8320, 0.0
    %v8322 = vadd.f32 %v8293, %v8321
    %s8323 = scalar_lea.vmem [#allocation13], 128
    %v8324 = vld [vmem:[%s8323] sm:$0xff]
    %v8325 = vld [vmem:[%s8323 + $0x8] sm:$0xff]
    %v8326 = vld [vmem:[%s8323 + $0x10] sm:$0xff]
    %v8327 = vld [vmem:[%s8323 + $0x18] sm:$0xf]
    %v8328 = vmul.f32 %v8189, %v8324
    %v8329 = vmul.f32 %v8190, %v8325
    %v8330 = vmul.f32 %v8191, %v8326
    %v8331 = vmul.f32 %v8192, %v8327
    %v8332 = vsel %vm1639, %v8328, 0.0
    %v8333 = vsel %vm1639, %v8329, 0.0
    %v8334 = vadd.f32 %v8332, %v8333
    %v8335 = vsel %vm1639, %v8330, 0.0
    %v8336 = vadd.f32 %v8334, %v8335
    %v8337 = vsel %vm1643, %v8331, 0.0
    %v8338 = vadd.f32 %v8336, %v8337
    %8339 = vadd.xlane.f32.xlu0 %v8338
    %v8340 = vpop.xlane.xlu0 %8339
    %v8341 = vrot.slane %v8340, 4
    %v8342 = vadd.f32 %v8340, %v8341
    %v8343 = vrot.slane %v8342, 2
    %v8344 = vadd.f32 %v8342, %v8343
    %v8345 = vrot.slane %v8344, 1
    %v8346 = vadd.f32 %v8344, %v8345
    %s8347 = vtos %v8346
    %vm8348 = vcmp.eq.s32.totalorder %v8207, 4
    %v8349 = vstv %s8347
    %v8350 = vsel %vm8348, %v8349, 0.0
    %v8351 = vadd.f32 %v8322, %v8350
    %s8352 = scalar_lea.vmem [#allocation13], 160
    %v8353 = vld [vmem:[%s8352] sm:$0xff]
    %v8354 = vld [vmem:[%s8352 + $0x8] sm:$0xff]
    %v8355 = vld [vmem:[%s8352 + $0x10] sm:$0xff]
    %v8356 = vld [vmem:[%s8352 + $0x18] sm:$0xf]
    %v8357 = vmul.f32 %v8189, %v8353
    %v8358 = vmul.f32 %v8190, %v8354
    %v8359 = vmul.f32 %v8191, %v8355
    %v8360 = vmul.f32 %v8192, %v8356
    %v8361 = vsel %vm1639, %v8357, 0.0
    %v8362 = vsel %vm1639, %v8358, 0.0
    %v8363 = vadd.f32 %v8361, %v8362
    %v8364 = vsel %vm1639, %v8359, 0.0
    %v8365 = vadd.f32 %v8363, %v8364
    %v8366 = vsel %vm1643, %v8360, 0.0
    %v8367 = vadd.f32 %v8365, %v8366
    %8368 = vadd.xlane.f32.xlu0 %v8367
    %v8369 = vpop.xlane.xlu0 %8368
    %v8370 = vrot.slane %v8369, 4
    %v8371 = vadd.f32 %v8369, %v8370
    %v8372 = vrot.slane %v8371, 2
    %v8373 = vadd.f32 %v8371, %v8372
    %v8374 = vrot.slane %v8373, 1
    %v8375 = vadd.f32 %v8373, %v8374
    %s8376 = vtos %v8375
    %vm8377 = vcmp.eq.s32.totalorder %v8207, 5
    %v8378 = vstv %s8376
    %v8379 = vsel %vm8377, %v8378, 0.0
    %v8380 = vadd.f32 %v8351, %v8379
    %s8381 = scalar_lea.vmem [#allocation13], 192
    %v8382 = vld [vmem:[%s8381] sm:$0xff]
    %v8383 = vld [vmem:[%s8381 + $0x8] sm:$0xff]
    %v8384 = vld [vmem:[%s8381 + $0x10] sm:$0xff]
    %v8385 = vld [vmem:[%s8381 + $0x18] sm:$0xf]
    %v8386 = vmul.f32 %v8189, %v8382
    %v8387 = vmul.f32 %v8190, %v8383
    %v8388 = vmul.f32 %v8191, %v8384
    %v8389 = vmul.f32 %v8192, %v8385
    %v8390 = vsel %vm1639, %v8386, 0.0
    %v8391 = vsel %vm1639, %v8387, 0.0
    %v8392 = vadd.f32 %v8390, %v8391
    %v8393 = vsel %vm1639, %v8388, 0.0
    %v8394 = vadd.f32 %v8392, %v8393
    %v8395 = vsel %vm1643, %v8389, 0.0
    %v8396 = vadd.f32 %v8394, %v8395
    %8397 = vadd.xlane.f32.xlu0 %v8396
    %v8398 = vpop.xlane.xlu0 %8397
    %v8399 = vrot.slane %v8398, 4
    %v8400 = vadd.f32 %v8398, %v8399
    %v8401 = vrot.slane %v8400, 2
    %v8402 = vadd.f32 %v8400, %v8401
    %v8403 = vrot.slane %v8402, 1
    %v8404 = vadd.f32 %v8402, %v8403
    %s8405 = vtos %v8404
    %vm8406 = vcmp.eq.s32.totalorder %v8207, 6
    %v8407 = vstv %s8405
    %v8408 = vsel %vm8406, %v8407, 0.0
    %v8409 = vadd.f32 %v8380, %v8408
    %s8410 = scalar_lea.vmem [#allocation13], 224
    %v8411 = vld [vmem:[%s8410] sm:$0xff]
    %v8412 = vld [vmem:[%s8410 + $0x8] sm:$0xff]
    %v8413 = vld [vmem:[%s8410 + $0x10] sm:$0xff]
    %v8414 = vld [vmem:[%s8410 + $0x18] sm:$0xf]
    %v8415 = vmul.f32 %v8189, %v8411
    %v8416 = vmul.f32 %v8190, %v8412
    %v8417 = vmul.f32 %v8191, %v8413
    %v8418 = vmul.f32 %v8192, %v8414
    %v8419 = vsel %vm1639, %v8415, 0.0
    %v8420 = vsel %vm1639, %v8416, 0.0
    %v8421 = vadd.f32 %v8419, %v8420
    %v8422 = vsel %vm1639, %v8417, 0.0
    %v8423 = vadd.f32 %v8421, %v8422
    %v8424 = vsel %vm1643, %v8418, 0.0
    %v8425 = vadd.f32 %v8423, %v8424
    %8426 = vadd.xlane.f32.xlu0 %v8425
    %v8427 = vpop.xlane.xlu0 %8426
    %v8428 = vrot.slane %v8427, 4
    %v8429 = vadd.f32 %v8427, %v8428
    %v8430 = vrot.slane %v8429, 2
    %v8431 = vadd.f32 %v8429, %v8430
    %v8432 = vrot.slane %v8431, 1
    %v8433 = vadd.f32 %v8431, %v8432
    %s8434 = vtos %v8433
    %vm8435 = vcmp.eq.s32.totalorder %v8207, 7
    %v8436 = vstv %s8434
    %v8437 = vsel %vm8435, %v8436, 0.0
    %v8438 = vadd.f32 %v8409, %v8437
    %s8439 = scalar_lea.vmem [#allocation13], 256
    %v8440 = vld [vmem:[%s8439] sm:$0xff]
    %v8441 = vld [vmem:[%s8439 + $0x8] sm:$0xff]
    %v8442 = vld [vmem:[%s8439 + $0x10] sm:$0xff]
    %v8443 = vld [vmem:[%s8439 + $0x18] sm:$0xf]
    %v8444 = vmul.f32 %v8189, %v8440
    %v8445 = vmul.f32 %v8190, %v8441
    %v8446 = vmul.f32 %v8191, %v8442
    %v8447 = vmul.f32 %v8192, %v8443
    %v8448 = vsel %vm1639, %v8444, 0.0
    %v8449 = vsel %vm1639, %v8445, 0.0
    %v8450 = vadd.f32 %v8448, %v8449
    %v8451 = vsel %vm1639, %v8446, 0.0
    %v8452 = vadd.f32 %v8450, %v8451
    %v8453 = vsel %vm1643, %v8447, 0.0
    %v8454 = vadd.f32 %v8452, %v8453
    %8455 = vadd.xlane.f32.xlu0 %v8454
    %v8456 = vpop.xlane.xlu0 %8455
    %v8457 = vrot.slane %v8456, 4
    %v8458 = vadd.f32 %v8456, %v8457
    %v8459 = vrot.slane %v8458, 2
    %v8460 = vadd.f32 %v8458, %v8459
    %v8461 = vrot.slane %v8460, 1
    %v8462 = vadd.f32 %v8460, %v8461
    %s8463 = vtos %v8462
    %vm8464 = vcmp.eq.s32.totalorder %v8207, 8
    %v8465 = vstv %s8463
    %v8466 = vsel %vm8464, %v8465, 0.0
    %v8467 = vadd.f32 %v8438, %v8466
    %s8468 = scalar_lea.vmem [#allocation13], 288
    %v8469 = vld [vmem:[%s8468] sm:$0xff]
    %v8470 = vld [vmem:[%s8468 + $0x8] sm:$0xff]
    %v8471 = vld [vmem:[%s8468 + $0x10] sm:$0xff]
    %v8472 = vld [vmem:[%s8468 + $0x18] sm:$0xf]
    %v8473 = vmul.f32 %v8189, %v8469
    %v8474 = vmul.f32 %v8190, %v8470
    %v8475 = vmul.f32 %v8191, %v8471
    %v8476 = vmul.f32 %v8192, %v8472
    %v8477 = vsel %vm1639, %v8473, 0.0
    %v8478 = vsel %vm1639, %v8474, 0.0
    %v8479 = vadd.f32 %v8477, %v8478
    %v8480 = vsel %vm1639, %v8475, 0.0
    %v8481 = vadd.f32 %v8479, %v8480
    %v8482 = vsel %vm1643, %v8476, 0.0
    %v8483 = vadd.f32 %v8481, %v8482
    %8484 = vadd.xlane.f32.xlu0 %v8483
    %v8485 = vpop.xlane.xlu0 %8484
    %v8486 = vrot.slane %v8485, 4
    %v8487 = vadd.f32 %v8485, %v8486
    %v8488 = vrot.slane %v8487, 2
    %v8489 = vadd.f32 %v8487, %v8488
    %v8490 = vrot.slane %v8489, 1
    %v8491 = vadd.f32 %v8489, %v8490
    %s8492 = vtos %v8491
    %vm8493 = vcmp.eq.s32.totalorder %v8207, 9
    %v8494 = vstv %s8492
    %v8495 = vsel %vm8493, %v8494, 0.0
    %v8496 = vadd.f32 %v8467, %v8495
    %v8497 = vmul.f32 %v8201, %v8208
    %v8498 = vmul.f32 %v8202, %v8209
    %v8499 = vmul.f32 %v8203, %v8210
    %v8500 = vmul.f32 %v8204, %v8211
    %v8501 = vsel %vm1639, %v8497, 0.0
    %v8502 = vsel %vm1639, %v8498, 0.0
    %v8503 = vadd.f32 %v8501, %v8502
    %v8504 = vsel %vm1639, %v8499, 0.0
    %v8505 = vadd.f32 %v8503, %v8504
    %v8506 = vsel %vm1643, %v8500, 0.0
    %v8507 = vadd.f32 %v8505, %v8506
    %8508 = vadd.xlane.f32.xlu0 %v8507
    %v8509 = vpop.xlane.xlu0 %8508
    %v8510 = vrot.slane %v8509, 4
    %v8511 = vadd.f32 %v8509, %v8510
    %v8512 = vrot.slane %v8511, 2
    %v8513 = vadd.f32 %v8511, %v8512
    %v8514 = vrot.slane %v8513, 1
    %v8515 = vadd.f32 %v8513, %v8514
    %s8516 = vtos %v8515
    %v8517 = vstv %s8516
    %v8518 = vsel %vm8232, %v8517, 0.0
    %v8519 = vadd.f32 %v8205, %v8518
    %v8520 = vmul.f32 %v8201, %v8237
    %v8521 = vmul.f32 %v8202, %v8238
    %v8522 = vmul.f32 %v8203, %v8239
    %v8523 = vmul.f32 %v8204, %v8240
    %v8524 = vsel %vm1639, %v8520, 0.0
    %v8525 = vsel %vm1639, %v8521, 0.0
    %v8526 = vadd.f32 %v8524, %v8525
    %v8527 = vsel %vm1639, %v8522, 0.0
    %v8528 = vadd.f32 %v8526, %v8527
    %v8529 = vsel %vm1643, %v8523, 0.0
    %v8530 = vadd.f32 %v8528, %v8529
    %8531 = vadd.xlane.f32.xlu0 %v8530
    %v8532 = vpop.xlane.xlu0 %8531
    %v8533 = vrot.slane %v8532, 4
    %v8534 = vadd.f32 %v8532, %v8533
    %v8535 = vrot.slane %v8534, 2
    %v8536 = vadd.f32 %v8534, %v8535
    %v8537 = vrot.slane %v8536, 1
    %v8538 = vadd.f32 %v8536, %v8537
    %s8539 = vtos %v8538
    %v8540 = vstv %s8539
    %v8541 = vsel %vm8261, %v8540, 0.0
    %v8542 = vadd.f32 %v8519, %v8541
    %v8543 = vmul.f32 %v8201, %v8266
    %v8544 = vmul.f32 %v8202, %v8267
    %v8545 = vmul.f32 %v8203, %v8268
    %v8546 = vmul.f32 %v8204, %v8269
    %v8547 = vsel %vm1639, %v8543, 0.0
    %v8548 = vsel %vm1639, %v8544, 0.0
    %v8549 = vadd.f32 %v8547, %v8548
    %v8550 = vsel %vm1639, %v8545, 0.0
    %v8551 = vadd.f32 %v8549, %v8550
    %v8552 = vsel %vm1643, %v8546, 0.0
    %v8553 = vadd.f32 %v8551, %v8552
    %8554 = vadd.xlane.f32.xlu0 %v8553
    %v8555 = vpop.xlane.xlu0 %8554
    %v8556 = vrot.slane %v8555, 4
    %v8557 = vadd.f32 %v8555, %v8556
    %v8558 = vrot.slane %v8557, 2
    %v8559 = vadd.f32 %v8557, %v8558
    %v8560 = vrot.slane %v8559, 1
    %v8561 = vadd.f32 %v8559, %v8560
    %s8562 = vtos %v8561
    %v8563 = vstv %s8562
    %v8564 = vsel %vm8290, %v8563, 0.0
    %v8565 = vadd.f32 %v8542, %v8564
    %v8566 = vmul.f32 %v8201, %v8295
    %v8567 = vmul.f32 %v8202, %v8296
    %v8568 = vmul.f32 %v8203, %v8297
    %v8569 = vmul.f32 %v8204, %v8298
    %v8570 = vsel %vm1639, %v8566, 0.0
    %v8571 = vsel %vm1639, %v8567, 0.0
    %v8572 = vadd.f32 %v8570, %v8571
    %v8573 = vsel %vm1639, %v8568, 0.0
    %v8574 = vadd.f32 %v8572, %v8573
    %v8575 = vsel %vm1643, %v8569, 0.0
    %v8576 = vadd.f32 %v8574, %v8575
    %8577 = vadd.xlane.f32.xlu0 %v8576
    %v8578 = vpop.xlane.xlu0 %8577
    %v8579 = vrot.slane %v8578, 4
    %v8580 = vadd.f32 %v8578, %v8579
    %v8581 = vrot.slane %v8580, 2
    %v8582 = vadd.f32 %v8580, %v8581
    %v8583 = vrot.slane %v8582, 1
    %v8584 = vadd.f32 %v8582, %v8583
    %s8585 = vtos %v8584
    %v8586 = vstv %s8585
    %v8587 = vsel %vm8319, %v8586, 0.0
    %v8588 = vadd.f32 %v8565, %v8587
    %v8589 = vmul.f32 %v8201, %v8324
    %v8590 = vmul.f32 %v8202, %v8325
    %v8591 = vmul.f32 %v8203, %v8326
    %v8592 = vmul.f32 %v8204, %v8327
    %v8593 = vsel %vm1639, %v8589, 0.0
    %v8594 = vsel %vm1639, %v8590, 0.0
    %v8595 = vadd.f32 %v8593, %v8594
    %v8596 = vsel %vm1639, %v8591, 0.0
    %v8597 = vadd.f32 %v8595, %v8596
    %v8598 = vsel %vm1643, %v8592, 0.0
    %v8599 = vadd.f32 %v8597, %v8598
    %8600 = vadd.xlane.f32.xlu0 %v8599
    %v8601 = vpop.xlane.xlu0 %8600
    %v8602 = vrot.slane %v8601, 4
    %v8603 = vadd.f32 %v8601, %v8602
    %v8604 = vrot.slane %v8603, 2
    %v8605 = vadd.f32 %v8603, %v8604
    %v8606 = vrot.slane %v8605, 1
    %v8607 = vadd.f32 %v8605, %v8606
    %s8608 = vtos %v8607
    %v8609 = vstv %s8608
    %v8610 = vsel %vm8348, %v8609, 0.0
    %v8611 = vadd.f32 %v8588, %v8610
    %v8612 = vmul.f32 %v8201, %v8353
    %v8613 = vmul.f32 %v8202, %v8354
    %v8614 = vmul.f32 %v8203, %v8355
    %v8615 = vmul.f32 %v8204, %v8356
    %v8616 = vsel %vm1639, %v8612, 0.0
    %v8617 = vsel %vm1639, %v8613, 0.0
    %v8618 = vadd.f32 %v8616, %v8617
    %v8619 = vsel %vm1639, %v8614, 0.0
    %v8620 = vadd.f32 %v8618, %v8619
    %v8621 = vsel %vm1643, %v8615, 0.0
    %v8622 = vadd.f32 %v8620, %v8621
    %8623 = vadd.xlane.f32.xlu0 %v8622
    %v8624 = vpop.xlane.xlu0 %8623
    %v8625 = vrot.slane %v8624, 4
    %v8626 = vadd.f32 %v8624, %v8625
    %v8627 = vrot.slane %v8626, 2
    %v8628 = vadd.f32 %v8626, %v8627
    %v8629 = vrot.slane %v8628, 1
    %v8630 = vadd.f32 %v8628, %v8629
    %s8631 = vtos %v8630
    %v8632 = vstv %s8631
    %v8633 = vsel %vm8377, %v8632, 0.0
    %v8634 = vadd.f32 %v8611, %v8633
    %v8635 = vmul.f32 %v8201, %v8382
    %v8636 = vmul.f32 %v8202, %v8383
    %v8637 = vmul.f32 %v8203, %v8384
    %v8638 = vmul.f32 %v8204, %v8385
    %v8639 = vsel %vm1639, %v8635, 0.0
    %v8640 = vsel %vm1639, %v8636, 0.0
    %v8641 = vadd.f32 %v8639, %v8640
    %v8642 = vsel %vm1639, %v8637, 0.0
    %v8643 = vadd.f32 %v8641, %v8642
    %v8644 = vsel %vm1643, %v8638, 0.0
    %v8645 = vadd.f32 %v8643, %v8644
    %8646 = vadd.xlane.f32.xlu0 %v8645
    %v8647 = vpop.xlane.xlu0 %8646
    %v8648 = vrot.slane %v8647, 4
    %v8649 = vadd.f32 %v8647, %v8648
    %v8650 = vrot.slane %v8649, 2
    %v8651 = vadd.f32 %v8649, %v8650
    %v8652 = vrot.slane %v8651, 1
    %v8653 = vadd.f32 %v8651, %v8652
    %s8654 = vtos %v8653
    %v8655 = vstv %s8654
    %v8656 = vsel %vm8406, %v8655, 0.0
    %v8657 = vadd.f32 %v8634, %v8656
    %v8658 = vmul.f32 %v8201, %v8411
    %v8659 = vmul.f32 %v8202, %v8412
    %v8660 = vmul.f32 %v8203, %v8413
    %v8661 = vmul.f32 %v8204, %v8414
    %v8662 = vsel %vm1639, %v8658, 0.0
    %v8663 = vsel %vm1639, %v8659, 0.0
    %v8664 = vadd.f32 %v8662, %v8663
    %v8665 = vsel %vm1639, %v8660, 0.0
    %v8666 = vadd.f32 %v8664, %v8665
    %v8667 = vsel %vm1643, %v8661, 0.0
    %v8668 = vadd.f32 %v8666, %v8667
    %8669 = vadd.xlane.f32.xlu0 %v8668
    %v8670 = vpop.xlane.xlu0 %8669
    %v8671 = vrot.slane %v8670, 4
    %v8672 = vadd.f32 %v8670, %v8671
    %v8673 = vrot.slane %v8672, 2
    %v8674 = vadd.f32 %v8672, %v8673
    %v8675 = vrot.slane %v8674, 1
    %v8676 = vadd.f32 %v8674, %v8675
    %s8677 = vtos %v8676
    %v8678 = vstv %s8677
    %v8679 = vsel %vm8435, %v8678, 0.0
    %v8680 = vadd.f32 %v8657, %v8679
    %v8681 = vmul.f32 %v8201, %v8440
    %v8682 = vmul.f32 %v8202, %v8441
    %v8683 = vmul.f32 %v8203, %v8442
    %v8684 = vmul.f32 %v8204, %v8443
    %v8685 = vsel %vm1639, %v8681, 0.0
    %v8686 = vsel %vm1639, %v8682, 0.0
    %v8687 = vadd.f32 %v8685, %v8686
    %v8688 = vsel %vm1639, %v8683, 0.0
    %v8689 = vadd.f32 %v8687, %v8688
    %v8690 = vsel %vm1643, %v8684, 0.0
    %v8691 = vadd.f32 %v8689, %v8690
    %8692 = vadd.xlane.f32.xlu0 %v8691
    %v8693 = vpop.xlane.xlu0 %8692
    %v8694 = vrot.slane %v8693, 4
    %v8695 = vadd.f32 %v8693, %v8694
    %v8696 = vrot.slane %v8695, 2
    %v8697 = vadd.f32 %v8695, %v8696
    %v8698 = vrot.slane %v8697, 1
    %v8699 = vadd.f32 %v8697, %v8698
    %s8700 = vtos %v8699
    %v8701 = vstv %s8700
    %v8702 = vsel %vm8464, %v8701, 0.0
    %v8703 = vadd.f32 %v8680, %v8702
    %v8704 = vmul.f32 %v8201, %v8469
    %v8705 = vmul.f32 %v8202, %v8470
    %v8706 = vmul.f32 %v8203, %v8471
    %v8707 = vmul.f32 %v8204, %v8472
    %v8708 = vsel %vm1639, %v8704, 0.0
    %v8709 = vsel %vm1639, %v8705, 0.0
    %v8710 = vadd.f32 %v8708, %v8709
    %v8711 = vsel %vm1639, %v8706, 0.0
    %v8712 = vadd.f32 %v8710, %v8711
    %v8713 = vsel %vm1643, %v8707, 0.0
    %v8714 = vadd.f32 %v8712, %v8713
    %8715 = vadd.xlane.f32.xlu0 %v8714
    %v8716 = vpop.xlane.xlu0 %8715
    %v8717 = vrot.slane %v8716, 4
    %v8718 = vadd.f32 %v8716, %v8717
    %v8719 = vrot.slane %v8718, 2
    %v8720 = vadd.f32 %v8718, %v8719
    %v8721 = vrot.slane %v8720, 1
    %v8722 = vadd.f32 %v8720, %v8721
    %s8723 = vtos %v8722
    %v8724 = vstv %s8723
    %v8725 = vsel %vm8493, %v8724, 0.0
    %v8726 = vadd.f32 %v8703, %v8725
    %v8728 = vlaneseq
    %v8729 = vshrl.u32 %v8728, 7
    %v8730 = vsub.s32 0, %v8729
    %v8731 = vrot.slane %v8726, %v8730
    %v8733 = vsel %vm129, %v8496, %v8731
    %vm8734 = vcmask 74752
    %8735 = vst.msk [vmem:[#allocation14] sm:$0x3] %vm8734, %v8733
    // Predicated region
    $region62: #{tpu_custom_call.1} parent=1 // pred_check
      _
    $region63: #{tpu_custom_call.1} parent=1 // pred_check_branch
      %8737 = sbr.rel (0) target = $region65
    $region64: #{tpu_custom_call.1} parent=1 // pred_region
      %s8739 = ssub.s32 32, 32
      %8740 = vsyncadd [#allocation5], %s8739
      %s8742 = sshll.u32 [#allocation14], 4
      %s8743 = int_to_ptr.vmem [resolvable:$true] %s8742
      %8745 = dma.vmem_to_hbm [thread:$0]  %s8743, 32, %s9, [#allocation5]
    $region65: #{tpu_custom_call.1} parent=1 // pred_fallthru
      _
    // Predicated region
    $region66: #{tpu_custom_call.1} parent=1 // pred_check
      _
    $region67: #{tpu_custom_call.1} parent=1 // pred_check_branch
      %8747 = sbr.rel (0) target = $region69
    $region68: #{tpu_custom_call.1} parent=1 // pred_region
      %8748 = dma.done [#allocation5], 32
    $region69: #{tpu_custom_call.1} parent=1 // pred_fallthru
      _
    %8749 = vsyncpa [#allocation4], 1
    %8750 = vsyncpa [#allocation5], 1
    %8751 = vsyncpa [#allocation6], 1
    %8752 = vsyncpa [#allocation8], 1
    %8753 = vsyncpa [#allocation11], 1

</llo_original>
